<compile_context>
chip_gen: v7x
topology: tpu7x:2x2x1
jax: 0.10.0
libtpu: 0.0.40
codegen_flags: <defaults>
</compile_context>

<pallas_src>
import functools

import jax
import jax.numpy as jnp
from jax.experimental import pallas as pl
from jax.experimental.pallas import tpu as pltpu

VMEM = pltpu.MemorySpace.VMEM

# MXU operand dtype.  f32 keeps numerics tight at this tiny size; set to
# jnp.bfloat16 on v6e/v7x for large-batch throughput (epilogue stays f32).
MXU_DTYPE = jnp.float32


# --------------------------------------------------------------------------
# In-kernel helpers
# --------------------------------------------------------------------------
def _softmax_last(x):
    """Stable softmax over the last axis; returns (softmax, max, sum_exp)."""
    m = jnp.max(x, axis=-1, keepdims=True)
    e = jnp.exp(x - m)
    s = jnp.sum(e, axis=-1, keepdims=True)
    return e * pl.reciprocal(s, approx=True), m, s


def _sigmoid(y):
    """Numerically stable sigmoid; exp + approx reciprocal both go to the EUP."""
    e = jnp.exp(-jnp.abs(y))
    r = pl.reciprocal(1.0 + e, approx=True)
    return jnp.where(y >= 0, r, e * r)


def _sparsemax(z):
    """Sort-free sparsemax (Martins & Astudillo) over the last axis (O(L^2))."""
    zi = z[:, :, None]                               # (B, L, 1)
    zj = z[:, None, :]                               # (B, 1, L)
    ge = (zj >= zi).astype(jnp.float32)              # (B, L, L)
    rank = jnp.sum(ge, axis=-1)                      # descending rank (1-based)
    csum = jnp.sum(ge * zj, axis=-1)                 # cumulative sum at that rank
    support = (1.0 + rank * z > csum).astype(jnp.float32)
    k = jnp.sum(support, axis=-1, keepdims=True)
    tot = jnp.sum(support * z, axis=-1, keepdims=True)
    tau = (tot - 1.0) / k
    return jnp.maximum(z - tau, 0.0)


# --------------------------------------------------------------------------
# Kernel 1: phase-batched lane-dense GEMM + bias + activation
#   o[ph] = act(W[ph] (Cout,K) @ P[ph] (K,M) + b)     with M = B*OH*OW minor.
# Forward convs use n_phase=1; conv-transposes use n_phase=stride^2.
# --------------------------------------------------------------------------
def _phase_matmul_kernel(p_ref, w_ref, b_ref, o_ref, *, n_phase, act):
    bias = b_ref[...]                                # (Cout, 1)
    for ph in range(n_phase):                        # static unroll (<= 4)
        y = jnp.dot(w_ref[ph].astype(MXU_DTYPE), p_ref[ph].astype(MXU_DTYPE),
                    preferred_element_type=jnp.float32)
        y = y + bias
        if act == "relu":
            y = jnp.maximum(y, 0.0)
        elif act == "sigmoid":
            y = _sigmoid(y)
        o_ref[ph] = y.astype(o_ref.dtype)


def phase_matmul(patches, wstack, bias, act):
    P, K, M = patches.shape
    Cout = wstack.shape[1]
    return pl.pallas_call(
        functools.partial(_phase_matmul_kernel, n_phase=P, act=act),
        out_shape=jax.ShapeDtypeStruct((P, Cout, M), jnp.float32),
        in_specs=[pl.BlockSpec(memory_space=VMEM)] * 3,
        out_specs=pl.BlockSpec(memory_space=VMEM),
    )(patches.astype(jnp.float32), wstack.astype(jnp.float32),
      bias.reshape(Cout, 1).astype(jnp.float32))


# --------------------------------------------------------------------------
# Kernel 2: fused latent path
#   lin_q -> softmax_q, lin_p -> softmax_p + sparsemax_p,
#   Gumbel-Softmax sample_q, decoder L1   -- one launch, everything in VMEM.
# --------------------------------------------------------------------------
def _latent_kernel(fx_ref, wq_ref, bq_ref, c_ref, wp_ref, bp_ref, g_ref, w1_ref, b1_ref,
                   aq_ref, ap_ref, apm_ref, z_ref, d_ref, *, temperature):
    # linear_latent_q + softmax_q
    aq_lin = (jnp.dot(fx_ref[...].astype(MXU_DTYPE), wq_ref[...].astype(MXU_DTYPE),
                      preferred_element_type=jnp.float32) + bq_ref[...])
    alpha_q, mq, sq = _softmax_last(aq_lin)
    aq_ref[...] = alpha_q

    # linear_latent_p + softmax_p + sparsemax_p (MLP_p is empty for conditional=False)
    ap_lin = (jnp.dot(c_ref[...], wp_ref[...], preferred_element_type=jnp.float32)
              + bp_ref[...])
    alpha_p, _, _ = _softmax_last(ap_lin)
    ap_ref[...] = alpha_p
    apm_ref[...] = _sparsemax(ap_lin)

    # TODO(synk): sample_q is defined outside the provided source; implemented as the
    # standard Gumbel-Softmax (RelaxedOneHotCategorical rsample) at this temperature.
    log_aq = (aq_lin - mq) - jnp.log(sq)             # log_softmax == log(alpha_q)
    y = (log_aq + g_ref[...]) / temperature
    z, _, _ = _softmax_last(y)
    z_ref[...] = z

    # decoder L1 (fused): lane-dense (B, 2048) output
    d_ref[...] = (jnp.dot(z.astype(MXU_DTYPE), w1_ref[...].astype(MXU_DTYPE),
                          preferred_element_type=jnp.float32) + b1_ref[...])


def latent_path(full_x, c_feat, gumbel, params, temperature):
    B = full_x.shape[0]
    L = params["lin_q_b"].shape[0]
    D1 = params["dec_l1_b"].shape[0]
    f32 = jnp.float32
    return pl.pallas_call(
        functools.partial(_latent_kernel, temperature=float(temperature)),
        out_shape=(
            jax.ShapeDtypeStruct((B, L), f32),    # alpha_q
            jax.ShapeDtypeStruct((B, L), f32),    # alpha_p
            jax.ShapeDtypeStruct((B, L), f32),    # alpha_p_max
            jax.ShapeDtypeStruct((B, L), f32),    # z
            jax.ShapeDtypeStruct((B, D1), f32),   # decoder L1 output
        ),
        in_specs=[pl.BlockSpec(memory_space=VMEM)] * 9,
        out_specs=(pl.BlockSpec(memory_space=VMEM),) * 5,
    )(full_x.astype(f32),
      params["lin_q_w"].T.astype(f32), params["lin_q_b"].reshape(1, L).astype(f32),
      c_feat.astype(f32),
      params["lin_p_w"].T.astype(f32), params["lin_p_b"].reshape(1, L).astype(f32),
      gumbel.astype(f32),
      params["dec_l1_w"].T.astype(f32), params["dec_l1_b"].reshape(1, D1).astype(f32))


# --------------------------------------------------------------------------
# Glue: lane-dense patch building (channels-first activations everywhere)
# --------------------------------------------------------------------------
def _pad_rows_to_multiple(mat, mult):
    r = mat.shape[0] % mult
    if r:
        mat = jnp.pad(mat, ((0, mult - r), (0, 0)))
    return mat


def conv2d_cf(x_cf, w, b, stride, padding, act):
    """Conv2d on channels-first activation (Cin, B, H, W) -> (Cout, B, OH, OW)."""
    Cout, Cin, kh, kw = w.shape
    _, B, H, W = x_cf.shape
    if padding:
        x_cf = jnp.pad(x_cf, ((0, 0), (0, 0), (padding, padding), (padding, padding)))
    Hp, Wp = H + 2 * padding, W + 2 * padding
    OH = (Hp - kh) // stride + 1
    OW = (Wp - kw) // stride + 1
    taps = []
    for di in range(kh):
        for dj in range(kw):
            taps.append(x_cf[:, :, di:di + stride * (OH - 1) + 1:stride,
                                   dj:dj + stride * (OW - 1) + 1:stride])
    # (K, M): K ordered (Cin, kh, kw) to match w.reshape, M ordered (b, oh, ow)
    patches = jnp.stack(taps, axis=1).reshape(Cin * kh * kw, B * OH * OW)
    wmat = w.reshape(Cout, Cin * kh * kw)
    # pad K (sublane axis of the GEMM RHS) up to a multiple of 8 (conv1: 36 -> 40)
    patches = _pad_rows_to_multiple(patches, 8)
    if wmat.shape[1] != patches.shape[0]:
        wmat = jnp.pad(wmat, ((0, 0), (0, patches.shape[0] - wmat.shape[1])))
    y = phase_matmul(patches[None], wmat[None], b, act)        # (1, Cout, M)
    return y[0].reshape(Cout, B, OH, OW)


def conv_transpose2d_cf(x_cf, w, b, stride, padding, act):
    """ConvTranspose2d on channels-first activation, sub-pixel (phase) formulation.

    Each of the stride^2 output phases is a stride-1 convolution of the un-dilated
    (lightly padded) input with a (k/stride)^2 sub-kernel; no zero-dilation, no
    structural-zero MACs.  All phases run in one pallas_call.
    """
    Cin, Cout, kh, kw = w.shape
    _, B, H, W = x_cf.shape
    s, p = stride, padding
    OHt = (H - 1) * s + kh - 2 * p
    OWt = (W - 1) * s + kw - 2 * p
    assert kh % s == 0 and kw % s == 0 and OHt % s == 0 and OWt % s == 0
    Qh, Qw = OHt // s, OWt // s

    def taps_for_phase(r, k):
        us = [u for u in range(k) if (u % s) == ((r + p) % s)]
        return us, [(r + p - u) // s for u in us]

    offs_h = [o for r in range(s) for o in taps_for_phase(r, kh)[1]]
    offs_w = [o for r in range(s) for o in taps_for_phase(r, kw)[1]]
    plo_h = max(0, -min(offs_h)); phi_h = max(0, (Qh - 1) + max(offs_h) - (H - 1))
    plo_w = max(0, -min(offs_w)); phi_w = max(0, (Qw - 1) + max(offs_w) - (W - 1))
    xp = jnp.pad(x_cf, ((0, 0), (0, 0), (plo_h, phi_h), (plo_w, phi_w)))

    patch_list, w_list = [], []
    for rh in range(s):
        us_h, of_h = taps_for_phase(rh, kh)
        for rw in range(s):
            us_w, of_w = taps_for_phase(rw, kw)
            taps = []
            for oh in of_h:
                for ow in of_w:
                    sh, sw = oh + plo_h, ow + plo_w
                    taps.append(xp[:, :, sh:sh + Qh, sw:sw + Qw])     # (Cin, B, Qh, Qw)
            T = len(taps)
            patch_list.append(jnp.stack(taps, axis=1).reshape(Cin * T, B * Qh * Qw))
            # Wsub[co, ci*T + t] = W[ci, co, u_t, v_t]  (same (u, v) order as taps)
            wsub = jnp.take(jnp.take(w, jnp.array(us_h), axis=2), jnp.array(us_w), axis=3)
            w_list.append(jnp.transpose(wsub, (1, 0, 2, 3)).reshape(Cout, Cin * T))

    patches = jnp.stack(patch_list, axis=0)                           # (s*s, K_ph, M_ph)
    wstack = jnp.stack(w_list, axis=0)                                # (s*s, Cout, K_ph)
    y = phase_matmul(patches, wstack, b, act)                         # (s*s, Cout, M_ph)
    y = y.reshape(s, s, Cout, B, Qh, Qw)
    return jnp.transpose(y, (2, 3, 4, 0, 5, 1)).reshape(Cout, B, OHt, OWt)


# --------------------------------------------------------------------------
# Parameters (deterministic synthetic init; PyTorch weight layouts)
# --------------------------------------------------------------------------
def init_params(key, latent_size, p_in):
    def nrm(k, shape, scale=0.15):
        return scale * jax.random.normal(k, shape, dtype=jnp.float32)

    ks = jax.random.split(key, 18)
    return {
        # Encoder MLP_q
        "enc_c1_w": nrm(ks[0], (32, 1, 6, 6)),   "enc_c1_b": nrm(ks[1], (32,)),
        "enc_c2_w": nrm(ks[2], (64, 32, 4, 4)),  "enc_c2_b": nrm(ks[3], (64,)),
        "enc_c3_w": nrm(ks[4], (128, 64, 2, 2)), "enc_c3_b": nrm(ks[5], (128,)),
        "lin_q_w": nrm(ks[6], (latent_size, 128 * 4 * 4)), "lin_q_b": nrm(ks[7], (latent_size,)),
        "lin_p_w": nrm(ks[8], (latent_size, p_in)),        "lin_p_b": nrm(ks[9], (latent_size,)),
        # Decoder
        "dec_l1_w": nrm(ks[10], (4 * 4 * 128, latent_size)), "dec_l1_b": nrm(ks[11], (4 * 4 * 128,)),
        "dec_c1_w": nrm(ks[12], (128, 64, 2, 2)), "dec_c1_b": nrm(ks[13], (64,)),
        "dec_c2_w": nrm(ks[14], (64, 32, 4, 4)),  "dec_c2_b": nrm(ks[15], (32,)),
        "dec_c3_w": nrm(ks[16], (32, 1, 6, 6)),   "dec_c3_b": nrm(ks[17], (1,)),
    }


# --------------------------------------------------------------------------
# VAE forward (conditional=False, num_labels=0 path; train=True)
# --------------------------------------------------------------------------
def vae_forward(params, x, c, gumbel_noise, temperature=0.67):
    B = x.shape[0]
    x_cf = jnp.transpose(x, (1, 0, 2, 3))                       # (1, B, 28, 28)

    # Encoder MLP_q: Conv(1->32,k6,s2) -> Conv(32->64,k4,s2,p1) -> Conv(64->128,k2,s2,p1)
    h = conv2d_cf(x_cf, params["enc_c1_w"], params["enc_c1_b"], 2, 0, "relu")   # (32,B,12,12)
    h = conv2d_cf(h, params["enc_c2_w"], params["enc_c2_b"], 2, 1, "relu")      # (64,B,6,6)
    h = conv2d_cf(h, params["enc_c3_w"], params["enc_c3_b"], 2, 1, "relu")      # (128,B,4,4)
    full_x = jnp.transpose(h, (1, 0, 2, 3)).reshape(B, 128 * 4 * 4)             # View((-1, 2048))

    # Fused latent path (one pallas_call): lin_q->softmax, lin_p->softmax/sparsemax,
    # Gumbel-Softmax sample_q, decoder L1.
    features = c                                                # MLP_p empty (conditional=False)
    alpha_q, alpha_p, alpha_p_max, z, d = latent_path(full_x, features, gumbel_noise,
                                                      params, temperature)

    # Decoder: View(-1,128,4,4) -> CT(128->64,k2,s2,p1) -> CT(64->32,k4,s2,p1)
    #          -> CT(32->1,k6,s2,p0) -> sigmoid
    d_cf = jnp.transpose(d.reshape(B, 128, 4, 4), (1, 0, 2, 3))                 # (128,B,4,4)
    d1 = conv_transpose2d_cf(d_cf, params["dec_c1_w"], params["dec_c1_b"], 2, 1, "relu")
    d2 = conv_transpose2d_cf(d1, params["dec_c2_w"], params["dec_c2_b"], 2, 1, "relu")
    r_cf = conv_transpose2d_cf(d2, params["dec_c3_w"], params["dec_c3_b"], 2, 0, "sigmoid")
    recon_x = jnp.transpose(r_cf, (1, 0, 2, 3))                                 # (B,1,28,28)

    return (recon_x, alpha_q, alpha_p, alpha_p_max,
            {"weight": params["lin_q_w"], "bias": params["lin_q_b"]},
            {"weight": params["lin_p_w"], "bias": params["lin_p_b"]},
            z, features)


# --------------------------------------------------------------------------
# Pure-XLA reference of the same forward pass (for a numerical sanity check)
# --------------------------------------------------------------------------
def _conv2d_ref(x, w, b, stride, padding):
    y = jax.lax.conv_general_dilated(
        x, w, (stride, stride), [(padding, padding), (padding, padding)],
        dimension_numbers=("NCHW", "OIHW", "NCHW"),
        precision=jax.lax.Precision.HIGHEST)
    return y + b.reshape(1, -1, 1, 1)


def _conv_transpose2d_ref(x, w, b, stride, padding):
    _, _, kh, kw = w.shape
    wf = jnp.flip(w, (2, 3)).transpose(1, 0, 2, 3)               # (Cout, Cin, kh, kw)
    y = jax.lax.conv_general_dilated(
        x, wf, (1, 1), [(kh - 1 - padding,) * 2, (kw - 1 - padding,) * 2],
        lhs_dilation=(stride, stride),
        dimension_numbers=("NCHW", "OIHW", "NCHW"),
        precision=jax.lax.Precision.HIGHEST)
    return y + b.reshape(1, -1, 1, 1)


def _sparsemax_ref(z):
    zs = -jnp.sort(-z, axis=-1)
    kk = jnp.arange(1, z.shape[-1] + 1, dtype=z.dtype)
    zc = jnp.cumsum(zs, axis=-1)
    support = 1.0 + kk * zs > zc
    k = jnp.sum(support.astype(z.dtype), axis=-1, keepdims=True)
    tot = jnp.sum(jnp.where(support, zs, 0.0), axis=-1, keepdims=True)
    tau = (tot - 1.0) / k
    return jnp.maximum(z - tau, 0.0)


def vae_forward_ref(params, x, c, gumbel, temperature=0.67):
    B = x.shape[0]
    h = jax.nn.relu(_conv2d_ref(x, params["enc_c1_w"], params["enc_c1_b"], 2, 0))
    h = jax.nn.relu(_conv2d_ref(h, params["enc_c2_w"], params["enc_c2_b"], 2, 1))
    h = jax.nn.relu(_conv2d_ref(h, params["enc_c3_w"], params["enc_c3_b"], 2, 1))
    full_x = h.reshape(B, 128 * 4 * 4)
    aq_lin = full_x @ params["lin_q_w"].T + params["lin_q_b"]
    alpha_q = jax.nn.softmax(aq_lin, axis=-1)
    ap_lin = c @ params["lin_p_w"].T + params["lin_p_b"]
    alpha_p = jax.nn.softmax(ap_lin, axis=-1)
    alpha_p_max = _sparsemax_ref(ap_lin)
    z = jax.nn.softmax((jax.nn.log_softmax(aq_lin, axis=-1) + gumbel) / temperature, axis=-1)
    d = (z @ params["dec_l1_w"].T + params["dec_l1_b"]).reshape(B, 128, 4, 4)
    d = jax.nn.relu(_conv_transpose2d_ref(d, params["dec_c1_w"], params["dec_c1_b"], 2, 1))
    d = jax.nn.relu(_conv_transpose2d_ref(d, params["dec_c2_w"], params["dec_c2_b"], 2, 1))
    recon = jax.nn.sigmoid(_conv_transpose2d_ref(d, params["dec_c3_w"], params["dec_c3_b"], 2, 0))
    return recon, alpha_q, alpha_p, alpha_p_max, z


# --------------------------------------------------------------------------
if __name__ == "__main__":
    key = jax.random.PRNGKey(0)
    k_param, k_x, k_c, k_g = jax.random.split(key, 4)

    latent_size = 16
    p_in = 10            # layer_sizes_p[-1]
    B = 2                # spatial must be 28x28 (hard-coded 128*4*4 flatten)

    params = init_params(k_param, latent_size, p_in)
    x = jax.random.uniform(k_x, (B, 1, 28, 28), dtype=jnp.float32)
    c = jax.random.normal(k_c, (B, p_in), dtype=jnp.float32)
    u = jax.random.uniform(k_g, (B, latent_size), minval=1e-6, maxval=1.0 - 1e-6)
    gumbel = -jnp.log(-jnp.log(u))

    fwd = jax.jit(functools.partial(vae_forward, temperature=0.67))
    outs = jax.block_until_ready(fwd(params, x, c, gumbel))
    recon_x, alpha_q, alpha_p, alpha_p_max, lin_q, lin_p, z, feats = outs

    assert recon_x.shape == (B, 1, 28, 28)
    assert alpha_q.shape == (B, latent_size)
    assert alpha_p.shape == (B, latent_size)
    assert alpha_p_max.shape == (B, latent_size)
    assert z.shape == (B, latent_size)
    assert feats.shape == (B, p_in)

    # Sanity check against a pure-XLA reference of the same forward pass
    # (loose tolerance: approx reciprocals + f32-vs-conv accumulation order).
    ref = vae_forward_ref(params, x, c, gumbel, 0.67)
    for name, got, want in [("recon_x", recon_x, ref[0]), ("alpha_q", alpha_q, ref[1]),
                            ("alpha_p", alpha_p, ref[2]), ("alpha_p_max", alpha_p_max, ref[3]),
                            ("z", z, ref[4])]:
        err = float(jnp.max(jnp.abs(got - want)))
        assert err < 2e-2, f"{name} mismatch vs reference: max abs diff {err}"

    print("KERNEL_OK")
</pallas_src>

<mosaic_0001>
module attributes {stable_mosaic.version = 11 : i64} {
  func.func @_phase_matmul_kernel(%arg0: memref<1x40x288xf32, #tpu.memory_space<vmem>>, %arg1: memref<1x32x40xf32, #tpu.memory_space<vmem>>, %arg2: memref<32x1xf32, #tpu.memory_space<vmem>>, %arg3: memref<1x32x288xf32, #tpu.memory_space<vmem>>) attributes {dimension_semantics = [], scalar_prefetch = 0 : i64, scratch_operands = 0 : i64, tpu.core_type = #tpu.core_type<tc>} {
    %c0 = arith.constant 0 : index
    %c0_0 = arith.constant 0 : index
    %0 = vector.load %arg2[%c0, %c0_0] : memref<32x1xf32, #tpu.memory_space<vmem>>, vector<32x1xf32>
    %c0_1 = arith.constant 0 : index
    %c0_2 = arith.constant 0 : index
    %c0_3 = arith.constant 0 : index
    %1 = vector.load %arg1[%c0_1, %c0_2, %c0_3] : memref<1x32x40xf32, #tpu.memory_space<vmem>>, vector<1x32x40xf32>
    %2 = vector.shape_cast %1 : vector<1x32x40xf32> to vector<32x40xf32>
    %c0_4 = arith.constant 0 : index
    %c0_5 = arith.constant 0 : index
    %c0_6 = arith.constant 0 : index
    %3 = vector.load %arg0[%c0_4, %c0_5, %c0_6] : memref<1x40x288xf32, #tpu.memory_space<vmem>>, vector<1x40x288xf32>
    %4 = vector.shape_cast %3 : vector<1x40x288xf32> to vector<40x288xf32>
    %cst = arith.constant dense<0.000000e+00> : vector<32x288xf32>
    %5 = tpu.matmul %2, %4, %cst {dimension_numbers = #tpu.dot_dimension_numbers<[1], [0], [0], [1], [0, 0, 1, 1], [], []>} : vector<32x40xf32>, vector<40x288xf32>, vector<32x288xf32> -> vector<32x288xf32>
    %6 = vector.broadcast %0 : vector<32x1xf32> to vector<32x288xf32>
    %7 = arith.addf %5, %6 : vector<32x288xf32>
    %cst_7 = arith.constant 0.000000e+00 : f32
    %8 = vector.broadcast %cst_7 : f32 to vector<32x288xf32>
    %9 = arith.maximumf %7, %8 : vector<32x288xf32>
    %c0_8 = arith.constant 0 : index
    %c0_9 = arith.constant 0 : index
    %c0_10 = arith.constant 0 : index
    %10 = vector.load %arg3[%c0_8, %c0_9, %c0_10] : memref<1x32x288xf32, #tpu.memory_space<vmem>>, vector<1x32x288xf32>
    %11 = vector.shape_cast %10 : vector<1x32x288xf32> to vector<32x288xf32>
    %12 = vector.shape_cast %9 : vector<32x288xf32> to vector<1x32x288xf32>
    tpu.vector_store %arg3[%c0_8, %c0_9, %c0_10], %12 {strides = array<i32>} : memref<1x32x288xf32, #tpu.memory_space<vmem>>, vector<1x32x288xf32>,
    return
  }
}

module attributes {stable_mosaic.version = 11 : i64} {
  func.func @_phase_matmul_kernel(%arg0: memref<1x512x72xf32, #tpu.memory_space<vmem>>, %arg1: memref<1x64x512xf32, #tpu.memory_space<vmem>>, %arg2: memref<64x1xf32, #tpu.memory_space<vmem>>, %arg3: memref<1x64x72xf32, #tpu.memory_space<vmem>>) attributes {dimension_semantics = [], scalar_prefetch = 0 : i64, scratch_operands = 0 : i64, tpu.core_type = #tpu.core_type<tc>} {
    %c0 = arith.constant 0 : index
    %c0_0 = arith.constant 0 : index
    %0 = vector.load %arg2[%c0, %c0_0] : memref<64x1xf32, #tpu.memory_space<vmem>>, vector<64x1xf32>
    %c0_1 = arith.constant 0 : index
    %c0_2 = arith.constant 0 : index
    %c0_3 = arith.constant 0 : index
    %1 = vector.load %arg1[%c0_1, %c0_2, %c0_3] : memref<1x64x512xf32, #tpu.memory_space<vmem>>, vector<1x64x512xf32>
    %2 = vector.shape_cast %1 : vector<1x64x512xf32> to vector<64x512xf32>
    %c0_4 = arith.constant 0 : index
    %c0_5 = arith.constant 0 : index
    %c0_6 = arith.constant 0 : index
    %3 = vector.load %arg0[%c0_4, %c0_5, %c0_6] : memref<1x512x72xf32, #tpu.memory_space<vmem>>, vector<1x512x72xf32>
    %4 = vector.shape_cast %3 : vector<1x512x72xf32> to vector<512x72xf32>
    %cst = arith.constant dense<0.000000e+00> : vector<64x72xf32>
    %5 = tpu.matmul %2, %4, %cst {dimension_numbers = #tpu.dot_dimension_numbers<[1], [0], [0], [1], [0, 0, 1, 1], [], []>} : vector<64x512xf32>, vector<512x72xf32>, vector<64x72xf32> -> vector<64x72xf32>
    %6 = vector.broadcast %0 : vector<64x1xf32> to vector<64x72xf32>
    %7 = arith.addf %5, %6 : vector<64x72xf32>
    %cst_7 = arith.constant 0.000000e+00 : f32
    %8 = vector.broadcast %cst_7 : f32 to vector<64x72xf32>
    %9 = arith.maximumf %7, %8 : vector<64x72xf32>
    %c0_8 = arith.constant 0 : index
    %c0_9 = arith.constant 0 : index
    %c0_10 = arith.constant 0 : index
    %10 = vector.load %arg3[%c0_8, %c0_9, %c0_10] : memref<1x64x72xf32, #tpu.memory_space<vmem>>, vector<1x64x72xf32>
    %11 = vector.shape_cast %10 : vector<1x64x72xf32> to vector<64x72xf32>
    %12 = vector.shape_cast %9 : vector<64x72xf32> to vector<1x64x72xf32>
    tpu.vector_store %arg3[%c0_8, %c0_9, %c0_10], %12 {strides = array<i32>} : memref<1x64x72xf32, #tpu.memory_space<vmem>>, vector<1x64x72xf32>,
    return
  }
}

module attributes {stable_mosaic.version = 11 : i64} {
  func.func @_phase_matmul_kernel(%arg0: memref<1x256x32xf32, #tpu.memory_space<vmem>>, %arg1: memref<1x128x256xf32, #tpu.memory_space<vmem>>, %arg2: memref<128x1xf32, #tpu.memory_space<vmem>>, %arg3: memref<1x128x32xf32, #tpu.memory_space<vmem>>) attributes {dimension_semantics = [], scalar_prefetch = 0 : i64, scratch_operands = 0 : i64, tpu.core_type = #tpu.core_type<tc>} {
    %c0 = arith.constant 0 : index
    %c0_0 = arith.constant 0 : index
    %0 = vector.load %arg2[%c0, %c0_0] : memref<128x1xf32, #tpu.memory_space<vmem>>, vector<128x1xf32>
    %c0_1 = arith.constant 0 : index
    %c0_2 = arith.constant 0 : index
    %c0_3 = arith.constant 0 : index
    %1 = vector.load %arg1[%c0_1, %c0_2, %c0_3] : memref<1x128x256xf32, #tpu.memory_space<vmem>>, vector<1x128x256xf32>
    %2 = vector.shape_cast %1 : vector<1x128x256xf32> to vector<128x256xf32>
    %c0_4 = arith.constant 0 : index
    %c0_5 = arith.constant 0 : index
    %c0_6 = arith.constant 0 : index
    %3 = vector.load %arg0[%c0_4, %c0_5, %c0_6] : memref<1x256x32xf32, #tpu.memory_space<vmem>>, vector<1x256x32xf32>
    %4 = vector.shape_cast %3 : vector<1x256x32xf32> to vector<256x32xf32>
    %cst = arith.constant dense<0.000000e+00> : vector<128x32xf32>
    %5 = tpu.matmul %2, %4, %cst {dimension_numbers = #tpu.dot_dimension_numbers<[1], [0], [0], [1], [0, 0, 1, 1], [], []>} : vector<128x256xf32>, vector<256x32xf32>, vector<128x32xf32> -> vector<128x32xf32>
    %6 = vector.broadcast %0 : vector<128x1xf32> to vector<128x32xf32>
    %7 = arith.addf %5, %6 : vector<128x32xf32>
    %cst_7 = arith.constant 0.000000e+00 : f32
    %8 = vector.broadcast %cst_7 : f32 to vector<128x32xf32>
    %9 = arith.maximumf %7, %8 : vector<128x32xf32>
    %c0_8 = arith.constant 0 : index
    %c0_9 = arith.constant 0 : index
    %c0_10 = arith.constant 0 : index
    %10 = vector.load %arg3[%c0_8, %c0_9, %c0_10] : memref<1x128x32xf32, #tpu.memory_space<vmem>>, vector<1x128x32xf32>
    %11 = vector.shape_cast %10 : vector<1x128x32xf32> to vector<128x32xf32>
    %12 = vector.shape_cast %9 : vector<128x32xf32> to vector<1x128x32xf32>
    tpu.vector_store %arg3[%c0_8, %c0_9, %c0_10], %12 {strides = array<i32>} : memref<1x128x32xf32, #tpu.memory_space<vmem>>, vector<1x128x32xf32>,
    return
  }
}

module attributes {stable_mosaic.version = 11 : i64} {
  func.func @_latent_kernel(%arg0: memref<2x2048xf32, #tpu.memory_space<vmem>>, %arg1: memref<2048x16xf32, #tpu.memory_space<vmem>>, %arg2: memref<1x16xf32, #tpu.memory_space<vmem>>, %arg3: memref<2x10xf32, #tpu.memory_space<vmem>>, %arg4: memref<10x16xf32, #tpu.memory_space<vmem>>, %arg5: memref<1x16xf32, #tpu.memory_space<vmem>>, %arg6: memref<2x16xf32, #tpu.memory_space<vmem>>, %arg7: memref<16x2048xf32, #tpu.memory_space<vmem>>, %arg8: memref<1x2048xf32, #tpu.memory_space<vmem>>, %arg9: memref<2x16xf32, #tpu.memory_space<vmem>>, %arg10: memref<2x16xf32, #tpu.memory_space<vmem>>, %arg11: memref<2x16xf32, #tpu.memory_space<vmem>>, %arg12: memref<2x16xf32, #tpu.memory_space<vmem>>, %arg13: memref<2x2048xf32, #tpu.memory_space<vmem>>) attributes {dimension_semantics = [], scalar_prefetch = 0 : i64, scratch_operands = 0 : i64, tpu.core_type = #tpu.core_type<tc>} {
    %c0 = arith.constant 0 : index
    %c0_0 = arith.constant 0 : index
    %0 = vector.load %arg0[%c0, %c0_0] : memref<2x2048xf32, #tpu.memory_space<vmem>>, vector<2x2048xf32>
    %c0_1 = arith.constant 0 : index
    %c0_2 = arith.constant 0 : index
    %1 = vector.load %arg1[%c0_1, %c0_2] : memref<2048x16xf32, #tpu.memory_space<vmem>>, vector<2048x16xf32>
    %cst = arith.constant dense<0.000000e+00> : vector<2x16xf32>
    %2 = tpu.matmul %0, %1, %cst {dimension_numbers = #tpu.dot_dimension_numbers<[1], [0], [0], [1], [0, 0, 1, 1], [], []>} : vector<2x2048xf32>, vector<2048x16xf32>, vector<2x16xf32> -> vector<2x16xf32>
    %c0_3 = arith.constant 0 : index
    %c0_4 = arith.constant 0 : index
    %3 = vector.load %arg2[%c0_3, %c0_4] : memref<1x16xf32, #tpu.memory_space<vmem>>, vector<1x16xf32>
    %4 = vector.broadcast %3 : vector<1x16xf32> to vector<2x16xf32>
    %5 = arith.addf %2, %4 : vector<2x16xf32>
    %cst_5 = arith.constant dense<0xFF800000> : vector<2xf32>
    %6 = vector.multi_reduction <maximumf>, %5, %cst_5 [1] : vector<2x16xf32> to vector<2xf32>
    %7 = vector.shape_cast %6 : vector<2xf32> to vector<2x1xf32>
    %8 = vector.broadcast %7 : vector<2x1xf32> to vector<2x16xf32>
    %9 = arith.subf %5, %8 : vector<2x16xf32>
    %10 = math.exp %9 : vector<2x16xf32>
    %cst_6 = arith.constant dense<0.000000e+00> : vector<2xf32>
    %11 = vector.multi_reduction <add>, %10, %cst_6 [1] : vector<2x16xf32> to vector<2xf32>
    %12 = vector.shape_cast %11 : vector<2xf32> to vector<2x1xf32>
    %13 = tpu.reciprocal %12 {approx = true} : vector<2x1xf32> -> vector<2x1xf32>
    %14 = vector.broadcast %13 : vector<2x1xf32> to vector<2x16xf32>
    %15 = arith.mulf %10, %14 : vector<2x16xf32>
    %c0_7 = arith.constant 0 : index
    %c0_8 = arith.constant 0 : index
    %16 = vector.load %arg9[%c0_7, %c0_8] : memref<2x16xf32, #tpu.memory_space<vmem>>, vector<2x16xf32>
    tpu.vector_store %arg9[%c0_7, %c0_8], %15 {strides = array<i32>} : memref<2x16xf32, #tpu.memory_space<vmem>>, vector<2x16xf32>,
    %c0_9 = arith.constant 0 : index
    %c0_10 = arith.constant 0 : index
    %17 = vector.load %arg3[%c0_9, %c0_10] : memref<2x10xf32, #tpu.memory_space<vmem>>, vector<2x10xf32>
    %c0_11 = arith.constant 0 : index
    %c0_12 = arith.constant 0 : index
    %18 = vector.load %arg4[%c0_11, %c0_12] : memref<10x16xf32, #tpu.memory_space<vmem>>, vector<10x16xf32>
    %cst_13 = arith.constant dense<0.000000e+00> : vector<2x16xf32>
    %19 = tpu.matmul %17, %18, %cst_13 {dimension_numbers = #tpu.dot_dimension_numbers<[1], [0], [0], [1], [0, 0, 1, 1], [], []>} : vector<2x10xf32>, vector<10x16xf32>, vector<2x16xf32> -> vector<2x16xf32>
    %c0_14 = arith.constant 0 : index
    %c0_15 = arith.constant 0 : index
    %20 = vector.load %arg5[%c0_14, %c0_15] : memref<1x16xf32, #tpu.memory_space<vmem>>, vector<1x16xf32>
    %21 = vector.broadcast %20 : vector<1x16xf32> to vector<2x16xf32>
    %22 = arith.addf %19, %21 : vector<2x16xf32>
    %cst_16 = arith.constant dense<0xFF800000> : vector<2xf32>
    %23 = vector.multi_reduction <maximumf>, %22, %cst_16 [1] : vector<2x16xf32> to vector<2xf32>
    %24 = vector.shape_cast %23 : vector<2xf32> to vector<2x1xf32>
    %25 = vector.broadcast %24 : vector<2x1xf32> to vector<2x16xf32>
    %26 = arith.subf %22, %25 : vector<2x16xf32>
    %27 = math.exp %26 : vector<2x16xf32>
    %cst_17 = arith.constant dense<0.000000e+00> : vector<2xf32>
    %28 = vector.multi_reduction <add>, %27, %cst_17 [1] : vector<2x16xf32> to vector<2xf32>
    %29 = vector.shape_cast %28 : vector<2xf32> to vector<2x1xf32>
    %30 = tpu.reciprocal %29 {approx = true} : vector<2x1xf32> -> vector<2x1xf32>
    %31 = vector.broadcast %30 : vector<2x1xf32> to vector<2x16xf32>
    %32 = arith.mulf %27, %31 : vector<2x16xf32>
    %c0_18 = arith.constant 0 : index
    %c0_19 = arith.constant 0 : index
    %33 = vector.load %arg10[%c0_18, %c0_19] : memref<2x16xf32, #tpu.memory_space<vmem>>, vector<2x16xf32>
    tpu.vector_store %arg10[%c0_18, %c0_19], %32 {strides = array<i32>} : memref<2x16xf32, #tpu.memory_space<vmem>>, vector<2x16xf32>,
    %34 = vector.shape_cast %22 : vector<2x16xf32> to vector<2x16x1xf32>
    %35 = vector.shape_cast %22 : vector<2x16xf32> to vector<2x1x16xf32>
    %36 = vector.broadcast %35 : vector<2x1x16xf32> to vector<2x16x16xf32>
    %37 = vector.broadcast %34 : vector<2x16x1xf32> to vector<2x16x16xf32>
    %38 = arith.cmpf oge, %36, %37 : vector<2x16x16xf32>
    %39 = arith.extui %38 : vector<2x16x16xi1> to vector<2x16x16xi32>
    %40 = arith.sitofp %39 : vector<2x16x16xi32> to vector<2x16x16xf32>
    %cst_20 = arith.constant dense<0.000000e+00> : vector<2x16xf32>
    %41 = vector.multi_reduction <add>, %40, %cst_20 [2] : vector<2x16x16xf32> to vector<2x16xf32>
    %42 = vector.broadcast %35 : vector<2x1x16xf32> to vector<2x16x16xf32>
    %43 = arith.mulf %40, %42 : vector<2x16x16xf32>
    %cst_21 = arith.constant dense<0.000000e+00> : vector<2x16xf32>
    %44 = vector.multi_reduction <add>, %43, %cst_21 [2] : vector<2x16x16xf32> to vector<2x16xf32>
    %45 = arith.mulf %41, %22 : vector<2x16xf32>
    %cst_22 = arith.constant 1.000000e+00 : f32
    %46 = vector.broadcast %cst_22 : f32 to vector<2x16xf32>
    %47 = arith.addf %46, %45 : vector<2x16xf32>
    %48 = arith.cmpf ogt, %47, %44 : vector<2x16xf32>
    %49 = arith.extui %48 : vector<2x16xi1> to vector<2x16xi32>
    %50 = arith.sitofp %49 : vector<2x16xi32> to vector<2x16xf32>
    %cst_23 = arith.constant dense<0.000000e+00> : vector<2xf32>
    %51 = vector.multi_reduction <add>, %50, %cst_23 [1] : vector<2x16xf32> to vector<2xf32>
    %52 = vector.shape_cast %51 : vector<2xf32> to vector<2x1xf32>
    %53 = arith.mulf %50, %22 : vector<2x16xf32>
    %cst_24 = arith.constant dense<0.000000e+00> : vector<2xf32>
    %54 = vector.multi_reduction <add>, %53, %cst_24 [1] : vector<2x16xf32> to vector<2xf32>
    %55 = vector.shape_cast %54 : vector<2xf32> to vector<2x1xf32>
    %cst_25 = arith.constant 1.000000e+00 : f32
    %56 = vector.broadcast %cst_25 : f32 to vector<2x1xf32>
    %57 = arith.subf %55, %56 : vector<2x1xf32>
    %58 = arith.divf %57, %52 : vector<2x1xf32>
    %59 = vector.broadcast %58 : vector<2x1xf32> to vector<2x16xf32>
    %60 = arith.subf %22, %59 : vector<2x16xf32>
    %cst_26 = arith.constant 0.000000e+00 : f32
    %61 = vector.broadcast %cst_26 : f32 to vector<2x16xf32>
    %62 = arith.maximumf %60, %61 : vector<2x16xf32>
    %c0_27 = arith.constant 0 : index
    %c0_28 = arith.constant 0 : index
    %63 = vector.load %arg11[%c0_27, %c0_28] : memref<2x16xf32, #tpu.memory_space<vmem>>, vector<2x16xf32>
    tpu.vector_store %arg11[%c0_27, %c0_28], %62 {strides = array<i32>} : memref<2x16xf32, #tpu.memory_space<vmem>>, vector<2x16xf32>,
    %64 = vector.broadcast %7 : vector<2x1xf32> to vector<2x16xf32>
    %65 = arith.subf %5, %64 : vector<2x16xf32>
    %66 = math.log %12 : vector<2x1xf32>
    %67 = vector.broadcast %66 : vector<2x1xf32> to vector<2x16xf32>
    %68 = arith.subf %65, %67 : vector<2x16xf32>
    %c0_29 = arith.constant 0 : index
    %c0_30 = arith.constant 0 : index
    %69 = vector.load %arg6[%c0_29, %c0_30] : memref<2x16xf32, #tpu.memory_space<vmem>>, vector<2x16xf32>
    %70 = arith.addf %68, %69 : vector<2x16xf32>
    %cst_31 = arith.constant 6.700000e-01 : f32
    %71 = vector.broadcast %cst_31 : f32 to vector<2x16xf32>
    %72 = arith.divf %70, %71 : vector<2x16xf32>
    %cst_32 = arith.constant dense<0xFF800000> : vector<2xf32>
    %73 = vector.multi_reduction <maximumf>, %72, %cst_32 [1] : vector<2x16xf32> to vector<2xf32>
    %74 = vector.shape_cast %73 : vector<2xf32> to vector<2x1xf32>
    %75 = vector.broadcast %74 : vector<2x1xf32> to vector<2x16xf32>
    %76 = arith.subf %72, %75 : vector<2x16xf32>
    %77 = math.exp %76 : vector<2x16xf32>
    %cst_33 = arith.constant dense<0.000000e+00> : vector<2xf32>
    %78 = vector.multi_reduction <add>, %77, %cst_33 [1] : vector<2x16xf32> to vector<2xf32>
    %79 = vector.shape_cast %78 : vector<2xf32> to vector<2x1xf32>
    %80 = tpu.reciprocal %79 {approx = true} : vector<2x1xf32> -> vector<2x1xf32>
    %81 = vector.broadcast %80 : vector<2x1xf32> to vector<2x16xf32>
    %82 = arith.mulf %77, %81 : vector<2x16xf32>
    %c0_34 = arith.constant 0 : index
    %c0_35 = arith.constant 0 : index
    %83 = vector.load %arg12[%c0_34, %c0_35] : memref<2x16xf32, #tpu.memory_space<vmem>>, vector<2x16xf32>
    tpu.vector_store %arg12[%c0_34, %c0_35], %82 {strides = array<i32>} : memref<2x16xf32, #tpu.memory_space<vmem>>, vector<2x16xf32>,
    %c0_36 = arith.constant 0 : index
    %c0_37 = arith.constant 0 : index
    %84 = vector.load %arg7[%c0_36, %c0_37] : memref<16x2048xf32, #tpu.memory_space<vmem>>, vector<16x2048xf32>
    %cst_38 = arith.constant dense<0.000000e+00> : vector<2x2048xf32>
    %85 = tpu.matmul %82, %84, %cst_38 {dimension_numbers = #tpu.dot_dimension_numbers<[1], [0], [0], [1], [0, 0, 1, 1], [], []>} : vector<2x16xf32>, vector<16x2048xf32>, vector<2x2048xf32> -> vector<2x2048xf32>
    %c0_39 = arith.constant 0 : index
    %c0_40 = arith.constant 0 : index
    %86 = vector.load %arg8[%c0_39, %c0_40] : memref<1x2048xf32, #tpu.memory_space<vmem>>, vector<1x2048xf32>
    %87 = vector.broadcast %86 : vector<1x2048xf32> to vector<2x2048xf32>
    %88 = arith.addf %85, %87 : vector<2x2048xf32>
    %c0_41 = arith.constant 0 : index
    %c0_42 = arith.constant 0 : index
    %89 = vector.load %arg13[%c0_41, %c0_42] : memref<2x2048xf32, #tpu.memory_space<vmem>>, vector<2x2048xf32>
    tpu.vector_store %arg13[%c0_41, %c0_42], %88 {strides = array<i32>} : memref<2x2048xf32, #tpu.memory_space<vmem>>, vector<2x2048xf32>,
    return
  }
}

module attributes {stable_mosaic.version = 11 : i64} {
  func.func @_phase_matmul_kernel(%arg0: memref<4x128x18xf32, #tpu.memory_space<vmem>>, %arg1: memref<4x64x128xf32, #tpu.memory_space<vmem>>, %arg2: memref<64x1xf32, #tpu.memory_space<vmem>>, %arg3: memref<4x64x18xf32, #tpu.memory_space<vmem>>) attributes {dimension_semantics = [], scalar_prefetch = 0 : i64, scratch_operands = 0 : i64, tpu.core_type = #tpu.core_type<tc>} {
    %c0 = arith.constant 0 : index
    %c0_0 = arith.constant 0 : index
    %0 = vector.load %arg2[%c0, %c0_0] : memref<64x1xf32, #tpu.memory_space<vmem>>, vector<64x1xf32>
    %c0_1 = arith.constant 0 : index
    %c0_2 = arith.constant 0 : index
    %c0_3 = arith.constant 0 : index
    %1 = vector.load %arg1[%c0_1, %c0_2, %c0_3] : memref<4x64x128xf32, #tpu.memory_space<vmem>>, vector<1x64x128xf32>
    %2 = vector.shape_cast %1 : vector<1x64x128xf32> to vector<64x128xf32>
    %c0_4 = arith.constant 0 : index
    %c0_5 = arith.constant 0 : index
    %c0_6 = arith.constant 0 : index
    %3 = vector.load %arg0[%c0_4, %c0_5, %c0_6] : memref<4x128x18xf32, #tpu.memory_space<vmem>>, vector<1x128x18xf32>
    %4 = vector.shape_cast %3 : vector<1x128x18xf32> to vector<128x18xf32>
    %cst = arith.constant dense<0.000000e+00> : vector<64x18xf32>
    %5 = tpu.matmul %2, %4, %cst {dimension_numbers = #tpu.dot_dimension_numbers<[1], [0], [0], [1], [0, 0, 1, 1], [], []>} : vector<64x128xf32>, vector<128x18xf32>, vector<64x18xf32> -> vector<64x18xf32>
    %6 = vector.broadcast %0 : vector<64x1xf32> to vector<64x18xf32>
    %7 = arith.addf %5, %6 : vector<64x18xf32>
    %cst_7 = arith.constant 0.000000e+00 : f32
    %8 = vector.broadcast %cst_7 : f32 to vector<64x18xf32>
    %9 = arith.maximumf %7, %8 : vector<64x18xf32>
    %c0_8 = arith.constant 0 : index
    %c0_9 = arith.constant 0 : index
    %c0_10 = arith.constant 0 : index
    %10 = vector.load %arg3[%c0_8, %c0_9, %c0_10] : memref<4x64x18xf32, #tpu.memory_space<vmem>>, vector<1x64x18xf32>
    %11 = vector.shape_cast %10 : vector<1x64x18xf32> to vector<64x18xf32>
    %12 = vector.shape_cast %9 : vector<64x18xf32> to vector<1x64x18xf32>
    tpu.vector_store %arg3[%c0_8, %c0_9, %c0_10], %12 {strides = array<i32>} : memref<4x64x18xf32, #tpu.memory_space<vmem>>, vector<1x64x18xf32>,
    %c1 = arith.constant 1 : index
    %c0_11 = arith.constant 0 : index
    %c0_12 = arith.constant 0 : index
    %13 = vector.load %arg1[%c1, %c0_11, %c0_12] : memref<4x64x128xf32, #tpu.memory_space<vmem>>, vector<1x64x128xf32>
    %14 = vector.shape_cast %13 : vector<1x64x128xf32> to vector<64x128xf32>
    %c1_13 = arith.constant 1 : index
    %c0_14 = arith.constant 0 : index
    %c0_15 = arith.constant 0 : index
    %15 = vector.load %arg0[%c1_13, %c0_14, %c0_15] : memref<4x128x18xf32, #tpu.memory_space<vmem>>, vector<1x128x18xf32>
    %16 = vector.shape_cast %15 : vector<1x128x18xf32> to vector<128x18xf32>
    %cst_16 = arith.constant dense<0.000000e+00> : vector<64x18xf32>
    %17 = tpu.matmul %14, %16, %cst_16 {dimension_numbers = #tpu.dot_dimension_numbers<[1], [0], [0], [1], [0, 0, 1, 1], [], []>} : vector<64x128xf32>, vector<128x18xf32>, vector<64x18xf32> -> vector<64x18xf32>
    %18 = vector.broadcast %0 : vector<64x1xf32> to vector<64x18xf32>
    %19 = arith.addf %17, %18 : vector<64x18xf32>
    %cst_17 = arith.constant 0.000000e+00 : f32
    %20 = vector.broadcast %cst_17 : f32 to vector<64x18xf32>
    %21 = arith.maximumf %19, %20 : vector<64x18xf32>
    %c1_18 = arith.constant 1 : index
    %c0_19 = arith.constant 0 : index
    %c0_20 = arith.constant 0 : index
    %22 = vector.load %arg3[%c1_18, %c0_19, %c0_20] : memref<4x64x18xf32, #tpu.memory_space<vmem>>, vector<1x64x18xf32>
    %23 = vector.shape_cast %22 : vector<1x64x18xf32> to vector<64x18xf32>
    %24 = vector.shape_cast %21 : vector<64x18xf32> to vector<1x64x18xf32>
    tpu.vector_store %arg3[%c1_18, %c0_19, %c0_20], %24 {strides = array<i32>} : memref<4x64x18xf32, #tpu.memory_space<vmem>>, vector<1x64x18xf32>,
    %c2 = arith.constant 2 : index
    %c0_21 = arith.constant 0 : index
    %c0_22 = arith.constant 0 : index
    %25 = vector.load %arg1[%c2, %c0_21, %c0_22] : memref<4x64x128xf32, #tpu.memory_space<vmem>>, vector<1x64x128xf32>
    %26 = vector.shape_cast %25 : vector<1x64x128xf32> to vector<64x128xf32>
    %c2_23 = arith.constant 2 : index
    %c0_24 = arith.constant 0 : index
    %c0_25 = arith.constant 0 : index
    %27 = vector.load %arg0[%c2_23, %c0_24, %c0_25] : memref<4x128x18xf32, #tpu.memory_space<vmem>>, vector<1x128x18xf32>
    %28 = vector.shape_cast %27 : vector<1x128x18xf32> to vector<128x18xf32>
    %cst_26 = arith.constant dense<0.000000e+00> : vector<64x18xf32>
    %29 = tpu.matmul %26, %28, %cst_26 {dimension_numbers = #tpu.dot_dimension_numbers<[1], [0], [0], [1], [0, 0, 1, 1], [], []>} : vector<64x128xf32>, vector<128x18xf32>, vector<64x18xf32> -> vector<64x18xf32>
    %30 = vector.broadcast %0 : vector<64x1xf32> to vector<64x18xf32>
    %31 = arith.addf %29, %30 : vector<64x18xf32>
    %cst_27 = arith.constant 0.000000e+00 : f32
    %32 = vector.broadcast %cst_27 : f32 to vector<64x18xf32>
    %33 = arith.maximumf %31, %32 : vector<64x18xf32>
    %c2_28 = arith.constant 2 : index
    %c0_29 = arith.constant 0 : index
    %c0_30 = arith.constant 0 : index
    %34 = vector.load %arg3[%c2_28, %c0_29, %c0_30] : memref<4x64x18xf32, #tpu.memory_space<vmem>>, vector<1x64x18xf32>
    %35 = vector.shape_cast %34 : vector<1x64x18xf32> to vector<64x18xf32>
    %36 = vector.shape_cast %33 : vector<64x18xf32> to vector<1x64x18xf32>
    tpu.vector_store %arg3[%c2_28, %c0_29, %c0_30], %36 {strides = array<i32>} : memref<4x64x18xf32, #tpu.memory_space<vmem>>, vector<1x64x18xf32>,
    %c3 = arith.constant 3 : index
    %c0_31 = arith.constant 0 : index
    %c0_32 = arith.constant 0 : index
    %37 = vector.load %arg1[%c3, %c0_31, %c0_32] : memref<4x64x128xf32, #tpu.memory_space<vmem>>, vector<1x64x128xf32>
    %38 = vector.shape_cast %37 : vector<1x64x128xf32> to vector<64x128xf32>
    %c3_33 = arith.constant 3 : index
    %c0_34 = arith.constant 0 : index
    %c0_35 = arith.constant 0 : index
    %39 = vector.load %arg0[%c3_33, %c0_34, %c0_35] : memref<4x128x18xf32, #tpu.memory_space<vmem>>, vector<1x128x18xf32>
    %40 = vector.shape_cast %39 : vector<1x128x18xf32> to vector<128x18xf32>
    %cst_36 = arith.constant dense<0.000000e+00> : vector<64x18xf32>
    %41 = tpu.matmul %38, %40, %cst_36 {dimension_numbers = #tpu.dot_dimension_numbers<[1], [0], [0], [1], [0, 0, 1, 1], [], []>} : vector<64x128xf32>, vector<128x18xf32>, vector<64x18xf32> -> vector<64x18xf32>
    %42 = vector.broadcast %0 : vector<64x1xf32> to vector<64x18xf32>
    %43 = arith.addf %41, %42 : vector<64x18xf32>
    %cst_37 = arith.constant 0.000000e+00 : f32
    %44 = vector.broadcast %cst_37 : f32 to vector<64x18xf32>
    %45 = arith.maximumf %43, %44 : vector<64x18xf32>
    %c3_38 = arith.constant 3 : index
    %c0_39 = arith.constant 0 : index
    %c0_40 = arith.constant 0 : index
    %46 = vector.load %arg3[%c3_38, %c0_39, %c0_40] : memref<4x64x18xf32, #tpu.memory_space<vmem>>, vector<1x64x18xf32>
    %47 = vector.shape_cast %46 : vector<1x64x18xf32> to vector<64x18xf32>
    %48 = vector.shape_cast %45 : vector<64x18xf32> to vector<1x64x18xf32>
    tpu.vector_store %arg3[%c3_38, %c0_39, %c0_40], %48 {strides = array<i32>} : memref<4x64x18xf32, #tpu.memory_space<vmem>>, vector<1x64x18xf32>,
    return
  }
}

module attributes {stable_mosaic.version = 11 : i64} {
  func.func @_phase_matmul_kernel(%arg0: memref<4x256x72xf32, #tpu.memory_space<vmem>>, %arg1: memref<4x32x256xf32, #tpu.memory_space<vmem>>, %arg2: memref<32x1xf32, #tpu.memory_space<vmem>>, %arg3: memref<4x32x72xf32, #tpu.memory_space<vmem>>) attributes {dimension_semantics = [], scalar_prefetch = 0 : i64, scratch_operands = 0 : i64, tpu.core_type = #tpu.core_type<tc>} {
    %c0 = arith.constant 0 : index
    %c0_0 = arith.constant 0 : index
    %0 = vector.load %arg2[%c0, %c0_0] : memref<32x1xf32, #tpu.memory_space<vmem>>, vector<32x1xf32>
    %c0_1 = arith.constant 0 : index
    %c0_2 = arith.constant 0 : index
    %c0_3 = arith.constant 0 : index
    %1 = vector.load %arg1[%c0_1, %c0_2, %c0_3] : memref<4x32x256xf32, #tpu.memory_space<vmem>>, vector<1x32x256xf32>
    %2 = vector.shape_cast %1 : vector<1x32x256xf32> to vector<32x256xf32>
    %c0_4 = arith.constant 0 : index
    %c0_5 = arith.constant 0 : index
    %c0_6 = arith.constant 0 : index
    %3 = vector.load %arg0[%c0_4, %c0_5, %c0_6] : memref<4x256x72xf32, #tpu.memory_space<vmem>>, vector<1x256x72xf32>
    %4 = vector.shape_cast %3 : vector<1x256x72xf32> to vector<256x72xf32>
    %cst = arith.constant dense<0.000000e+00> : vector<32x72xf32>
    %5 = tpu.matmul %2, %4, %cst {dimension_numbers = #tpu.dot_dimension_numbers<[1], [0], [0], [1], [0, 0, 1, 1], [], []>} : vector<32x256xf32>, vector<256x72xf32>, vector<32x72xf32> -> vector<32x72xf32>
    %6 = vector.broadcast %0 : vector<32x1xf32> to vector<32x72xf32>
    %7 = arith.addf %5, %6 : vector<32x72xf32>
    %cst_7 = arith.constant 0.000000e+00 : f32
    %8 = vector.broadcast %cst_7 : f32 to vector<32x72xf32>
    %9 = arith.maximumf %7, %8 : vector<32x72xf32>
    %c0_8 = arith.constant 0 : index
    %c0_9 = arith.constant 0 : index
    %c0_10 = arith.constant 0 : index
    %10 = vector.load %arg3[%c0_8, %c0_9, %c0_10] : memref<4x32x72xf32, #tpu.memory_space<vmem>>, vector<1x32x72xf32>
    %11 = vector.shape_cast %10 : vector<1x32x72xf32> to vector<32x72xf32>
    %12 = vector.shape_cast %9 : vector<32x72xf32> to vector<1x32x72xf32>
    tpu.vector_store %arg3[%c0_8, %c0_9, %c0_10], %12 {strides = array<i32>} : memref<4x32x72xf32, #tpu.memory_space<vmem>>, vector<1x32x72xf32>,
    %c1 = arith.constant 1 : index
    %c0_11 = arith.constant 0 : index
    %c0_12 = arith.constant 0 : index
    %13 = vector.load %arg1[%c1, %c0_11, %c0_12] : memref<4x32x256xf32, #tpu.memory_space<vmem>>, vector<1x32x256xf32>
    %14 = vector.shape_cast %13 : vector<1x32x256xf32> to vector<32x256xf32>
    %c1_13 = arith.constant 1 : index
    %c0_14 = arith.constant 0 : index
    %c0_15 = arith.constant 0 : index
    %15 = vector.load %arg0[%c1_13, %c0_14, %c0_15] : memref<4x256x72xf32, #tpu.memory_space<vmem>>, vector<1x256x72xf32>
    %16 = vector.shape_cast %15 : vector<1x256x72xf32> to vector<256x72xf32>
    %cst_16 = arith.constant dense<0.000000e+00> : vector<32x72xf32>
    %17 = tpu.matmul %14, %16, %cst_16 {dimension_numbers = #tpu.dot_dimension_numbers<[1], [0], [0], [1], [0, 0, 1, 1], [], []>} : vector<32x256xf32>, vector<256x72xf32>, vector<32x72xf32> -> vector<32x72xf32>
    %18 = vector.broadcast %0 : vector<32x1xf32> to vector<32x72xf32>
    %19 = arith.addf %17, %18 : vector<32x72xf32>
    %cst_17 = arith.constant 0.000000e+00 : f32
    %20 = vector.broadcast %cst_17 : f32 to vector<32x72xf32>
    %21 = arith.maximumf %19, %20 : vector<32x72xf32>
    %c1_18 = arith.constant 1 : index
    %c0_19 = arith.constant 0 : index
    %c0_20 = arith.constant 0 : index
    %22 = vector.load %arg3[%c1_18, %c0_19, %c0_20] : memref<4x32x72xf32, #tpu.memory_space<vmem>>, vector<1x32x72xf32>
    %23 = vector.shape_cast %22 : vector<1x32x72xf32> to vector<32x72xf32>
    %24 = vector.shape_cast %21 : vector<32x72xf32> to vector<1x32x72xf32>
    tpu.vector_store %arg3[%c1_18, %c0_19, %c0_20], %24 {strides = array<i32>} : memref<4x32x72xf32, #tpu.memory_space<vmem>>, vector<1x32x72xf32>,
    %c2 = arith.constant 2 : index
    %c0_21 = arith.constant 0 : index
    %c0_22 = arith.constant 0 : index
    %25 = vector.load %arg1[%c2, %c0_21, %c0_22] : memref<4x32x256xf32, #tpu.memory_space<vmem>>, vector<1x32x256xf32>
    %26 = vector.shape_cast %25 : vector<1x32x256xf32> to vector<32x256xf32>
    %c2_23 = arith.constant 2 : index
    %c0_24 = arith.constant 0 : index
    %c0_25 = arith.constant 0 : index
    %27 = vector.load %arg0[%c2_23, %c0_24, %c0_25] : memref<4x256x72xf32, #tpu.memory_space<vmem>>, vector<1x256x72xf32>
    %28 = vector.shape_cast %27 : vector<1x256x72xf32> to vector<256x72xf32>
    %cst_26 = arith.constant dense<0.000000e+00> : vector<32x72xf32>
    %29 = tpu.matmul %26, %28, %cst_26 {dimension_numbers = #tpu.dot_dimension_numbers<[1], [0], [0], [1], [0, 0, 1, 1], [], []>} : vector<32x256xf32>, vector<256x72xf32>, vector<32x72xf32> -> vector<32x72xf32>
    %30 = vector.broadcast %0 : vector<32x1xf32> to vector<32x72xf32>
    %31 = arith.addf %29, %30 : vector<32x72xf32>
    %cst_27 = arith.constant 0.000000e+00 : f32
    %32 = vector.broadcast %cst_27 : f32 to vector<32x72xf32>
    %33 = arith.maximumf %31, %32 : vector<32x72xf32>
    %c2_28 = arith.constant 2 : index
    %c0_29 = arith.constant 0 : index
    %c0_30 = arith.constant 0 : index
    %34 = vector.load %arg3[%c2_28, %c0_29, %c0_30] : memref<4x32x72xf32, #tpu.memory_space<vmem>>, vector<1x32x72xf32>
    %35 = vector.shape_cast %34 : vector<1x32x72xf32> to vector<32x72xf32>
    %36 = vector.shape_cast %33 : vector<32x72xf32> to vector<1x32x72xf32>
    tpu.vector_store %arg3[%c2_28, %c0_29, %c0_30], %36 {strides = array<i32>} : memref<4x32x72xf32, #tpu.memory_space<vmem>>, vector<1x32x72xf32>,
    %c3 = arith.constant 3 : index
    %c0_31 = arith.constant 0 : index
    %c0_32 = arith.constant 0 : index
    %37 = vector.load %arg1[%c3, %c0_31, %c0_32] : memref<4x32x256xf32, #tpu.memory_space<vmem>>, vector<1x32x256xf32>
    %38 = vector.shape_cast %37 : vector<1x32x256xf32> to vector<32x256xf32>
    %c3_33 = arith.constant 3 : index
    %c0_34 = arith.constant 0 : index
    %c0_35 = arith.constant 0 : index
    %39 = vector.load %arg0[%c3_33, %c0_34, %c0_35] : memref<4x256x72xf32, #tpu.memory_space<vmem>>, vector<1x256x72xf32>
    %40 = vector.shape_cast %39 : vector<1x256x72xf32> to vector<256x72xf32>
    %cst_36 = arith.constant dense<0.000000e+00> : vector<32x72xf32>
    %41 = tpu.matmul %38, %40, %cst_36 {dimension_numbers = #tpu.dot_dimension_numbers<[1], [0], [0], [1], [0, 0, 1, 1], [], []>} : vector<32x256xf32>, vector<256x72xf32>, vector<32x72xf32> -> vector<32x72xf32>
    %42 = vector.broadcast %0 : vector<32x1xf32> to vector<32x72xf32>
    %43 = arith.addf %41, %42 : vector<32x72xf32>
    %cst_37 = arith.constant 0.000000e+00 : f32
    %44 = vector.broadcast %cst_37 : f32 to vector<32x72xf32>
    %45 = arith.maximumf %43, %44 : vector<32x72xf32>
    %c3_38 = arith.constant 3 : index
    %c0_39 = arith.constant 0 : index
    %c0_40 = arith.constant 0 : index
    %46 = vector.load %arg3[%c3_38, %c0_39, %c0_40] : memref<4x32x72xf32, #tpu.memory_space<vmem>>, vector<1x32x72xf32>
    %47 = vector.shape_cast %46 : vector<1x32x72xf32> to vector<32x72xf32>
    %48 = vector.shape_cast %45 : vector<32x72xf32> to vector<1x32x72xf32>
    tpu.vector_store %arg3[%c3_38, %c0_39, %c0_40], %48 {strides = array<i32>} : memref<4x32x72xf32, #tpu.memory_space<vmem>>, vector<1x32x72xf32>,
    return
  }
}

module attributes {stable_mosaic.version = 11 : i64} {
  func.func @_phase_matmul_kernel(%arg0: memref<4x288x392xf32, #tpu.memory_space<vmem>>, %arg1: memref<4x1x288xf32, #tpu.memory_space<vmem>>, %arg2: memref<1x1xf32, #tpu.memory_space<vmem>>, %arg3: memref<4x1x392xf32, #tpu.memory_space<vmem>>) attributes {dimension_semantics = [], scalar_prefetch = 0 : i64, scratch_operands = 0 : i64, tpu.core_type = #tpu.core_type<tc>} {
    %c0 = arith.constant 0 : index
    %c0_0 = arith.constant 0 : index
    %0 = vector.load %arg2[%c0, %c0_0] : memref<1x1xf32, #tpu.memory_space<vmem>>, vector<1x1xf32>
    %c0_1 = arith.constant 0 : index
    %c0_2 = arith.constant 0 : index
    %c0_3 = arith.constant 0 : index
    %1 = vector.load %arg1[%c0_1, %c0_2, %c0_3] : memref<4x1x288xf32, #tpu.memory_space<vmem>>, vector<1x1x288xf32>
    %2 = vector.shape_cast %1 : vector<1x1x288xf32> to vector<1x288xf32>
    %c0_4 = arith.constant 0 : index
    %c0_5 = arith.constant 0 : index
    %c0_6 = arith.constant 0 : index
    %3 = vector.load %arg0[%c0_4, %c0_5, %c0_6] : memref<4x288x392xf32, #tpu.memory_space<vmem>>, vector<1x288x392xf32>
    %4 = vector.shape_cast %3 : vector<1x288x392xf32> to vector<288x392xf32>
    %cst = arith.constant dense<0.000000e+00> : vector<1x392xf32>
    %5 = tpu.matmul %2, %4, %cst {dimension_numbers = #tpu.dot_dimension_numbers<[1], [0], [0], [1], [0, 0, 1, 1], [], []>} : vector<1x288xf32>, vector<288x392xf32>, vector<1x392xf32> -> vector<1x392xf32>
    %6 = vector.broadcast %0 : vector<1x1xf32> to vector<1x392xf32>
    %7 = arith.addf %5, %6 : vector<1x392xf32>
    %8 = math.absf %7 : vector<1x392xf32>
    %cst_7 = arith.constant 0.000000e+00 : f32
    %9 = vector.broadcast %cst_7 : f32 to vector<1x392xf32>
    %10 = arith.subf %9, %8 : vector<1x392xf32>
    %11 = math.exp %10 : vector<1x392xf32>
    %cst_8 = arith.constant 1.000000e+00 : f32
    %12 = vector.broadcast %cst_8 : f32 to vector<1x392xf32>
    %13 = arith.addf %12, %11 : vector<1x392xf32>
    %14 = tpu.reciprocal %13 {approx = true} : vector<1x392xf32> -> vector<1x392xf32>
    %cst_9 = arith.constant 0.000000e+00 : f32
    %15 = vector.broadcast %cst_9 : f32 to vector<1x392xf32>
    %16 = arith.cmpf oge, %7, %15 : vector<1x392xf32>
    %17 = arith.mulf %11, %14 : vector<1x392xf32>
    %18 = arith.select %16, %14, %17 : vector<1x392xi1>, vector<1x392xf32>
    %c0_10 = arith.constant 0 : index
    %c0_11 = arith.constant 0 : index
    %c0_12 = arith.constant 0 : index
    %19 = vector.load %arg3[%c0_10, %c0_11, %c0_12] : memref<4x1x392xf32, #tpu.memory_space<vmem>>, vector<1x1x392xf32>
    %20 = vector.shape_cast %19 : vector<1x1x392xf32> to vector<1x392xf32>
    %21 = vector.shape_cast %18 : vector<1x392xf32> to vector<1x1x392xf32>
    tpu.vector_store %arg3[%c0_10, %c0_11, %c0_12], %21 {strides = array<i32>} : memref<4x1x392xf32, #tpu.memory_space<vmem>>, vector<1x1x392xf32>,
    %c1 = arith.constant 1 : index
    %c0_13 = arith.constant 0 : index
    %c0_14 = arith.constant 0 : index
    %22 = vector.load %arg1[%c1, %c0_13, %c0_14] : memref<4x1x288xf32, #tpu.memory_space<vmem>>, vector<1x1x288xf32>
    %23 = vector.shape_cast %22 : vector<1x1x288xf32> to vector<1x288xf32>
    %c1_15 = arith.constant 1 : index
    %c0_16 = arith.constant 0 : index
    %c0_17 = arith.constant 0 : index
    %24 = vector.load %arg0[%c1_15, %c0_16, %c0_17] : memref<4x288x392xf32, #tpu.memory_space<vmem>>, vector<1x288x392xf32>
    %25 = vector.shape_cast %24 : vector<1x288x392xf32> to vector<288x392xf32>
    %cst_18 = arith.constant dense<0.000000e+00> : vector<1x392xf32>
    %26 = tpu.matmul %23, %25, %cst_18 {dimension_numbers = #tpu.dot_dimension_numbers<[1], [0], [0], [1], [0, 0, 1, 1], [], []>} : vector<1x288xf32>, vector<288x392xf32>, vector<1x392xf32> -> vector<1x392xf32>
    %27 = vector.broadcast %0 : vector<1x1xf32> to vector<1x392xf32>
    %28 = arith.addf %26, %27 : vector<1x392xf32>
    %29 = math.absf %28 : vector<1x392xf32>
    %cst_19 = arith.constant 0.000000e+00 : f32
    %30 = vector.broadcast %cst_19 : f32 to vector<1x392xf32>
    %31 = arith.subf %30, %29 : vector<1x392xf32>
    %32 = math.exp %31 : vector<1x392xf32>
    %cst_20 = arith.constant 1.000000e+00 : f32
    %33 = vector.broadcast %cst_20 : f32 to vector<1x392xf32>
    %34 = arith.addf %33, %32 : vector<1x392xf32>
    %35 = tpu.reciprocal %34 {approx = true} : vector<1x392xf32> -> vector<1x392xf32>
    %cst_21 = arith.constant 0.000000e+00 : f32
    %36 = vector.broadcast %cst_21 : f32 to vector<1x392xf32>
    %37 = arith.cmpf oge, %28, %36 : vector<1x392xf32>
    %38 = arith.mulf %32, %35 : vector<1x392xf32>
    %39 = arith.select %37, %35, %38 : vector<1x392xi1>, vector<1x392xf32>
    %c1_22 = arith.constant 1 : index
    %c0_23 = arith.constant 0 : index
    %c0_24 = arith.constant 0 : index
    %40 = vector.load %arg3[%c1_22, %c0_23, %c0_24] : memref<4x1x392xf32, #tpu.memory_space<vmem>>, vector<1x1x392xf32>
    %41 = vector.shape_cast %40 : vector<1x1x392xf32> to vector<1x392xf32>
    %42 = vector.shape_cast %39 : vector<1x392xf32> to vector<1x1x392xf32>
    tpu.vector_store %arg3[%c1_22, %c0_23, %c0_24], %42 {strides = array<i32>} : memref<4x1x392xf32, #tpu.memory_space<vmem>>, vector<1x1x392xf32>,
    %c2 = arith.constant 2 : index
    %c0_25 = arith.constant 0 : index
    %c0_26 = arith.constant 0 : index
    %43 = vector.load %arg1[%c2, %c0_25, %c0_26] : memref<4x1x288xf32, #tpu.memory_space<vmem>>, vector<1x1x288xf32>
    %44 = vector.shape_cast %43 : vector<1x1x288xf32> to vector<1x288xf32>
    %c2_27 = arith.constant 2 : index
    %c0_28 = arith.constant 0 : index
    %c0_29 = arith.constant 0 : index
    %45 = vector.load %arg0[%c2_27, %c0_28, %c0_29] : memref<4x288x392xf32, #tpu.memory_space<vmem>>, vector<1x288x392xf32>
    %46 = vector.shape_cast %45 : vector<1x288x392xf32> to vector<288x392xf32>
    %cst_30 = arith.constant dense<0.000000e+00> : vector<1x392xf32>
    %47 = tpu.matmul %44, %46, %cst_30 {dimension_numbers = #tpu.dot_dimension_numbers<[1], [0], [0], [1], [0, 0, 1, 1], [], []>} : vector<1x288xf32>, vector<288x392xf32>, vector<1x392xf32> -> vector<1x392xf32>
    %48 = vector.broadcast %0 : vector<1x1xf32> to vector<1x392xf32>
    %49 = arith.addf %47, %48 : vector<1x392xf32>
    %50 = math.absf %49 : vector<1x392xf32>
    %cst_31 = arith.constant 0.000000e+00 : f32
    %51 = vector.broadcast %cst_31 : f32 to vector<1x392xf32>
    %52 = arith.subf %51, %50 : vector<1x392xf32>
    %53 = math.exp %52 : vector<1x392xf32>
    %cst_32 = arith.constant 1.000000e+00 : f32
    %54 = vector.broadcast %cst_32 : f32 to vector<1x392xf32>
    %55 = arith.addf %54, %53 : vector<1x392xf32>
    %56 = tpu.reciprocal %55 {approx = true} : vector<1x392xf32> -> vector<1x392xf32>
    %cst_33 = arith.constant 0.000000e+00 : f32
    %57 = vector.broadcast %cst_33 : f32 to vector<1x392xf32>
    %58 = arith.cmpf oge, %49, %57 : vector<1x392xf32>
    %59 = arith.mulf %53, %56 : vector<1x392xf32>
    %60 = arith.select %58, %56, %59 : vector<1x392xi1>, vector<1x392xf32>
    %c2_34 = arith.constant 2 : index
    %c0_35 = arith.constant 0 : index
    %c0_36 = arith.constant 0 : index
    %61 = vector.load %arg3[%c2_34, %c0_35, %c0_36] : memref<4x1x392xf32, #tpu.memory_space<vmem>>, vector<1x1x392xf32>
    %62 = vector.shape_cast %61 : vector<1x1x392xf32> to vector<1x392xf32>
    %63 = vector.shape_cast %60 : vector<1x392xf32> to vector<1x1x392xf32>
    tpu.vector_store %arg3[%c2_34, %c0_35, %c0_36], %63 {strides = array<i32>} : memref<4x1x392xf32, #tpu.memory_space<vmem>>, vector<1x1x392xf32>,
    %c3 = arith.constant 3 : index
    %c0_37 = arith.constant 0 : index
    %c0_38 = arith.constant 0 : index
    %64 = vector.load %arg1[%c3, %c0_37, %c0_38] : memref<4x1x288xf32, #tpu.memory_space<vmem>>, vector<1x1x288xf32>
    %65 = vector.shape_cast %64 : vector<1x1x288xf32> to vector<1x288xf32>
    %c3_39 = arith.constant 3 : index
    %c0_40 = arith.constant 0 : index
    %c0_41 = arith.constant 0 : index
    %66 = vector.load %arg0[%c3_39, %c0_40, %c0_41] : memref<4x288x392xf32, #tpu.memory_space<vmem>>, vector<1x288x392xf32>
    %67 = vector.shape_cast %66 : vector<1x288x392xf32> to vector<288x392xf32>
    %cst_42 = arith.constant dense<0.000000e+00> : vector<1x392xf32>
    %68 = tpu.matmul %65, %67, %cst_42 {dimension_numbers = #tpu.dot_dimension_numbers<[1], [0], [0], [1], [0, 0, 1, 1], [], []>} : vector<1x288xf32>, vector<288x392xf32>, vector<1x392xf32> -> vector<1x392xf32>
    %69 = vector.broadcast %0 : vector<1x1xf32> to vector<1x392xf32>
    %70 = arith.addf %68, %69 : vector<1x392xf32>
    %71 = math.absf %70 : vector<1x392xf32>
    %cst_43 = arith.constant 0.000000e+00 : f32
    %72 = vector.broadcast %cst_43 : f32 to vector<1x392xf32>
    %73 = arith.subf %72, %71 : vector<1x392xf32>
    %74 = math.exp %73 : vector<1x392xf32>
    %cst_44 = arith.constant 1.000000e+00 : f32
    %75 = vector.broadcast %cst_44 : f32 to vector<1x392xf32>
    %76 = arith.addf %75, %74 : vector<1x392xf32>
    %77 = tpu.reciprocal %76 {approx = true} : vector<1x392xf32> -> vector<1x392xf32>
    %cst_45 = arith.constant 0.000000e+00 : f32
    %78 = vector.broadcast %cst_45 : f32 to vector<1x392xf32>
    %79 = arith.cmpf oge, %70, %78 : vector<1x392xf32>
    %80 = arith.mulf %74, %77 : vector<1x392xf32>
    %81 = arith.select %79, %77, %80 : vector<1x392xi1>, vector<1x392xf32>
    %c3_46 = arith.constant 3 : index
    %c0_47 = arith.constant 0 : index
    %c0_48 = arith.constant 0 : index
    %82 = vector.load %arg3[%c3_46, %c0_47, %c0_48] : memref<4x1x392xf32, #tpu.memory_space<vmem>>, vector<1x1x392xf32>
    %83 = vector.shape_cast %82 : vector<1x1x392xf32> to vector<1x392xf32>
    %84 = vector.shape_cast %81 : vector<1x392xf32> to vector<1x1x392xf32>
    tpu.vector_store %arg3[%c3_46, %c0_47, %c0_48], %84 {strides = array<i32>} : memref<4x1x392xf32, #tpu.memory_space<vmem>>, vector<1x1x392xf32>,
    return
  }
}

</mosaic_0001>

<llo_original>
// kernel: squeeze.3
$region0: #{squeeze.3}
  %s0 = inlined_call_operand.vmem [shape: f32[1,32,288], index: 0, kind: input, shape index: {}]
  %s1 = inlined_call_operand.vmem [shape: f32[32,2,12,12], index: 1, kind: output, shape index: {}]
  %v2 = vld [vmem:[%s0] sm:$0xff]
  %vm3 = vcmask 261120
  %4 = vst.msk [vmem:[%s1] sm:$0xff] %vm3, %v2
  %s5 = scalar_lea.vmem %s0, 8
  %v6 = vld [vmem:[%s5] sm:$0xff]
  %vm7 = vcmask 261120
  %s8 = scalar_lea.vmem %s1, 8
  %9 = vst.msk [vmem:[%s8] sm:$0xf] %vm7, %v6
  %s10 = scalar_lea.vmem %s1, 12
  %11 = vst.msk [vmem:[%s10] sm:$0xf0] %vm7, %v6
  %s12 = scalar_lea.vmem %s0, 16
  %v13 = vld [vmem:[%s12] sm:$0xff]
  %vm14 = vcmask 261120
  %s15 = scalar_lea.vmem %s1, 20
  %16 = vst.msk [vmem:[%s15] sm:$0xff] %vm14, %v13
  %s17 = scalar_lea.vmem %s0, 24
  %v18 = vld [vmem:[%s17] sm:$0xff]
  %vm19 = vcmask 261120
  %s20 = scalar_lea.vmem %s1, 32
  %21 = vst.msk [vmem:[%s20] sm:$0xff] %vm19, %v18
  %s22 = scalar_lea.vmem %s0, 32
  %v23 = vld [vmem:[%s22] sm:$0xff]
  %vm24 = vcmask 261120
  %s25 = scalar_lea.vmem %s1, 40
  %26 = vst.msk [vmem:[%s25] sm:$0xf] %vm24, %v23
  %s27 = scalar_lea.vmem %s1, 44
  %28 = vst.msk [vmem:[%s27] sm:$0xf0] %vm24, %v23
  %s29 = scalar_lea.vmem %s0, 40
  %v30 = vld [vmem:[%s29] sm:$0xff]
  %vm31 = vcmask 261120
  %s32 = scalar_lea.vmem %s1, 52
  %33 = vst.msk [vmem:[%s32] sm:$0xff] %vm31, %v30
  %s34 = scalar_lea.vmem %s0, 48
  %v35 = vld [vmem:[%s34] sm:$0xff]
  %vm36 = vcmask 261120
  %s37 = scalar_lea.vmem %s1, 64
  %38 = vst.msk [vmem:[%s37] sm:$0xff] %vm36, %v35
  %s39 = scalar_lea.vmem %s0, 56
  %v40 = vld [vmem:[%s39] sm:$0xff]
  %vm41 = vcmask 261120
  %s42 = scalar_lea.vmem %s1, 72
  %43 = vst.msk [vmem:[%s42] sm:$0xf] %vm41, %v40
  %s44 = scalar_lea.vmem %s1, 76
  %45 = vst.msk [vmem:[%s44] sm:$0xf0] %vm41, %v40
  %s46 = scalar_lea.vmem %s0, 64
  %v47 = vld [vmem:[%s46] sm:$0xff]
  %vm48 = vcmask 261120
  %s49 = scalar_lea.vmem %s1, 84
  %50 = vst.msk [vmem:[%s49] sm:$0xff] %vm48, %v47
  %s51 = scalar_lea.vmem %s0, 72
  %v52 = vld [vmem:[%s51] sm:$0xff]
  %vm53 = vcmask 261120
  %s54 = scalar_lea.vmem %s1, 96
  %55 = vst.msk [vmem:[%s54] sm:$0xff] %vm53, %v52
  %s56 = scalar_lea.vmem %s0, 80
  %v57 = vld [vmem:[%s56] sm:$0xff]
  %vm58 = vcmask 261120
  %s59 = scalar_lea.vmem %s1, 104
  %60 = vst.msk [vmem:[%s59] sm:$0xf] %vm58, %v57
  %s61 = scalar_lea.vmem %s1, 108
  %62 = vst.msk [vmem:[%s61] sm:$0xf0] %vm58, %v57
  %s63 = scalar_lea.vmem %s0, 88
  %v64 = vld [vmem:[%s63] sm:$0xff]
  %vm65 = vcmask 261120
  %s66 = scalar_lea.vmem %s1, 116
  %67 = vst.msk [vmem:[%s66] sm:$0xff] %vm65, %v64
  %s68 = scalar_lea.vmem %s0, 96
  %v69 = vld [vmem:[%s68] sm:$0xff]
  %vm70 = vcmask 261120
  %s71 = scalar_lea.vmem %s1, 128
  %72 = vst.msk [vmem:[%s71] sm:$0xff] %vm70, %v69
  %s73 = scalar_lea.vmem %s0, 104
  %v74 = vld [vmem:[%s73] sm:$0xff]
  %vm75 = vcmask 261120
  %s76 = scalar_lea.vmem %s1, 136
  %77 = vst.msk [vmem:[%s76] sm:$0xf] %vm75, %v74
  %s78 = scalar_lea.vmem %s1, 140
  %79 = vst.msk [vmem:[%s78] sm:$0xf0] %vm75, %v74
  %s80 = scalar_lea.vmem %s0, 112
  %v81 = vld [vmem:[%s80] sm:$0xff]
  %vm82 = vcmask 261120
  %s83 = scalar_lea.vmem %s1, 148
  %84 = vst.msk [vmem:[%s83] sm:$0xff] %vm82, %v81
  %s85 = scalar_lea.vmem %s0, 120
  %v86 = vld [vmem:[%s85] sm:$0xff]
  %vm87 = vcmask 261120
  %s88 = scalar_lea.vmem %s1, 160
  %89 = vst.msk [vmem:[%s88] sm:$0xff] %vm87, %v86
  %s90 = scalar_lea.vmem %s0, 128
  %v91 = vld [vmem:[%s90] sm:$0xff]
  %vm92 = vcmask 261120
  %s93 = scalar_lea.vmem %s1, 168
  %94 = vst.msk [vmem:[%s93] sm:$0xf] %vm92, %v91
  %s95 = scalar_lea.vmem %s1, 172
  %96 = vst.msk [vmem:[%s95] sm:$0xf0] %vm92, %v91
  %s97 = scalar_lea.vmem %s0, 136
  %v98 = vld [vmem:[%s97] sm:$0xff]
  %vm99 = vcmask 261120
  %s100 = scalar_lea.vmem %s1, 180
  %101 = vst.msk [vmem:[%s100] sm:$0xff] %vm99, %v98
  %s102 = scalar_lea.vmem %s0, 144
  %v103 = vld [vmem:[%s102] sm:$0xff]
  %vm104 = vcmask 261120
  %s105 = scalar_lea.vmem %s1, 192
  %106 = vst.msk [vmem:[%s105] sm:$0xff] %vm104, %v103
  %s107 = scalar_lea.vmem %s0, 152
  %v108 = vld [vmem:[%s107] sm:$0xff]
  %vm109 = vcmask 261120
  %s110 = scalar_lea.vmem %s1, 200
  %111 = vst.msk [vmem:[%s110] sm:$0xf] %vm109, %v108
  %s112 = scalar_lea.vmem %s1, 204
  %113 = vst.msk [vmem:[%s112] sm:$0xf0] %vm109, %v108
  %s114 = scalar_lea.vmem %s0, 160
  %v115 = vld [vmem:[%s114] sm:$0xff]
  %vm116 = vcmask 261120
  %s117 = scalar_lea.vmem %s1, 212
  %118 = vst.msk [vmem:[%s117] sm:$0xff] %vm116, %v115
  %s119 = scalar_lea.vmem %s0, 168
  %v120 = vld [vmem:[%s119] sm:$0xff]
  %vm121 = vcmask 261120
  %s122 = scalar_lea.vmem %s1, 224
  %123 = vst.msk [vmem:[%s122] sm:$0xff] %vm121, %v120
  %s124 = scalar_lea.vmem %s0, 176
  %v125 = vld [vmem:[%s124] sm:$0xff]
  %vm126 = vcmask 261120
  %s127 = scalar_lea.vmem %s1, 232
  %128 = vst.msk [vmem:[%s127] sm:$0xf] %vm126, %v125
  %s129 = scalar_lea.vmem %s1, 236
  %130 = vst.msk [vmem:[%s129] sm:$0xf0] %vm126, %v125
  %s131 = scalar_lea.vmem %s0, 184
  %v132 = vld [vmem:[%s131] sm:$0xff]
  %vm133 = vcmask 261120
  %s134 = scalar_lea.vmem %s1, 244
  %135 = vst.msk [vmem:[%s134] sm:$0xff] %vm133, %v132
  %s136 = scalar_lea.vmem %s0, 192
  %v137 = vld [vmem:[%s136] sm:$0xff]
  %vm138 = vcmask 261120
  %s139 = scalar_lea.vmem %s1, 256
  %140 = vst.msk [vmem:[%s139] sm:$0xff] %vm138, %v137
  %s141 = scalar_lea.vmem %s0, 200
  %v142 = vld [vmem:[%s141] sm:$0xff]
  %vm143 = vcmask 261120
  %s144 = scalar_lea.vmem %s1, 264
  %145 = vst.msk [vmem:[%s144] sm:$0xf] %vm143, %v142
  %s146 = scalar_lea.vmem %s1, 268
  %147 = vst.msk [vmem:[%s146] sm:$0xf0] %vm143, %v142
  %s148 = scalar_lea.vmem %s0, 208
  %v149 = vld [vmem:[%s148] sm:$0xff]
  %vm150 = vcmask 261120
  %s151 = scalar_lea.vmem %s1, 276
  %152 = vst.msk [vmem:[%s151] sm:$0xff] %vm150, %v149
  %s153 = scalar_lea.vmem %s0, 216
  %v154 = vld [vmem:[%s153] sm:$0xff]
  %vm155 = vcmask 261120
  %s156 = scalar_lea.vmem %s1, 288
  %157 = vst.msk [vmem:[%s156] sm:$0xff] %vm155, %v154
  %s158 = scalar_lea.vmem %s0, 224
  %v159 = vld [vmem:[%s158] sm:$0xff]
  %vm160 = vcmask 261120
  %s161 = scalar_lea.vmem %s1, 296
  %162 = vst.msk [vmem:[%s161] sm:$0xf] %vm160, %v159
  %s163 = scalar_lea.vmem %s1, 300
  %164 = vst.msk [vmem:[%s163] sm:$0xf0] %vm160, %v159
  %s165 = scalar_lea.vmem %s0, 232
  %v166 = vld [vmem:[%s165] sm:$0xff]
  %vm167 = vcmask 261120
  %s168 = scalar_lea.vmem %s1, 308
  %169 = vst.msk [vmem:[%s168] sm:$0xff] %vm167, %v166
  %s170 = scalar_lea.vmem %s0, 240
  %v171 = vld [vmem:[%s170] sm:$0xff]
  %vm172 = vcmask 261120
  %s173 = scalar_lea.vmem %s1, 320
  %174 = vst.msk [vmem:[%s173] sm:$0xff] %vm172, %v171
  %s175 = scalar_lea.vmem %s0, 248
  %v176 = vld [vmem:[%s175] sm:$0xff]
  %vm177 = vcmask 261120
  %s178 = scalar_lea.vmem %s1, 328
  %179 = vst.msk [vmem:[%s178] sm:$0xf] %vm177, %v176
  %s180 = scalar_lea.vmem %s1, 332
  %181 = vst.msk [vmem:[%s180] sm:$0xf0] %vm177, %v176
  %s182 = scalar_lea.vmem %s0, 256
  %v183 = vld [vmem:[%s182] sm:$0xff]
  %vm184 = vcmask 261120
  %s185 = scalar_lea.vmem %s1, 340
  %186 = vst.msk [vmem:[%s185] sm:$0xff] %vm184, %v183
  %s187 = scalar_lea.vmem %s0, 264
  %v188 = vld [vmem:[%s187] sm:$0xff]
  %vm189 = vcmask 261120
  %s190 = scalar_lea.vmem %s1, 352
  %191 = vst.msk [vmem:[%s190] sm:$0xff] %vm189, %v188
  %s192 = scalar_lea.vmem %s0, 272
  %v193 = vld [vmem:[%s192] sm:$0xff]
  %vm194 = vcmask 261120
  %s195 = scalar_lea.vmem %s1, 360
  %196 = vst.msk [vmem:[%s195] sm:$0xf] %vm194, %v193
  %s197 = scalar_lea.vmem %s1, 364
  %198 = vst.msk [vmem:[%s197] sm:$0xf0] %vm194, %v193
  %s199 = scalar_lea.vmem %s0, 280
  %v200 = vld [vmem:[%s199] sm:$0xff]
  %vm201 = vcmask 261120
  %s202 = scalar_lea.vmem %s1, 372
  %203 = vst.msk [vmem:[%s202] sm:$0xff] %vm201, %v200

// kernel: vae_forward.7
$region0: #{vae_forward.7}
  #allocation0 [shape = 'u32[]', space=smem, size = 0x4, offset = 0x4, fixed_abs, tag = 'smem constant byte address 0x4 - core index']
  #allocation1 [shape = 'u32[144,128]{1,0:T(1,128)}', space=vmem, size = 0x12000, scoped, tag = 'internal scratch']
  %s0 = inlined_call_operand.vmem [shape: f32[1,40,288], index: 0, kind: input, shape index: {}]
  %s1 = inlined_call_operand.vmem [shape: f32[1,32,40], index: 1, kind: input, shape index: {}]
  %s2 = inlined_call_operand.vmem [shape: f32[32,1], index: 2, kind: input, shape index: {}]
  %s3 = inlined_call_operand.vmem [shape: f32[1,32,288], index: 3, kind: output, shape index: {}]
  %s4 = sld [smem:[#allocation0]]
  $region22: #{vae_forward.7} parent=0
    _
  %s6 = ssub.s32 1, %s4
  %s7 = scalar_select 0, %s6, %s4
  // Predicated region
  $region2: #{vae_forward.7} parent=0 // pred_check
    _
  $region3: #{vae_forward.7} parent=0 // pred_check_branch
    %9 = sbr.rel (0) target = $region5
  $region4: #{vae_forward.7} parent=0 // pred_region
    _
  $region5: #{vae_forward.7} parent=0 // pred_fallthru
    _
  // Predicated region
  $region6: #{vae_forward.7} parent=0 // pred_check
    _
  $region7: #{vae_forward.7} parent=0 // pred_check_branch
    %11 = sbr.rel (0) target = $region9
  $region8: #{vae_forward.7} parent=0 // pred_region
    _
  $region9: #{vae_forward.7} parent=0 // pred_fallthru
    _
  // Predicated region
  $region10: #{vae_forward.7} parent=0 // pred_check
    _
  $region11: #{vae_forward.7} parent=0 // pred_check_branch
    %13 = sbr.rel (0) target = $region13
  $region12: #{vae_forward.7} parent=0 // pred_region
    _
  $region13: #{vae_forward.7} parent=0 // pred_fallthru
    _
  %v14 = vld [vmem:[%s2] sm:$0xff]
  %v15 = vld [vmem:[%s2 + $0x8] sm:$0xff]
  %v16 = vld [vmem:[%s2 + $0x10] sm:$0xff]
  %v17 = vld [vmem:[%s2 + $0x18] sm:$0xff]
  %v18 = vld [vmem:[%s1] sm:$0xff]
  %v19 = vld [vmem:[%s1 + $0x8] sm:$0xff]
  %v20 = vld [vmem:[%s1 + $0x10] sm:$0xff]
  %v21 = vld [vmem:[%s1 + $0x18] sm:$0xff]
  %v22 = vld [vmem:[%s0] sm:$0xff]
  %v23 = vld [vmem:[%s0 + $0x8] sm:$0xff]
  %v24 = vld [vmem:[%s0 + $0x10] sm:$0xff]
  %v25 = vld [vmem:[%s0 + $0x18] sm:$0xff]
  %v26 = vld [vmem:[%s0 + $0x20] sm:$0xff]
  %v27 = vld [vmem:[%s0 + $0x28] sm:$0xff]
  %v28 = vld [vmem:[%s0 + $0x30] sm:$0xff]
  %v29 = vld [vmem:[%s0 + $0x38] sm:$0xff]
  %v30 = vld [vmem:[%s0 + $0x40] sm:$0xff]
  %v31 = vld [vmem:[%s0 + $0x48] sm:$0xff]
  %v32 = vld [vmem:[%s0 + $0x50] sm:$0xff]
  %v33 = vld [vmem:[%s0 + $0x58] sm:$0xff]
  %v34 = vld [vmem:[%s0 + $0x60] sm:$0xff]
  %v35 = vld [vmem:[%s0 + $0x68] sm:$0xff]
  %v36 = vld [vmem:[%s0 + $0x70] sm:$0xff]
  %38 = vset.pattern.permute.xlu0 0
  %39 = vperm.xlu0 %38, %v14
  %v40 = vpop.permute.xlu0 %39
  %43 = vset.pattern.permute.xlu0 0
  %44 = vperm.xlu0 %43, %v15
  %v45 = vpop.permute.xlu0 %44
  %48 = vset.pattern.permute.xlu0 0
  %49 = vperm.xlu0 %48, %v16
  %v50 = vpop.permute.xlu0 %49
  %53 = vset.pattern.permute.xlu0 0
  %54 = vperm.xlu0 %53, %v17
  %v55 = vpop.permute.xlu0 %54
  %vm57 = vcmask 326656
  %v59 = vsel %vm57, %v18, 0
  %v62 = vsel %vm57, %v19, 0
  %v65 = vsel %vm57, %v20, 0
  %v68 = vsel %vm57, %v21, 0
  %70 = vmatprep.subr.mxu0 %v23
  %71 = vmatpush1.msra.mxu0 %v22
  %72 = vmatprep.subr.mxu0 %v26
  %73 = vmatpush1.msra.mxu0 %v25
  %74 = vmatprep.subr.mxu0 %v29
  %75 = vmatpush1.msra.mxu0 %v28
  %76 = vmatprep.subr.mxu0 %v32
  %77 = vmatpush1.msra.mxu0 %v31
  %78 = vmatprep.subr.mxu0 %v35
  %79 = vmatpush1.msra.mxu0 %v34
  %80 = vmatprep.subr.mxu0 0.0
  %81 = vmatpush1.msra.mxu0 0.0
  %82 = vmatprep.subr.mxu0 0.0
  %83 = vmatpush1.msra.mxu0 0.0
  %84 = vmatprep.subr.mxu0 0.0
  %85 = vmatpush1.msra.mxu0 0.0
  %86 = vmatprep.subr.mxu0 0.0
  %87 = vmatpush1.msra.mxu0 0.0
  %88 = vmatprep.subr.mxu0 0.0
  %89 = vmatpush1.msra.mxu0 0.0
  %90 = vmatprep.subr.mxu0 0.0
  %91 = vmatpush1.msra.mxu0 0.0
  %92 = vmatprep.subr.mxu0 0.0
  %93 = vmatpush1.msra.mxu0 0.0
  %94 = vmatprep.subr.mxu0 0.0
  %95 = vmatpush1.msra.mxu0 0.0
  %96 = vmatprep.subr.mxu0 0.0
  %97 = vmatpush1.msra.mxu0 0.0
  %98 = vmatprep.subr.mxu0 0.0
  %99 = vmatpush1.msra.mxu0 0.0
  %100 = vmatprep.subr.mxu0 0.0
  %101 = vmatpush1.msra.mxu0 0.0
  %102 = vmatprep.subr.mxu0 0.0
  %103 = vmatpush1.msra.mxu0 0.0
  %104 = vmatprep.subr.mxu0 0.0
  %105 = vmatpush1.msra.mxu0 0.0
  %106 = vmatprep.subr.mxu0 0.0
  %107 = vmatpush1.msra.mxu0 0.0
  %108 = vmatprep.subr.mxu0 0.0
  %109 = vmatpush1.msra.mxu0 0.0
  %110 = vmatprep.subr.mxu0 0.0
  %111 = vmatpush1.msra.mxu0 0.0
  %112 = vmatprep.subr.mxu0 0.0
  %113 = vmatpush1.msra.mxu0 0.0
  %114 = vmatprep.subr.mxu0 0.0
  %115 = vmatpush1.msra.mxu0 0.0
  %116 = vmatprep.subr.mxu0 0.0
  %117 = vmatpush1.msra.mxu0 0.0
  %118 = vmatprep.subr.mxu0 0.0
  %119 = vmatpush1.msra.mxu0 0.0
  %120 = vmatprep.subr.mxu0 0.0
  %121 = vmatpush1.msra.mxu0 0.0
  %122 = vmatprep.subr.mxu0 0.0
  %123 = vmatpush1.msra.mxu0 0.0
  %124 = vmatprep.subr.mxu0 0.0
  %125 = vmatpush1.msra.mxu0 0.0
  %126 = vmatprep.subr.mxu0 0.0
  %127 = vmatpush1.msra.mxu0 0.0
  %128 = vmatprep.subr.mxu0 0.0
  %129 = vmatpush1.msra.mxu0 0.0
  %130 = vmatprep.subr.mxu0 0.0
  %131 = vmatpush1.msra.mxu0 0.0
  %132 = vmatprep.subr.mxu0 0.0
  %133 = vmatpush1.msra.mxu0 0.0
  %134 = vmatprep.mubr.f32.mxu0 0.0
  %135 = vmatmul.mubr.f32.gmra.mrb[0].mxu0 %v59
  %v136 = vpop.f32.mrb[0].mxu0
  %v137 = vadd.f32 %v40, %v136
  %v138 = vpop.f32.mrb[0].mxu0
  %v139 = vadd.f32 %v40, %v138
  %140 = vmatprep.mubr.f32.mxu0 0.0
  %141 = vmatmul.mubr.f32.gmra.mrb[0].mxu0 %v62
  %v142 = vpop.f32.mrb[0].mxu0
  %v143 = vadd.f32 %v45, %v142
  %v144 = vpop.f32.mrb[0].mxu0
  %v145 = vadd.f32 %v45, %v144
  %146 = vmatprep.mubr.f32.mxu0 0.0
  %147 = vmatmul.mubr.f32.gmra.mrb[0].mxu0 %v65
  %v148 = vpop.f32.mrb[0].mxu0
  %v149 = vadd.f32 %v50, %v148
  %v150 = vpop.f32.mrb[0].mxu0
  %v151 = vadd.f32 %v50, %v150
  %152 = vmatprep.mubr.f32.mxu0 0.0
  %153 = vmatmul.mubr.f32.gmra.mrb[0].mxu0 %v68
  %v154 = vpop.f32.mrb[0].mxu0
  %v155 = vadd.f32 %v55, %v154
  %v156 = vpop.f32.mrb[0].mxu0
  %v157 = vadd.f32 %v55, %v156
  %158 = vdwg.mxu0
  %159 = vmatprep.subr.mxu0 0.0
  %160 = vmatpush1.msra.mxu0 %v24
  %161 = vmatprep.subr.mxu0 0.0
  %162 = vmatpush1.msra.mxu0 %v27
  %163 = vmatprep.subr.mxu0 0.0
  %164 = vmatpush1.msra.mxu0 %v30
  %165 = vmatprep.subr.mxu0 0.0
  %166 = vmatpush1.msra.mxu0 %v33
  %167 = vmatprep.subr.mxu0 0.0
  %168 = vmatpush1.msra.mxu0 %v36
  %169 = vmatprep.subr.mxu0 0.0
  %170 = vmatpush1.msra.mxu0 0.0
  %171 = vmatprep.subr.mxu0 0.0
  %172 = vmatpush1.msra.mxu0 0.0
  %173 = vmatprep.subr.mxu0 0.0
  %174 = vmatpush1.msra.mxu0 0.0
  %175 = vmatprep.subr.mxu0 0.0
  %176 = vmatpush1.msra.mxu0 0.0
  %177 = vmatprep.subr.mxu0 0.0
  %178 = vmatpush1.msra.mxu0 0.0
  %179 = vmatprep.subr.mxu0 0.0
  %180 = vmatpush1.msra.mxu0 0.0
  %181 = vmatprep.subr.mxu0 0.0
  %182 = vmatpush1.msra.mxu0 0.0
  %183 = vmatprep.subr.mxu0 0.0
  %184 = vmatpush1.msra.mxu0 0.0
  %185 = vmatprep.subr.mxu0 0.0
  %186 = vmatpush1.msra.mxu0 0.0
  %187 = vmatprep.subr.mxu0 0.0
  %188 = vmatpush1.msra.mxu0 0.0
  %189 = vmatprep.subr.mxu0 0.0
  %190 = vmatpush1.msra.mxu0 0.0
  %191 = vmatprep.subr.mxu0 0.0
  %192 = vmatpush1.msra.mxu0 0.0
  %193 = vmatprep.subr.mxu0 0.0
  %194 = vmatpush1.msra.mxu0 0.0
  %195 = vmatprep.subr.mxu0 0.0
  %196 = vmatpush1.msra.mxu0 0.0
  %197 = vmatprep.subr.mxu0 0.0
  %198 = vmatpush1.msra.mxu0 0.0
  %199 = vmatprep.subr.mxu0 0.0
  %200 = vmatpush1.msra.mxu0 0.0
  %201 = vmatprep.subr.mxu0 0.0
  %202 = vmatpush1.msra.mxu0 0.0
  %203 = vmatprep.subr.mxu0 0.0
  %204 = vmatpush1.msra.mxu0 0.0
  %205 = vmatprep.subr.mxu0 0.0
  %206 = vmatpush1.msra.mxu0 0.0
  %207 = vmatprep.subr.mxu0 0.0
  %208 = vmatpush1.msra.mxu0 0.0
  %209 = vmatprep.subr.mxu0 0.0
  %210 = vmatpush1.msra.mxu0 0.0
  %211 = vmatprep.subr.mxu0 0.0
  %212 = vmatpush1.msra.mxu0 0.0
  %213 = vmatprep.subr.mxu0 0.0
  %214 = vmatpush1.msra.mxu0 0.0
  %215 = vmatprep.subr.mxu0 0.0
  %216 = vmatpush1.msra.mxu0 0.0
  %217 = vmatprep.subr.mxu0 0.0
  %218 = vmatpush1.msra.mxu0 0.0
  %219 = vmatprep.subr.mxu0 0.0
  %220 = vmatpush1.msra.mxu0 0.0
  %221 = vmatprep.subr.mxu0 0.0
  %222 = vmatpush1.msra.mxu0 0.0
  %223 = vmatprep.mubr.f32.mxu0 0.0
  %224 = vmatmul.mubr.f32.gmra.mrb[0].mxu0 %v59
  %v225 = vpop.f32.mrb[0].mxu0
  %v226 = vadd.f32 %v40, %v225
  %v227 = vpop.f32.mrb[0].mxu0
  %228 = vmatprep.mubr.f32.mxu0 0.0
  %229 = vmatmul.mubr.f32.gmra.mrb[0].mxu0 %v62
  %v230 = vpop.f32.mrb[0].mxu0
  %v231 = vadd.f32 %v45, %v230
  %v232 = vpop.f32.mrb[0].mxu0
  %233 = vmatprep.mubr.f32.mxu0 0.0
  %234 = vmatmul.mubr.f32.gmra.mrb[0].mxu0 %v65
  %v235 = vpop.f32.mrb[0].mxu0
  %v236 = vadd.f32 %v50, %v235
  %v237 = vpop.f32.mrb[0].mxu0
  %238 = vmatprep.mubr.f32.mxu0 0.0
  %239 = vmatmul.mubr.f32.gmra.mrb[0].mxu0 %v68
  %v240 = vpop.f32.mrb[0].mxu0
  %v241 = vadd.f32 %v55, %v240
  %v242 = vpop.f32.mrb[0].mxu0
  %243 = vdwg.mxu0
  %v244 = vmax.f32 %v137, 0.0
  %v245 = vmax.f32 %v139, 0.0
  %v246 = vmax.f32 %v226, 0.0
  %v247 = vmax.f32 %v143, 0.0
  %v248 = vmax.f32 %v145, 0.0
  %v249 = vmax.f32 %v231, 0.0
  %v250 = vmax.f32 %v149, 0.0
  %v251 = vmax.f32 %v151, 0.0
  %v252 = vmax.f32 %v236, 0.0
  %v253 = vmax.f32 %v155, 0.0
  %v254 = vmax.f32 %v157, 0.0
  %v255 = vmax.f32 %v241, 0.0
  %256 = vst [vmem:[%s3] sm:$0xff] %v244
  %257 = vst [vmem:[%s3 + $0x8] sm:$0xff] %v245
  %vm258 = vcmask 261120
  %259 = vst.msk [vmem:[%s3 + $0x10] sm:$0xff] %vm258, %v246
  %260 = vst [vmem:[%s3 + $0x18] sm:$0xff] %v247
  %261 = vst [vmem:[%s3 + $0x20] sm:$0xff] %v248
  %262 = vst.msk [vmem:[%s3 + $0x28] sm:$0xff] %vm258, %v249
  %263 = vst [vmem:[%s3 + $0x30] sm:$0xff] %v250
  %264 = vst [vmem:[%s3 + $0x38] sm:$0xff] %v251
  %265 = vst.msk [vmem:[%s3 + $0x40] sm:$0xff] %vm258, %v252
  %266 = vst [vmem:[%s3 + $0x48] sm:$0xff] %v253
  %267 = vst [vmem:[%s3 + $0x50] sm:$0xff] %v254
  %268 = vst.msk [vmem:[%s3 + $0x58] sm:$0xff] %vm258, %v255
  // Predicated region
  $region14: #{vae_forward.7} parent=0 // pred_check
    _
  $region15: #{vae_forward.7} parent=0 // pred_check_branch
    %270 = sbr.rel (0) target = $region17
  $region16: #{vae_forward.7} parent=0 // pred_region
    _
  $region17: #{vae_forward.7} parent=0 // pred_fallthru
    _
  // Predicated region
  $region18: #{vae_forward.7} parent=0 // pred_check
    _
  $region19: #{vae_forward.7} parent=0 // pred_check_branch
    %272 = sbr.rel (0) target = $region21
  $region20: #{vae_forward.7} parent=0 // pred_region
    _
  $region21: #{vae_forward.7} parent=0 // pred_fallthru
    _

// kernel: squeeze.4
$region0: #{squeeze.4}
  %s0 = inlined_call_operand.vmem [shape: f32[1,64,72], index: 0, kind: input, shape index: {}]
  %s1 = inlined_call_operand.vmem [shape: f32[64,2,6,6], index: 1, kind: output, shape index: {}]
  %v2 = vld [vmem:[%s0] sm:$0xff]
  %vm3 = vcmask 523264
  %4 = vst.msk [vmem:[%s1] sm:$0x3f] %vm3, %v2
  %s5 = scalar_lea.vmem %s1, 2
  %6 = vst.msk [vmem:[%s5] sm:$0xc0] %vm3, %v2
  %s7 = scalar_lea.vmem %s0, 8
  %v8 = vld [vmem:[%s7] sm:$0xff]
  %vm9 = vcmask 523264
  %s10 = scalar_lea.vmem %s1, 10
  %11 = vst.msk [vmem:[%s10] sm:$0xf] %vm9, %v8
  %s12 = scalar_lea.vmem %s1, 12
  %13 = vst.msk [vmem:[%s12] sm:$0xf0] %vm9, %v8
  %s14 = scalar_lea.vmem %s0, 16
  %v15 = vld [vmem:[%s14] sm:$0xff]
  %vm16 = vcmask 523264
  %s17 = scalar_lea.vmem %s1, 20
  %18 = vst.msk [vmem:[%s17] sm:$0x3] %vm16, %v15
  %s19 = scalar_lea.vmem %s1, 22
  %20 = vst.msk [vmem:[%s19] sm:$0xfc] %vm16, %v15
  %s21 = scalar_lea.vmem %s0, 24
  %v22 = vld [vmem:[%s21] sm:$0xff]
  %vm23 = vcmask 523264
  %s24 = scalar_lea.vmem %s1, 32
  %25 = vst.msk [vmem:[%s24] sm:$0x3f] %vm23, %v22
  %s26 = scalar_lea.vmem %s1, 34
  %27 = vst.msk [vmem:[%s26] sm:$0xc0] %vm23, %v22
  %s28 = scalar_lea.vmem %s0, 32
  %v29 = vld [vmem:[%s28] sm:$0xff]
  %vm30 = vcmask 523264
  %s31 = scalar_lea.vmem %s1, 42
  %32 = vst.msk [vmem:[%s31] sm:$0xf] %vm30, %v29
  %s33 = scalar_lea.vmem %s1, 44
  %34 = vst.msk [vmem:[%s33] sm:$0xf0] %vm30, %v29
  %s35 = scalar_lea.vmem %s0, 40
  %v36 = vld [vmem:[%s35] sm:$0xff]
  %vm37 = vcmask 523264
  %s38 = scalar_lea.vmem %s1, 52
  %39 = vst.msk [vmem:[%s38] sm:$0x3] %vm37, %v36
  %s40 = scalar_lea.vmem %s1, 54
  %41 = vst.msk [vmem:[%s40] sm:$0xfc] %vm37, %v36
  %s42 = scalar_lea.vmem %s0, 48
  %v43 = vld [vmem:[%s42] sm:$0xff]
  %vm44 = vcmask 523264
  %s45 = scalar_lea.vmem %s1, 64
  %46 = vst.msk [vmem:[%s45] sm:$0x3f] %vm44, %v43
  %s47 = scalar_lea.vmem %s1, 66
  %48 = vst.msk [vmem:[%s47] sm:$0xc0] %vm44, %v43
  %s49 = scalar_lea.vmem %s0, 56
  %v50 = vld [vmem:[%s49] sm:$0xff]
  %vm51 = vcmask 523264
  %s52 = scalar_lea.vmem %s1, 74
  %53 = vst.msk [vmem:[%s52] sm:$0xf] %vm51, %v50
  %s54 = scalar_lea.vmem %s1, 76
  %55 = vst.msk [vmem:[%s54] sm:$0xf0] %vm51, %v50
  %s56 = scalar_lea.vmem %s0, 64
  %v57 = vld [vmem:[%s56] sm:$0xff]
  %vm58 = vcmask 523264
  %s59 = scalar_lea.vmem %s1, 84
  %60 = vst.msk [vmem:[%s59] sm:$0x3] %vm58, %v57
  %s61 = scalar_lea.vmem %s1, 86
  %62 = vst.msk [vmem:[%s61] sm:$0xfc] %vm58, %v57

// kernel: vae_forward.8
$region0: #{vae_forward.8}
  #allocation0 [shape = 'u32[]', space=smem, size = 0x4, offset = 0x4, fixed_abs, tag = 'smem constant byte address 0x4 - core index']
  #allocation1 [shape = 'u32[144,128]{1,0:T(1,128)}', space=vmem, size = 0x12000, scoped, tag = 'internal scratch']
  %s0 = inlined_call_operand.vmem [shape: f32[1,512,72], index: 0, kind: input, shape index: {}]
  %s1 = inlined_call_operand.vmem [shape: f32[1,64,512], index: 1, kind: input, shape index: {}]
  %s2 = inlined_call_operand.vmem [shape: f32[64,1], index: 2, kind: input, shape index: {}]
  %s3 = inlined_call_operand.vmem [shape: f32[1,64,72], index: 3, kind: output, shape index: {}]
  %s4 = sld [smem:[#allocation0]]
  $region22: #{vae_forward.8} parent=0
    _
  %s6 = ssub.s32 1, %s4
  %s7 = scalar_select 0, %s6, %s4
  // Predicated region
  $region2: #{vae_forward.8} parent=0 // pred_check
    _
  $region3: #{vae_forward.8} parent=0 // pred_check_branch
    %9 = sbr.rel (0) target = $region5
  $region4: #{vae_forward.8} parent=0 // pred_region
    _
  $region5: #{vae_forward.8} parent=0 // pred_fallthru
    _
  // Predicated region
  $region6: #{vae_forward.8} parent=0 // pred_check
    _
  $region7: #{vae_forward.8} parent=0 // pred_check_branch
    %11 = sbr.rel (0) target = $region9
  $region8: #{vae_forward.8} parent=0 // pred_region
    _
  $region9: #{vae_forward.8} parent=0 // pred_fallthru
    _
  // Predicated region
  $region10: #{vae_forward.8} parent=0 // pred_check
    _
  $region11: #{vae_forward.8} parent=0 // pred_check_branch
    %13 = sbr.rel (0) target = $region13
  $region12: #{vae_forward.8} parent=0 // pred_region
    _
  $region13: #{vae_forward.8} parent=0 // pred_fallthru
    _
  %v14 = vld [vmem:[%s2] sm:$0xff]
  %v15 = vld [vmem:[%s2 + $0x8] sm:$0xff]
  %v16 = vld [vmem:[%s2 + $0x10] sm:$0xff]
  %v17 = vld [vmem:[%s2 + $0x18] sm:$0xff]
  %v18 = vld [vmem:[%s2 + $0x20] sm:$0xff]
  %v19 = vld [vmem:[%s2 + $0x28] sm:$0xff]
  %v20 = vld [vmem:[%s2 + $0x30] sm:$0xff]
  %v21 = vld [vmem:[%s2 + $0x38] sm:$0xff]
  %v22 = vld [vmem:[%s1] sm:$0xff]
  %v23 = vld [vmem:[%s1 + $0x8] sm:$0xff]
  %v24 = vld [vmem:[%s1 + $0x10] sm:$0xff]
  %v25 = vld [vmem:[%s1 + $0x18] sm:$0xff]
  %v26 = vld [vmem:[%s1 + $0x20] sm:$0xff]
  %v27 = vld [vmem:[%s1 + $0x28] sm:$0xff]
  %v28 = vld [vmem:[%s1 + $0x30] sm:$0xff]
  %v29 = vld [vmem:[%s1 + $0x38] sm:$0xff]
  %v30 = vld [vmem:[%s1 + $0x40] sm:$0xff]
  %v31 = vld [vmem:[%s1 + $0x48] sm:$0xff]
  %v32 = vld [vmem:[%s1 + $0x50] sm:$0xff]
  %v33 = vld [vmem:[%s1 + $0x58] sm:$0xff]
  %v34 = vld [vmem:[%s1 + $0x60] sm:$0xff]
  %v35 = vld [vmem:[%s1 + $0x68] sm:$0xff]
  %v36 = vld [vmem:[%s1 + $0x70] sm:$0xff]
  %v37 = vld [vmem:[%s1 + $0x78] sm:$0xff]
  %v38 = vld [vmem:[%s1 + $0x80] sm:$0xff]
  %v39 = vld [vmem:[%s1 + $0x88] sm:$0xff]
  %v40 = vld [vmem:[%s1 + $0x90] sm:$0xff]
  %v41 = vld [vmem:[%s1 + $0x98] sm:$0xff]
  %v42 = vld [vmem:[%s1 + $0xa0] sm:$0xff]
  %v43 = vld [vmem:[%s1 + $0xa8] sm:$0xff]
  %v44 = vld [vmem:[%s1 + $0xb0] sm:$0xff]
  %v45 = vld [vmem:[%s1 + $0xb8] sm:$0xff]
  %v46 = vld [vmem:[%s1 + $0xc0] sm:$0xff]
  %v47 = vld [vmem:[%s1 + $0xc8] sm:$0xff]
  %v48 = vld [vmem:[%s1 + $0xd0] sm:$0xff]
  %v49 = vld [vmem:[%s1 + $0xd8] sm:$0xff]
  %v50 = vld [vmem:[%s1 + $0xe0] sm:$0xff]
  %v51 = vld [vmem:[%s1 + $0xe8] sm:$0xff]
  %v52 = vld [vmem:[%s1 + $0xf0] sm:$0xff]
  %v53 = vld [vmem:[%s1 + $0xf8] sm:$0xff]
  %v54 = vld [vmem:[%s0] sm:$0xff]
  %v55 = vld [vmem:[%s0 + $0x8] sm:$0xff]
  %v56 = vld [vmem:[%s0 + $0x10] sm:$0xff]
  %v57 = vld [vmem:[%s0 + $0x18] sm:$0xff]
  %v58 = vld [vmem:[%s0 + $0x20] sm:$0xff]
  %v59 = vld [vmem:[%s0 + $0x28] sm:$0xff]
  %v60 = vld [vmem:[%s0 + $0x30] sm:$0xff]
  %v61 = vld [vmem:[%s0 + $0x38] sm:$0xff]
  %v62 = vld [vmem:[%s0 + $0x40] sm:$0xff]
  %v63 = vld [vmem:[%s0 + $0x48] sm:$0xff]
  %v64 = vld [vmem:[%s0 + $0x50] sm:$0xff]
  %v65 = vld [vmem:[%s0 + $0x58] sm:$0xff]
  %v66 = vld [vmem:[%s0 + $0x60] sm:$0xff]
  %v67 = vld [vmem:[%s0 + $0x68] sm:$0xff]
  %v68 = vld [vmem:[%s0 + $0x70] sm:$0xff]
  %v69 = vld [vmem:[%s0 + $0x78] sm:$0xff]
  %v70 = vld [vmem:[%s0 + $0x80] sm:$0xff]
  %v71 = vld [vmem:[%s0 + $0x88] sm:$0xff]
  %v72 = vld [vmem:[%s0 + $0x90] sm:$0xff]
  %v73 = vld [vmem:[%s0 + $0x98] sm:$0xff]
  %v74 = vld [vmem:[%s0 + $0xa0] sm:$0xff]
  %v75 = vld [vmem:[%s0 + $0xa8] sm:$0xff]
  %v76 = vld [vmem:[%s0 + $0xb0] sm:$0xff]
  %v77 = vld [vmem:[%s0 + $0xb8] sm:$0xff]
  %v78 = vld [vmem:[%s0 + $0xc0] sm:$0xff]
  %v79 = vld [vmem:[%s0 + $0xc8] sm:$0xff]
  %v80 = vld [vmem:[%s0 + $0xd0] sm:$0xff]
  %v81 = vld [vmem:[%s0 + $0xd8] sm:$0xff]
  %v82 = vld [vmem:[%s0 + $0xe0] sm:$0xff]
  %v83 = vld [vmem:[%s0 + $0xe8] sm:$0xff]
  %v84 = vld [vmem:[%s0 + $0xf0] sm:$0xff]
  %v85 = vld [vmem:[%s0 + $0xf8] sm:$0xff]
  %v86 = vld [vmem:[%s0 + $0x100] sm:$0xff]
  %v87 = vld [vmem:[%s0 + $0x108] sm:$0xff]
  %v88 = vld [vmem:[%s0 + $0x110] sm:$0xff]
  %v89 = vld [vmem:[%s0 + $0x118] sm:$0xff]
  %v90 = vld [vmem:[%s0 + $0x120] sm:$0xff]
  %v91 = vld [vmem:[%s0 + $0x128] sm:$0xff]
  %v92 = vld [vmem:[%s0 + $0x130] sm:$0xff]
  %v93 = vld [vmem:[%s0 + $0x138] sm:$0xff]
  %v94 = vld [vmem:[%s0 + $0x140] sm:$0xff]
  %v95 = vld [vmem:[%s0 + $0x148] sm:$0xff]
  %v96 = vld [vmem:[%s0 + $0x150] sm:$0xff]
  %v97 = vld [vmem:[%s0 + $0x158] sm:$0xff]
  %v98 = vld [vmem:[%s0 + $0x160] sm:$0xff]
  %v99 = vld [vmem:[%s0 + $0x168] sm:$0xff]
  %v100 = vld [vmem:[%s0 + $0x170] sm:$0xff]
  %v101 = vld [vmem:[%s0 + $0x178] sm:$0xff]
  %v102 = vld [vmem:[%s0 + $0x180] sm:$0xff]
  %v103 = vld [vmem:[%s0 + $0x188] sm:$0xff]
  %v104 = vld [vmem:[%s0 + $0x190] sm:$0xff]
  %v105 = vld [vmem:[%s0 + $0x198] sm:$0xff]
  %v106 = vld [vmem:[%s0 + $0x1a0] sm:$0xff]
  %v107 = vld [vmem:[%s0 + $0x1a8] sm:$0xff]
  %v108 = vld [vmem:[%s0 + $0x1b0] sm:$0xff]
  %v109 = vld [vmem:[%s0 + $0x1b8] sm:$0xff]
  %v110 = vld [vmem:[%s0 + $0x1c0] sm:$0xff]
  %v111 = vld [vmem:[%s0 + $0x1c8] sm:$0xff]
  %v112 = vld [vmem:[%s0 + $0x1d0] sm:$0xff]
  %v113 = vld [vmem:[%s0 + $0x1d8] sm:$0xff]
  %v114 = vld [vmem:[%s0 + $0x1e0] sm:$0xff]
  %v115 = vld [vmem:[%s0 + $0x1e8] sm:$0xff]
  %v116 = vld [vmem:[%s0 + $0x1f0] sm:$0xff]
  %v117 = vld [vmem:[%s0 + $0x1f8] sm:$0xff]
  %119 = vset.pattern.permute.xlu0 0
  %120 = vperm.xlu0 %119, %v14
  %v121 = vpop.permute.xlu0 %120
  %124 = vset.pattern.permute.xlu0 0
  %125 = vperm.xlu0 %124, %v15
  %v126 = vpop.permute.xlu0 %125
  %129 = vset.pattern.permute.xlu0 0
  %130 = vperm.xlu0 %129, %v16
  %v131 = vpop.permute.xlu0 %130
  %134 = vset.pattern.permute.xlu0 0
  %135 = vperm.xlu0 %134, %v17
  %v136 = vpop.permute.xlu0 %135
  %139 = vset.pattern.permute.xlu0 0
  %140 = vperm.xlu0 %139, %v18
  %v141 = vpop.permute.xlu0 %140
  %144 = vset.pattern.permute.xlu0 0
  %145 = vperm.xlu0 %144, %v19
  %v146 = vpop.permute.xlu0 %145
  %149 = vset.pattern.permute.xlu0 0
  %150 = vperm.xlu0 %149, %v20
  %v151 = vpop.permute.xlu0 %150
  %154 = vset.pattern.permute.xlu0 0
  %155 = vperm.xlu0 %154, %v21
  %v156 = vpop.permute.xlu0 %155
  %158 = vmatprep.subr.mxu0 0.0
  %159 = vmatpush1.msra.mxu0 %v54
  %160 = vmatprep.subr.mxu0 0.0
  %161 = vmatpush1.msra.mxu0 %v55
  %162 = vmatprep.subr.mxu0 0.0
  %163 = vmatpush1.msra.mxu0 %v56
  %164 = vmatprep.subr.mxu0 0.0
  %165 = vmatpush1.msra.mxu0 %v57
  %166 = vmatprep.subr.mxu0 0.0
  %167 = vmatpush1.msra.mxu0 %v58
  %168 = vmatprep.subr.mxu0 0.0
  %169 = vmatpush1.msra.mxu0 %v59
  %170 = vmatprep.subr.mxu0 0.0
  %171 = vmatpush1.msra.mxu0 %v60
  %172 = vmatprep.subr.mxu0 0.0
  %173 = vmatpush1.msra.mxu0 %v61
  %174 = vmatprep.subr.mxu0 0.0
  %175 = vmatpush1.msra.mxu0 %v62
  %176 = vmatprep.subr.mxu0 0.0
  %177 = vmatpush1.msra.mxu0 %v63
  %178 = vmatprep.subr.mxu0 0.0
  %179 = vmatpush1.msra.mxu0 %v64
  %180 = vmatprep.subr.mxu0 0.0
  %181 = vmatpush1.msra.mxu0 %v65
  %182 = vmatprep.subr.mxu0 0.0
  %183 = vmatpush1.msra.mxu0 %v66
  %184 = vmatprep.subr.mxu0 0.0
  %185 = vmatpush1.msra.mxu0 %v67
  %186 = vmatprep.subr.mxu0 0.0
  %187 = vmatpush1.msra.mxu0 %v68
  %188 = vmatprep.subr.mxu0 0.0
  %189 = vmatpush1.msra.mxu0 %v69
  %190 = vmatprep.subr.mxu0 0.0
  %191 = vmatpush1.msra.mxu0 %v70
  %192 = vmatprep.subr.mxu0 0.0
  %193 = vmatpush1.msra.mxu0 %v71
  %194 = vmatprep.subr.mxu0 0.0
  %195 = vmatpush1.msra.mxu0 %v72
  %196 = vmatprep.subr.mxu0 0.0
  %197 = vmatpush1.msra.mxu0 %v73
  %198 = vmatprep.subr.mxu0 0.0
  %199 = vmatpush1.msra.mxu0 %v74
  %200 = vmatprep.subr.mxu0 0.0
  %201 = vmatpush1.msra.mxu0 %v75
  %202 = vmatprep.subr.mxu0 0.0
  %203 = vmatpush1.msra.mxu0 %v76
  %204 = vmatprep.subr.mxu0 0.0
  %205 = vmatpush1.msra.mxu0 %v77
  %206 = vmatprep.subr.mxu0 0.0
  %207 = vmatpush1.msra.mxu0 %v78
  %208 = vmatprep.subr.mxu0 0.0
  %209 = vmatpush1.msra.mxu0 %v79
  %210 = vmatprep.subr.mxu0 0.0
  %211 = vmatpush1.msra.mxu0 %v80
  %212 = vmatprep.subr.mxu0 0.0
  %213 = vmatpush1.msra.mxu0 %v81
  %214 = vmatprep.subr.mxu0 0.0
  %215 = vmatpush1.msra.mxu0 %v82
  %216 = vmatprep.subr.mxu0 0.0
  %217 = vmatpush1.msra.mxu0 %v83
  %218 = vmatprep.subr.mxu0 0.0
  %219 = vmatpush1.msra.mxu0 %v84
  %220 = vmatprep.subr.mxu0 0.0
  %221 = vmatpush1.msra.mxu0 %v85
  %222 = vmatprep.mubr.f32.mxu0 %v23
  %223 = vmatmul.mubr.f32.gmra.mrb[0].mxu0 %v22
  %v224 = vpop.f32.mrb[0].mxu0
  %v225 = vadd.f32 %v121, %v224
  %v226 = vpop.f32.mrb[0].mxu0
  %227 = vmatprep.mubr.f32.mxu0 %v27
  %228 = vmatmul.mubr.f32.gmra.mrb[0].mxu0 %v26
  %v229 = vpop.f32.mrb[0].mxu0
  %v230 = vadd.f32 %v126, %v229
  %v231 = vpop.f32.mrb[0].mxu0
  %232 = vmatprep.mubr.f32.mxu0 %v31
  %233 = vmatmul.mubr.f32.gmra.mrb[0].mxu0 %v30
  %v234 = vpop.f32.mrb[0].mxu0
  %v235 = vadd.f32 %v131, %v234
  %v236 = vpop.f32.mrb[0].mxu0
  %237 = vmatprep.mubr.f32.mxu0 %v35
  %238 = vmatmul.mubr.f32.gmra.mrb[0].mxu0 %v34
  %v239 = vpop.f32.mrb[0].mxu0
  %v240 = vadd.f32 %v136, %v239
  %v241 = vpop.f32.mrb[0].mxu0
  %242 = vmatprep.mubr.f32.mxu0 %v39
  %243 = vmatmul.mubr.f32.gmra.mrb[0].mxu0 %v38
  %v244 = vpop.f32.mrb[0].mxu0
  %v245 = vadd.f32 %v141, %v244
  %v246 = vpop.f32.mrb[0].mxu0
  %247 = vmatprep.mubr.f32.mxu0 %v43
  %248 = vmatmul.mubr.f32.gmra.mrb[0].mxu0 %v42
  %v249 = vpop.f32.mrb[0].mxu0
  %v250 = vadd.f32 %v146, %v249
  %v251 = vpop.f32.mrb[0].mxu0
  %252 = vmatprep.mubr.f32.mxu0 %v47
  %253 = vmatmul.mubr.f32.gmra.mrb[0].mxu0 %v46
  %v254 = vpop.f32.mrb[0].mxu0
  %v255 = vadd.f32 %v151, %v254
  %v256 = vpop.f32.mrb[0].mxu0
  %257 = vmatprep.mubr.f32.mxu0 %v51
  %258 = vmatmul.mubr.f32.gmra.mrb[0].mxu0 %v50
  %v259 = vpop.f32.mrb[0].mxu0
  %v260 = vadd.f32 %v156, %v259
  %v261 = vpop.f32.mrb[0].mxu0
  %262 = vdwg.mxu0
  %263 = vmatprep.subr.mxu0 0.0
  %264 = vmatpush1.msra.mxu0 %v86
  %265 = vmatprep.subr.mxu0 0.0
  %266 = vmatpush1.msra.mxu0 %v87
  %267 = vmatprep.subr.mxu0 0.0
  %268 = vmatpush1.msra.mxu0 %v88
  %269 = vmatprep.subr.mxu0 0.0
  %270 = vmatpush1.msra.mxu0 %v89
  %271 = vmatprep.subr.mxu0 0.0
  %272 = vmatpush1.msra.mxu0 %v90
  %273 = vmatprep.subr.mxu0 0.0
  %274 = vmatpush1.msra.mxu0 %v91
  %275 = vmatprep.subr.mxu0 0.0
  %276 = vmatpush1.msra.mxu0 %v92
  %277 = vmatprep.subr.mxu0 0.0
  %278 = vmatpush1.msra.mxu0 %v93
  %279 = vmatprep.subr.mxu0 0.0
  %280 = vmatpush1.msra.mxu0 %v94
  %281 = vmatprep.subr.mxu0 0.0
  %282 = vmatpush1.msra.mxu0 %v95
  %283 = vmatprep.subr.mxu0 0.0
  %284 = vmatpush1.msra.mxu0 %v96
  %285 = vmatprep.subr.mxu0 0.0
  %286 = vmatpush1.msra.mxu0 %v97
  %287 = vmatprep.subr.mxu0 0.0
  %288 = vmatpush1.msra.mxu0 %v98
  %289 = vmatprep.subr.mxu0 0.0
  %290 = vmatpush1.msra.mxu0 %v99
  %291 = vmatprep.subr.mxu0 0.0
  %292 = vmatpush1.msra.mxu0 %v100
  %293 = vmatprep.subr.mxu0 0.0
  %294 = vmatpush1.msra.mxu0 %v101
  %295 = vmatprep.subr.mxu0 0.0
  %296 = vmatpush1.msra.mxu0 %v102
  %297 = vmatprep.subr.mxu0 0.0
  %298 = vmatpush1.msra.mxu0 %v103
  %299 = vmatprep.subr.mxu0 0.0
  %300 = vmatpush1.msra.mxu0 %v104
  %301 = vmatprep.subr.mxu0 0.0
  %302 = vmatpush1.msra.mxu0 %v105
  %303 = vmatprep.subr.mxu0 0.0
  %304 = vmatpush1.msra.mxu0 %v106
  %305 = vmatprep.subr.mxu0 0.0
  %306 = vmatpush1.msra.mxu0 %v107
  %307 = vmatprep.subr.mxu0 0.0
  %308 = vmatpush1.msra.mxu0 %v108
  %309 = vmatprep.subr.mxu0 0.0
  %310 = vmatpush1.msra.mxu0 %v109
  %311 = vmatprep.subr.mxu0 0.0
  %312 = vmatpush1.msra.mxu0 %v110
  %313 = vmatprep.subr.mxu0 0.0
  %314 = vmatpush1.msra.mxu0 %v111
  %315 = vmatprep.subr.mxu0 0.0
  %316 = vmatpush1.msra.mxu0 %v112
  %317 = vmatprep.subr.mxu0 0.0
  %318 = vmatpush1.msra.mxu0 %v113
  %319 = vmatprep.subr.mxu0 0.0
  %320 = vmatpush1.msra.mxu0 %v114
  %321 = vmatprep.subr.mxu0 0.0
  %322 = vmatpush1.msra.mxu0 %v115
  %323 = vmatprep.subr.mxu0 0.0
  %324 = vmatpush1.msra.mxu0 %v116
  %325 = vmatprep.subr.mxu0 0.0
  %326 = vmatpush1.msra.mxu0 %v117
  %327 = vmatprep.mubr.f32.mxu0 %v25
  %328 = vmatmul.mubr.f32.gmra.mrb[0].mxu0 %v24
  %v329 = vpop.f32.mrb[0].mxu0
  %v330 = vadd.f32 %v225, %v329
  %v331 = vpop.f32.mrb[0].mxu0
  %332 = vmatprep.mubr.f32.mxu0 %v29
  %333 = vmatmul.mubr.f32.gmra.mrb[0].mxu0 %v28
  %v334 = vpop.f32.mrb[0].mxu0
  %v335 = vadd.f32 %v230, %v334
  %v336 = vpop.f32.mrb[0].mxu0
  %337 = vmatprep.mubr.f32.mxu0 %v33
  %338 = vmatmul.mubr.f32.gmra.mrb[0].mxu0 %v32
  %v339 = vpop.f32.mrb[0].mxu0
  %v340 = vadd.f32 %v235, %v339
  %v341 = vpop.f32.mrb[0].mxu0
  %342 = vmatprep.mubr.f32.mxu0 %v37
  %343 = vmatmul.mubr.f32.gmra.mrb[0].mxu0 %v36
  %v344 = vpop.f32.mrb[0].mxu0
  %v345 = vadd.f32 %v240, %v344
  %v346 = vpop.f32.mrb[0].mxu0
  %347 = vmatprep.mubr.f32.mxu0 %v41
  %348 = vmatmul.mubr.f32.gmra.mrb[0].mxu0 %v40
  %v349 = vpop.f32.mrb[0].mxu0
  %v350 = vadd.f32 %v245, %v349
  %v351 = vpop.f32.mrb[0].mxu0
  %352 = vmatprep.mubr.f32.mxu0 %v45
  %353 = vmatmul.mubr.f32.gmra.mrb[0].mxu0 %v44
  %v354 = vpop.f32.mrb[0].mxu0
  %v355 = vadd.f32 %v250, %v354
  %v356 = vpop.f32.mrb[0].mxu0
  %357 = vmatprep.mubr.f32.mxu0 %v49
  %358 = vmatmul.mubr.f32.gmra.mrb[0].mxu0 %v48
  %v359 = vpop.f32.mrb[0].mxu0
  %v360 = vadd.f32 %v255, %v359
  %v361 = vpop.f32.mrb[0].mxu0
  %362 = vmatprep.mubr.f32.mxu0 %v53
  %363 = vmatmul.mubr.f32.gmra.mrb[0].mxu0 %v52
  %v364 = vpop.f32.mrb[0].mxu0
  %v365 = vadd.f32 %v260, %v364
  %v366 = vpop.f32.mrb[0].mxu0
  %367 = vdwg.mxu0
  %v368 = vmax.f32 %v330, 0.0
  %v369 = vmax.f32 %v335, 0.0
  %v370 = vmax.f32 %v340, 0.0
  %v371 = vmax.f32 %v345, 0.0
  %v372 = vmax.f32 %v350, 0.0
  %v373 = vmax.f32 %v355, 0.0
  %v374 = vmax.f32 %v360, 0.0
  %v375 = vmax.f32 %v365, 0.0
  %vm376 = vcmask 588800
  %377 = vst.msk [vmem:[%s3] sm:$0xff] %vm376, %v368
  %378 = vst.msk [vmem:[%s3 + $0x8] sm:$0xff] %vm376, %v369
  %379 = vst.msk [vmem:[%s3 + $0x10] sm:$0xff] %vm376, %v370
  %380 = vst.msk [vmem:[%s3 + $0x18] sm:$0xff] %vm376, %v371
  %381 = vst.msk [vmem:[%s3 + $0x20] sm:$0xff] %vm376, %v372
  %382 = vst.msk [vmem:[%s3 + $0x28] sm:$0xff] %vm376, %v373
  %383 = vst.msk [vmem:[%s3 + $0x30] sm:$0xff] %vm376, %v374
  %384 = vst.msk [vmem:[%s3 + $0x38] sm:$0xff] %vm376, %v375
  // Predicated region
  $region14: #{vae_forward.8} parent=0 // pred_check
    _
  $region15: #{vae_forward.8} parent=0 // pred_check_branch
    %386 = sbr.rel (0) target = $region17
  $region16: #{vae_forward.8} parent=0 // pred_region
    _
  $region17: #{vae_forward.8} parent=0 // pred_fallthru
    _
  // Predicated region
  $region18: #{vae_forward.8} parent=0 // pred_check
    _
  $region19: #{vae_forward.8} parent=0 // pred_check_branch
    %388 = sbr.rel (0) target = $region21
  $region20: #{vae_forward.8} parent=0 // pred_region
    _
  $region21: #{vae_forward.8} parent=0 // pred_fallthru
    _

// kernel: vae_forward.9
$region0: #{vae_forward.9}
  #allocation0 [shape = 'u32[]', space=smem, size = 0x4, offset = 0x4, fixed_abs, tag = 'smem constant byte address 0x4 - core index']
  #allocation1 [shape = 'u32[144,128]{1,0:T(1,128)}', space=vmem, size = 0x12000, scoped, tag = 'internal scratch']
  %s0 = inlined_call_operand.vmem [shape: f32[1,256,32], index: 0, kind: input, shape index: {}]
  %s1 = inlined_call_operand.vmem [shape: f32[1,128,256], index: 1, kind: input, shape index: {}]
  %s2 = inlined_call_operand.vmem [shape: f32[128,1], index: 2, kind: input, shape index: {}]
  %s3 = inlined_call_operand.vmem [shape: f32[1,128,32], index: 3, kind: output, shape index: {}]
  %s4 = sld [smem:[#allocation0]]
  $region22: #{vae_forward.9} parent=0
    _
  %s6 = ssub.s32 1, %s4
  %s7 = scalar_select 0, %s6, %s4
  // Predicated region
  $region2: #{vae_forward.9} parent=0 // pred_check
    _
  $region3: #{vae_forward.9} parent=0 // pred_check_branch
    %9 = sbr.rel (0) target = $region5
  $region4: #{vae_forward.9} parent=0 // pred_region
    _
  $region5: #{vae_forward.9} parent=0 // pred_fallthru
    _
  // Predicated region
  $region6: #{vae_forward.9} parent=0 // pred_check
    _
  $region7: #{vae_forward.9} parent=0 // pred_check_branch
    %11 = sbr.rel (0) target = $region9
  $region8: #{vae_forward.9} parent=0 // pred_region
    _
  $region9: #{vae_forward.9} parent=0 // pred_fallthru
    _
  // Predicated region
  $region10: #{vae_forward.9} parent=0 // pred_check
    _
  $region11: #{vae_forward.9} parent=0 // pred_check_branch
    %13 = sbr.rel (0) target = $region13
  $region12: #{vae_forward.9} parent=0 // pred_region
    _
  $region13: #{vae_forward.9} parent=0 // pred_fallthru
    _
  %v14 = vld [vmem:[%s2] sm:$0xff]
  %v15 = vld [vmem:[%s2 + $0x8] sm:$0xff]
  %v16 = vld [vmem:[%s2 + $0x10] sm:$0xff]
  %v17 = vld [vmem:[%s2 + $0x18] sm:$0xff]
  %v18 = vld [vmem:[%s2 + $0x20] sm:$0xff]
  %v19 = vld [vmem:[%s2 + $0x28] sm:$0xff]
  %v20 = vld [vmem:[%s2 + $0x30] sm:$0xff]
  %v21 = vld [vmem:[%s2 + $0x38] sm:$0xff]
  %v22 = vld [vmem:[%s2 + $0x40] sm:$0xff]
  %v23 = vld [vmem:[%s2 + $0x48] sm:$0xff]
  %v24 = vld [vmem:[%s2 + $0x50] sm:$0xff]
  %v25 = vld [vmem:[%s2 + $0x58] sm:$0xff]
  %v26 = vld [vmem:[%s2 + $0x60] sm:$0xff]
  %v27 = vld [vmem:[%s2 + $0x68] sm:$0xff]
  %v28 = vld [vmem:[%s2 + $0x70] sm:$0xff]
  %v29 = vld [vmem:[%s2 + $0x78] sm:$0xff]
  %v30 = vld [vmem:[%s1] sm:$0xff]
  %v31 = vld [vmem:[%s1 + $0x8] sm:$0xff]
  %v32 = vld [vmem:[%s1 + $0x10] sm:$0xff]
  %v33 = vld [vmem:[%s1 + $0x18] sm:$0xff]
  %v34 = vld [vmem:[%s1 + $0x20] sm:$0xff]
  %v35 = vld [vmem:[%s1 + $0x28] sm:$0xff]
  %v36 = vld [vmem:[%s1 + $0x30] sm:$0xff]
  %v37 = vld [vmem:[%s1 + $0x38] sm:$0xff]
  %v38 = vld [vmem:[%s1 + $0x40] sm:$0xff]
  %v39 = vld [vmem:[%s1 + $0x48] sm:$0xff]
  %v40 = vld [vmem:[%s1 + $0x50] sm:$0xff]
  %v41 = vld [vmem:[%s1 + $0x58] sm:$0xff]
  %v42 = vld [vmem:[%s1 + $0x60] sm:$0xff]
  %v43 = vld [vmem:[%s1 + $0x68] sm:$0xff]
  %v44 = vld [vmem:[%s1 + $0x70] sm:$0xff]
  %v45 = vld [vmem:[%s1 + $0x78] sm:$0xff]
  %v46 = vld [vmem:[%s1 + $0x80] sm:$0xff]
  %v47 = vld [vmem:[%s1 + $0x88] sm:$0xff]
  %v48 = vld [vmem:[%s1 + $0x90] sm:$0xff]
  %v49 = vld [vmem:[%s1 + $0x98] sm:$0xff]
  %v50 = vld [vmem:[%s1 + $0xa0] sm:$0xff]
  %v51 = vld [vmem:[%s1 + $0xa8] sm:$0xff]
  %v52 = vld [vmem:[%s1 + $0xb0] sm:$0xff]
  %v53 = vld [vmem:[%s1 + $0xb8] sm:$0xff]
  %v54 = vld [vmem:[%s1 + $0xc0] sm:$0xff]
  %v55 = vld [vmem:[%s1 + $0xc8] sm:$0xff]
  %v56 = vld [vmem:[%s1 + $0xd0] sm:$0xff]
  %v57 = vld [vmem:[%s1 + $0xd8] sm:$0xff]
  %v58 = vld [vmem:[%s1 + $0xe0] sm:$0xff]
  %v59 = vld [vmem:[%s1 + $0xe8] sm:$0xff]
  %v60 = vld [vmem:[%s1 + $0xf0] sm:$0xff]
  %v61 = vld [vmem:[%s1 + $0xf8] sm:$0xff]
  %v62 = vld [vmem:[%s0] sm:$0xff]
  %v63 = vld [vmem:[%s0 + $0x8] sm:$0xff]
  %v64 = vld [vmem:[%s0 + $0x10] sm:$0xff]
  %v65 = vld [vmem:[%s0 + $0x18] sm:$0xff]
  %v66 = vld [vmem:[%s0 + $0x20] sm:$0xff]
  %v67 = vld [vmem:[%s0 + $0x28] sm:$0xff]
  %v68 = vld [vmem:[%s0 + $0x30] sm:$0xff]
  %v69 = vld [vmem:[%s0 + $0x38] sm:$0xff]
  %v70 = vld [vmem:[%s0 + $0x40] sm:$0xff]
  %v71 = vld [vmem:[%s0 + $0x48] sm:$0xff]
  %v72 = vld [vmem:[%s0 + $0x50] sm:$0xff]
  %v73 = vld [vmem:[%s0 + $0x58] sm:$0xff]
  %v74 = vld [vmem:[%s0 + $0x60] sm:$0xff]
  %v75 = vld [vmem:[%s0 + $0x68] sm:$0xff]
  %v76 = vld [vmem:[%s0 + $0x70] sm:$0xff]
  %v77 = vld [vmem:[%s0 + $0x78] sm:$0xff]
  %v78 = vld [vmem:[%s0 + $0x80] sm:$0xff]
  %v79 = vld [vmem:[%s0 + $0x88] sm:$0xff]
  %v80 = vld [vmem:[%s0 + $0x90] sm:$0xff]
  %v81 = vld [vmem:[%s0 + $0x98] sm:$0xff]
  %v82 = vld [vmem:[%s0 + $0xa0] sm:$0xff]
  %v83 = vld [vmem:[%s0 + $0xa8] sm:$0xff]
  %v84 = vld [vmem:[%s0 + $0xb0] sm:$0xff]
  %v85 = vld [vmem:[%s0 + $0xb8] sm:$0xff]
  %v86 = vld [vmem:[%s0 + $0xc0] sm:$0xff]
  %v87 = vld [vmem:[%s0 + $0xc8] sm:$0xff]
  %v88 = vld [vmem:[%s0 + $0xd0] sm:$0xff]
  %v89 = vld [vmem:[%s0 + $0xd8] sm:$0xff]
  %v90 = vld [vmem:[%s0 + $0xe0] sm:$0xff]
  %v91 = vld [vmem:[%s0 + $0xe8] sm:$0xff]
  %v92 = vld [vmem:[%s0 + $0xf0] sm:$0xff]
  %v93 = vld [vmem:[%s0 + $0xf8] sm:$0xff]
  %95 = vset.pattern.permute.xlu0 0
  %96 = vperm.xlu0 %95, %v14
  %v97 = vpop.permute.xlu0 %96
  %100 = vset.pattern.permute.xlu0 0
  %101 = vperm.xlu0 %100, %v15
  %v102 = vpop.permute.xlu0 %101
  %105 = vset.pattern.permute.xlu0 0
  %106 = vperm.xlu0 %105, %v16
  %v107 = vpop.permute.xlu0 %106
  %110 = vset.pattern.permute.xlu0 0
  %111 = vperm.xlu0 %110, %v17
  %v112 = vpop.permute.xlu0 %111
  %115 = vset.pattern.permute.xlu0 0
  %116 = vperm.xlu0 %115, %v18
  %v117 = vpop.permute.xlu0 %116
  %120 = vset.pattern.permute.xlu0 0
  %121 = vperm.xlu0 %120, %v19
  %v122 = vpop.permute.xlu0 %121
  %125 = vset.pattern.permute.xlu0 0
  %126 = vperm.xlu0 %125, %v20
  %v127 = vpop.permute.xlu0 %126
  %130 = vset.pattern.permute.xlu0 0
  %131 = vperm.xlu0 %130, %v21
  %v132 = vpop.permute.xlu0 %131
  %135 = vset.pattern.permute.xlu0 0
  %136 = vperm.xlu0 %135, %v22
  %v137 = vpop.permute.xlu0 %136
  %140 = vset.pattern.permute.xlu0 0
  %141 = vperm.xlu0 %140, %v23
  %v142 = vpop.permute.xlu0 %141
  %145 = vset.pattern.permute.xlu0 0
  %146 = vperm.xlu0 %145, %v24
  %v147 = vpop.permute.xlu0 %146
  %150 = vset.pattern.permute.xlu0 0
  %151 = vperm.xlu0 %150, %v25
  %v152 = vpop.permute.xlu0 %151
  %155 = vset.pattern.permute.xlu0 0
  %156 = vperm.xlu0 %155, %v26
  %v157 = vpop.permute.xlu0 %156
  %160 = vset.pattern.permute.xlu0 0
  %161 = vperm.xlu0 %160, %v27
  %v162 = vpop.permute.xlu0 %161
  %165 = vset.pattern.permute.xlu0 0
  %166 = vperm.xlu0 %165, %v28
  %v167 = vpop.permute.xlu0 %166
  %170 = vset.pattern.permute.xlu0 0
  %171 = vperm.xlu0 %170, %v29
  %v172 = vpop.permute.xlu0 %171
  %174 = vmatprep.subr.mxu0 0.0
  %175 = vmatpush1.msra.mxu0 %v62
  %176 = vmatprep.subr.mxu0 0.0
  %177 = vmatpush1.msra.mxu0 %v63
  %178 = vmatprep.subr.mxu0 0.0
  %179 = vmatpush1.msra.mxu0 %v64
  %180 = vmatprep.subr.mxu0 0.0
  %181 = vmatpush1.msra.mxu0 %v65
  %182 = vmatprep.subr.mxu0 0.0
  %183 = vmatpush1.msra.mxu0 %v66
  %184 = vmatprep.subr.mxu0 0.0
  %185 = vmatpush1.msra.mxu0 %v67
  %186 = vmatprep.subr.mxu0 0.0
  %187 = vmatpush1.msra.mxu0 %v68
  %188 = vmatprep.subr.mxu0 0.0
  %189 = vmatpush1.msra.mxu0 %v69
  %190 = vmatprep.subr.mxu0 0.0
  %191 = vmatpush1.msra.mxu0 %v70
  %192 = vmatprep.subr.mxu0 0.0
  %193 = vmatpush1.msra.mxu0 %v71
  %194 = vmatprep.subr.mxu0 0.0
  %195 = vmatpush1.msra.mxu0 %v72
  %196 = vmatprep.subr.mxu0 0.0
  %197 = vmatpush1.msra.mxu0 %v73
  %198 = vmatprep.subr.mxu0 0.0
  %199 = vmatpush1.msra.mxu0 %v74
  %200 = vmatprep.subr.mxu0 0.0
  %201 = vmatpush1.msra.mxu0 %v75
  %202 = vmatprep.subr.mxu0 0.0
  %203 = vmatpush1.msra.mxu0 %v76
  %204 = vmatprep.subr.mxu0 0.0
  %205 = vmatpush1.msra.mxu0 %v77
  %206 = vmatprep.subr.mxu0 0.0
  %207 = vmatpush1.msra.mxu0 %v78
  %208 = vmatprep.subr.mxu0 0.0
  %209 = vmatpush1.msra.mxu0 %v79
  %210 = vmatprep.subr.mxu0 0.0
  %211 = vmatpush1.msra.mxu0 %v80
  %212 = vmatprep.subr.mxu0 0.0
  %213 = vmatpush1.msra.mxu0 %v81
  %214 = vmatprep.subr.mxu0 0.0
  %215 = vmatpush1.msra.mxu0 %v82
  %216 = vmatprep.subr.mxu0 0.0
  %217 = vmatpush1.msra.mxu0 %v83
  %218 = vmatprep.subr.mxu0 0.0
  %219 = vmatpush1.msra.mxu0 %v84
  %220 = vmatprep.subr.mxu0 0.0
  %221 = vmatpush1.msra.mxu0 %v85
  %222 = vmatprep.subr.mxu0 0.0
  %223 = vmatpush1.msra.mxu0 %v86
  %224 = vmatprep.subr.mxu0 0.0
  %225 = vmatpush1.msra.mxu0 %v87
  %226 = vmatprep.subr.mxu0 0.0
  %227 = vmatpush1.msra.mxu0 %v88
  %228 = vmatprep.subr.mxu0 0.0
  %229 = vmatpush1.msra.mxu0 %v89
  %230 = vmatprep.subr.mxu0 0.0
  %231 = vmatpush1.msra.mxu0 %v90
  %232 = vmatprep.subr.mxu0 0.0
  %233 = vmatpush1.msra.mxu0 %v91
  %234 = vmatprep.subr.mxu0 0.0
  %235 = vmatpush1.msra.mxu0 %v92
  %236 = vmatprep.subr.mxu0 0.0
  %237 = vmatpush1.msra.mxu0 %v93
  %238 = vmatprep.mubr.f32.mxu0 %v31
  %239 = vmatmul.mubr.f32.gmra.mrb[0].mxu0 %v30
  %v240 = vpop.f32.mrb[0].mxu0
  %v241 = vadd.f32 %v97, %v240
  %v242 = vpop.f32.mrb[0].mxu0
  %243 = vmatprep.mubr.f32.mxu0 %v33
  %244 = vmatmul.mubr.f32.gmra.mrb[0].mxu0 %v32
  %v245 = vpop.f32.mrb[0].mxu0
  %v246 = vadd.f32 %v102, %v245
  %v247 = vpop.f32.mrb[0].mxu0
  %248 = vmatprep.mubr.f32.mxu0 %v35
  %249 = vmatmul.mubr.f32.gmra.mrb[0].mxu0 %v34
  %v250 = vpop.f32.mrb[0].mxu0
  %v251 = vadd.f32 %v107, %v250
  %v252 = vpop.f32.mrb[0].mxu0
  %253 = vmatprep.mubr.f32.mxu0 %v37
  %254 = vmatmul.mubr.f32.gmra.mrb[0].mxu0 %v36
  %v255 = vpop.f32.mrb[0].mxu0
  %v256 = vadd.f32 %v112, %v255
  %v257 = vpop.f32.mrb[0].mxu0
  %258 = vmatprep.mubr.f32.mxu0 %v39
  %259 = vmatmul.mubr.f32.gmra.mrb[0].mxu0 %v38
  %v260 = vpop.f32.mrb[0].mxu0
  %v261 = vadd.f32 %v117, %v260
  %v262 = vpop.f32.mrb[0].mxu0
  %263 = vmatprep.mubr.f32.mxu0 %v41
  %264 = vmatmul.mubr.f32.gmra.mrb[0].mxu0 %v40
  %v265 = vpop.f32.mrb[0].mxu0
  %v266 = vadd.f32 %v122, %v265
  %v267 = vpop.f32.mrb[0].mxu0
  %268 = vmatprep.mubr.f32.mxu0 %v43
  %269 = vmatmul.mubr.f32.gmra.mrb[0].mxu0 %v42
  %v270 = vpop.f32.mrb[0].mxu0
  %v271 = vadd.f32 %v127, %v270
  %v272 = vpop.f32.mrb[0].mxu0
  %273 = vmatprep.mubr.f32.mxu0 %v45
  %274 = vmatmul.mubr.f32.gmra.mrb[0].mxu0 %v44
  %v275 = vpop.f32.mrb[0].mxu0
  %v276 = vadd.f32 %v132, %v275
  %v277 = vpop.f32.mrb[0].mxu0
  %278 = vmatprep.mubr.f32.mxu0 %v47
  %279 = vmatmul.mubr.f32.gmra.mrb[0].mxu0 %v46
  %v280 = vpop.f32.mrb[0].mxu0
  %v281 = vadd.f32 %v137, %v280
  %v282 = vpop.f32.mrb[0].mxu0
  %283 = vmatprep.mubr.f32.mxu0 %v49
  %284 = vmatmul.mubr.f32.gmra.mrb[0].mxu0 %v48
  %v285 = vpop.f32.mrb[0].mxu0
  %v286 = vadd.f32 %v142, %v285
  %v287 = vpop.f32.mrb[0].mxu0
  %288 = vmatprep.mubr.f32.mxu0 %v51
  %289 = vmatmul.mubr.f32.gmra.mrb[0].mxu0 %v50
  %v290 = vpop.f32.mrb[0].mxu0
  %v291 = vadd.f32 %v147, %v290
  %v292 = vpop.f32.mrb[0].mxu0
  %293 = vmatprep.mubr.f32.mxu0 %v53
  %294 = vmatmul.mubr.f32.gmra.mrb[0].mxu0 %v52
  %v295 = vpop.f32.mrb[0].mxu0
  %v296 = vadd.f32 %v152, %v295
  %v297 = vpop.f32.mrb[0].mxu0
  %298 = vmatprep.mubr.f32.mxu0 %v55
  %299 = vmatmul.mubr.f32.gmra.mrb[0].mxu0 %v54
  %v300 = vpop.f32.mrb[0].mxu0
  %v301 = vadd.f32 %v157, %v300
  %v302 = vpop.f32.mrb[0].mxu0
  %303 = vmatprep.mubr.f32.mxu0 %v57
  %304 = vmatmul.mubr.f32.gmra.mrb[0].mxu0 %v56
  %v305 = vpop.f32.mrb[0].mxu0
  %v306 = vadd.f32 %v162, %v305
  %v307 = vpop.f32.mrb[0].mxu0
  %308 = vmatprep.mubr.f32.mxu0 %v59
  %309 = vmatmul.mubr.f32.gmra.mrb[0].mxu0 %v58
  %v310 = vpop.f32.mrb[0].mxu0
  %v311 = vadd.f32 %v167, %v310
  %v312 = vpop.f32.mrb[0].mxu0
  %313 = vmatprep.mubr.f32.mxu0 %v61
  %314 = vmatmul.mubr.f32.gmra.mrb[0].mxu0 %v60
  %v315 = vpop.f32.mrb[0].mxu0
  %v316 = vadd.f32 %v172, %v315
  %v317 = vpop.f32.mrb[0].mxu0
  %318 = vdwg.mxu0
  %v319 = vmax.f32 %v241, 0.0
  %v320 = vmax.f32 %v246, 0.0
  %v321 = vmax.f32 %v251, 0.0
  %v322 = vmax.f32 %v256, 0.0
  %v323 = vmax.f32 %v261, 0.0
  %v324 = vmax.f32 %v266, 0.0
  %v325 = vmax.f32 %v271, 0.0
  %v326 = vmax.f32 %v276, 0.0
  %v327 = vmax.f32 %v281, 0.0
  %v328 = vmax.f32 %v286, 0.0
  %v329 = vmax.f32 %v291, 0.0
  %v330 = vmax.f32 %v296, 0.0
  %v331 = vmax.f32 %v301, 0.0
  %v332 = vmax.f32 %v306, 0.0
  %v333 = vmax.f32 %v311, 0.0
  %v334 = vmax.f32 %v316, 0.0
  %vm335 = vcmask 261120
  %336 = vst.msk [vmem:[%s3] sm:$0xff] %vm335, %v319
  %337 = vst.msk [vmem:[%s3 + $0x8] sm:$0xff] %vm335, %v320
  %338 = vst.msk [vmem:[%s3 + $0x10] sm:$0xff] %vm335, %v321
  %339 = vst.msk [vmem:[%s3 + $0x18] sm:$0xff] %vm335, %v322
  %340 = vst.msk [vmem:[%s3 + $0x20] sm:$0xff] %vm335, %v323
  %341 = vst.msk [vmem:[%s3 + $0x28] sm:$0xff] %vm335, %v324
  %342 = vst.msk [vmem:[%s3 + $0x30] sm:$0xff] %vm335, %v325
  %343 = vst.msk [vmem:[%s3 + $0x38] sm:$0xff] %vm335, %v326
  %344 = vst.msk [vmem:[%s3 + $0x40] sm:$0xff] %vm335, %v327
  %345 = vst.msk [vmem:[%s3 + $0x48] sm:$0xff] %vm335, %v328
  %346 = vst.msk [vmem:[%s3 + $0x50] sm:$0xff] %vm335, %v329
  %347 = vst.msk [vmem:[%s3 + $0x58] sm:$0xff] %vm335, %v330
  %348 = vst.msk [vmem:[%s3 + $0x60] sm:$0xff] %vm335, %v331
  %349 = vst.msk [vmem:[%s3 + $0x68] sm:$0xff] %vm335, %v332
  %350 = vst.msk [vmem:[%s3 + $0x70] sm:$0xff] %vm335, %v333
  %351 = vst.msk [vmem:[%s3 + $0x78] sm:$0xff] %vm335, %v334
  // Predicated region
  $region14: #{vae_forward.9} parent=0 // pred_check
    _
  $region15: #{vae_forward.9} parent=0 // pred_check_branch
    %353 = sbr.rel (0) target = $region17
  $region16: #{vae_forward.9} parent=0 // pred_region
    _
  $region17: #{vae_forward.9} parent=0 // pred_fallthru
    _
  // Predicated region
  $region18: #{vae_forward.9} parent=0 // pred_check
    _
  $region19: #{vae_forward.9} parent=0 // pred_check_branch
    %355 = sbr.rel (0) target = $region21
  $region20: #{vae_forward.9} parent=0 // pred_region
    _
  $region21: #{vae_forward.9} parent=0 // pred_fallthru
    _

// kernel: vae_forward.10
$region0: #{vae_forward.10}
  #allocation0 [shape = 'u32[]', space=smem, size = 0x4, offset = 0x4, fixed_abs, tag = 'smem constant byte address 0x4 - core index']
  #allocation1 [shape = 'u32[144,128]{1,0:T(1,128)}', space=vmem, size = 0x12000, scoped, tag = 'internal scratch']
  %s0 = inlined_call_operand.vmem [shape: f32[2,2048], index: 0, kind: input, shape index: {}]
  %s1 = inlined_call_operand.vmem [shape: f32[2048,16], index: 1, kind: input, shape index: {}]
  %s2 = inlined_call_operand.vmem [shape: f32[1,16], index: 2, kind: input, shape index: {}]
  %s3 = inlined_call_operand.vmem [shape: f32[2,10], index: 3, kind: input, shape index: {}]
  %s4 = inlined_call_operand.vmem [shape: f32[10,16], index: 4, kind: input, shape index: {}]
  %s5 = inlined_call_operand.vmem [shape: f32[1,16], index: 5, kind: input, shape index: {}]
  %s6 = inlined_call_operand.vmem [shape: f32[2,16], index: 6, kind: input, shape index: {}]
  %s7 = inlined_call_operand.vmem [shape: f32[16,2048], index: 7, kind: input, shape index: {}]
  %s8 = inlined_call_operand.vmem [shape: f32[1,2048], index: 8, kind: input, shape index: {}]
  %s9 = inlined_call_operand.hbm [shape: f32[2,16], index: 9, kind: output, shape index: {0}]
  %s10 = inlined_call_operand.hbm [shape: f32[2,16], index: 10, kind: output, shape index: {1}]
  %s11 = inlined_call_operand.hbm [shape: f32[2,16], index: 11, kind: output, shape index: {2}]
  %s12 = inlined_call_operand.hbm [shape: f32[2,16], index: 12, kind: output, shape index: {3}]
  %s13 = inlined_call_operand.vmem [shape: f32[2,2048], index: 13, kind: output, shape index: {4}]
  %14 = xla_tuple %s9, %s10, %s11, %s12, %s13
  %s15 = sld [smem:[#allocation0]]
  $region78: #{vae_forward.10} parent=0
    _
  %s17 = ssub.s32 1, %s15
  %s18 = scalar_select 0, %s17, %s15
  $region1: #{vae_forward.10} parent=0
    #allocation2 [shape = 'u8[1024]{0}', space=vmem, size = 0x400, scoped, tag = 'output window, operand 0, single buffered']
    #allocation3 [shape = 's32[1]{0}', space=sflag, size = 0x4, scoped, tag = 'scoped memory for vae_forward.10']
    #allocation4 [shape = 'u8[1024]{0}', space=vmem, size = 0x400, scoped, tag = 'output window, operand 1, single buffered']
    #allocation5 [shape = 's32[1]{0}', space=sflag, size = 0x4, scoped, tag = 'scoped memory for vae_forward.10']
    #allocation6 [shape = 'u8[1024]{0}', space=vmem, size = 0x400, scoped, tag = 'output window, operand 2, single buffered']
    #allocation7 [shape = 'u8[1024]{0}', space=vmem, size = 0x400, scoped, tag = 'output window, operand 3, single buffered']
    #allocation8 [shape = 's32[1]{0}', space=sflag, size = 0x4, scoped, tag = 'scoped memory for vae_forward.10']
    %19 = vsyncpa [#allocation3], 0
    %20 = vsyncpa [#allocation5], 0
    %21 = vsyncpa [#allocation8], 0
    // Predicated region
    $region2: #{vae_forward.10} parent=1 // pred_check
      _
    $region3: #{vae_forward.10} parent=1 // pred_check_branch
      %23 = sbr.rel (0) target = $region5
    $region4: #{vae_forward.10} parent=1 // pred_region
      _
    $region5: #{vae_forward.10} parent=1 // pred_fallthru
      _
    // Predicated region
    $region6: #{vae_forward.10} parent=1 // pred_check
      _
    $region7: #{vae_forward.10} parent=1 // pred_check_branch
      %25 = sbr.rel (0) target = $region9
    $region8: #{vae_forward.10} parent=1 // pred_region
      _
    $region9: #{vae_forward.10} parent=1 // pred_fallthru
      _
    // Predicated region
    $region10: #{vae_forward.10} parent=1 // pred_check
      _
    $region11: #{vae_forward.10} parent=1 // pred_check_branch
      %27 = sbr.rel (0) target = $region13
    $region12: #{vae_forward.10} parent=1 // pred_region
      _
    $region13: #{vae_forward.10} parent=1 // pred_fallthru
      _
    // Predicated region
    $region14: #{vae_forward.10} parent=1 // pred_check
      _
    $region15: #{vae_forward.10} parent=1 // pred_check_branch
      %29 = sbr.rel (0) target = $region17
    $region16: #{vae_forward.10} parent=1 // pred_region
      _
    $region17: #{vae_forward.10} parent=1 // pred_fallthru
      _
    // Predicated region
    $region18: #{vae_forward.10} parent=1 // pred_check
      _
    $region19: #{vae_forward.10} parent=1 // pred_check_branch
      %31 = sbr.rel (0) target = $region21
    $region20: #{vae_forward.10} parent=1 // pred_region
      _
    $region21: #{vae_forward.10} parent=1 // pred_fallthru
      _
    // Predicated region
    $region22: #{vae_forward.10} parent=1 // pred_check
      _
    $region23: #{vae_forward.10} parent=1 // pred_check_branch
      %33 = sbr.rel (0) target = $region25
    $region24: #{vae_forward.10} parent=1 // pred_region
      _
    $region25: #{vae_forward.10} parent=1 // pred_fallthru
      _
    // Predicated region
    $region26: #{vae_forward.10} parent=1 // pred_check
      _
    $region27: #{vae_forward.10} parent=1 // pred_check_branch
      %35 = sbr.rel (0) target = $region29
    $region28: #{vae_forward.10} parent=1 // pred_region
      _
    $region29: #{vae_forward.10} parent=1 // pred_fallthru
      _
    // Predicated region
    $region30: #{vae_forward.10} parent=1 // pred_check
      _
    $region31: #{vae_forward.10} parent=1 // pred_check_branch
      %37 = sbr.rel (0) target = $region33
    $region32: #{vae_forward.10} parent=1 // pred_region
      _
    $region33: #{vae_forward.10} parent=1 // pred_fallthru
      _
    // Predicated region
    $region34: #{vae_forward.10} parent=1 // pred_check
      _
    $region35: #{vae_forward.10} parent=1 // pred_check_branch
      %39 = sbr.rel (0) target = $region37
    $region36: #{vae_forward.10} parent=1 // pred_region
      _
    $region37: #{vae_forward.10} parent=1 // pred_fallthru
      _
    %v40 = vld [vmem:[%s0] sm:$0xff]
    %v41 = vld [vmem:[%s0 + $0x8] sm:$0xff]
    %v42 = vld [vmem:[%s0 + $0x10] sm:$0xff]
    %v43 = vld [vmem:[%s0 + $0x18] sm:$0xff]
    %v44 = vld [vmem:[%s1] sm:$0xff]
    %v45 = vld [vmem:[%s1 + $0x8] sm:$0xff]
    %v46 = vld [vmem:[%s1 + $0x10] sm:$0xff]
    %v47 = vld [vmem:[%s1 + $0x18] sm:$0xff]
    %v48 = vld [vmem:[%s1 + $0x20] sm:$0xff]
    %v49 = vld [vmem:[%s1 + $0x28] sm:$0xff]
    %v50 = vld [vmem:[%s1 + $0x30] sm:$0xff]
    %v51 = vld [vmem:[%s1 + $0x38] sm:$0xff]
    %v52 = vld [vmem:[%s1 + $0x40] sm:$0xff]
    %v53 = vld [vmem:[%s1 + $0x48] sm:$0xff]
    %v54 = vld [vmem:[%s1 + $0x50] sm:$0xff]
    %v55 = vld [vmem:[%s1 + $0x58] sm:$0xff]
    %v56 = vld [vmem:[%s1 + $0x60] sm:$0xff]
    %v57 = vld [vmem:[%s1 + $0x68] sm:$0xff]
    %v58 = vld [vmem:[%s1 + $0x70] sm:$0xff]
    %v59 = vld [vmem:[%s1 + $0x78] sm:$0xff]
    %v60 = vld [vmem:[%s1 + $0x80] sm:$0xff]
    %v61 = vld [vmem:[%s1 + $0x88] sm:$0xff]
    %v62 = vld [vmem:[%s1 + $0x90] sm:$0xff]
    %v63 = vld [vmem:[%s1 + $0x98] sm:$0xff]
    %v64 = vld [vmem:[%s1 + $0xa0] sm:$0xff]
    %v65 = vld [vmem:[%s1 + $0xa8] sm:$0xff]
    %v66 = vld [vmem:[%s1 + $0xb0] sm:$0xff]
    %v67 = vld [vmem:[%s1 + $0xb8] sm:$0xff]
    %v68 = vld [vmem:[%s1 + $0xc0] sm:$0xff]
    %v69 = vld [vmem:[%s1 + $0xc8] sm:$0xff]
    %v70 = vld [vmem:[%s1 + $0xd0] sm:$0xff]
    %v71 = vld [vmem:[%s1 + $0xd8] sm:$0xff]
    %v72 = vld [vmem:[%s1 + $0xe0] sm:$0xff]
    %v73 = vld [vmem:[%s1 + $0xe8] sm:$0xff]
    %v74 = vld [vmem:[%s1 + $0xf0] sm:$0xff]
    %v75 = vld [vmem:[%s1 + $0xf8] sm:$0xff]
    %v76 = vld [vmem:[%s1 + $0x100] sm:$0xff]
    %v77 = vld [vmem:[%s1 + $0x108] sm:$0xff]
    %v78 = vld [vmem:[%s1 + $0x110] sm:$0xff]
    %v79 = vld [vmem:[%s1 + $0x118] sm:$0xff]
    %v80 = vld [vmem:[%s1 + $0x120] sm:$0xff]
    %v81 = vld [vmem:[%s1 + $0x128] sm:$0xff]
    %v82 = vld [vmem:[%s1 + $0x130] sm:$0xff]
    %v83 = vld [vmem:[%s1 + $0x138] sm:$0xff]
    %v84 = vld [vmem:[%s1 + $0x140] sm:$0xff]
    %v85 = vld [vmem:[%s1 + $0x148] sm:$0xff]
    %v86 = vld [vmem:[%s1 + $0x150] sm:$0xff]
    %v87 = vld [vmem:[%s1 + $0x158] sm:$0xff]
    %v88 = vld [vmem:[%s1 + $0x160] sm:$0xff]
    %v89 = vld [vmem:[%s1 + $0x168] sm:$0xff]
    %v90 = vld [vmem:[%s1 + $0x170] sm:$0xff]
    %v91 = vld [vmem:[%s1 + $0x178] sm:$0xff]
    %v92 = vld [vmem:[%s1 + $0x180] sm:$0xff]
    %v93 = vld [vmem:[%s1 + $0x188] sm:$0xff]
    %v94 = vld [vmem:[%s1 + $0x190] sm:$0xff]
    %v95 = vld [vmem:[%s1 + $0x198] sm:$0xff]
    %v96 = vld [vmem:[%s1 + $0x1a0] sm:$0xff]
    %v97 = vld [vmem:[%s1 + $0x1a8] sm:$0xff]
    %v98 = vld [vmem:[%s1 + $0x1b0] sm:$0xff]
    %v99 = vld [vmem:[%s1 + $0x1b8] sm:$0xff]
    %v100 = vld [vmem:[%s1 + $0x1c0] sm:$0xff]
    %v101 = vld [vmem:[%s1 + $0x1c8] sm:$0xff]
    %v102 = vld [vmem:[%s1 + $0x1d0] sm:$0xff]
    %v103 = vld [vmem:[%s1 + $0x1d8] sm:$0xff]
    %v104 = vld [vmem:[%s1 + $0x1e0] sm:$0xff]
    %v105 = vld [vmem:[%s1 + $0x1e8] sm:$0xff]
    %v106 = vld [vmem:[%s1 + $0x1f0] sm:$0xff]
    %v107 = vld [vmem:[%s1 + $0x1f8] sm:$0xff]
    %v108 = vld [vmem:[%s1 + $0x200] sm:$0xff]
    %v109 = vld [vmem:[%s1 + $0x208] sm:$0xff]
    %v110 = vld [vmem:[%s1 + $0x210] sm:$0xff]
    %v111 = vld [vmem:[%s1 + $0x218] sm:$0xff]
    %v112 = vld [vmem:[%s1 + $0x220] sm:$0xff]
    %v113 = vld [vmem:[%s1 + $0x228] sm:$0xff]
    %v114 = vld [vmem:[%s1 + $0x230] sm:$0xff]
    %v115 = vld [vmem:[%s1 + $0x238] sm:$0xff]
    %v116 = vld [vmem:[%s1 + $0x240] sm:$0xff]
    %v117 = vld [vmem:[%s1 + $0x248] sm:$0xff]
    %v118 = vld [vmem:[%s1 + $0x250] sm:$0xff]
    %v119 = vld [vmem:[%s1 + $0x258] sm:$0xff]
    %v120 = vld [vmem:[%s1 + $0x260] sm:$0xff]
    %v121 = vld [vmem:[%s1 + $0x268] sm:$0xff]
    %v122 = vld [vmem:[%s1 + $0x270] sm:$0xff]
    %v123 = vld [vmem:[%s1 + $0x278] sm:$0xff]
    %v124 = vld [vmem:[%s1 + $0x280] sm:$0xff]
    %v125 = vld [vmem:[%s1 + $0x288] sm:$0xff]
    %v126 = vld [vmem:[%s1 + $0x290] sm:$0xff]
    %v127 = vld [vmem:[%s1 + $0x298] sm:$0xff]
    %v128 = vld [vmem:[%s1 + $0x2a0] sm:$0xff]
    %v129 = vld [vmem:[%s1 + $0x2a8] sm:$0xff]
    %v130 = vld [vmem:[%s1 + $0x2b0] sm:$0xff]
    %v131 = vld [vmem:[%s1 + $0x2b8] sm:$0xff]
    %v132 = vld [vmem:[%s1 + $0x2c0] sm:$0xff]
    %v133 = vld [vmem:[%s1 + $0x2c8] sm:$0xff]
    %v134 = vld [vmem:[%s1 + $0x2d0] sm:$0xff]
    %v135 = vld [vmem:[%s1 + $0x2d8] sm:$0xff]
    %v136 = vld [vmem:[%s1 + $0x2e0] sm:$0xff]
    %v137 = vld [vmem:[%s1 + $0x2e8] sm:$0xff]
    %v138 = vld [vmem:[%s1 + $0x2f0] sm:$0xff]
    %v139 = vld [vmem:[%s1 + $0x2f8] sm:$0xff]
    %v140 = vld [vmem:[%s1 + $0x300] sm:$0xff]
    %v141 = vld [vmem:[%s1 + $0x308] sm:$0xff]
    %v142 = vld [vmem:[%s1 + $0x310] sm:$0xff]
    %v143 = vld [vmem:[%s1 + $0x318] sm:$0xff]
    %v144 = vld [vmem:[%s1 + $0x320] sm:$0xff]
    %v145 = vld [vmem:[%s1 + $0x328] sm:$0xff]
    %v146 = vld [vmem:[%s1 + $0x330] sm:$0xff]
    %v147 = vld [vmem:[%s1 + $0x338] sm:$0xff]
    %v148 = vld [vmem:[%s1 + $0x340] sm:$0xff]
    %v149 = vld [vmem:[%s1 + $0x348] sm:$0xff]
    %v150 = vld [vmem:[%s1 + $0x350] sm:$0xff]
    %v151 = vld [vmem:[%s1 + $0x358] sm:$0xff]
    %v152 = vld [vmem:[%s1 + $0x360] sm:$0xff]
    %v153 = vld [vmem:[%s1 + $0x368] sm:$0xff]
    %v154 = vld [vmem:[%s1 + $0x370] sm:$0xff]
    %v155 = vld [vmem:[%s1 + $0x378] sm:$0xff]
    %v156 = vld [vmem:[%s1 + $0x380] sm:$0xff]
    %v157 = vld [vmem:[%s1 + $0x388] sm:$0xff]
    %v158 = vld [vmem:[%s1 + $0x390] sm:$0xff]
    %v159 = vld [vmem:[%s1 + $0x398] sm:$0xff]
    %v160 = vld [vmem:[%s1 + $0x3a0] sm:$0xff]
    %v161 = vld [vmem:[%s1 + $0x3a8] sm:$0xff]
    %v162 = vld [vmem:[%s1 + $0x3b0] sm:$0xff]
    %v163 = vld [vmem:[%s1 + $0x3b8] sm:$0xff]
    %v164 = vld [vmem:[%s1 + $0x3c0] sm:$0xff]
    %v165 = vld [vmem:[%s1 + $0x3c8] sm:$0xff]
    %v166 = vld [vmem:[%s1 + $0x3d0] sm:$0xff]
    %v167 = vld [vmem:[%s1 + $0x3d8] sm:$0xff]
    %v168 = vld [vmem:[%s1 + $0x3e0] sm:$0xff]
    %v169 = vld [vmem:[%s1 + $0x3e8] sm:$0xff]
    %v170 = vld [vmem:[%s1 + $0x3f0] sm:$0xff]
    %v171 = vld [vmem:[%s1 + $0x3f8] sm:$0xff]
    %v172 = vld [vmem:[%s1 + $0x400] sm:$0xff]
    %v173 = vld [vmem:[%s1 + $0x408] sm:$0xff]
    %v174 = vld [vmem:[%s1 + $0x410] sm:$0xff]
    %v175 = vld [vmem:[%s1 + $0x418] sm:$0xff]
    %v176 = vld [vmem:[%s1 + $0x420] sm:$0xff]
    %v177 = vld [vmem:[%s1 + $0x428] sm:$0xff]
    %v178 = vld [vmem:[%s1 + $0x430] sm:$0xff]
    %v179 = vld [vmem:[%s1 + $0x438] sm:$0xff]
    %v180 = vld [vmem:[%s1 + $0x440] sm:$0xff]
    %v181 = vld [vmem:[%s1 + $0x448] sm:$0xff]
    %v182 = vld [vmem:[%s1 + $0x450] sm:$0xff]
    %v183 = vld [vmem:[%s1 + $0x458] sm:$0xff]
    %v184 = vld [vmem:[%s1 + $0x460] sm:$0xff]
    %v185 = vld [vmem:[%s1 + $0x468] sm:$0xff]
    %v186 = vld [vmem:[%s1 + $0x470] sm:$0xff]
    %v187 = vld [vmem:[%s1 + $0x478] sm:$0xff]
    %v188 = vld [vmem:[%s1 + $0x480] sm:$0xff]
    %v189 = vld [vmem:[%s1 + $0x488] sm:$0xff]
    %v190 = vld [vmem:[%s1 + $0x490] sm:$0xff]
    %v191 = vld [vmem:[%s1 + $0x498] sm:$0xff]
    %v192 = vld [vmem:[%s1 + $0x4a0] sm:$0xff]
    %v193 = vld [vmem:[%s1 + $0x4a8] sm:$0xff]
    %v194 = vld [vmem:[%s1 + $0x4b0] sm:$0xff]
    %v195 = vld [vmem:[%s1 + $0x4b8] sm:$0xff]
    %v196 = vld [vmem:[%s1 + $0x4c0] sm:$0xff]
    %v197 = vld [vmem:[%s1 + $0x4c8] sm:$0xff]
    %v198 = vld [vmem:[%s1 + $0x4d0] sm:$0xff]
    %v199 = vld [vmem:[%s1 + $0x4d8] sm:$0xff]
    %v200 = vld [vmem:[%s1 + $0x4e0] sm:$0xff]
    %v201 = vld [vmem:[%s1 + $0x4e8] sm:$0xff]
    %v202 = vld [vmem:[%s1 + $0x4f0] sm:$0xff]
    %v203 = vld [vmem:[%s1 + $0x4f8] sm:$0xff]
    %v204 = vld [vmem:[%s1 + $0x500] sm:$0xff]
    %v205 = vld [vmem:[%s1 + $0x508] sm:$0xff]
    %v206 = vld [vmem:[%s1 + $0x510] sm:$0xff]
    %v207 = vld [vmem:[%s1 + $0x518] sm:$0xff]
    %v208 = vld [vmem:[%s1 + $0x520] sm:$0xff]
    %v209 = vld [vmem:[%s1 + $0x528] sm:$0xff]
    %v210 = vld [vmem:[%s1 + $0x530] sm:$0xff]
    %v211 = vld [vmem:[%s1 + $0x538] sm:$0xff]
    %v212 = vld [vmem:[%s1 + $0x540] sm:$0xff]
    %v213 = vld [vmem:[%s1 + $0x548] sm:$0xff]
    %v214 = vld [vmem:[%s1 + $0x550] sm:$0xff]
    %v215 = vld [vmem:[%s1 + $0x558] sm:$0xff]
    %v216 = vld [vmem:[%s1 + $0x560] sm:$0xff]
    %v217 = vld [vmem:[%s1 + $0x568] sm:$0xff]
    %v218 = vld [vmem:[%s1 + $0x570] sm:$0xff]
    %v219 = vld [vmem:[%s1 + $0x578] sm:$0xff]
    %v220 = vld [vmem:[%s1 + $0x580] sm:$0xff]
    %v221 = vld [vmem:[%s1 + $0x588] sm:$0xff]
    %v222 = vld [vmem:[%s1 + $0x590] sm:$0xff]
    %v223 = vld [vmem:[%s1 + $0x598] sm:$0xff]
    %v224 = vld [vmem:[%s1 + $0x5a0] sm:$0xff]
    %v225 = vld [vmem:[%s1 + $0x5a8] sm:$0xff]
    %v226 = vld [vmem:[%s1 + $0x5b0] sm:$0xff]
    %v227 = vld [vmem:[%s1 + $0x5b8] sm:$0xff]
    %v228 = vld [vmem:[%s1 + $0x5c0] sm:$0xff]
    %v229 = vld [vmem:[%s1 + $0x5c8] sm:$0xff]
    %v230 = vld [vmem:[%s1 + $0x5d0] sm:$0xff]
    %v231 = vld [vmem:[%s1 + $0x5d8] sm:$0xff]
    %v232 = vld [vmem:[%s1 + $0x5e0] sm:$0xff]
    %v233 = vld [vmem:[%s1 + $0x5e8] sm:$0xff]
    %v234 = vld [vmem:[%s1 + $0x5f0] sm:$0xff]
    %v235 = vld [vmem:[%s1 + $0x5f8] sm:$0xff]
    %v236 = vld [vmem:[%s1 + $0x600] sm:$0xff]
    %v237 = vld [vmem:[%s1 + $0x608] sm:$0xff]
    %v238 = vld [vmem:[%s1 + $0x610] sm:$0xff]
    %v239 = vld [vmem:[%s1 + $0x618] sm:$0xff]
    %v240 = vld [vmem:[%s1 + $0x620] sm:$0xff]
    %v241 = vld [vmem:[%s1 + $0x628] sm:$0xff]
    %v242 = vld [vmem:[%s1 + $0x630] sm:$0xff]
    %v243 = vld [vmem:[%s1 + $0x638] sm:$0xff]
    %v244 = vld [vmem:[%s1 + $0x640] sm:$0xff]
    %v245 = vld [vmem:[%s1 + $0x648] sm:$0xff]
    %v246 = vld [vmem:[%s1 + $0x650] sm:$0xff]
    %v247 = vld [vmem:[%s1 + $0x658] sm:$0xff]
    %v248 = vld [vmem:[%s1 + $0x660] sm:$0xff]
    %v249 = vld [vmem:[%s1 + $0x668] sm:$0xff]
    %v250 = vld [vmem:[%s1 + $0x670] sm:$0xff]
    %v251 = vld [vmem:[%s1 + $0x678] sm:$0xff]
    %v252 = vld [vmem:[%s1 + $0x680] sm:$0xff]
    %v253 = vld [vmem:[%s1 + $0x688] sm:$0xff]
    %v254 = vld [vmem:[%s1 + $0x690] sm:$0xff]
    %v255 = vld [vmem:[%s1 + $0x698] sm:$0xff]
    %v256 = vld [vmem:[%s1 + $0x6a0] sm:$0xff]
    %v257 = vld [vmem:[%s1 + $0x6a8] sm:$0xff]
    %v258 = vld [vmem:[%s1 + $0x6b0] sm:$0xff]
    %v259 = vld [vmem:[%s1 + $0x6b8] sm:$0xff]
    %v260 = vld [vmem:[%s1 + $0x6c0] sm:$0xff]
    %v261 = vld [vmem:[%s1 + $0x6c8] sm:$0xff]
    %v262 = vld [vmem:[%s1 + $0x6d0] sm:$0xff]
    %v263 = vld [vmem:[%s1 + $0x6d8] sm:$0xff]
    %v264 = vld [vmem:[%s1 + $0x6e0] sm:$0xff]
    %v265 = vld [vmem:[%s1 + $0x6e8] sm:$0xff]
    %v266 = vld [vmem:[%s1 + $0x6f0] sm:$0xff]
    %v267 = vld [vmem:[%s1 + $0x6f8] sm:$0xff]
    %v268 = vld [vmem:[%s1 + $0x700] sm:$0xff]
    %v269 = vld [vmem:[%s1 + $0x708] sm:$0xff]
    %v270 = vld [vmem:[%s1 + $0x710] sm:$0xff]
    %v271 = vld [vmem:[%s1 + $0x718] sm:$0xff]
    %v272 = vld [vmem:[%s1 + $0x720] sm:$0xff]
    %v273 = vld [vmem:[%s1 + $0x728] sm:$0xff]
    %v274 = vld [vmem:[%s1 + $0x730] sm:$0xff]
    %v275 = vld [vmem:[%s1 + $0x738] sm:$0xff]
    %v276 = vld [vmem:[%s1 + $0x740] sm:$0xff]
    %v277 = vld [vmem:[%s1 + $0x748] sm:$0xff]
    %v278 = vld [vmem:[%s1 + $0x750] sm:$0xff]
    %v279 = vld [vmem:[%s1 + $0x758] sm:$0xff]
    %v280 = vld [vmem:[%s1 + $0x760] sm:$0xff]
    %v281 = vld [vmem:[%s1 + $0x768] sm:$0xff]
    %v282 = vld [vmem:[%s1 + $0x770] sm:$0xff]
    %v283 = vld [vmem:[%s1 + $0x778] sm:$0xff]
    %v284 = vld [vmem:[%s1 + $0x780] sm:$0xff]
    %v285 = vld [vmem:[%s1 + $0x788] sm:$0xff]
    %v286 = vld [vmem:[%s1 + $0x790] sm:$0xff]
    %v287 = vld [vmem:[%s1 + $0x798] sm:$0xff]
    %v288 = vld [vmem:[%s1 + $0x7a0] sm:$0xff]
    %v289 = vld [vmem:[%s1 + $0x7a8] sm:$0xff]
    %v290 = vld [vmem:[%s1 + $0x7b0] sm:$0xff]
    %v291 = vld [vmem:[%s1 + $0x7b8] sm:$0xff]
    %v292 = vld [vmem:[%s1 + $0x7c0] sm:$0xff]
    %v293 = vld [vmem:[%s1 + $0x7c8] sm:$0xff]
    %v294 = vld [vmem:[%s1 + $0x7d0] sm:$0xff]
    %v295 = vld [vmem:[%s1 + $0x7d8] sm:$0xff]
    %v296 = vld [vmem:[%s1 + $0x7e0] sm:$0xff]
    %v297 = vld [vmem:[%s1 + $0x7e8] sm:$0xff]
    %v298 = vld [vmem:[%s1 + $0x7f0] sm:$0xff]
    %v299 = vld [vmem:[%s1 + $0x7f8] sm:$0xff]
    %v300 = vld [vmem:[%s2] sm:$0x1]
    %v302 = vlaneseq
    %v303 = vshrl.u32 %v302, 7
    %v304 = vsub.s32 0, %v303
    %v305 = vrot.slane %v300, %v304
    %v311 = vcombine.high %v40, %v40
    %v313 = vunpack.c.l.s4 1983009808
    %v314 = vunpack.c.0.s8 %v313
    %v315 = vlaneseq
    %v316 = vshrl.u32 %v315, 7
    %v317 = vsub.s32 %v314, %v316
    %v318 = vrot.slane %v40, %v317
    %v320 = vunpack.c.l.s4 1983009808
    %v321 = vunpack.c.0.s8 %v320
    %v322 = vlaneseq
    %v323 = vshrl.u32 %v322, 7
    %v324 = vsub.s32 %v321, %v323
    %v325 = vrot.slane %v311, %v324
    %v326 = vcombine.high %v318, %v318
    %v327 = vcombine.high %v325, %v325
    %v328 = vcombine.high %v41, %v41
    %v330 = vunpack.c.l.s4 1983009808
    %v331 = vunpack.c.0.s8 %v330
    %v332 = vlaneseq
    %v333 = vshrl.u32 %v332, 7
    %v334 = vsub.s32 %v331, %v333
    %v335 = vrot.slane %v41, %v334
    %v337 = vunpack.c.l.s4 1983009808
    %v338 = vunpack.c.0.s8 %v337
    %v339 = vlaneseq
    %v340 = vshrl.u32 %v339, 7
    %v341 = vsub.s32 %v338, %v340
    %v342 = vrot.slane %v328, %v341
    %v343 = vcombine.high %v335, %v335
    %v344 = vcombine.high %v342, %v342
    %v345 = vcombine.high %v42, %v42
    %v347 = vunpack.c.l.s4 1983009808
    %v348 = vunpack.c.0.s8 %v347
    %v349 = vlaneseq
    %v350 = vshrl.u32 %v349, 7
    %v351 = vsub.s32 %v348, %v350
    %v352 = vrot.slane %v42, %v351
    %v354 = vunpack.c.l.s4 1983009808
    %v355 = vunpack.c.0.s8 %v354
    %v356 = vlaneseq
    %v357 = vshrl.u32 %v356, 7
    %v358 = vsub.s32 %v355, %v357
    %v359 = vrot.slane %v345, %v358
    %v360 = vcombine.high %v352, %v352
    %v361 = vcombine.high %v359, %v359
    %v362 = vcombine.high %v43, %v43
    %v364 = vunpack.c.l.s4 1983009808
    %v365 = vunpack.c.0.s8 %v364
    %v366 = vlaneseq
    %v367 = vshrl.u32 %v366, 7
    %v368 = vsub.s32 %v365, %v367
    %v369 = vrot.slane %v43, %v368
    %v371 = vunpack.c.l.s4 1983009808
    %v372 = vunpack.c.0.s8 %v371
    %v373 = vlaneseq
    %v374 = vshrl.u32 %v373, 7
    %v375 = vsub.s32 %v372, %v374
    %v376 = vrot.slane %v362, %v375
    %v377 = vcombine.high %v369, %v369
    %v378 = vcombine.high %v376, %v376
    %395 = vmatprep.subr.mxu0 0.0
    %396 = vmatpush1.msra.mxu0 %v44
    %397 = vmatprep.subr.mxu0 0.0
    %398 = vmatpush1.msra.mxu0 %v45
    %399 = vmatprep.subr.mxu0 0.0
    %400 = vmatpush1.msra.mxu0 %v46
    %401 = vmatprep.subr.mxu0 0.0
    %402 = vmatpush1.msra.mxu0 %v47
    %403 = vmatprep.subr.mxu0 0.0
    %404 = vmatpush1.msra.mxu0 %v48
    %405 = vmatprep.subr.mxu0 0.0
    %406 = vmatpush1.msra.mxu0 %v49
    %407 = vmatprep.subr.mxu0 0.0
    %408 = vmatpush1.msra.mxu0 %v50
    %409 = vmatprep.subr.mxu0 0.0
    %410 = vmatpush1.msra.mxu0 %v51
    %411 = vmatprep.subr.mxu0 0.0
    %412 = vmatpush1.msra.mxu0 %v52
    %413 = vmatprep.subr.mxu0 0.0
    %414 = vmatpush1.msra.mxu0 %v53
    %415 = vmatprep.subr.mxu0 0.0
    %416 = vmatpush1.msra.mxu0 %v54
    %417 = vmatprep.subr.mxu0 0.0
    %418 = vmatpush1.msra.mxu0 %v55
    %419 = vmatprep.subr.mxu0 0.0
    %420 = vmatpush1.msra.mxu0 %v56
    %421 = vmatprep.subr.mxu0 0.0
    %422 = vmatpush1.msra.mxu0 %v57
    %423 = vmatprep.subr.mxu0 0.0
    %424 = vmatpush1.msra.mxu0 %v58
    %425 = vmatprep.subr.mxu0 0.0
    %426 = vmatpush1.msra.mxu0 %v59
    %427 = vmatprep.subr.mxu0 0.0
    %428 = vmatpush1.msra.mxu0 %v60
    %429 = vmatprep.subr.mxu0 0.0
    %430 = vmatpush1.msra.mxu0 %v61
    %431 = vmatprep.subr.mxu0 0.0
    %432 = vmatpush1.msra.mxu0 %v62
    %433 = vmatprep.subr.mxu0 0.0
    %434 = vmatpush1.msra.mxu0 %v63
    %435 = vmatprep.subr.mxu0 0.0
    %436 = vmatpush1.msra.mxu0 %v64
    %437 = vmatprep.subr.mxu0 0.0
    %438 = vmatpush1.msra.mxu0 %v65
    %439 = vmatprep.subr.mxu0 0.0
    %440 = vmatpush1.msra.mxu0 %v66
    %441 = vmatprep.subr.mxu0 0.0
    %442 = vmatpush1.msra.mxu0 %v67
    %443 = vmatprep.subr.mxu0 0.0
    %444 = vmatpush1.msra.mxu0 %v68
    %445 = vmatprep.subr.mxu0 0.0
    %446 = vmatpush1.msra.mxu0 %v69
    %447 = vmatprep.subr.mxu0 0.0
    %448 = vmatpush1.msra.mxu0 %v70
    %449 = vmatprep.subr.mxu0 0.0
    %450 = vmatpush1.msra.mxu0 %v71
    %451 = vmatprep.subr.mxu0 0.0
    %452 = vmatpush1.msra.mxu0 %v72
    %453 = vmatprep.subr.mxu0 0.0
    %454 = vmatpush1.msra.mxu0 %v73
    %455 = vmatprep.subr.mxu0 0.0
    %456 = vmatpush1.msra.mxu0 %v74
    %457 = vmatprep.subr.mxu0 0.0
    %458 = vmatpush1.msra.mxu0 %v75
    %459 = vmatprep.mubr.f32.mxu0 %v326
    %460 = vmatmul.mubr.f32.gmra.mrb[0].mxu0 %v318
    %v461 = vpop.f32.mrb[0].mxu0
    %v462 = vadd.f32 %v305, %v461
    %v463 = vpop.f32.mrb[0].mxu0
    %464 = vdwg.mxu0
    %465 = vmatprep.subr.mxu0 0.0
    %466 = vmatpush1.msra.mxu0 %v76
    %467 = vmatprep.subr.mxu0 0.0
    %468 = vmatpush1.msra.mxu0 %v77
    %469 = vmatprep.subr.mxu0 0.0
    %470 = vmatpush1.msra.mxu0 %v78
    %471 = vmatprep.subr.mxu0 0.0
    %472 = vmatpush1.msra.mxu0 %v79
    %473 = vmatprep.subr.mxu0 0.0
    %474 = vmatpush1.msra.mxu0 %v80
    %475 = vmatprep.subr.mxu0 0.0
    %476 = vmatpush1.msra.mxu0 %v81
    %477 = vmatprep.subr.mxu0 0.0
    %478 = vmatpush1.msra.mxu0 %v82
    %479 = vmatprep.subr.mxu0 0.0
    %480 = vmatpush1.msra.mxu0 %v83
    %481 = vmatprep.subr.mxu0 0.0
    %482 = vmatpush1.msra.mxu0 %v84
    %483 = vmatprep.subr.mxu0 0.0
    %484 = vmatpush1.msra.mxu0 %v85
    %485 = vmatprep.subr.mxu0 0.0
    %486 = vmatpush1.msra.mxu0 %v86
    %487 = vmatprep.subr.mxu0 0.0
    %488 = vmatpush1.msra.mxu0 %v87
    %489 = vmatprep.subr.mxu0 0.0
    %490 = vmatpush1.msra.mxu0 %v88
    %491 = vmatprep.subr.mxu0 0.0
    %492 = vmatpush1.msra.mxu0 %v89
    %493 = vmatprep.subr.mxu0 0.0
    %494 = vmatpush1.msra.mxu0 %v90
    %495 = vmatprep.subr.mxu0 0.0
    %496 = vmatpush1.msra.mxu0 %v91
    %497 = vmatprep.subr.mxu0 0.0
    %498 = vmatpush1.msra.mxu0 %v92
    %499 = vmatprep.subr.mxu0 0.0
    %500 = vmatpush1.msra.mxu0 %v93
    %501 = vmatprep.subr.mxu0 0.0
    %502 = vmatpush1.msra.mxu0 %v94
    %503 = vmatprep.subr.mxu0 0.0
    %504 = vmatpush1.msra.mxu0 %v95
    %505 = vmatprep.subr.mxu0 0.0
    %506 = vmatpush1.msra.mxu0 %v96
    %507 = vmatprep.subr.mxu0 0.0
    %508 = vmatpush1.msra.mxu0 %v97
    %509 = vmatprep.subr.mxu0 0.0
    %510 = vmatpush1.msra.mxu0 %v98
    %511 = vmatprep.subr.mxu0 0.0
    %512 = vmatpush1.msra.mxu0 %v99
    %513 = vmatprep.subr.mxu0 0.0
    %514 = vmatpush1.msra.mxu0 %v100
    %515 = vmatprep.subr.mxu0 0.0
    %516 = vmatpush1.msra.mxu0 %v101
    %517 = vmatprep.subr.mxu0 0.0
    %518 = vmatpush1.msra.mxu0 %v102
    %519 = vmatprep.subr.mxu0 0.0
    %520 = vmatpush1.msra.mxu0 %v103
    %521 = vmatprep.subr.mxu0 0.0
    %522 = vmatpush1.msra.mxu0 %v104
    %523 = vmatprep.subr.mxu0 0.0
    %524 = vmatpush1.msra.mxu0 %v105
    %525 = vmatprep.subr.mxu0 0.0
    %526 = vmatpush1.msra.mxu0 %v106
    %527 = vmatprep.subr.mxu0 0.0
    %528 = vmatpush1.msra.mxu0 %v107
    %529 = vmatprep.mubr.f32.mxu0 %v327
    %530 = vmatmul.mubr.f32.gmra.mrb[0].mxu0 %v325
    %v531 = vpop.f32.mrb[0].mxu0
    %v532 = vadd.f32 %v462, %v531
    %v533 = vpop.f32.mrb[0].mxu0
    %534 = vdwg.mxu0
    %535 = vmatprep.subr.mxu0 0.0
    %536 = vmatpush1.msra.mxu0 %v108
    %537 = vmatprep.subr.mxu0 0.0
    %538 = vmatpush1.msra.mxu0 %v109
    %539 = vmatprep.subr.mxu0 0.0
    %540 = vmatpush1.msra.mxu0 %v110
    %541 = vmatprep.subr.mxu0 0.0
    %542 = vmatpush1.msra.mxu0 %v111
    %543 = vmatprep.subr.mxu0 0.0
    %544 = vmatpush1.msra.mxu0 %v112
    %545 = vmatprep.subr.mxu0 0.0
    %546 = vmatpush1.msra.mxu0 %v113
    %547 = vmatprep.subr.mxu0 0.0
    %548 = vmatpush1.msra.mxu0 %v114
    %549 = vmatprep.subr.mxu0 0.0
    %550 = vmatpush1.msra.mxu0 %v115
    %551 = vmatprep.subr.mxu0 0.0
    %552 = vmatpush1.msra.mxu0 %v116
    %553 = vmatprep.subr.mxu0 0.0
    %554 = vmatpush1.msra.mxu0 %v117
    %555 = vmatprep.subr.mxu0 0.0
    %556 = vmatpush1.msra.mxu0 %v118
    %557 = vmatprep.subr.mxu0 0.0
    %558 = vmatpush1.msra.mxu0 %v119
    %559 = vmatprep.subr.mxu0 0.0
    %560 = vmatpush1.msra.mxu0 %v120
    %561 = vmatprep.subr.mxu0 0.0
    %562 = vmatpush1.msra.mxu0 %v121
    %563 = vmatprep.subr.mxu0 0.0
    %564 = vmatpush1.msra.mxu0 %v122
    %565 = vmatprep.subr.mxu0 0.0
    %566 = vmatpush1.msra.mxu0 %v123
    %567 = vmatprep.subr.mxu0 0.0
    %568 = vmatpush1.msra.mxu0 %v124
    %569 = vmatprep.subr.mxu0 0.0
    %570 = vmatpush1.msra.mxu0 %v125
    %571 = vmatprep.subr.mxu0 0.0
    %572 = vmatpush1.msra.mxu0 %v126
    %573 = vmatprep.subr.mxu0 0.0
    %574 = vmatpush1.msra.mxu0 %v127
    %575 = vmatprep.subr.mxu0 0.0
    %576 = vmatpush1.msra.mxu0 %v128
    %577 = vmatprep.subr.mxu0 0.0
    %578 = vmatpush1.msra.mxu0 %v129
    %579 = vmatprep.subr.mxu0 0.0
    %580 = vmatpush1.msra.mxu0 %v130
    %581 = vmatprep.subr.mxu0 0.0
    %582 = vmatpush1.msra.mxu0 %v131
    %583 = vmatprep.subr.mxu0 0.0
    %584 = vmatpush1.msra.mxu0 %v132
    %585 = vmatprep.subr.mxu0 0.0
    %586 = vmatpush1.msra.mxu0 %v133
    %587 = vmatprep.subr.mxu0 0.0
    %588 = vmatpush1.msra.mxu0 %v134
    %589 = vmatprep.subr.mxu0 0.0
    %590 = vmatpush1.msra.mxu0 %v135
    %591 = vmatprep.subr.mxu0 0.0
    %592 = vmatpush1.msra.mxu0 %v136
    %593 = vmatprep.subr.mxu0 0.0
    %594 = vmatpush1.msra.mxu0 %v137
    %595 = vmatprep.subr.mxu0 0.0
    %596 = vmatpush1.msra.mxu0 %v138
    %597 = vmatprep.subr.mxu0 0.0
    %598 = vmatpush1.msra.mxu0 %v139
    %599 = vmatprep.mubr.f32.mxu0 %v343
    %600 = vmatmul.mubr.f32.gmra.mrb[0].mxu0 %v335
    %v601 = vpop.f32.mrb[0].mxu0
    %v602 = vadd.f32 %v532, %v601
    %v603 = vpop.f32.mrb[0].mxu0
    %604 = vdwg.mxu0
    %605 = vmatprep.subr.mxu0 0.0
    %606 = vmatpush1.msra.mxu0 %v140
    %607 = vmatprep.subr.mxu0 0.0
    %608 = vmatpush1.msra.mxu0 %v141
    %609 = vmatprep.subr.mxu0 0.0
    %610 = vmatpush1.msra.mxu0 %v142
    %611 = vmatprep.subr.mxu0 0.0
    %612 = vmatpush1.msra.mxu0 %v143
    %613 = vmatprep.subr.mxu0 0.0
    %614 = vmatpush1.msra.mxu0 %v144
    %615 = vmatprep.subr.mxu0 0.0
    %616 = vmatpush1.msra.mxu0 %v145
    %617 = vmatprep.subr.mxu0 0.0
    %618 = vmatpush1.msra.mxu0 %v146
    %619 = vmatprep.subr.mxu0 0.0
    %620 = vmatpush1.msra.mxu0 %v147
    %621 = vmatprep.subr.mxu0 0.0
    %622 = vmatpush1.msra.mxu0 %v148
    %623 = vmatprep.subr.mxu0 0.0
    %624 = vmatpush1.msra.mxu0 %v149
    %625 = vmatprep.subr.mxu0 0.0
    %626 = vmatpush1.msra.mxu0 %v150
    %627 = vmatprep.subr.mxu0 0.0
    %628 = vmatpush1.msra.mxu0 %v151
    %629 = vmatprep.subr.mxu0 0.0
    %630 = vmatpush1.msra.mxu0 %v152
    %631 = vmatprep.subr.mxu0 0.0
    %632 = vmatpush1.msra.mxu0 %v153
    %633 = vmatprep.subr.mxu0 0.0
    %634 = vmatpush1.msra.mxu0 %v154
    %635 = vmatprep.subr.mxu0 0.0
    %636 = vmatpush1.msra.mxu0 %v155
    %637 = vmatprep.subr.mxu0 0.0
    %638 = vmatpush1.msra.mxu0 %v156
    %639 = vmatprep.subr.mxu0 0.0
    %640 = vmatpush1.msra.mxu0 %v157
    %641 = vmatprep.subr.mxu0 0.0
    %642 = vmatpush1.msra.mxu0 %v158
    %643 = vmatprep.subr.mxu0 0.0
    %644 = vmatpush1.msra.mxu0 %v159
    %645 = vmatprep.subr.mxu0 0.0
    %646 = vmatpush1.msra.mxu0 %v160
    %647 = vmatprep.subr.mxu0 0.0
    %648 = vmatpush1.msra.mxu0 %v161
    %649 = vmatprep.subr.mxu0 0.0
    %650 = vmatpush1.msra.mxu0 %v162
    %651 = vmatprep.subr.mxu0 0.0
    %652 = vmatpush1.msra.mxu0 %v163
    %653 = vmatprep.subr.mxu0 0.0
    %654 = vmatpush1.msra.mxu0 %v164
    %655 = vmatprep.subr.mxu0 0.0
    %656 = vmatpush1.msra.mxu0 %v165
    %657 = vmatprep.subr.mxu0 0.0
    %658 = vmatpush1.msra.mxu0 %v166
    %659 = vmatprep.subr.mxu0 0.0
    %660 = vmatpush1.msra.mxu0 %v167
    %661 = vmatprep.subr.mxu0 0.0
    %662 = vmatpush1.msra.mxu0 %v168
    %663 = vmatprep.subr.mxu0 0.0
    %664 = vmatpush1.msra.mxu0 %v169
    %665 = vmatprep.subr.mxu0 0.0
    %666 = vmatpush1.msra.mxu0 %v170
    %667 = vmatprep.subr.mxu0 0.0
    %668 = vmatpush1.msra.mxu0 %v171
    %669 = vmatprep.mubr.f32.mxu0 %v344
    %670 = vmatmul.mubr.f32.gmra.mrb[0].mxu0 %v342
    %v671 = vpop.f32.mrb[0].mxu0
    %v672 = vadd.f32 %v602, %v671
    %v673 = vpop.f32.mrb[0].mxu0
    %674 = vdwg.mxu0
    %675 = vmatprep.subr.mxu0 0.0
    %676 = vmatpush1.msra.mxu0 %v172
    %677 = vmatprep.subr.mxu0 0.0
    %678 = vmatpush1.msra.mxu0 %v173
    %679 = vmatprep.subr.mxu0 0.0
    %680 = vmatpush1.msra.mxu0 %v174
    %681 = vmatprep.subr.mxu0 0.0
    %682 = vmatpush1.msra.mxu0 %v175
    %683 = vmatprep.subr.mxu0 0.0
    %684 = vmatpush1.msra.mxu0 %v176
    %685 = vmatprep.subr.mxu0 0.0
    %686 = vmatpush1.msra.mxu0 %v177
    %687 = vmatprep.subr.mxu0 0.0
    %688 = vmatpush1.msra.mxu0 %v178
    %689 = vmatprep.subr.mxu0 0.0
    %690 = vmatpush1.msra.mxu0 %v179
    %691 = vmatprep.subr.mxu0 0.0
    %692 = vmatpush1.msra.mxu0 %v180
    %693 = vmatprep.subr.mxu0 0.0
    %694 = vmatpush1.msra.mxu0 %v181
    %695 = vmatprep.subr.mxu0 0.0
    %696 = vmatpush1.msra.mxu0 %v182
    %697 = vmatprep.subr.mxu0 0.0
    %698 = vmatpush1.msra.mxu0 %v183
    %699 = vmatprep.subr.mxu0 0.0
    %700 = vmatpush1.msra.mxu0 %v184
    %701 = vmatprep.subr.mxu0 0.0
    %702 = vmatpush1.msra.mxu0 %v185
    %703 = vmatprep.subr.mxu0 0.0
    %704 = vmatpush1.msra.mxu0 %v186
    %705 = vmatprep.subr.mxu0 0.0
    %706 = vmatpush1.msra.mxu0 %v187
    %707 = vmatprep.subr.mxu0 0.0
    %708 = vmatpush1.msra.mxu0 %v188
    %709 = vmatprep.subr.mxu0 0.0
    %710 = vmatpush1.msra.mxu0 %v189
    %711 = vmatprep.subr.mxu0 0.0
    %712 = vmatpush1.msra.mxu0 %v190
    %713 = vmatprep.subr.mxu0 0.0
    %714 = vmatpush1.msra.mxu0 %v191
    %715 = vmatprep.subr.mxu0 0.0
    %716 = vmatpush1.msra.mxu0 %v192
    %717 = vmatprep.subr.mxu0 0.0
    %718 = vmatpush1.msra.mxu0 %v193
    %719 = vmatprep.subr.mxu0 0.0
    %720 = vmatpush1.msra.mxu0 %v194
    %721 = vmatprep.subr.mxu0 0.0
    %722 = vmatpush1.msra.mxu0 %v195
    %723 = vmatprep.subr.mxu0 0.0
    %724 = vmatpush1.msra.mxu0 %v196
    %725 = vmatprep.subr.mxu0 0.0
    %726 = vmatpush1.msra.mxu0 %v197
    %727 = vmatprep.subr.mxu0 0.0
    %728 = vmatpush1.msra.mxu0 %v198
    %729 = vmatprep.subr.mxu0 0.0
    %730 = vmatpush1.msra.mxu0 %v199
    %731 = vmatprep.subr.mxu0 0.0
    %732 = vmatpush1.msra.mxu0 %v200
    %733 = vmatprep.subr.mxu0 0.0
    %734 = vmatpush1.msra.mxu0 %v201
    %735 = vmatprep.subr.mxu0 0.0
    %736 = vmatpush1.msra.mxu0 %v202
    %737 = vmatprep.subr.mxu0 0.0
    %738 = vmatpush1.msra.mxu0 %v203
    %739 = vmatprep.mubr.f32.mxu0 %v360
    %740 = vmatmul.mubr.f32.gmra.mrb[0].mxu0 %v352
    %v741 = vpop.f32.mrb[0].mxu0
    %v742 = vadd.f32 %v672, %v741
    %v743 = vpop.f32.mrb[0].mxu0
    %744 = vdwg.mxu0
    %745 = vmatprep.subr.mxu0 0.0
    %746 = vmatpush1.msra.mxu0 %v204
    %747 = vmatprep.subr.mxu0 0.0
    %748 = vmatpush1.msra.mxu0 %v205
    %749 = vmatprep.subr.mxu0 0.0
    %750 = vmatpush1.msra.mxu0 %v206
    %751 = vmatprep.subr.mxu0 0.0
    %752 = vmatpush1.msra.mxu0 %v207
    %753 = vmatprep.subr.mxu0 0.0
    %754 = vmatpush1.msra.mxu0 %v208
    %755 = vmatprep.subr.mxu0 0.0
    %756 = vmatpush1.msra.mxu0 %v209
    %757 = vmatprep.subr.mxu0 0.0
    %758 = vmatpush1.msra.mxu0 %v210
    %759 = vmatprep.subr.mxu0 0.0
    %760 = vmatpush1.msra.mxu0 %v211
    %761 = vmatprep.subr.mxu0 0.0
    %762 = vmatpush1.msra.mxu0 %v212
    %763 = vmatprep.subr.mxu0 0.0
    %764 = vmatpush1.msra.mxu0 %v213
    %765 = vmatprep.subr.mxu0 0.0
    %766 = vmatpush1.msra.mxu0 %v214
    %767 = vmatprep.subr.mxu0 0.0
    %768 = vmatpush1.msra.mxu0 %v215
    %769 = vmatprep.subr.mxu0 0.0
    %770 = vmatpush1.msra.mxu0 %v216
    %771 = vmatprep.subr.mxu0 0.0
    %772 = vmatpush1.msra.mxu0 %v217
    %773 = vmatprep.subr.mxu0 0.0
    %774 = vmatpush1.msra.mxu0 %v218
    %775 = vmatprep.subr.mxu0 0.0
    %776 = vmatpush1.msra.mxu0 %v219
    %777 = vmatprep.subr.mxu0 0.0
    %778 = vmatpush1.msra.mxu0 %v220
    %779 = vmatprep.subr.mxu0 0.0
    %780 = vmatpush1.msra.mxu0 %v221
    %781 = vmatprep.subr.mxu0 0.0
    %782 = vmatpush1.msra.mxu0 %v222
    %783 = vmatprep.subr.mxu0 0.0
    %784 = vmatpush1.msra.mxu0 %v223
    %785 = vmatprep.subr.mxu0 0.0
    %786 = vmatpush1.msra.mxu0 %v224
    %787 = vmatprep.subr.mxu0 0.0
    %788 = vmatpush1.msra.mxu0 %v225
    %789 = vmatprep.subr.mxu0 0.0
    %790 = vmatpush1.msra.mxu0 %v226
    %791 = vmatprep.subr.mxu0 0.0
    %792 = vmatpush1.msra.mxu0 %v227
    %793 = vmatprep.subr.mxu0 0.0
    %794 = vmatpush1.msra.mxu0 %v228
    %795 = vmatprep.subr.mxu0 0.0
    %796 = vmatpush1.msra.mxu0 %v229
    %797 = vmatprep.subr.mxu0 0.0
    %798 = vmatpush1.msra.mxu0 %v230
    %799 = vmatprep.subr.mxu0 0.0
    %800 = vmatpush1.msra.mxu0 %v231
    %801 = vmatprep.subr.mxu0 0.0
    %802 = vmatpush1.msra.mxu0 %v232
    %803 = vmatprep.subr.mxu0 0.0
    %804 = vmatpush1.msra.mxu0 %v233
    %805 = vmatprep.subr.mxu0 0.0
    %806 = vmatpush1.msra.mxu0 %v234
    %807 = vmatprep.subr.mxu0 0.0
    %808 = vmatpush1.msra.mxu0 %v235
    %809 = vmatprep.mubr.f32.mxu0 %v361
    %810 = vmatmul.mubr.f32.gmra.mrb[0].mxu0 %v359
    %v811 = vpop.f32.mrb[0].mxu0
    %v812 = vadd.f32 %v742, %v811
    %v813 = vpop.f32.mrb[0].mxu0
    %814 = vdwg.mxu0
    %815 = vmatprep.subr.mxu0 0.0
    %816 = vmatpush1.msra.mxu0 %v236
    %817 = vmatprep.subr.mxu0 0.0
    %818 = vmatpush1.msra.mxu0 %v237
    %819 = vmatprep.subr.mxu0 0.0
    %820 = vmatpush1.msra.mxu0 %v238
    %821 = vmatprep.subr.mxu0 0.0
    %822 = vmatpush1.msra.mxu0 %v239
    %823 = vmatprep.subr.mxu0 0.0
    %824 = vmatpush1.msra.mxu0 %v240
    %825 = vmatprep.subr.mxu0 0.0
    %826 = vmatpush1.msra.mxu0 %v241
    %827 = vmatprep.subr.mxu0 0.0
    %828 = vmatpush1.msra.mxu0 %v242
    %829 = vmatprep.subr.mxu0 0.0
    %830 = vmatpush1.msra.mxu0 %v243
    %831 = vmatprep.subr.mxu0 0.0
    %832 = vmatpush1.msra.mxu0 %v244
    %833 = vmatprep.subr.mxu0 0.0
    %834 = vmatpush1.msra.mxu0 %v245
    %835 = vmatprep.subr.mxu0 0.0
    %836 = vmatpush1.msra.mxu0 %v246
    %837 = vmatprep.subr.mxu0 0.0
    %838 = vmatpush1.msra.mxu0 %v247
    %839 = vmatprep.subr.mxu0 0.0
    %840 = vmatpush1.msra.mxu0 %v248
    %841 = vmatprep.subr.mxu0 0.0
    %842 = vmatpush1.msra.mxu0 %v249
    %843 = vmatprep.subr.mxu0 0.0
    %844 = vmatpush1.msra.mxu0 %v250
    %845 = vmatprep.subr.mxu0 0.0
    %846 = vmatpush1.msra.mxu0 %v251
    %847 = vmatprep.subr.mxu0 0.0
    %848 = vmatpush1.msra.mxu0 %v252
    %849 = vmatprep.subr.mxu0 0.0
    %850 = vmatpush1.msra.mxu0 %v253
    %851 = vmatprep.subr.mxu0 0.0
    %852 = vmatpush1.msra.mxu0 %v254
    %853 = vmatprep.subr.mxu0 0.0
    %854 = vmatpush1.msra.mxu0 %v255
    %855 = vmatprep.subr.mxu0 0.0
    %856 = vmatpush1.msra.mxu0 %v256
    %857 = vmatprep.subr.mxu0 0.0
    %858 = vmatpush1.msra.mxu0 %v257
    %859 = vmatprep.subr.mxu0 0.0
    %860 = vmatpush1.msra.mxu0 %v258
    %861 = vmatprep.subr.mxu0 0.0
    %862 = vmatpush1.msra.mxu0 %v259
    %863 = vmatprep.subr.mxu0 0.0
    %864 = vmatpush1.msra.mxu0 %v260
    %865 = vmatprep.subr.mxu0 0.0
    %866 = vmatpush1.msra.mxu0 %v261
    %867 = vmatprep.subr.mxu0 0.0
    %868 = vmatpush1.msra.mxu0 %v262
    %869 = vmatprep.subr.mxu0 0.0
    %870 = vmatpush1.msra.mxu0 %v263
    %871 = vmatprep.subr.mxu0 0.0
    %872 = vmatpush1.msra.mxu0 %v264
    %873 = vmatprep.subr.mxu0 0.0
    %874 = vmatpush1.msra.mxu0 %v265
    %875 = vmatprep.subr.mxu0 0.0
    %876 = vmatpush1.msra.mxu0 %v266
    %877 = vmatprep.subr.mxu0 0.0
    %878 = vmatpush1.msra.mxu0 %v267
    %879 = vmatprep.mubr.f32.mxu0 %v377
    %880 = vmatmul.mubr.f32.gmra.mrb[0].mxu0 %v369
    %v881 = vpop.f32.mrb[0].mxu0
    %v882 = vadd.f32 %v812, %v881
    %v883 = vpop.f32.mrb[0].mxu0
    %884 = vdwg.mxu0
    %885 = vmatprep.subr.mxu0 0.0
    %886 = vmatpush1.msra.mxu0 %v268
    %887 = vmatprep.subr.mxu0 0.0
    %888 = vmatpush1.msra.mxu0 %v269
    %889 = vmatprep.subr.mxu0 0.0
    %890 = vmatpush1.msra.mxu0 %v270
    %891 = vmatprep.subr.mxu0 0.0
    %892 = vmatpush1.msra.mxu0 %v271
    %893 = vmatprep.subr.mxu0 0.0
    %894 = vmatpush1.msra.mxu0 %v272
    %895 = vmatprep.subr.mxu0 0.0
    %896 = vmatpush1.msra.mxu0 %v273
    %897 = vmatprep.subr.mxu0 0.0
    %898 = vmatpush1.msra.mxu0 %v274
    %899 = vmatprep.subr.mxu0 0.0
    %900 = vmatpush1.msra.mxu0 %v275
    %901 = vmatprep.subr.mxu0 0.0
    %902 = vmatpush1.msra.mxu0 %v276
    %903 = vmatprep.subr.mxu0 0.0
    %904 = vmatpush1.msra.mxu0 %v277
    %905 = vmatprep.subr.mxu0 0.0
    %906 = vmatpush1.msra.mxu0 %v278
    %907 = vmatprep.subr.mxu0 0.0
    %908 = vmatpush1.msra.mxu0 %v279
    %909 = vmatprep.subr.mxu0 0.0
    %910 = vmatpush1.msra.mxu0 %v280
    %911 = vmatprep.subr.mxu0 0.0
    %912 = vmatpush1.msra.mxu0 %v281
    %913 = vmatprep.subr.mxu0 0.0
    %914 = vmatpush1.msra.mxu0 %v282
    %915 = vmatprep.subr.mxu0 0.0
    %916 = vmatpush1.msra.mxu0 %v283
    %917 = vmatprep.subr.mxu0 0.0
    %918 = vmatpush1.msra.mxu0 %v284
    %919 = vmatprep.subr.mxu0 0.0
    %920 = vmatpush1.msra.mxu0 %v285
    %921 = vmatprep.subr.mxu0 0.0
    %922 = vmatpush1.msra.mxu0 %v286
    %923 = vmatprep.subr.mxu0 0.0
    %924 = vmatpush1.msra.mxu0 %v287
    %925 = vmatprep.subr.mxu0 0.0
    %926 = vmatpush1.msra.mxu0 %v288
    %927 = vmatprep.subr.mxu0 0.0
    %928 = vmatpush1.msra.mxu0 %v289
    %929 = vmatprep.subr.mxu0 0.0
    %930 = vmatpush1.msra.mxu0 %v290
    %931 = vmatprep.subr.mxu0 0.0
    %932 = vmatpush1.msra.mxu0 %v291
    %933 = vmatprep.subr.mxu0 0.0
    %934 = vmatpush1.msra.mxu0 %v292
    %935 = vmatprep.subr.mxu0 0.0
    %936 = vmatpush1.msra.mxu0 %v293
    %937 = vmatprep.subr.mxu0 0.0
    %938 = vmatpush1.msra.mxu0 %v294
    %939 = vmatprep.subr.mxu0 0.0
    %940 = vmatpush1.msra.mxu0 %v295
    %941 = vmatprep.subr.mxu0 0.0
    %942 = vmatpush1.msra.mxu0 %v296
    %943 = vmatprep.subr.mxu0 0.0
    %944 = vmatpush1.msra.mxu0 %v297
    %945 = vmatprep.subr.mxu0 0.0
    %946 = vmatpush1.msra.mxu0 %v298
    %947 = vmatprep.subr.mxu0 0.0
    %948 = vmatpush1.msra.mxu0 %v299
    %949 = vmatprep.mubr.f32.mxu0 %v378
    %950 = vmatmul.mubr.f32.gmra.mrb[0].mxu0 %v376
    %v951 = vpop.f32.mrb[0].mxu0
    %v952 = vadd.f32 %v882, %v951
    %v953 = vpop.f32.mrb[0].mxu0
    %954 = vdwg.mxu0
    %vm955 = vcmask 123904
    %v956 = vsel %vm955, %v952, -inf
    %957 = vmax.xlane.f32.xlu0 %v956
    %v958 = vpop.xlane.xlu0 %957
    %v959 = vsub.f32 %v952, %v958
    %v960 = vmul.f32 %v959, 1.442695
    %v961 = vpow.pop %v960
    %v962 = vsel %vm955, %v961, 0.0
    %963 = vadd.xlane.f32.xlu0 %v962
    %v964 = vpop.xlane.xlu0 %963
    %v965 = vrcp.pop %v964
    %v966 = vmul.f32 %v961, %v965
    %967 = vst.msk [vmem:[#allocation2] sm:$0x3] %vm955, %v966
    %v968 = vld [vmem:[%s3] sm:$0x3]
    %v969 = vld [vmem:[%s4] sm:$0xff]
    %v970 = vld [vmem:[%s4 + $0x8] sm:$0x3]
    %v971 = vld [vmem:[%s5] sm:$0x1]
    %v973 = vlaneseq
    %v974 = vshrl.u32 %v973, 7
    %v975 = vsub.s32 0, %v974
    %v976 = vrot.slane %v971, %v975
    %vm978 = vcmask 80896
    %v980 = vsel %vm978, %v968, 0
    %vm982 = vcmask 1041408
    %v984 = vsel %vm982, %v970, 0
    %986 = vmatprep.subr.mxu0 0.0
    %987 = vmatpush1.msra.mxu0 %v969
    %988 = vmatprep.subr.mxu0 0.0
    %989 = vmatpush1.msra.mxu0 %v984
    %990 = vmatprep.subr.mxu0 0.0
    %991 = vmatpush1.msra.mxu0 0.0
    %992 = vmatprep.subr.mxu0 0.0
    %993 = vmatpush1.msra.mxu0 0.0
    %994 = vmatprep.subr.mxu0 0.0
    %995 = vmatpush1.msra.mxu0 0.0
    %996 = vmatprep.subr.mxu0 0.0
    %997 = vmatpush1.msra.mxu0 0.0
    %998 = vmatprep.subr.mxu0 0.0
    %999 = vmatpush1.msra.mxu0 0.0
    %1000 = vmatprep.subr.mxu0 0.0
    %1001 = vmatpush1.msra.mxu0 0.0
    %1002 = vmatprep.subr.mxu0 0.0
    %1003 = vmatpush1.msra.mxu0 0.0
    %1004 = vmatprep.subr.mxu0 0.0
    %1005 = vmatpush1.msra.mxu0 0.0
    %1006 = vmatprep.subr.mxu0 0.0
    %1007 = vmatpush1.msra.mxu0 0.0
    %1008 = vmatprep.subr.mxu0 0.0
    %1009 = vmatpush1.msra.mxu0 0.0
    %1010 = vmatprep.subr.mxu0 0.0
    %1011 = vmatpush1.msra.mxu0 0.0
    %1012 = vmatprep.subr.mxu0 0.0
    %1013 = vmatpush1.msra.mxu0 0.0
    %1014 = vmatprep.subr.mxu0 0.0
    %1015 = vmatpush1.msra.mxu0 0.0
    %1016 = vmatprep.subr.mxu0 0.0
    %1017 = vmatpush1.msra.mxu0 0.0
    %1018 = vmatprep.subr.mxu0 0.0
    %1019 = vmatpush1.msra.mxu0 0.0
    %1020 = vmatprep.subr.mxu0 0.0
    %1021 = vmatpush1.msra.mxu0 0.0
    %1022 = vmatprep.subr.mxu0 0.0
    %1023 = vmatpush1.msra.mxu0 0.0
    %1024 = vmatprep.subr.mxu0 0.0
    %1025 = vmatpush1.msra.mxu0 0.0
    %1026 = vmatprep.subr.mxu0 0.0
    %1027 = vmatpush1.msra.mxu0 0.0
    %1028 = vmatprep.subr.mxu0 0.0
    %1029 = vmatpush1.msra.mxu0 0.0
    %1030 = vmatprep.subr.mxu0 0.0
    %1031 = vmatpush1.msra.mxu0 0.0
    %1032 = vmatprep.subr.mxu0 0.0
    %1033 = vmatpush1.msra.mxu0 0.0
    %1034 = vmatprep.subr.mxu0 0.0
    %1035 = vmatpush1.msra.mxu0 0.0
    %1036 = vmatprep.subr.mxu0 0.0
    %1037 = vmatpush1.msra.mxu0 0.0
    %1038 = vmatprep.subr.mxu0 0.0
    %1039 = vmatpush1.msra.mxu0 0.0
    %1040 = vmatprep.subr.mxu0 0.0
    %1041 = vmatpush1.msra.mxu0 0.0
    %1042 = vmatprep.subr.mxu0 0.0
    %1043 = vmatpush1.msra.mxu0 0.0
    %1044 = vmatprep.subr.mxu0 0.0
    %1045 = vmatpush1.msra.mxu0 0.0
    %1046 = vmatprep.subr.mxu0 0.0
    %1047 = vmatpush1.msra.mxu0 0.0
    %1048 = vmatprep.subr.mxu0 0.0
    %1049 = vmatpush1.msra.mxu0 0.0
    %1050 = vmatprep.mubr.f32.mxu0 0.0
    %1051 = vmatmul.mubr.f32.gmra.mrb[0].mxu0 %v980
    %v1052 = vpop.f32.mrb[0].mxu0
    %v1053 = vadd.f32 %v976, %v1052
    %v1054 = vpop.f32.mrb[0].mxu0
    %1055 = vdwg.mxu0
    %v1056 = vsel %vm955, %v1053, -inf
    %1057 = vmax.xlane.f32.xlu0 %v1056
    %v1058 = vpop.xlane.xlu0 %1057
    %v1059 = vsub.f32 %v1053, %v1058
    %v1060 = vmul.f32 %v1059, 1.442695
    %v1061 = vpow.pop %v1060
    %v1062 = vsel %vm955, %v1061, 0.0
    %1063 = vadd.xlane.f32.xlu0 %v1062
    %v1064 = vpop.xlane.xlu0 %1063
    %v1065 = vrcp.pop %v1064
    %v1066 = vmul.f32 %v1061, %v1065
    %1067 = vst.msk [vmem:[#allocation4] sm:$0x3] %vm955, %v1066
    %v1068 = vlaneseq
    %v1069 = vshrl.u32 %v1068, 7
    %v1070 = vsub.s32 0, %v1069
    %v1071 = vrot.slane %v1053, %v1070
    %1073 = vbcast.lane.b32.xlu0 %v1071, 256
    %v1074 = vpop.permute.xlu0 %1073
    %s1076 = sor.u32 256, 8
    %1077 = vbcast.lane.b32.xlu0 %v1071, %s1076
    %v1078 = vpop.permute.xlu0 %1077
    %v1079 = vlaneseq
    %v1080 = vshrl.u32 %v1079, 7
    %v1081 = vsub.s32 1, %v1080
    %v1082 = vrot.slane %v1053, %v1081
    %1084 = vbcast.lane.b32.xlu0 %v1082, 256
    %v1085 = vpop.permute.xlu0 %1084
    %s1087 = sor.u32 256, 8
    %1088 = vbcast.lane.b32.xlu0 %v1082, %s1087
    %v1089 = vpop.permute.xlu0 %1088
    %v1092 = vunpack.c.l.s4 1966171168
    %v1093 = vunpack.c.0.s8 %v1092
    %v1094 = vlaneseq
    %v1095 = vshrl.u32 %v1094, 7
    %v1096 = vsub.s32 %v1093, %v1095
    %v1097 = vrot.slane %v1053, %v1096
    %v1098 = vcombine.high %v1097, %v1097
    %v1100 = vunpack.c.l.s4 1966171168
    %v1101 = vunpack.c.0.s8 %v1100
    %v1102 = vlaneseq
    %v1103 = vshrl.u32 %v1102, 7
    %v1104 = vsub.s32 %v1101, %v1103
    %v1105 = vrot.slane %v1097, %v1104
    %v1107 = vunpack.c.l.s4 1966171168
    %v1108 = vunpack.c.0.s8 %v1107
    %v1109 = vlaneseq
    %v1110 = vshrl.u32 %v1109, 7
    %v1111 = vsub.s32 %v1108, %v1110
    %v1112 = vrot.slane %v1098, %v1111
    %v1113 = vlaneseq
    %v1114 = vshrl.u32 %v1113, 7
    %v1115 = vsub.s32 0, %v1114
    %v1116 = vrot.slane %v1105, %v1115
    %v1117 = vlaneseq
    %v1118 = vshrl.u32 %v1117, 7
    %v1119 = vsub.s32 0, %v1118
    %v1120 = vrot.slane %v1112, %v1119
    %vm1123 = vcmp.ge.f32.partialorder %v1116, %v1074
    %vm1124 = vcmp.ge.f32.partialorder %v1116, %v1078
    %vm1125 = vcmp.ge.f32.partialorder %v1120, %v1085
    %vm1126 = vcmp.ge.f32.partialorder %v1120, %v1089
    %v1127 = vsel %vm1123, 1, 0
    %v1128 = vsel %vm1124, 1, 0
    %v1129 = vsel %vm1125, 1, 0
    %v1130 = vsel %vm1126, 1, 0
    %v1131 = vcvt.s32.f32 %v1127
    %v1132 = vcvt.s32.f32 %v1128
    %v1133 = vcvt.s32.f32 %v1129
    %v1134 = vcvt.s32.f32 %v1130
    %vm1135 = vcmask 130048
    %v1136 = vsel %vm1135, %v1131, 0.0
    %1137 = vadd.xlane.f32.xlu0 %v1136
    %v1138 = vpop.xlane.xlu0 %1137
    %v1139 = vsel %vm1135, %v1132, 0.0
    %1140 = vadd.xlane.f32.xlu0 %v1139
    %v1141 = vpop.xlane.xlu0 %1140
    %v1142 = vsel %vm1135, %v1133, 0.0
    %1143 = vadd.xlane.f32.xlu0 %v1142
    %v1144 = vpop.xlane.xlu0 %1143
    %v1145 = vsel %vm1135, %v1134, 0.0
    %1146 = vadd.xlane.f32.xlu0 %v1145
    %v1147 = vpop.xlane.xlu0 %1146
    %v1148 = vmul.f32 %v1131, %v1116
    %v1149 = vmul.f32 %v1132, %v1116
    %v1150 = vmul.f32 %v1133, %v1120
    %v1151 = vmul.f32 %v1134, %v1120
    %v1152 = vsel %vm1135, %v1148, 0.0
    %1153 = vadd.xlane.f32.xlu0 %v1152
    %v1154 = vpop.xlane.xlu0 %1153
    %v1155 = vsel %vm1135, %v1149, 0.0
    %1156 = vadd.xlane.f32.xlu0 %v1155
    %v1157 = vpop.xlane.xlu0 %1156
    %v1158 = vsel %vm1135, %v1150, 0.0
    %1159 = vadd.xlane.f32.xlu0 %v1158
    %v1160 = vpop.xlane.xlu0 %1159
    %v1161 = vsel %vm1135, %v1151, 0.0
    %1162 = vadd.xlane.f32.xlu0 %v1161
    %v1163 = vpop.xlane.xlu0 %1162
    %v1164 = vlaneseq
    %v1165 = vshrl.u32 %v1164, 7
    %v1166 = vsub.s32 0, %v1165
    %v1167 = vrot.slane %v1053, %v1166
    %1169 = vbcast.lane.b32.xlu0 %v1167, 256
    %v1170 = vpop.permute.xlu0 %1169
    %s1172 = sor.u32 256, 8
    %1173 = vbcast.lane.b32.xlu0 %v1167, %s1172
    %v1174 = vpop.permute.xlu0 %1173
    %v1175 = vlaneseq
    %v1176 = vshrl.u32 %v1175, 7
    %v1177 = vsub.s32 1, %v1176
    %v1178 = vrot.slane %v1053, %v1177
    %1180 = vbcast.lane.b32.xlu0 %v1178, 256
    %v1181 = vpop.permute.xlu0 %1180
    %s1183 = sor.u32 256, 8
    %1184 = vbcast.lane.b32.xlu0 %v1178, %s1183
    %v1185 = vpop.permute.xlu0 %1184
    %v1190 = vmul.f32 %v1138, %v1170
    %v1191 = vmul.f32 %v1141, %v1174
    %v1192 = vmul.f32 %v1144, %v1181
    %v1193 = vmul.f32 %v1147, %v1185
    %v1194 = vadd.f32 %v1190, 1.0
    %v1195 = vadd.f32 %v1191, 1.0
    %v1196 = vadd.f32 %v1192, 1.0
    %v1197 = vadd.f32 %v1193, 1.0
    %vm1198 = vcmp.gt.f32.partialorder %v1194, %v1154
    %vm1199 = vcmp.gt.f32.partialorder %v1195, %v1157
    %vm1200 = vcmp.gt.f32.partialorder %v1196, %v1160
    %vm1201 = vcmp.gt.f32.partialorder %v1197, %v1163
    %v1202 = vsel %vm1198, 1, 0
    %v1203 = vsel %vm1199, 1, 0
    %v1204 = vsel %vm1200, 1, 0
    %v1205 = vsel %vm1201, 1, 0
    %v1206 = vcvt.s32.f32 %v1202
    %v1207 = vcvt.s32.f32 %v1203
    %v1208 = vcvt.s32.f32 %v1204
    %v1209 = vcvt.s32.f32 %v1205
    %1214 = vset.pattern.permute.xlu0 0
    %1215 = vperm.xlu0 %1214, %v1206
    %v1216 = vpop.permute.xlu0 %1215
    %1217 = vset.pattern.permute.xlu0 0
    %1218 = vperm.xlu0 %1217, %v1207
    %v1219 = vpop.permute.xlu0 %1218
    %1220 = vset.pattern.permute.xlu0 0
    %1221 = vperm.xlu0 %1220, %v1208
    %v1222 = vpop.permute.xlu0 %1221
    %1223 = vset.pattern.permute.xlu0 0
    %1224 = vperm.xlu0 %1223, %v1209
    %v1225 = vpop.permute.xlu0 %1224
    %v1226 = vlaneseq
    %v1227 = vand.u32 %v1226, 127
    %v1228 = vlaneseq
    %v1229 = vshrl.u32 %v1228, 7
    %v1230 = vsub.s32 %v1227, %v1229
    %v1231 = vrot.slane %v1216, %v1230
    %v1232 = vadd.s32 %v1227, 4294967288
    %v1233 = vlaneseq
    %v1234 = vshrl.u32 %v1233, 7
    %v1235 = vsub.s32 %v1232, %v1234
    %v1236 = vrot.slane %v1219, %v1235
    %vm1237 = vcmask 130112
    %v1238 = vsel %vm1237, %v1236, %v1231
    %v1239 = vlaneseq
    %v1240 = vshrl.u32 %v1239, 7
    %v1241 = vsub.s32 %v1227, %v1240
    %v1242 = vrot.slane %v1222, %v1241
    %v1243 = vlaneseq
    %v1244 = vshrl.u32 %v1243, 7
    %v1245 = vsub.s32 %v1232, %v1244
    %v1246 = vrot.slane %v1225, %v1245
    %v1247 = vsel %vm1237, %v1246, %v1242
    %vm1248 = vcmask 1041409
    %v1249 = vsel %vm1248, %v1247, %v1238
    %v1251 = vsel %vm955, %v1249, 0.0
    %1252 = vadd.xlane.f32.xlu0 %v1251
    %v1253 = vpop.xlane.xlu0 %1252
    %v1254 = vmul.f32 %v1206, %v1170
    %v1255 = vmul.f32 %v1207, %v1174
    %v1256 = vmul.f32 %v1208, %v1181
    %v1257 = vmul.f32 %v1209, %v1185
    %1262 = vset.pattern.permute.xlu0 0
    %1263 = vperm.xlu0 %1262, %v1254
    %v1264 = vpop.permute.xlu0 %1263
    %1265 = vset.pattern.permute.xlu0 0
    %1266 = vperm.xlu0 %1265, %v1255
    %v1267 = vpop.permute.xlu0 %1266
    %1268 = vset.pattern.permute.xlu0 0
    %1269 = vperm.xlu0 %1268, %v1256
    %v1270 = vpop.permute.xlu0 %1269
    %1271 = vset.pattern.permute.xlu0 0
    %1272 = vperm.xlu0 %1271, %v1257
    %v1273 = vpop.permute.xlu0 %1272
    %v1274 = vlaneseq
    %v1275 = vshrl.u32 %v1274, 7
    %v1276 = vsub.s32 %v1227, %v1275
    %v1277 = vrot.slane %v1264, %v1276
    %v1278 = vlaneseq
    %v1279 = vshrl.u32 %v1278, 7
    %v1280 = vsub.s32 %v1232, %v1279
    %v1281 = vrot.slane %v1267, %v1280
    %v1282 = vsel %vm1237, %v1281, %v1277
    %v1283 = vlaneseq
    %v1284 = vshrl.u32 %v1283, 7
    %v1285 = vsub.s32 %v1227, %v1284
    %v1286 = vrot.slane %v1270, %v1285
    %v1287 = vlaneseq
    %v1288 = vshrl.u32 %v1287, 7
    %v1289 = vsub.s32 %v1232, %v1288
    %v1290 = vrot.slane %v1273, %v1289
    %v1291 = vsel %vm1237, %v1290, %v1286
    %v1292 = vsel %vm1248, %v1291, %v1282
    %v1294 = vsel %vm955, %v1292, 0.0
    %1295 = vadd.xlane.f32.xlu0 %v1294
    %v1296 = vpop.xlane.xlu0 %1295
    %v1297 = vsub.f32 %v1296, 1.0
    %v1298 = vrcp.pop %v1253
    %v1299 = vmul.f32 %v1297, %v1298
    %v1300 = vsub.f32 %v1053, %v1299
    %v1301 = vmax.f32 %v1300, 0.0
    %1302 = vst.msk [vmem:[#allocation6] sm:$0x3] %vm955, %v1301
    %v1303 = vlog2.pop %v964
    %v1304 = vmul.f32 %v1303, 0.6931472
    %v1305 = vsub.f32 %v959, %v1304
    %v1306 = vld [vmem:[%s6] sm:$0x3]
    %v1307 = vadd.f32 %v1305, %v1306
    %v1308 = vrcp.pop 0.67
    %v1309 = vmul.f32 %v1307, %v1308
    %v1310 = vsel %vm955, %v1309, -inf
    %1311 = vmax.xlane.f32.xlu0 %v1310
    %v1312 = vpop.xlane.xlu0 %1311
    %v1313 = vsub.f32 %v1309, %v1312
    %v1314 = vmul.f32 %v1313, 1.442695
    %v1315 = vpow.pop %v1314
    %v1316 = vsel %vm955, %v1315, 0.0
    %1317 = vadd.xlane.f32.xlu0 %v1316
    %v1318 = vpop.xlane.xlu0 %1317
    %v1319 = vrcp.pop %v1318
    %v1320 = vmul.f32 %v1315, %v1319
    %1321 = vst.msk [vmem:[#allocation7] sm:$0x3] %vm955, %v1320
    %v1322 = vld [vmem:[%s7] sm:$0xff]
    %v1323 = vld [vmem:[%s7 + $0x8] sm:$0xff]
    %v1324 = vld [vmem:[%s7 + $0x10] sm:$0xff]
    %v1325 = vld [vmem:[%s7 + $0x18] sm:$0xff]
    %v1326 = vld [vmem:[%s7 + $0x20] sm:$0xff]
    %v1327 = vld [vmem:[%s7 + $0x28] sm:$0xff]
    %v1328 = vld [vmem:[%s7 + $0x30] sm:$0xff]
    %v1329 = vld [vmem:[%s7 + $0x38] sm:$0xff]
    %v1330 = vld [vmem:[%s7 + $0x40] sm:$0xff]
    %v1331 = vld [vmem:[%s7 + $0x48] sm:$0xff]
    %v1332 = vld [vmem:[%s7 + $0x50] sm:$0xff]
    %v1333 = vld [vmem:[%s7 + $0x58] sm:$0xff]
    %v1334 = vld [vmem:[%s7 + $0x60] sm:$0xff]
    %v1335 = vld [vmem:[%s7 + $0x68] sm:$0xff]
    %v1336 = vld [vmem:[%s7 + $0x70] sm:$0xff]
    %v1337 = vld [vmem:[%s7 + $0x78] sm:$0xff]
    %v1338 = vld [vmem:[%s7 + $0x80] sm:$0xff]
    %v1339 = vld [vmem:[%s7 + $0x88] sm:$0xff]
    %v1340 = vld [vmem:[%s7 + $0x90] sm:$0xff]
    %v1341 = vld [vmem:[%s7 + $0x98] sm:$0xff]
    %v1342 = vld [vmem:[%s7 + $0xa0] sm:$0xff]
    %v1343 = vld [vmem:[%s7 + $0xa8] sm:$0xff]
    %v1344 = vld [vmem:[%s7 + $0xb0] sm:$0xff]
    %v1345 = vld [vmem:[%s7 + $0xb8] sm:$0xff]
    %v1346 = vld [vmem:[%s7 + $0xc0] sm:$0xff]
    %v1347 = vld [vmem:[%s7 + $0xc8] sm:$0xff]
    %v1348 = vld [vmem:[%s7 + $0xd0] sm:$0xff]
    %v1349 = vld [vmem:[%s7 + $0xd8] sm:$0xff]
    %v1350 = vld [vmem:[%s7 + $0xe0] sm:$0xff]
    %v1351 = vld [vmem:[%s7 + $0xe8] sm:$0xff]
    %v1352 = vld [vmem:[%s7 + $0xf0] sm:$0xff]
    %v1353 = vld [vmem:[%s7 + $0xf8] sm:$0xff]
    %v1354 = vld [vmem:[%s8] sm:$0xff]
    %v1355 = vld [vmem:[%s8 + $0x8] sm:$0xff]
    %v1358 = vlaneseq
    %v1359 = vshrl.u32 %v1358, 7
    %v1360 = vsub.s32 0, %v1359
    %v1361 = vrot.slane %v1354, %v1360
    %v1362 = vlaneseq
    %v1363 = vshrl.u32 %v1362, 7
    %v1364 = vsub.s32 1, %v1363
    %v1365 = vrot.slane %v1354, %v1364
    %v1366 = vlaneseq
    %v1367 = vshrl.u32 %v1366, 7
    %v1368 = vsub.s32 2, %v1367
    %v1369 = vrot.slane %v1354, %v1368
    %v1370 = vlaneseq
    %v1371 = vshrl.u32 %v1370, 7
    %v1372 = vsub.s32 3, %v1371
    %v1373 = vrot.slane %v1354, %v1372
    %v1374 = vlaneseq
    %v1375 = vshrl.u32 %v1374, 7
    %v1376 = vsub.s32 4, %v1375
    %v1377 = vrot.slane %v1354, %v1376
    %v1378 = vlaneseq
    %v1379 = vshrl.u32 %v1378, 7
    %v1380 = vsub.s32 5, %v1379
    %v1381 = vrot.slane %v1354, %v1380
    %v1382 = vlaneseq
    %v1383 = vshrl.u32 %v1382, 7
    %v1384 = vsub.s32 6, %v1383
    %v1385 = vrot.slane %v1354, %v1384
    %v1386 = vlaneseq
    %v1387 = vshrl.u32 %v1386, 7
    %v1388 = vsub.s32 7, %v1387
    %v1389 = vrot.slane %v1354, %v1388
    %v1390 = vlaneseq
    %v1391 = vshrl.u32 %v1390, 7
    %v1392 = vsub.s32 0, %v1391
    %v1393 = vrot.slane %v1355, %v1392
    %v1394 = vlaneseq
    %v1395 = vshrl.u32 %v1394, 7
    %v1396 = vsub.s32 1, %v1395
    %v1397 = vrot.slane %v1355, %v1396
    %v1398 = vlaneseq
    %v1399 = vshrl.u32 %v1398, 7
    %v1400 = vsub.s32 2, %v1399
    %v1401 = vrot.slane %v1355, %v1400
    %v1402 = vlaneseq
    %v1403 = vshrl.u32 %v1402, 7
    %v1404 = vsub.s32 3, %v1403
    %v1405 = vrot.slane %v1355, %v1404
    %v1406 = vlaneseq
    %v1407 = vshrl.u32 %v1406, 7
    %v1408 = vsub.s32 4, %v1407
    %v1409 = vrot.slane %v1355, %v1408
    %v1410 = vlaneseq
    %v1411 = vshrl.u32 %v1410, 7
    %v1412 = vsub.s32 5, %v1411
    %v1413 = vrot.slane %v1355, %v1412
    %v1414 = vlaneseq
    %v1415 = vshrl.u32 %v1414, 7
    %v1416 = vsub.s32 6, %v1415
    %v1417 = vrot.slane %v1355, %v1416
    %v1418 = vlaneseq
    %v1419 = vshrl.u32 %v1418, 7
    %v1420 = vsub.s32 7, %v1419
    %v1421 = vrot.slane %v1355, %v1420
    %v1439 = vsel %vm1135, %v1320, 0
    %1441 = vmatprep.subr.mxu0 %v1323
    %1442 = vmatpush1.msra.mxu0 %v1322
    %1443 = vmatprep.subr.mxu0 %v1339
    %1444 = vmatpush1.msra.mxu0 %v1338
    %1445 = vmatprep.subr.mxu0 0.0
    %1446 = vmatpush1.msra.mxu0 0.0
    %1447 = vmatprep.subr.mxu0 0.0
    %1448 = vmatpush1.msra.mxu0 0.0
    %1449 = vmatprep.subr.mxu0 0.0
    %1450 = vmatpush1.msra.mxu0 0.0
    %1451 = vmatprep.subr.mxu0 0.0
    %1452 = vmatpush1.msra.mxu0 0.0
    %1453 = vmatprep.subr.mxu0 0.0
    %1454 = vmatpush1.msra.mxu0 0.0
    %1455 = vmatprep.subr.mxu0 0.0
    %1456 = vmatpush1.msra.mxu0 0.0
    %1457 = vmatprep.subr.mxu0 0.0
    %1458 = vmatpush1.msra.mxu0 0.0
    %1459 = vmatprep.subr.mxu0 0.0
    %1460 = vmatpush1.msra.mxu0 0.0
    %1461 = vmatprep.subr.mxu0 0.0
    %1462 = vmatpush1.msra.mxu0 0.0
    %1463 = vmatprep.subr.mxu0 0.0
    %1464 = vmatpush1.msra.mxu0 0.0
    %1465 = vmatprep.subr.mxu0 0.0
    %1466 = vmatpush1.msra.mxu0 0.0
    %1467 = vmatprep.subr.mxu0 0.0
    %1468 = vmatpush1.msra.mxu0 0.0
    %1469 = vmatprep.subr.mxu0 0.0
    %1470 = vmatpush1.msra.mxu0 0.0
    %1471 = vmatprep.subr.mxu0 0.0
    %1472 = vmatpush1.msra.mxu0 0.0
    %1473 = vmatprep.subr.mxu0 0.0
    %1474 = vmatpush1.msra.mxu0 0.0
    %1475 = vmatprep.subr.mxu0 0.0
    %1476 = vmatpush1.msra.mxu0 0.0
    %1477 = vmatprep.subr.mxu0 0.0
    %1478 = vmatpush1.msra.mxu0 0.0
    %1479 = vmatprep.subr.mxu0 0.0
    %1480 = vmatpush1.msra.mxu0 0.0
    %1481 = vmatprep.subr.mxu0 0.0
    %1482 = vmatpush1.msra.mxu0 0.0
    %1483 = vmatprep.subr.mxu0 0.0
    %1484 = vmatpush1.msra.mxu0 0.0
    %1485 = vmatprep.subr.mxu0 0.0
    %1486 = vmatpush1.msra.mxu0 0.0
    %1487 = vmatprep.subr.mxu0 0.0
    %1488 = vmatpush1.msra.mxu0 0.0
    %1489 = vmatprep.subr.mxu0 0.0
    %1490 = vmatpush1.msra.mxu0 0.0
    %1491 = vmatprep.subr.mxu0 0.0
    %1492 = vmatpush1.msra.mxu0 0.0
    %1493 = vmatprep.subr.mxu0 0.0
    %1494 = vmatpush1.msra.mxu0 0.0
    %1495 = vmatprep.subr.mxu0 0.0
    %1496 = vmatpush1.msra.mxu0 0.0
    %1497 = vmatprep.subr.mxu0 0.0
    %1498 = vmatpush1.msra.mxu0 0.0
    %1499 = vmatprep.subr.mxu0 0.0
    %1500 = vmatpush1.msra.mxu0 0.0
    %1501 = vmatprep.subr.mxu0 0.0
    %1502 = vmatpush1.msra.mxu0 0.0
    %1503 = vmatprep.subr.mxu0 0.0
    %1504 = vmatpush1.msra.mxu0 0.0
    %1505 = vmatprep.mubr.f32.mxu0 0.0
    %1506 = vmatmul.mubr.f32.gmra.mrb[0].mxu0 %v1439
    %v1507 = vpop.f32.mrb[0].mxu0
    %v1508 = vadd.f32 %v1361, %v1507
    %v1509 = vpop.f32.mrb[0].mxu0
    %v1510 = vadd.f32 %v1365, %v1509
    %1511 = vdwg.mxu0
    %1512 = vmatprep.subr.mxu0 %v1325
    %1513 = vmatpush1.msra.mxu0 %v1324
    %1514 = vmatprep.subr.mxu0 %v1341
    %1515 = vmatpush1.msra.mxu0 %v1340
    %1516 = vmatprep.subr.mxu0 0.0
    %1517 = vmatpush1.msra.mxu0 0.0
    %1518 = vmatprep.subr.mxu0 0.0
    %1519 = vmatpush1.msra.mxu0 0.0
    %1520 = vmatprep.subr.mxu0 0.0
    %1521 = vmatpush1.msra.mxu0 0.0
    %1522 = vmatprep.subr.mxu0 0.0
    %1523 = vmatpush1.msra.mxu0 0.0
    %1524 = vmatprep.subr.mxu0 0.0
    %1525 = vmatpush1.msra.mxu0 0.0
    %1526 = vmatprep.subr.mxu0 0.0
    %1527 = vmatpush1.msra.mxu0 0.0
    %1528 = vmatprep.subr.mxu0 0.0
    %1529 = vmatpush1.msra.mxu0 0.0
    %1530 = vmatprep.subr.mxu0 0.0
    %1531 = vmatpush1.msra.mxu0 0.0
    %1532 = vmatprep.subr.mxu0 0.0
    %1533 = vmatpush1.msra.mxu0 0.0
    %1534 = vmatprep.subr.mxu0 0.0
    %1535 = vmatpush1.msra.mxu0 0.0
    %1536 = vmatprep.subr.mxu0 0.0
    %1537 = vmatpush1.msra.mxu0 0.0
    %1538 = vmatprep.subr.mxu0 0.0
    %1539 = vmatpush1.msra.mxu0 0.0
    %1540 = vmatprep.subr.mxu0 0.0
    %1541 = vmatpush1.msra.mxu0 0.0
    %1542 = vmatprep.subr.mxu0 0.0
    %1543 = vmatpush1.msra.mxu0 0.0
    %1544 = vmatprep.subr.mxu0 0.0
    %1545 = vmatpush1.msra.mxu0 0.0
    %1546 = vmatprep.subr.mxu0 0.0
    %1547 = vmatpush1.msra.mxu0 0.0
    %1548 = vmatprep.subr.mxu0 0.0
    %1549 = vmatpush1.msra.mxu0 0.0
    %1550 = vmatprep.subr.mxu0 0.0
    %1551 = vmatpush1.msra.mxu0 0.0
    %1552 = vmatprep.subr.mxu0 0.0
    %1553 = vmatpush1.msra.mxu0 0.0
    %1554 = vmatprep.subr.mxu0 0.0
    %1555 = vmatpush1.msra.mxu0 0.0
    %1556 = vmatprep.subr.mxu0 0.0
    %1557 = vmatpush1.msra.mxu0 0.0
    %1558 = vmatprep.subr.mxu0 0.0
    %1559 = vmatpush1.msra.mxu0 0.0
    %1560 = vmatprep.subr.mxu0 0.0
    %1561 = vmatpush1.msra.mxu0 0.0
    %1562 = vmatprep.subr.mxu0 0.0
    %1563 = vmatpush1.msra.mxu0 0.0
    %1564 = vmatprep.subr.mxu0 0.0
    %1565 = vmatpush1.msra.mxu0 0.0
    %1566 = vmatprep.subr.mxu0 0.0
    %1567 = vmatpush1.msra.mxu0 0.0
    %1568 = vmatprep.subr.mxu0 0.0
    %1569 = vmatpush1.msra.mxu0 0.0
    %1570 = vmatprep.subr.mxu0 0.0
    %1571 = vmatpush1.msra.mxu0 0.0
    %1572 = vmatprep.subr.mxu0 0.0
    %1573 = vmatpush1.msra.mxu0 0.0
    %1574 = vmatprep.subr.mxu0 0.0
    %1575 = vmatpush1.msra.mxu0 0.0
    %1576 = vmatprep.mubr.f32.mxu0 0.0
    %1577 = vmatmul.mubr.f32.gmra.mrb[0].mxu0 %v1439
    %v1578 = vpop.f32.mrb[0].mxu0
    %v1579 = vadd.f32 %v1369, %v1578
    %v1580 = vpop.f32.mrb[0].mxu0
    %v1581 = vadd.f32 %v1373, %v1580
    %1582 = vdwg.mxu0
    %1583 = vmatprep.subr.mxu0 %v1327
    %1584 = vmatpush1.msra.mxu0 %v1326
    %1585 = vmatprep.subr.mxu0 %v1343
    %1586 = vmatpush1.msra.mxu0 %v1342
    %1587 = vmatprep.subr.mxu0 0.0
    %1588 = vmatpush1.msra.mxu0 0.0
    %1589 = vmatprep.subr.mxu0 0.0
    %1590 = vmatpush1.msra.mxu0 0.0
    %1591 = vmatprep.subr.mxu0 0.0
    %1592 = vmatpush1.msra.mxu0 0.0
    %1593 = vmatprep.subr.mxu0 0.0
    %1594 = vmatpush1.msra.mxu0 0.0
    %1595 = vmatprep.subr.mxu0 0.0
    %1596 = vmatpush1.msra.mxu0 0.0
    %1597 = vmatprep.subr.mxu0 0.0
    %1598 = vmatpush1.msra.mxu0 0.0
    %1599 = vmatprep.subr.mxu0 0.0
    %1600 = vmatpush1.msra.mxu0 0.0
    %1601 = vmatprep.subr.mxu0 0.0
    %1602 = vmatpush1.msra.mxu0 0.0
    %1603 = vmatprep.subr.mxu0 0.0
    %1604 = vmatpush1.msra.mxu0 0.0
    %1605 = vmatprep.subr.mxu0 0.0
    %1606 = vmatpush1.msra.mxu0 0.0
    %1607 = vmatprep.subr.mxu0 0.0
    %1608 = vmatpush1.msra.mxu0 0.0
    %1609 = vmatprep.subr.mxu0 0.0
    %1610 = vmatpush1.msra.mxu0 0.0
    %1611 = vmatprep.subr.mxu0 0.0
    %1612 = vmatpush1.msra.mxu0 0.0
    %1613 = vmatprep.subr.mxu0 0.0
    %1614 = vmatpush1.msra.mxu0 0.0
    %1615 = vmatprep.subr.mxu0 0.0
    %1616 = vmatpush1.msra.mxu0 0.0
    %1617 = vmatprep.subr.mxu0 0.0
    %1618 = vmatpush1.msra.mxu0 0.0
    %1619 = vmatprep.subr.mxu0 0.0
    %1620 = vmatpush1.msra.mxu0 0.0
    %1621 = vmatprep.subr.mxu0 0.0
    %1622 = vmatpush1.msra.mxu0 0.0
    %1623 = vmatprep.subr.mxu0 0.0
    %1624 = vmatpush1.msra.mxu0 0.0
    %1625 = vmatprep.subr.mxu0 0.0
    %1626 = vmatpush1.msra.mxu0 0.0
    %1627 = vmatprep.subr.mxu0 0.0
    %1628 = vmatpush1.msra.mxu0 0.0
    %1629 = vmatprep.subr.mxu0 0.0
    %1630 = vmatpush1.msra.mxu0 0.0
    %1631 = vmatprep.subr.mxu0 0.0
    %1632 = vmatpush1.msra.mxu0 0.0
    %1633 = vmatprep.subr.mxu0 0.0
    %1634 = vmatpush1.msra.mxu0 0.0
    %1635 = vmatprep.subr.mxu0 0.0
    %1636 = vmatpush1.msra.mxu0 0.0
    %1637 = vmatprep.subr.mxu0 0.0
    %1638 = vmatpush1.msra.mxu0 0.0
    %1639 = vmatprep.subr.mxu0 0.0
    %1640 = vmatpush1.msra.mxu0 0.0
    %1641 = vmatprep.subr.mxu0 0.0
    %1642 = vmatpush1.msra.mxu0 0.0
    %1643 = vmatprep.subr.mxu0 0.0
    %1644 = vmatpush1.msra.mxu0 0.0
    %1645 = vmatprep.subr.mxu0 0.0
    %1646 = vmatpush1.msra.mxu0 0.0
    %1647 = vmatprep.mubr.f32.mxu0 0.0
    %1648 = vmatmul.mubr.f32.gmra.mrb[0].mxu0 %v1439
    %v1649 = vpop.f32.mrb[0].mxu0
    %v1650 = vadd.f32 %v1377, %v1649
    %v1651 = vpop.f32.mrb[0].mxu0
    %v1652 = vadd.f32 %v1381, %v1651
    %1653 = vdwg.mxu0
    %1654 = vmatprep.subr.mxu0 %v1329
    %1655 = vmatpush1.msra.mxu0 %v1328
    %1656 = vmatprep.subr.mxu0 %v1345
    %1657 = vmatpush1.msra.mxu0 %v1344
    %1658 = vmatprep.subr.mxu0 0.0
    %1659 = vmatpush1.msra.mxu0 0.0
    %1660 = vmatprep.subr.mxu0 0.0
    %1661 = vmatpush1.msra.mxu0 0.0
    %1662 = vmatprep.subr.mxu0 0.0
    %1663 = vmatpush1.msra.mxu0 0.0
    %1664 = vmatprep.subr.mxu0 0.0
    %1665 = vmatpush1.msra.mxu0 0.0
    %1666 = vmatprep.subr.mxu0 0.0
    %1667 = vmatpush1.msra.mxu0 0.0
    %1668 = vmatprep.subr.mxu0 0.0
    %1669 = vmatpush1.msra.mxu0 0.0
    %1670 = vmatprep.subr.mxu0 0.0
    %1671 = vmatpush1.msra.mxu0 0.0
    %1672 = vmatprep.subr.mxu0 0.0
    %1673 = vmatpush1.msra.mxu0 0.0
    %1674 = vmatprep.subr.mxu0 0.0
    %1675 = vmatpush1.msra.mxu0 0.0
    %1676 = vmatprep.subr.mxu0 0.0
    %1677 = vmatpush1.msra.mxu0 0.0
    %1678 = vmatprep.subr.mxu0 0.0
    %1679 = vmatpush1.msra.mxu0 0.0
    %1680 = vmatprep.subr.mxu0 0.0
    %1681 = vmatpush1.msra.mxu0 0.0
    %1682 = vmatprep.subr.mxu0 0.0
    %1683 = vmatpush1.msra.mxu0 0.0
    %1684 = vmatprep.subr.mxu0 0.0
    %1685 = vmatpush1.msra.mxu0 0.0
    %1686 = vmatprep.subr.mxu0 0.0
    %1687 = vmatpush1.msra.mxu0 0.0
    %1688 = vmatprep.subr.mxu0 0.0
    %1689 = vmatpush1.msra.mxu0 0.0
    %1690 = vmatprep.subr.mxu0 0.0
    %1691 = vmatpush1.msra.mxu0 0.0
    %1692 = vmatprep.subr.mxu0 0.0
    %1693 = vmatpush1.msra.mxu0 0.0
    %1694 = vmatprep.subr.mxu0 0.0
    %1695 = vmatpush1.msra.mxu0 0.0
    %1696 = vmatprep.subr.mxu0 0.0
    %1697 = vmatpush1.msra.mxu0 0.0
    %1698 = vmatprep.subr.mxu0 0.0
    %1699 = vmatpush1.msra.mxu0 0.0
    %1700 = vmatprep.subr.mxu0 0.0
    %1701 = vmatpush1.msra.mxu0 0.0
    %1702 = vmatprep.subr.mxu0 0.0
    %1703 = vmatpush1.msra.mxu0 0.0
    %1704 = vmatprep.subr.mxu0 0.0
    %1705 = vmatpush1.msra.mxu0 0.0
    %1706 = vmatprep.subr.mxu0 0.0
    %1707 = vmatpush1.msra.mxu0 0.0
    %1708 = vmatprep.subr.mxu0 0.0
    %1709 = vmatpush1.msra.mxu0 0.0
    %1710 = vmatprep.subr.mxu0 0.0
    %1711 = vmatpush1.msra.mxu0 0.0
    %1712 = vmatprep.subr.mxu0 0.0
    %1713 = vmatpush1.msra.mxu0 0.0
    %1714 = vmatprep.subr.mxu0 0.0
    %1715 = vmatpush1.msra.mxu0 0.0
    %1716 = vmatprep.subr.mxu0 0.0
    %1717 = vmatpush1.msra.mxu0 0.0
    %1718 = vmatprep.mubr.f32.mxu0 0.0
    %1719 = vmatmul.mubr.f32.gmra.mrb[0].mxu0 %v1439
    %v1720 = vpop.f32.mrb[0].mxu0
    %v1721 = vadd.f32 %v1385, %v1720
    %v1722 = vpop.f32.mrb[0].mxu0
    %v1723 = vadd.f32 %v1389, %v1722
    %1724 = vdwg.mxu0
    %1725 = vmatprep.subr.mxu0 %v1331
    %1726 = vmatpush1.msra.mxu0 %v1330
    %1727 = vmatprep.subr.mxu0 %v1347
    %1728 = vmatpush1.msra.mxu0 %v1346
    %1729 = vmatprep.subr.mxu0 0.0
    %1730 = vmatpush1.msra.mxu0 0.0
    %1731 = vmatprep.subr.mxu0 0.0
    %1732 = vmatpush1.msra.mxu0 0.0
    %1733 = vmatprep.subr.mxu0 0.0
    %1734 = vmatpush1.msra.mxu0 0.0
    %1735 = vmatprep.subr.mxu0 0.0
    %1736 = vmatpush1.msra.mxu0 0.0
    %1737 = vmatprep.subr.mxu0 0.0
    %1738 = vmatpush1.msra.mxu0 0.0
    %1739 = vmatprep.subr.mxu0 0.0
    %1740 = vmatpush1.msra.mxu0 0.0
    %1741 = vmatprep.subr.mxu0 0.0
    %1742 = vmatpush1.msra.mxu0 0.0
    %1743 = vmatprep.subr.mxu0 0.0
    %1744 = vmatpush1.msra.mxu0 0.0
    %1745 = vmatprep.subr.mxu0 0.0
    %1746 = vmatpush1.msra.mxu0 0.0
    %1747 = vmatprep.subr.mxu0 0.0
    %1748 = vmatpush1.msra.mxu0 0.0
    %1749 = vmatprep.subr.mxu0 0.0
    %1750 = vmatpush1.msra.mxu0 0.0
    %1751 = vmatprep.subr.mxu0 0.0
    %1752 = vmatpush1.msra.mxu0 0.0
    %1753 = vmatprep.subr.mxu0 0.0
    %1754 = vmatpush1.msra.mxu0 0.0
    %1755 = vmatprep.subr.mxu0 0.0
    %1756 = vmatpush1.msra.mxu0 0.0
    %1757 = vmatprep.subr.mxu0 0.0
    %1758 = vmatpush1.msra.mxu0 0.0
    %1759 = vmatprep.subr.mxu0 0.0
    %1760 = vmatpush1.msra.mxu0 0.0
    %1761 = vmatprep.subr.mxu0 0.0
    %1762 = vmatpush1.msra.mxu0 0.0
    %1763 = vmatprep.subr.mxu0 0.0
    %1764 = vmatpush1.msra.mxu0 0.0
    %1765 = vmatprep.subr.mxu0 0.0
    %1766 = vmatpush1.msra.mxu0 0.0
    %1767 = vmatprep.subr.mxu0 0.0
    %1768 = vmatpush1.msra.mxu0 0.0
    %1769 = vmatprep.subr.mxu0 0.0
    %1770 = vmatpush1.msra.mxu0 0.0
    %1771 = vmatprep.subr.mxu0 0.0
    %1772 = vmatpush1.msra.mxu0 0.0
    %1773 = vmatprep.subr.mxu0 0.0
    %1774 = vmatpush1.msra.mxu0 0.0
    %1775 = vmatprep.subr.mxu0 0.0
    %1776 = vmatpush1.msra.mxu0 0.0
    %1777 = vmatprep.subr.mxu0 0.0
    %1778 = vmatpush1.msra.mxu0 0.0
    %1779 = vmatprep.subr.mxu0 0.0
    %1780 = vmatpush1.msra.mxu0 0.0
    %1781 = vmatprep.subr.mxu0 0.0
    %1782 = vmatpush1.msra.mxu0 0.0
    %1783 = vmatprep.subr.mxu0 0.0
    %1784 = vmatpush1.msra.mxu0 0.0
    %1785 = vmatprep.subr.mxu0 0.0
    %1786 = vmatpush1.msra.mxu0 0.0
    %1787 = vmatprep.subr.mxu0 0.0
    %1788 = vmatpush1.msra.mxu0 0.0
    %1789 = vmatprep.mubr.f32.mxu0 0.0
    %1790 = vmatmul.mubr.f32.gmra.mrb[0].mxu0 %v1439
    %v1791 = vpop.f32.mrb[0].mxu0
    %v1792 = vadd.f32 %v1393, %v1791
    %v1793 = vpop.f32.mrb[0].mxu0
    %v1794 = vadd.f32 %v1397, %v1793
    %1795 = vdwg.mxu0
    %1796 = vmatprep.subr.mxu0 %v1333
    %1797 = vmatpush1.msra.mxu0 %v1332
    %1798 = vmatprep.subr.mxu0 %v1349
    %1799 = vmatpush1.msra.mxu0 %v1348
    %1800 = vmatprep.subr.mxu0 0.0
    %1801 = vmatpush1.msra.mxu0 0.0
    %1802 = vmatprep.subr.mxu0 0.0
    %1803 = vmatpush1.msra.mxu0 0.0
    %1804 = vmatprep.subr.mxu0 0.0
    %1805 = vmatpush1.msra.mxu0 0.0
    %1806 = vmatprep.subr.mxu0 0.0
    %1807 = vmatpush1.msra.mxu0 0.0
    %1808 = vmatprep.subr.mxu0 0.0
    %1809 = vmatpush1.msra.mxu0 0.0
    %1810 = vmatprep.subr.mxu0 0.0
    %1811 = vmatpush1.msra.mxu0 0.0
    %1812 = vmatprep.subr.mxu0 0.0
    %1813 = vmatpush1.msra.mxu0 0.0
    %1814 = vmatprep.subr.mxu0 0.0
    %1815 = vmatpush1.msra.mxu0 0.0
    %1816 = vmatprep.subr.mxu0 0.0
    %1817 = vmatpush1.msra.mxu0 0.0
    %1818 = vmatprep.subr.mxu0 0.0
    %1819 = vmatpush1.msra.mxu0 0.0
    %1820 = vmatprep.subr.mxu0 0.0
    %1821 = vmatpush1.msra.mxu0 0.0
    %1822 = vmatprep.subr.mxu0 0.0
    %1823 = vmatpush1.msra.mxu0 0.0
    %1824 = vmatprep.subr.mxu0 0.0
    %1825 = vmatpush1.msra.mxu0 0.0
    %1826 = vmatprep.subr.mxu0 0.0
    %1827 = vmatpush1.msra.mxu0 0.0
    %1828 = vmatprep.subr.mxu0 0.0
    %1829 = vmatpush1.msra.mxu0 0.0
    %1830 = vmatprep.subr.mxu0 0.0
    %1831 = vmatpush1.msra.mxu0 0.0
    %1832 = vmatprep.subr.mxu0 0.0
    %1833 = vmatpush1.msra.mxu0 0.0
    %1834 = vmatprep.subr.mxu0 0.0
    %1835 = vmatpush1.msra.mxu0 0.0
    %1836 = vmatprep.subr.mxu0 0.0
    %1837 = vmatpush1.msra.mxu0 0.0
    %1838 = vmatprep.subr.mxu0 0.0
    %1839 = vmatpush1.msra.mxu0 0.0
    %1840 = vmatprep.subr.mxu0 0.0
    %1841 = vmatpush1.msra.mxu0 0.0
    %1842 = vmatprep.subr.mxu0 0.0
    %1843 = vmatpush1.msra.mxu0 0.0
    %1844 = vmatprep.subr.mxu0 0.0
    %1845 = vmatpush1.msra.mxu0 0.0
    %1846 = vmatprep.subr.mxu0 0.0
    %1847 = vmatpush1.msra.mxu0 0.0
    %1848 = vmatprep.subr.mxu0 0.0
    %1849 = vmatpush1.msra.mxu0 0.0
    %1850 = vmatprep.subr.mxu0 0.0
    %1851 = vmatpush1.msra.mxu0 0.0
    %1852 = vmatprep.subr.mxu0 0.0
    %1853 = vmatpush1.msra.mxu0 0.0
    %1854 = vmatprep.subr.mxu0 0.0
    %1855 = vmatpush1.msra.mxu0 0.0
    %1856 = vmatprep.subr.mxu0 0.0
    %1857 = vmatpush1.msra.mxu0 0.0
    %1858 = vmatprep.subr.mxu0 0.0
    %1859 = vmatpush1.msra.mxu0 0.0
    %1860 = vmatprep.mubr.f32.mxu0 0.0
    %1861 = vmatmul.mubr.f32.gmra.mrb[0].mxu0 %v1439
    %v1862 = vpop.f32.mrb[0].mxu0
    %v1863 = vadd.f32 %v1401, %v1862
    %v1864 = vpop.f32.mrb[0].mxu0
    %v1865 = vadd.f32 %v1405, %v1864
    %1866 = vdwg.mxu0
    %1867 = vmatprep.subr.mxu0 %v1335
    %1868 = vmatpush1.msra.mxu0 %v1334
    %1869 = vmatprep.subr.mxu0 %v1351
    %1870 = vmatpush1.msra.mxu0 %v1350
    %1871 = vmatprep.subr.mxu0 0.0
    %1872 = vmatpush1.msra.mxu0 0.0
    %1873 = vmatprep.subr.mxu0 0.0
    %1874 = vmatpush1.msra.mxu0 0.0
    %1875 = vmatprep.subr.mxu0 0.0
    %1876 = vmatpush1.msra.mxu0 0.0
    %1877 = vmatprep.subr.mxu0 0.0
    %1878 = vmatpush1.msra.mxu0 0.0
    %1879 = vmatprep.subr.mxu0 0.0
    %1880 = vmatpush1.msra.mxu0 0.0
    %1881 = vmatprep.subr.mxu0 0.0
    %1882 = vmatpush1.msra.mxu0 0.0
    %1883 = vmatprep.subr.mxu0 0.0
    %1884 = vmatpush1.msra.mxu0 0.0
    %1885 = vmatprep.subr.mxu0 0.0
    %1886 = vmatpush1.msra.mxu0 0.0
    %1887 = vmatprep.subr.mxu0 0.0
    %1888 = vmatpush1.msra.mxu0 0.0
    %1889 = vmatprep.subr.mxu0 0.0
    %1890 = vmatpush1.msra.mxu0 0.0
    %1891 = vmatprep.subr.mxu0 0.0
    %1892 = vmatpush1.msra.mxu0 0.0
    %1893 = vmatprep.subr.mxu0 0.0
    %1894 = vmatpush1.msra.mxu0 0.0
    %1895 = vmatprep.subr.mxu0 0.0
    %1896 = vmatpush1.msra.mxu0 0.0
    %1897 = vmatprep.subr.mxu0 0.0
    %1898 = vmatpush1.msra.mxu0 0.0
    %1899 = vmatprep.subr.mxu0 0.0
    %1900 = vmatpush1.msra.mxu0 0.0
    %1901 = vmatprep.subr.mxu0 0.0
    %1902 = vmatpush1.msra.mxu0 0.0
    %1903 = vmatprep.subr.mxu0 0.0
    %1904 = vmatpush1.msra.mxu0 0.0
    %1905 = vmatprep.subr.mxu0 0.0
    %1906 = vmatpush1.msra.mxu0 0.0
    %1907 = vmatprep.subr.mxu0 0.0
    %1908 = vmatpush1.msra.mxu0 0.0
    %1909 = vmatprep.subr.mxu0 0.0
    %1910 = vmatpush1.msra.mxu0 0.0
    %1911 = vmatprep.subr.mxu0 0.0
    %1912 = vmatpush1.msra.mxu0 0.0
    %1913 = vmatprep.subr.mxu0 0.0
    %1914 = vmatpush1.msra.mxu0 0.0
    %1915 = vmatprep.subr.mxu0 0.0
    %1916 = vmatpush1.msra.mxu0 0.0
    %1917 = vmatprep.subr.mxu0 0.0
    %1918 = vmatpush1.msra.mxu0 0.0
    %1919 = vmatprep.subr.mxu0 0.0
    %1920 = vmatpush1.msra.mxu0 0.0
    %1921 = vmatprep.subr.mxu0 0.0
    %1922 = vmatpush1.msra.mxu0 0.0
    %1923 = vmatprep.subr.mxu0 0.0
    %1924 = vmatpush1.msra.mxu0 0.0
    %1925 = vmatprep.subr.mxu0 0.0
    %1926 = vmatpush1.msra.mxu0 0.0
    %1927 = vmatprep.subr.mxu0 0.0
    %1928 = vmatpush1.msra.mxu0 0.0
    %1929 = vmatprep.subr.mxu0 0.0
    %1930 = vmatpush1.msra.mxu0 0.0
    %1931 = vmatprep.mubr.f32.mxu0 0.0
    %1932 = vmatmul.mubr.f32.gmra.mrb[0].mxu0 %v1439
    %v1933 = vpop.f32.mrb[0].mxu0
    %v1934 = vadd.f32 %v1409, %v1933
    %v1935 = vpop.f32.mrb[0].mxu0
    %v1936 = vadd.f32 %v1413, %v1935
    %1937 = vdwg.mxu0
    %1938 = vmatprep.subr.mxu0 %v1337
    %1939 = vmatpush1.msra.mxu0 %v1336
    %1940 = vmatprep.subr.mxu0 %v1353
    %1941 = vmatpush1.msra.mxu0 %v1352
    %1942 = vmatprep.subr.mxu0 0.0
    %1943 = vmatpush1.msra.mxu0 0.0
    %1944 = vmatprep.subr.mxu0 0.0
    %1945 = vmatpush1.msra.mxu0 0.0
    %1946 = vmatprep.subr.mxu0 0.0
    %1947 = vmatpush1.msra.mxu0 0.0
    %1948 = vmatprep.subr.mxu0 0.0
    %1949 = vmatpush1.msra.mxu0 0.0
    %1950 = vmatprep.subr.mxu0 0.0
    %1951 = vmatpush1.msra.mxu0 0.0
    %1952 = vmatprep.subr.mxu0 0.0
    %1953 = vmatpush1.msra.mxu0 0.0
    %1954 = vmatprep.subr.mxu0 0.0
    %1955 = vmatpush1.msra.mxu0 0.0
    %1956 = vmatprep.subr.mxu0 0.0
    %1957 = vmatpush1.msra.mxu0 0.0
    %1958 = vmatprep.subr.mxu0 0.0
    %1959 = vmatpush1.msra.mxu0 0.0
    %1960 = vmatprep.subr.mxu0 0.0
    %1961 = vmatpush1.msra.mxu0 0.0
    %1962 = vmatprep.subr.mxu0 0.0
    %1963 = vmatpush1.msra.mxu0 0.0
    %1964 = vmatprep.subr.mxu0 0.0
    %1965 = vmatpush1.msra.mxu0 0.0
    %1966 = vmatprep.subr.mxu0 0.0
    %1967 = vmatpush1.msra.mxu0 0.0
    %1968 = vmatprep.subr.mxu0 0.0
    %1969 = vmatpush1.msra.mxu0 0.0
    %1970 = vmatprep.subr.mxu0 0.0
    %1971 = vmatpush1.msra.mxu0 0.0
    %1972 = vmatprep.subr.mxu0 0.0
    %1973 = vmatpush1.msra.mxu0 0.0
    %1974 = vmatprep.subr.mxu0 0.0
    %1975 = vmatpush1.msra.mxu0 0.0
    %1976 = vmatprep.subr.mxu0 0.0
    %1977 = vmatpush1.msra.mxu0 0.0
    %1978 = vmatprep.subr.mxu0 0.0
    %1979 = vmatpush1.msra.mxu0 0.0
    %1980 = vmatprep.subr.mxu0 0.0
    %1981 = vmatpush1.msra.mxu0 0.0
    %1982 = vmatprep.subr.mxu0 0.0
    %1983 = vmatpush1.msra.mxu0 0.0
    %1984 = vmatprep.subr.mxu0 0.0
    %1985 = vmatpush1.msra.mxu0 0.0
    %1986 = vmatprep.subr.mxu0 0.0
    %1987 = vmatpush1.msra.mxu0 0.0
    %1988 = vmatprep.subr.mxu0 0.0
    %1989 = vmatpush1.msra.mxu0 0.0
    %1990 = vmatprep.subr.mxu0 0.0
    %1991 = vmatpush1.msra.mxu0 0.0
    %1992 = vmatprep.subr.mxu0 0.0
    %1993 = vmatpush1.msra.mxu0 0.0
    %1994 = vmatprep.subr.mxu0 0.0
    %1995 = vmatpush1.msra.mxu0 0.0
    %1996 = vmatprep.subr.mxu0 0.0
    %1997 = vmatpush1.msra.mxu0 0.0
    %1998 = vmatprep.subr.mxu0 0.0
    %1999 = vmatpush1.msra.mxu0 0.0
    %2000 = vmatprep.subr.mxu0 0.0
    %2001 = vmatpush1.msra.mxu0 0.0
    %2002 = vmatprep.mubr.f32.mxu0 0.0
    %2003 = vmatmul.mubr.f32.gmra.mrb[0].mxu0 %v1439
    %v2004 = vpop.f32.mrb[0].mxu0
    %v2005 = vadd.f32 %v1417, %v2004
    %v2006 = vpop.f32.mrb[0].mxu0
    %v2007 = vadd.f32 %v1421, %v2006
    %2008 = vdwg.mxu0
    %v2025 = vcombine.low %v1508, %v1510
    %v2026 = vcombine.low %v1579, %v1581
    %v2028 = vunpack.c.l.s4 1983009808
    %v2029 = vunpack.c.0.s8 %v2028
    %v2030 = vlaneseq
    %v2031 = vshrl.u32 %v2030, 7
    %v2032 = vsub.s32 %v2029, %v2031
    %v2033 = vrot.slane %v2025, %v2032
    %v2035 = vunpack.c.l.s4 1983009808
    %v2036 = vunpack.c.0.s8 %v2035
    %v2037 = vlaneseq
    %v2038 = vshrl.u32 %v2037, 7
    %v2039 = vsub.s32 %v2036, %v2038
    %v2040 = vrot.slane %v2026, %v2039
    %v2041 = vcombine.low %v2033, %v2040
    %v2042 = vcombine.low %v1650, %v1652
    %v2043 = vcombine.low %v1721, %v1723
    %v2045 = vunpack.c.l.s4 1983009808
    %v2046 = vunpack.c.0.s8 %v2045
    %v2047 = vlaneseq
    %v2048 = vshrl.u32 %v2047, 7
    %v2049 = vsub.s32 %v2046, %v2048
    %v2050 = vrot.slane %v2042, %v2049
    %v2052 = vunpack.c.l.s4 1983009808
    %v2053 = vunpack.c.0.s8 %v2052
    %v2054 = vlaneseq
    %v2055 = vshrl.u32 %v2054, 7
    %v2056 = vsub.s32 %v2053, %v2055
    %v2057 = vrot.slane %v2043, %v2056
    %v2058 = vcombine.low %v2050, %v2057
    %v2059 = vcombine.low %v1792, %v1794
    %v2060 = vcombine.low %v1863, %v1865
    %v2062 = vunpack.c.l.s4 1983009808
    %v2063 = vunpack.c.0.s8 %v2062
    %v2064 = vlaneseq
    %v2065 = vshrl.u32 %v2064, 7
    %v2066 = vsub.s32 %v2063, %v2065
    %v2067 = vrot.slane %v2059, %v2066
    %v2069 = vunpack.c.l.s4 1983009808
    %v2070 = vunpack.c.0.s8 %v2069
    %v2071 = vlaneseq
    %v2072 = vshrl.u32 %v2071, 7
    %v2073 = vsub.s32 %v2070, %v2072
    %v2074 = vrot.slane %v2060, %v2073
    %v2075 = vcombine.low %v2067, %v2074
    %v2076 = vcombine.low %v1934, %v1936
    %v2077 = vcombine.low %v2005, %v2007
    %v2079 = vunpack.c.l.s4 1983009808
    %v2080 = vunpack.c.0.s8 %v2079
    %v2081 = vlaneseq
    %v2082 = vshrl.u32 %v2081, 7
    %v2083 = vsub.s32 %v2080, %v2082
    %v2084 = vrot.slane %v2076, %v2083
    %v2086 = vunpack.c.l.s4 1983009808
    %v2087 = vunpack.c.0.s8 %v2086
    %v2088 = vlaneseq
    %v2089 = vshrl.u32 %v2088, 7
    %v2090 = vsub.s32 %v2087, %v2089
    %v2091 = vrot.slane %v2077, %v2090
    %v2092 = vcombine.low %v2084, %v2091
    %2097 = vst [vmem:[%s13] sm:$0xff] %v2041
    %2098 = vst [vmem:[%s13 + $0x8] sm:$0xff] %v2058
    %2099 = vst [vmem:[%s13 + $0x10] sm:$0xff] %v2075
    %2100 = vst [vmem:[%s13 + $0x18] sm:$0xff] %v2092
    // Predicated region
    $region38: #{vae_forward.10} parent=1 // pred_check
      _
    $region39: #{vae_forward.10} parent=1 // pred_check_branch
      %2102 = sbr.rel (0) target = $region41
    $region40: #{vae_forward.10} parent=1 // pred_region
      %s2104 = ssub.s32 32, 32
      %2105 = vsyncadd [#allocation3], %s2104
      %s2107 = sshll.u32 [#allocation2], 4
      %s2108 = int_to_ptr.vmem [resolvable:$true] %s2107
      %2110 = dma.vmem_to_hbm [thread:$0]  %s2108, 32, %s9, [#allocation3]
    $region41: #{vae_forward.10} parent=1 // pred_fallthru
      _
    // Predicated region
    $region42: #{vae_forward.10} parent=1 // pred_check
      _
    $region43: #{vae_forward.10} parent=1 // pred_check_branch
      %2112 = sbr.rel (0) target = $region45
    $region44: #{vae_forward.10} parent=1 // pred_region
      %s2114 = ssub.s32 32, 32
      %2115 = vsyncadd [#allocation5], %s2114
      %s2117 = sshll.u32 [#allocation4], 4
      %s2118 = int_to_ptr.vmem [resolvable:$true] %s2117
      %2120 = dma.vmem_to_hbm [thread:$0]  %s2118, 32, %s10, [#allocation5]
    $region45: #{vae_forward.10} parent=1 // pred_fallthru
      _
    // Predicated region
    $region46: #{vae_forward.10} parent=1 // pred_check
      _
    $region47: #{vae_forward.10} parent=1 // pred_check_branch
      %2122 = sbr.rel (0) target = $region49
    $region48: #{vae_forward.10} parent=1 // pred_region
      %s2124 = ssub.s32 32, 32
      %2125 = vsyncadd [#allocation5], %s2124
      %s2127 = sshll.u32 [#allocation6], 4
      %s2128 = int_to_ptr.vmem [resolvable:$true] %s2127
      %2130 = dma.vmem_to_hbm [thread:$0]  %s2128, 32, %s11, [#allocation5]
    $region49: #{vae_forward.10} parent=1 // pred_fallthru
      _
    // Predicated region
    $region50: #{vae_forward.10} parent=1 // pred_check
      _
    $region51: #{vae_forward.10} parent=1 // pred_check_branch
      %2132 = sbr.rel (0) target = $region53
    $region52: #{vae_forward.10} parent=1 // pred_region
      %s2134 = ssub.s32 32, 32
      %2135 = vsyncadd [#allocation8], %s2134
      %s2137 = sshll.u32 [#allocation7], 4
      %s2138 = int_to_ptr.vmem [resolvable:$true] %s2137
      %2140 = dma.vmem_to_hbm [thread:$0]  %s2138, 32, %s12, [#allocation8]
    $region53: #{vae_forward.10} parent=1 // pred_fallthru
      _
    // Predicated region
    $region54: #{vae_forward.10} parent=1 // pred_check
      _
    $region55: #{vae_forward.10} parent=1 // pred_check_branch
      %2142 = sbr.rel (0) target = $region57
    $region56: #{vae_forward.10} parent=1 // pred_region
      _
    $region57: #{vae_forward.10} parent=1 // pred_fallthru
      _
    // Predicated region
    $region58: #{vae_forward.10} parent=1 // pred_check
      _
    $region59: #{vae_forward.10} parent=1 // pred_check_branch
      %2144 = sbr.rel (0) target = $region61
    $region60: #{vae_forward.10} parent=1 // pred_region
      %2145 = dma.done [#allocation3], 32
    $region61: #{vae_forward.10} parent=1 // pred_fallthru
      _
    // Predicated region
    $region62: #{vae_forward.10} parent=1 // pred_check
      _
    $region63: #{vae_forward.10} parent=1 // pred_check_branch
      %2147 = sbr.rel (0) target = $region65
    $region64: #{vae_forward.10} parent=1 // pred_region
      %2148 = dma.done [#allocation5], 32
    $region65: #{vae_forward.10} parent=1 // pred_fallthru
      _
    // Predicated region
    $region66: #{vae_forward.10} parent=1 // pred_check
      _
    $region67: #{vae_forward.10} parent=1 // pred_check_branch
      %2150 = sbr.rel (0) target = $region69
    $region68: #{vae_forward.10} parent=1 // pred_region
      %2151 = dma.done [#allocation5], 32
    $region69: #{vae_forward.10} parent=1 // pred_fallthru
      _
    // Predicated region
    $region70: #{vae_forward.10} parent=1 // pred_check
      _
    $region71: #{vae_forward.10} parent=1 // pred_check_branch
      %2153 = sbr.rel (0) target = $region73
    $region72: #{vae_forward.10} parent=1 // pred_region
      %2154 = dma.done [#allocation8], 32
    $region73: #{vae_forward.10} parent=1 // pred_fallthru
      _
    // Predicated region
    $region74: #{vae_forward.10} parent=1 // pred_check
      _
    $region75: #{vae_forward.10} parent=1 // pred_check_branch
      %2156 = sbr.rel (0) target = $region77
    $region76: #{vae_forward.10} parent=1 // pred_region
      _
    $region77: #{vae_forward.10} parent=1 // pred_fallthru
      _
    %2157 = vsyncpa [#allocation3], 1
    %2158 = vsyncpa [#allocation5], 1
    %2159 = vsyncpa [#allocation8], 1

// kernel: vae_forward.11
$region0: #{vae_forward.11}
  #allocation0 [shape = 'u32[]', space=smem, size = 0x4, offset = 0x4, fixed_abs, tag = 'smem constant byte address 0x4 - core index']
  #allocation1 [shape = 'u32[144,128]{1,0:T(1,128)}', space=vmem, size = 0x12000, scoped, tag = 'internal scratch']
  %s0 = inlined_call_operand.vmem [shape: f32[4,128,18], index: 0, kind: input, shape index: {}]
  %s1 = inlined_call_operand.vmem [shape: f32[4,64,128], index: 1, kind: input, shape index: {}]
  %s2 = inlined_call_operand.vmem [shape: f32[64,1], index: 2, kind: input, shape index: {}]
  %s3 = inlined_call_operand.vmem [shape: f32[4,64,18], index: 3, kind: output, shape index: {}]
  %s4 = sld [smem:[#allocation0]]
  $region22: #{vae_forward.11} parent=0
    _
  %s6 = ssub.s32 1, %s4
  %s7 = scalar_select 0, %s6, %s4
  // Predicated region
  $region2: #{vae_forward.11} parent=0 // pred_check
    _
  $region3: #{vae_forward.11} parent=0 // pred_check_branch
    %9 = sbr.rel (0) target = $region5
  $region4: #{vae_forward.11} parent=0 // pred_region
    _
  $region5: #{vae_forward.11} parent=0 // pred_fallthru
    _
  // Predicated region
  $region6: #{vae_forward.11} parent=0 // pred_check
    _
  $region7: #{vae_forward.11} parent=0 // pred_check_branch
    %11 = sbr.rel (0) target = $region9
  $region8: #{vae_forward.11} parent=0 // pred_region
    _
  $region9: #{vae_forward.11} parent=0 // pred_fallthru
    _
  // Predicated region
  $region10: #{vae_forward.11} parent=0 // pred_check
    _
  $region11: #{vae_forward.11} parent=0 // pred_check_branch
    %13 = sbr.rel (0) target = $region13
  $region12: #{vae_forward.11} parent=0 // pred_region
    _
  $region13: #{vae_forward.11} parent=0 // pred_fallthru
    _
  %v14 = vld [vmem:[%s2] sm:$0xff]
  %v15 = vld [vmem:[%s2 + $0x8] sm:$0xff]
  %v16 = vld [vmem:[%s2 + $0x10] sm:$0xff]
  %v17 = vld [vmem:[%s2 + $0x18] sm:$0xff]
  %v18 = vld [vmem:[%s2 + $0x20] sm:$0xff]
  %v19 = vld [vmem:[%s2 + $0x28] sm:$0xff]
  %v20 = vld [vmem:[%s2 + $0x30] sm:$0xff]
  %v21 = vld [vmem:[%s2 + $0x38] sm:$0xff]
  %v22 = vld [vmem:[%s1] sm:$0xff]
  %v23 = vld [vmem:[%s1 + $0x8] sm:$0xff]
  %v24 = vld [vmem:[%s1 + $0x10] sm:$0xff]
  %v25 = vld [vmem:[%s1 + $0x18] sm:$0xff]
  %v26 = vld [vmem:[%s1 + $0x20] sm:$0xff]
  %v27 = vld [vmem:[%s1 + $0x28] sm:$0xff]
  %v28 = vld [vmem:[%s1 + $0x30] sm:$0xff]
  %v29 = vld [vmem:[%s1 + $0x38] sm:$0xff]
  %v30 = vld [vmem:[%s0] sm:$0xff]
  %v31 = vld [vmem:[%s0 + $0x8] sm:$0xff]
  %v32 = vld [vmem:[%s0 + $0x10] sm:$0xff]
  %v33 = vld [vmem:[%s0 + $0x18] sm:$0xff]
  %v34 = vld [vmem:[%s0 + $0x20] sm:$0xff]
  %v35 = vld [vmem:[%s0 + $0x28] sm:$0xff]
  %v36 = vld [vmem:[%s0 + $0x30] sm:$0xff]
  %v37 = vld [vmem:[%s0 + $0x38] sm:$0xff]
  %v38 = vld [vmem:[%s0 + $0x40] sm:$0xff]
  %v39 = vld [vmem:[%s0 + $0x48] sm:$0xff]
  %v40 = vld [vmem:[%s0 + $0x50] sm:$0xff]
  %v41 = vld [vmem:[%s0 + $0x58] sm:$0xff]
  %v42 = vld [vmem:[%s0 + $0x60] sm:$0xff]
  %v43 = vld [vmem:[%s0 + $0x68] sm:$0xff]
  %v44 = vld [vmem:[%s0 + $0x70] sm:$0xff]
  %v45 = vld [vmem:[%s0 + $0x78] sm:$0xff]
  %47 = vset.pattern.permute.xlu0 0
  %48 = vperm.xlu0 %47, %v14
  %v49 = vpop.permute.xlu0 %48
  %52 = vset.pattern.permute.xlu0 0
  %53 = vperm.xlu0 %52, %v15
  %v54 = vpop.permute.xlu0 %53
  %57 = vset.pattern.permute.xlu0 0
  %58 = vperm.xlu0 %57, %v16
  %v59 = vpop.permute.xlu0 %58
  %62 = vset.pattern.permute.xlu0 0
  %63 = vperm.xlu0 %62, %v17
  %v64 = vpop.permute.xlu0 %63
  %67 = vset.pattern.permute.xlu0 0
  %68 = vperm.xlu0 %67, %v18
  %v69 = vpop.permute.xlu0 %68
  %72 = vset.pattern.permute.xlu0 0
  %73 = vperm.xlu0 %72, %v19
  %v74 = vpop.permute.xlu0 %73
  %77 = vset.pattern.permute.xlu0 0
  %78 = vperm.xlu0 %77, %v20
  %v79 = vpop.permute.xlu0 %78
  %82 = vset.pattern.permute.xlu0 0
  %83 = vperm.xlu0 %82, %v21
  %v84 = vpop.permute.xlu0 %83
  %86 = vmatprep.subr.mxu0 0.0
  %87 = vmatpush1.msra.mxu0 %v30
  %88 = vmatprep.subr.mxu0 0.0
  %89 = vmatpush1.msra.mxu0 %v31
  %90 = vmatprep.subr.mxu0 0.0
  %91 = vmatpush1.msra.mxu0 %v32
  %92 = vmatprep.subr.mxu0 0.0
  %93 = vmatpush1.msra.mxu0 %v33
  %94 = vmatprep.subr.mxu0 0.0
  %95 = vmatpush1.msra.mxu0 %v34
  %96 = vmatprep.subr.mxu0 0.0
  %97 = vmatpush1.msra.mxu0 %v35
  %98 = vmatprep.subr.mxu0 0.0
  %99 = vmatpush1.msra.mxu0 %v36
  %100 = vmatprep.subr.mxu0 0.0
  %101 = vmatpush1.msra.mxu0 %v37
  %102 = vmatprep.subr.mxu0 0.0
  %103 = vmatpush1.msra.mxu0 %v38
  %104 = vmatprep.subr.mxu0 0.0
  %105 = vmatpush1.msra.mxu0 %v39
  %106 = vmatprep.subr.mxu0 0.0
  %107 = vmatpush1.msra.mxu0 %v40
  %108 = vmatprep.subr.mxu0 0.0
  %109 = vmatpush1.msra.mxu0 %v41
  %110 = vmatprep.subr.mxu0 0.0
  %111 = vmatpush1.msra.mxu0 %v42
  %112 = vmatprep.subr.mxu0 0.0
  %113 = vmatpush1.msra.mxu0 %v43
  %114 = vmatprep.subr.mxu0 0.0
  %115 = vmatpush1.msra.mxu0 %v44
  %116 = vmatprep.subr.mxu0 0.0
  %117 = vmatpush1.msra.mxu0 %v45
  %118 = vmatprep.subr.mxu0 0.0
  %119 = vmatpush1.msra.mxu0 0.0
  %120 = vmatprep.subr.mxu0 0.0
  %121 = vmatpush1.msra.mxu0 0.0
  %122 = vmatprep.subr.mxu0 0.0
  %123 = vmatpush1.msra.mxu0 0.0
  %124 = vmatprep.subr.mxu0 0.0
  %125 = vmatpush1.msra.mxu0 0.0
  %126 = vmatprep.subr.mxu0 0.0
  %127 = vmatpush1.msra.mxu0 0.0
  %128 = vmatprep.subr.mxu0 0.0
  %129 = vmatpush1.msra.mxu0 0.0
  %130 = vmatprep.subr.mxu0 0.0
  %131 = vmatpush1.msra.mxu0 0.0
  %132 = vmatprep.subr.mxu0 0.0
  %133 = vmatpush1.msra.mxu0 0.0
  %134 = vmatprep.subr.mxu0 0.0
  %135 = vmatpush1.msra.mxu0 0.0
  %136 = vmatprep.subr.mxu0 0.0
  %137 = vmatpush1.msra.mxu0 0.0
  %138 = vmatprep.subr.mxu0 0.0
  %139 = vmatpush1.msra.mxu0 0.0
  %140 = vmatprep.subr.mxu0 0.0
  %141 = vmatpush1.msra.mxu0 0.0
  %142 = vmatprep.subr.mxu0 0.0
  %143 = vmatpush1.msra.mxu0 0.0
  %144 = vmatprep.subr.mxu0 0.0
  %145 = vmatpush1.msra.mxu0 0.0
  %146 = vmatprep.subr.mxu0 0.0
  %147 = vmatpush1.msra.mxu0 0.0
  %148 = vmatprep.subr.mxu0 0.0
  %149 = vmatpush1.msra.mxu0 0.0
  %150 = vmatprep.mubr.f32.mxu0 0.0
  %151 = vmatmul.mubr.f32.gmra.mrb[0].mxu0 %v22
  %v152 = vpop.f32.mrb[0].mxu0
  %v153 = vadd.f32 %v49, %v152
  %v154 = vpop.f32.mrb[0].mxu0
  %155 = vmatprep.mubr.f32.mxu0 0.0
  %156 = vmatmul.mubr.f32.gmra.mrb[0].mxu0 %v23
  %v157 = vpop.f32.mrb[0].mxu0
  %v158 = vadd.f32 %v54, %v157
  %v159 = vpop.f32.mrb[0].mxu0
  %160 = vmatprep.mubr.f32.mxu0 0.0
  %161 = vmatmul.mubr.f32.gmra.mrb[0].mxu0 %v24
  %v162 = vpop.f32.mrb[0].mxu0
  %v163 = vadd.f32 %v59, %v162
  %v164 = vpop.f32.mrb[0].mxu0
  %165 = vmatprep.mubr.f32.mxu0 0.0
  %166 = vmatmul.mubr.f32.gmra.mrb[0].mxu0 %v25
  %v167 = vpop.f32.mrb[0].mxu0
  %v168 = vadd.f32 %v64, %v167
  %v169 = vpop.f32.mrb[0].mxu0
  %170 = vmatprep.mubr.f32.mxu0 0.0
  %171 = vmatmul.mubr.f32.gmra.mrb[0].mxu0 %v26
  %v172 = vpop.f32.mrb[0].mxu0
  %v173 = vadd.f32 %v69, %v172
  %v174 = vpop.f32.mrb[0].mxu0
  %175 = vmatprep.mubr.f32.mxu0 0.0
  %176 = vmatmul.mubr.f32.gmra.mrb[0].mxu0 %v27
  %v177 = vpop.f32.mrb[0].mxu0
  %v178 = vadd.f32 %v74, %v177
  %v179 = vpop.f32.mrb[0].mxu0
  %180 = vmatprep.mubr.f32.mxu0 0.0
  %181 = vmatmul.mubr.f32.gmra.mrb[0].mxu0 %v28
  %v182 = vpop.f32.mrb[0].mxu0
  %v183 = vadd.f32 %v79, %v182
  %v184 = vpop.f32.mrb[0].mxu0
  %185 = vmatprep.mubr.f32.mxu0 0.0
  %186 = vmatmul.mubr.f32.gmra.mrb[0].mxu0 %v29
  %v187 = vpop.f32.mrb[0].mxu0
  %v188 = vadd.f32 %v84, %v187
  %v189 = vpop.f32.mrb[0].mxu0
  %190 = vdwg.mxu0
  %v191 = vmax.f32 %v153, 0.0
  %v192 = vmax.f32 %v158, 0.0
  %v193 = vmax.f32 %v163, 0.0
  %v194 = vmax.f32 %v168, 0.0
  %v195 = vmax.f32 %v173, 0.0
  %v196 = vmax.f32 %v178, 0.0
  %v197 = vmax.f32 %v183, 0.0
  %v198 = vmax.f32 %v188, 0.0
  %vm199 = vcmask 146432
  %200 = vst.msk [vmem:[%s3] sm:$0xff] %vm199, %v191
  %201 = vst.msk [vmem:[%s3 + $0x8] sm:$0xff] %vm199, %v192
  %202 = vst.msk [vmem:[%s3 + $0x10] sm:$0xff] %vm199, %v193
  %203 = vst.msk [vmem:[%s3 + $0x18] sm:$0xff] %vm199, %v194
  %204 = vst.msk [vmem:[%s3 + $0x20] sm:$0xff] %vm199, %v195
  %205 = vst.msk [vmem:[%s3 + $0x28] sm:$0xff] %vm199, %v196
  %206 = vst.msk [vmem:[%s3 + $0x30] sm:$0xff] %vm199, %v197
  %207 = vst.msk [vmem:[%s3 + $0x38] sm:$0xff] %vm199, %v198
  %s208 = scalar_lea.vmem %s1, 64
  %v209 = vld [vmem:[%s208] sm:$0xff]
  %v210 = vld [vmem:[%s208 + $0x8] sm:$0xff]
  %v211 = vld [vmem:[%s208 + $0x10] sm:$0xff]
  %v212 = vld [vmem:[%s208 + $0x18] sm:$0xff]
  %v213 = vld [vmem:[%s208 + $0x20] sm:$0xff]
  %v214 = vld [vmem:[%s208 + $0x28] sm:$0xff]
  %v215 = vld [vmem:[%s208 + $0x30] sm:$0xff]
  %v216 = vld [vmem:[%s208 + $0x38] sm:$0xff]
  %s217 = scalar_lea.vmem %s0, 128
  %v218 = vld [vmem:[%s217] sm:$0xff]
  %v219 = vld [vmem:[%s217 + $0x8] sm:$0xff]
  %v220 = vld [vmem:[%s217 + $0x10] sm:$0xff]
  %v221 = vld [vmem:[%s217 + $0x18] sm:$0xff]
  %v222 = vld [vmem:[%s217 + $0x20] sm:$0xff]
  %v223 = vld [vmem:[%s217 + $0x28] sm:$0xff]
  %v224 = vld [vmem:[%s217 + $0x30] sm:$0xff]
  %v225 = vld [vmem:[%s217 + $0x38] sm:$0xff]
  %v226 = vld [vmem:[%s217 + $0x40] sm:$0xff]
  %v227 = vld [vmem:[%s217 + $0x48] sm:$0xff]
  %v228 = vld [vmem:[%s217 + $0x50] sm:$0xff]
  %v229 = vld [vmem:[%s217 + $0x58] sm:$0xff]
  %v230 = vld [vmem:[%s217 + $0x60] sm:$0xff]
  %v231 = vld [vmem:[%s217 + $0x68] sm:$0xff]
  %v232 = vld [vmem:[%s217 + $0x70] sm:$0xff]
  %v233 = vld [vmem:[%s217 + $0x78] sm:$0xff]
  %234 = vmatprep.subr.mxu0 0.0
  %235 = vmatpush1.msra.mxu0 %v218
  %236 = vmatprep.subr.mxu0 0.0
  %237 = vmatpush1.msra.mxu0 %v219
  %238 = vmatprep.subr.mxu0 0.0
  %239 = vmatpush1.msra.mxu0 %v220
  %240 = vmatprep.subr.mxu0 0.0
  %241 = vmatpush1.msra.mxu0 %v221
  %242 = vmatprep.subr.mxu0 0.0
  %243 = vmatpush1.msra.mxu0 %v222
  %244 = vmatprep.subr.mxu0 0.0
  %245 = vmatpush1.msra.mxu0 %v223
  %246 = vmatprep.subr.mxu0 0.0
  %247 = vmatpush1.msra.mxu0 %v224
  %248 = vmatprep.subr.mxu0 0.0
  %249 = vmatpush1.msra.mxu0 %v225
  %250 = vmatprep.subr.mxu0 0.0
  %251 = vmatpush1.msra.mxu0 %v226
  %252 = vmatprep.subr.mxu0 0.0
  %253 = vmatpush1.msra.mxu0 %v227
  %254 = vmatprep.subr.mxu0 0.0
  %255 = vmatpush1.msra.mxu0 %v228
  %256 = vmatprep.subr.mxu0 0.0
  %257 = vmatpush1.msra.mxu0 %v229
  %258 = vmatprep.subr.mxu0 0.0
  %259 = vmatpush1.msra.mxu0 %v230
  %260 = vmatprep.subr.mxu0 0.0
  %261 = vmatpush1.msra.mxu0 %v231
  %262 = vmatprep.subr.mxu0 0.0
  %263 = vmatpush1.msra.mxu0 %v232
  %264 = vmatprep.subr.mxu0 0.0
  %265 = vmatpush1.msra.mxu0 %v233
  %266 = vmatprep.subr.mxu0 0.0
  %267 = vmatpush1.msra.mxu0 0.0
  %268 = vmatprep.subr.mxu0 0.0
  %269 = vmatpush1.msra.mxu0 0.0
  %270 = vmatprep.subr.mxu0 0.0
  %271 = vmatpush1.msra.mxu0 0.0
  %272 = vmatprep.subr.mxu0 0.0
  %273 = vmatpush1.msra.mxu0 0.0
  %274 = vmatprep.subr.mxu0 0.0
  %275 = vmatpush1.msra.mxu0 0.0
  %276 = vmatprep.subr.mxu0 0.0
  %277 = vmatpush1.msra.mxu0 0.0
  %278 = vmatprep.subr.mxu0 0.0
  %279 = vmatpush1.msra.mxu0 0.0
  %280 = vmatprep.subr.mxu0 0.0
  %281 = vmatpush1.msra.mxu0 0.0
  %282 = vmatprep.subr.mxu0 0.0
  %283 = vmatpush1.msra.mxu0 0.0
  %284 = vmatprep.subr.mxu0 0.0
  %285 = vmatpush1.msra.mxu0 0.0
  %286 = vmatprep.subr.mxu0 0.0
  %287 = vmatpush1.msra.mxu0 0.0
  %288 = vmatprep.subr.mxu0 0.0
  %289 = vmatpush1.msra.mxu0 0.0
  %290 = vmatprep.subr.mxu0 0.0
  %291 = vmatpush1.msra.mxu0 0.0
  %292 = vmatprep.subr.mxu0 0.0
  %293 = vmatpush1.msra.mxu0 0.0
  %294 = vmatprep.subr.mxu0 0.0
  %295 = vmatpush1.msra.mxu0 0.0
  %296 = vmatprep.subr.mxu0 0.0
  %297 = vmatpush1.msra.mxu0 0.0
  %298 = vmatprep.mubr.f32.mxu0 0.0
  %299 = vmatmul.mubr.f32.gmra.mrb[0].mxu0 %v209
  %v300 = vpop.f32.mrb[0].mxu0
  %v301 = vadd.f32 %v49, %v300
  %v302 = vpop.f32.mrb[0].mxu0
  %303 = vmatprep.mubr.f32.mxu0 0.0
  %304 = vmatmul.mubr.f32.gmra.mrb[0].mxu0 %v210
  %v305 = vpop.f32.mrb[0].mxu0
  %v306 = vadd.f32 %v54, %v305
  %v307 = vpop.f32.mrb[0].mxu0
  %308 = vmatprep.mubr.f32.mxu0 0.0
  %309 = vmatmul.mubr.f32.gmra.mrb[0].mxu0 %v211
  %v310 = vpop.f32.mrb[0].mxu0
  %v311 = vadd.f32 %v59, %v310
  %v312 = vpop.f32.mrb[0].mxu0
  %313 = vmatprep.mubr.f32.mxu0 0.0
  %314 = vmatmul.mubr.f32.gmra.mrb[0].mxu0 %v212
  %v315 = vpop.f32.mrb[0].mxu0
  %v316 = vadd.f32 %v64, %v315
  %v317 = vpop.f32.mrb[0].mxu0
  %318 = vmatprep.mubr.f32.mxu0 0.0
  %319 = vmatmul.mubr.f32.gmra.mrb[0].mxu0 %v213
  %v320 = vpop.f32.mrb[0].mxu0
  %v321 = vadd.f32 %v69, %v320
  %v322 = vpop.f32.mrb[0].mxu0
  %323 = vmatprep.mubr.f32.mxu0 0.0
  %324 = vmatmul.mubr.f32.gmra.mrb[0].mxu0 %v214
  %v325 = vpop.f32.mrb[0].mxu0
  %v326 = vadd.f32 %v74, %v325
  %v327 = vpop.f32.mrb[0].mxu0
  %328 = vmatprep.mubr.f32.mxu0 0.0
  %329 = vmatmul.mubr.f32.gmra.mrb[0].mxu0 %v215
  %v330 = vpop.f32.mrb[0].mxu0
  %v331 = vadd.f32 %v79, %v330
  %v332 = vpop.f32.mrb[0].mxu0
  %333 = vmatprep.mubr.f32.mxu0 0.0
  %334 = vmatmul.mubr.f32.gmra.mrb[0].mxu0 %v216
  %v335 = vpop.f32.mrb[0].mxu0
  %v336 = vadd.f32 %v84, %v335
  %v337 = vpop.f32.mrb[0].mxu0
  %338 = vdwg.mxu0
  %v339 = vmax.f32 %v301, 0.0
  %v340 = vmax.f32 %v306, 0.0
  %v341 = vmax.f32 %v311, 0.0
  %v342 = vmax.f32 %v316, 0.0
  %v343 = vmax.f32 %v321, 0.0
  %v344 = vmax.f32 %v326, 0.0
  %v345 = vmax.f32 %v331, 0.0
  %v346 = vmax.f32 %v336, 0.0
  %s347 = scalar_lea.vmem %s3, 64
  %348 = vst.msk [vmem:[%s347] sm:$0xff] %vm199, %v339
  %349 = vst.msk [vmem:[%s347 + $0x8] sm:$0xff] %vm199, %v340
  %350 = vst.msk [vmem:[%s347 + $0x10] sm:$0xff] %vm199, %v341
  %351 = vst.msk [vmem:[%s347 + $0x18] sm:$0xff] %vm199, %v342
  %352 = vst.msk [vmem:[%s347 + $0x20] sm:$0xff] %vm199, %v343
  %353 = vst.msk [vmem:[%s347 + $0x28] sm:$0xff] %vm199, %v344
  %354 = vst.msk [vmem:[%s347 + $0x30] sm:$0xff] %vm199, %v345
  %355 = vst.msk [vmem:[%s347 + $0x38] sm:$0xff] %vm199, %v346
  %s356 = scalar_lea.vmem %s1, 128
  %v357 = vld [vmem:[%s356] sm:$0xff]
  %v358 = vld [vmem:[%s356 + $0x8] sm:$0xff]
  %v359 = vld [vmem:[%s356 + $0x10] sm:$0xff]
  %v360 = vld [vmem:[%s356 + $0x18] sm:$0xff]
  %v361 = vld [vmem:[%s356 + $0x20] sm:$0xff]
  %v362 = vld [vmem:[%s356 + $0x28] sm:$0xff]
  %v363 = vld [vmem:[%s356 + $0x30] sm:$0xff]
  %v364 = vld [vmem:[%s356 + $0x38] sm:$0xff]
  %s365 = scalar_lea.vmem %s0, 256
  %v366 = vld [vmem:[%s365] sm:$0xff]
  %v367 = vld [vmem:[%s365 + $0x8] sm:$0xff]
  %v368 = vld [vmem:[%s365 + $0x10] sm:$0xff]
  %v369 = vld [vmem:[%s365 + $0x18] sm:$0xff]
  %v370 = vld [vmem:[%s365 + $0x20] sm:$0xff]
  %v371 = vld [vmem:[%s365 + $0x28] sm:$0xff]
  %v372 = vld [vmem:[%s365 + $0x30] sm:$0xff]
  %v373 = vld [vmem:[%s365 + $0x38] sm:$0xff]
  %v374 = vld [vmem:[%s365 + $0x40] sm:$0xff]
  %v375 = vld [vmem:[%s365 + $0x48] sm:$0xff]
  %v376 = vld [vmem:[%s365 + $0x50] sm:$0xff]
  %v377 = vld [vmem:[%s365 + $0x58] sm:$0xff]
  %v378 = vld [vmem:[%s365 + $0x60] sm:$0xff]
  %v379 = vld [vmem:[%s365 + $0x68] sm:$0xff]
  %v380 = vld [vmem:[%s365 + $0x70] sm:$0xff]
  %v381 = vld [vmem:[%s365 + $0x78] sm:$0xff]
  %382 = vmatprep.subr.mxu0 0.0
  %383 = vmatpush1.msra.mxu0 %v366
  %384 = vmatprep.subr.mxu0 0.0
  %385 = vmatpush1.msra.mxu0 %v367
  %386 = vmatprep.subr.mxu0 0.0
  %387 = vmatpush1.msra.mxu0 %v368
  %388 = vmatprep.subr.mxu0 0.0
  %389 = vmatpush1.msra.mxu0 %v369
  %390 = vmatprep.subr.mxu0 0.0
  %391 = vmatpush1.msra.mxu0 %v370
  %392 = vmatprep.subr.mxu0 0.0
  %393 = vmatpush1.msra.mxu0 %v371
  %394 = vmatprep.subr.mxu0 0.0
  %395 = vmatpush1.msra.mxu0 %v372
  %396 = vmatprep.subr.mxu0 0.0
  %397 = vmatpush1.msra.mxu0 %v373
  %398 = vmatprep.subr.mxu0 0.0
  %399 = vmatpush1.msra.mxu0 %v374
  %400 = vmatprep.subr.mxu0 0.0
  %401 = vmatpush1.msra.mxu0 %v375
  %402 = vmatprep.subr.mxu0 0.0
  %403 = vmatpush1.msra.mxu0 %v376
  %404 = vmatprep.subr.mxu0 0.0
  %405 = vmatpush1.msra.mxu0 %v377
  %406 = vmatprep.subr.mxu0 0.0
  %407 = vmatpush1.msra.mxu0 %v378
  %408 = vmatprep.subr.mxu0 0.0
  %409 = vmatpush1.msra.mxu0 %v379
  %410 = vmatprep.subr.mxu0 0.0
  %411 = vmatpush1.msra.mxu0 %v380
  %412 = vmatprep.subr.mxu0 0.0
  %413 = vmatpush1.msra.mxu0 %v381
  %414 = vmatprep.subr.mxu0 0.0
  %415 = vmatpush1.msra.mxu0 0.0
  %416 = vmatprep.subr.mxu0 0.0
  %417 = vmatpush1.msra.mxu0 0.0
  %418 = vmatprep.subr.mxu0 0.0
  %419 = vmatpush1.msra.mxu0 0.0
  %420 = vmatprep.subr.mxu0 0.0
  %421 = vmatpush1.msra.mxu0 0.0
  %422 = vmatprep.subr.mxu0 0.0
  %423 = vmatpush1.msra.mxu0 0.0
  %424 = vmatprep.subr.mxu0 0.0
  %425 = vmatpush1.msra.mxu0 0.0
  %426 = vmatprep.subr.mxu0 0.0
  %427 = vmatpush1.msra.mxu0 0.0
  %428 = vmatprep.subr.mxu0 0.0
  %429 = vmatpush1.msra.mxu0 0.0
  %430 = vmatprep.subr.mxu0 0.0
  %431 = vmatpush1.msra.mxu0 0.0
  %432 = vmatprep.subr.mxu0 0.0
  %433 = vmatpush1.msra.mxu0 0.0
  %434 = vmatprep.subr.mxu0 0.0
  %435 = vmatpush1.msra.mxu0 0.0
  %436 = vmatprep.subr.mxu0 0.0
  %437 = vmatpush1.msra.mxu0 0.0
  %438 = vmatprep.subr.mxu0 0.0
  %439 = vmatpush1.msra.mxu0 0.0
  %440 = vmatprep.subr.mxu0 0.0
  %441 = vmatpush1.msra.mxu0 0.0
  %442 = vmatprep.subr.mxu0 0.0
  %443 = vmatpush1.msra.mxu0 0.0
  %444 = vmatprep.subr.mxu0 0.0
  %445 = vmatpush1.msra.mxu0 0.0
  %446 = vmatprep.mubr.f32.mxu0 0.0
  %447 = vmatmul.mubr.f32.gmra.mrb[0].mxu0 %v357
  %v448 = vpop.f32.mrb[0].mxu0
  %v449 = vadd.f32 %v49, %v448
  %v450 = vpop.f32.mrb[0].mxu0
  %451 = vmatprep.mubr.f32.mxu0 0.0
  %452 = vmatmul.mubr.f32.gmra.mrb[0].mxu0 %v358
  %v453 = vpop.f32.mrb[0].mxu0
  %v454 = vadd.f32 %v54, %v453
  %v455 = vpop.f32.mrb[0].mxu0
  %456 = vmatprep.mubr.f32.mxu0 0.0
  %457 = vmatmul.mubr.f32.gmra.mrb[0].mxu0 %v359
  %v458 = vpop.f32.mrb[0].mxu0
  %v459 = vadd.f32 %v59, %v458
  %v460 = vpop.f32.mrb[0].mxu0
  %461 = vmatprep.mubr.f32.mxu0 0.0
  %462 = vmatmul.mubr.f32.gmra.mrb[0].mxu0 %v360
  %v463 = vpop.f32.mrb[0].mxu0
  %v464 = vadd.f32 %v64, %v463
  %v465 = vpop.f32.mrb[0].mxu0
  %466 = vmatprep.mubr.f32.mxu0 0.0
  %467 = vmatmul.mubr.f32.gmra.mrb[0].mxu0 %v361
  %v468 = vpop.f32.mrb[0].mxu0
  %v469 = vadd.f32 %v69, %v468
  %v470 = vpop.f32.mrb[0].mxu0
  %471 = vmatprep.mubr.f32.mxu0 0.0
  %472 = vmatmul.mubr.f32.gmra.mrb[0].mxu0 %v362
  %v473 = vpop.f32.mrb[0].mxu0
  %v474 = vadd.f32 %v74, %v473
  %v475 = vpop.f32.mrb[0].mxu0
  %476 = vmatprep.mubr.f32.mxu0 0.0
  %477 = vmatmul.mubr.f32.gmra.mrb[0].mxu0 %v363
  %v478 = vpop.f32.mrb[0].mxu0
  %v479 = vadd.f32 %v79, %v478
  %v480 = vpop.f32.mrb[0].mxu0
  %481 = vmatprep.mubr.f32.mxu0 0.0
  %482 = vmatmul.mubr.f32.gmra.mrb[0].mxu0 %v364
  %v483 = vpop.f32.mrb[0].mxu0
  %v484 = vadd.f32 %v84, %v483
  %v485 = vpop.f32.mrb[0].mxu0
  %486 = vdwg.mxu0
  %v487 = vmax.f32 %v449, 0.0
  %v488 = vmax.f32 %v454, 0.0
  %v489 = vmax.f32 %v459, 0.0
  %v490 = vmax.f32 %v464, 0.0
  %v491 = vmax.f32 %v469, 0.0
  %v492 = vmax.f32 %v474, 0.0
  %v493 = vmax.f32 %v479, 0.0
  %v494 = vmax.f32 %v484, 0.0
  %s495 = scalar_lea.vmem %s3, 128
  %496 = vst.msk [vmem:[%s495] sm:$0xff] %vm199, %v487
  %497 = vst.msk [vmem:[%s495 + $0x8] sm:$0xff] %vm199, %v488
  %498 = vst.msk [vmem:[%s495 + $0x10] sm:$0xff] %vm199, %v489
  %499 = vst.msk [vmem:[%s495 + $0x18] sm:$0xff] %vm199, %v490
  %500 = vst.msk [vmem:[%s495 + $0x20] sm:$0xff] %vm199, %v491
  %501 = vst.msk [vmem:[%s495 + $0x28] sm:$0xff] %vm199, %v492
  %502 = vst.msk [vmem:[%s495 + $0x30] sm:$0xff] %vm199, %v493
  %503 = vst.msk [vmem:[%s495 + $0x38] sm:$0xff] %vm199, %v494
  %s504 = scalar_lea.vmem %s1, 192
  %v505 = vld [vmem:[%s504] sm:$0xff]
  %v506 = vld [vmem:[%s504 + $0x8] sm:$0xff]
  %v507 = vld [vmem:[%s504 + $0x10] sm:$0xff]
  %v508 = vld [vmem:[%s504 + $0x18] sm:$0xff]
  %v509 = vld [vmem:[%s504 + $0x20] sm:$0xff]
  %v510 = vld [vmem:[%s504 + $0x28] sm:$0xff]
  %v511 = vld [vmem:[%s504 + $0x30] sm:$0xff]
  %v512 = vld [vmem:[%s504 + $0x38] sm:$0xff]
  %s513 = scalar_lea.vmem %s0, 384
  %v514 = vld [vmem:[%s513] sm:$0xff]
  %v515 = vld [vmem:[%s513 + $0x8] sm:$0xff]
  %v516 = vld [vmem:[%s513 + $0x10] sm:$0xff]
  %v517 = vld [vmem:[%s513 + $0x18] sm:$0xff]
  %v518 = vld [vmem:[%s513 + $0x20] sm:$0xff]
  %v519 = vld [vmem:[%s513 + $0x28] sm:$0xff]
  %v520 = vld [vmem:[%s513 + $0x30] sm:$0xff]
  %v521 = vld [vmem:[%s513 + $0x38] sm:$0xff]
  %v522 = vld [vmem:[%s513 + $0x40] sm:$0xff]
  %v523 = vld [vmem:[%s513 + $0x48] sm:$0xff]
  %v524 = vld [vmem:[%s513 + $0x50] sm:$0xff]
  %v525 = vld [vmem:[%s513 + $0x58] sm:$0xff]
  %v526 = vld [vmem:[%s513 + $0x60] sm:$0xff]
  %v527 = vld [vmem:[%s513 + $0x68] sm:$0xff]
  %v528 = vld [vmem:[%s513 + $0x70] sm:$0xff]
  %v529 = vld [vmem:[%s513 + $0x78] sm:$0xff]
  %530 = vmatprep.subr.mxu0 0.0
  %531 = vmatpush1.msra.mxu0 %v514
  %532 = vmatprep.subr.mxu0 0.0
  %533 = vmatpush1.msra.mxu0 %v515
  %534 = vmatprep.subr.mxu0 0.0
  %535 = vmatpush1.msra.mxu0 %v516
  %536 = vmatprep.subr.mxu0 0.0
  %537 = vmatpush1.msra.mxu0 %v517
  %538 = vmatprep.subr.mxu0 0.0
  %539 = vmatpush1.msra.mxu0 %v518
  %540 = vmatprep.subr.mxu0 0.0
  %541 = vmatpush1.msra.mxu0 %v519
  %542 = vmatprep.subr.mxu0 0.0
  %543 = vmatpush1.msra.mxu0 %v520
  %544 = vmatprep.subr.mxu0 0.0
  %545 = vmatpush1.msra.mxu0 %v521
  %546 = vmatprep.subr.mxu0 0.0
  %547 = vmatpush1.msra.mxu0 %v522
  %548 = vmatprep.subr.mxu0 0.0
  %549 = vmatpush1.msra.mxu0 %v523
  %550 = vmatprep.subr.mxu0 0.0
  %551 = vmatpush1.msra.mxu0 %v524
  %552 = vmatprep.subr.mxu0 0.0
  %553 = vmatpush1.msra.mxu0 %v525
  %554 = vmatprep.subr.mxu0 0.0
  %555 = vmatpush1.msra.mxu0 %v526
  %556 = vmatprep.subr.mxu0 0.0
  %557 = vmatpush1.msra.mxu0 %v527
  %558 = vmatprep.subr.mxu0 0.0
  %559 = vmatpush1.msra.mxu0 %v528
  %560 = vmatprep.subr.mxu0 0.0
  %561 = vmatpush1.msra.mxu0 %v529
  %562 = vmatprep.subr.mxu0 0.0
  %563 = vmatpush1.msra.mxu0 0.0
  %564 = vmatprep.subr.mxu0 0.0
  %565 = vmatpush1.msra.mxu0 0.0
  %566 = vmatprep.subr.mxu0 0.0
  %567 = vmatpush1.msra.mxu0 0.0
  %568 = vmatprep.subr.mxu0 0.0
  %569 = vmatpush1.msra.mxu0 0.0
  %570 = vmatprep.subr.mxu0 0.0
  %571 = vmatpush1.msra.mxu0 0.0
  %572 = vmatprep.subr.mxu0 0.0
  %573 = vmatpush1.msra.mxu0 0.0
  %574 = vmatprep.subr.mxu0 0.0
  %575 = vmatpush1.msra.mxu0 0.0
  %576 = vmatprep.subr.mxu0 0.0
  %577 = vmatpush1.msra.mxu0 0.0
  %578 = vmatprep.subr.mxu0 0.0
  %579 = vmatpush1.msra.mxu0 0.0
  %580 = vmatprep.subr.mxu0 0.0
  %581 = vmatpush1.msra.mxu0 0.0
  %582 = vmatprep.subr.mxu0 0.0
  %583 = vmatpush1.msra.mxu0 0.0
  %584 = vmatprep.subr.mxu0 0.0
  %585 = vmatpush1.msra.mxu0 0.0
  %586 = vmatprep.subr.mxu0 0.0
  %587 = vmatpush1.msra.mxu0 0.0
  %588 = vmatprep.subr.mxu0 0.0
  %589 = vmatpush1.msra.mxu0 0.0
  %590 = vmatprep.subr.mxu0 0.0
  %591 = vmatpush1.msra.mxu0 0.0
  %592 = vmatprep.subr.mxu0 0.0
  %593 = vmatpush1.msra.mxu0 0.0
  %594 = vmatprep.mubr.f32.mxu0 0.0
  %595 = vmatmul.mubr.f32.gmra.mrb[0].mxu0 %v505
  %v596 = vpop.f32.mrb[0].mxu0
  %v597 = vadd.f32 %v49, %v596
  %v598 = vpop.f32.mrb[0].mxu0
  %599 = vmatprep.mubr.f32.mxu0 0.0
  %600 = vmatmul.mubr.f32.gmra.mrb[0].mxu0 %v506
  %v601 = vpop.f32.mrb[0].mxu0
  %v602 = vadd.f32 %v54, %v601
  %v603 = vpop.f32.mrb[0].mxu0
  %604 = vmatprep.mubr.f32.mxu0 0.0
  %605 = vmatmul.mubr.f32.gmra.mrb[0].mxu0 %v507
  %v606 = vpop.f32.mrb[0].mxu0
  %v607 = vadd.f32 %v59, %v606
  %v608 = vpop.f32.mrb[0].mxu0
  %609 = vmatprep.mubr.f32.mxu0 0.0
  %610 = vmatmul.mubr.f32.gmra.mrb[0].mxu0 %v508
  %v611 = vpop.f32.mrb[0].mxu0
  %v612 = vadd.f32 %v64, %v611
  %v613 = vpop.f32.mrb[0].mxu0
  %614 = vmatprep.mubr.f32.mxu0 0.0
  %615 = vmatmul.mubr.f32.gmra.mrb[0].mxu0 %v509
  %v616 = vpop.f32.mrb[0].mxu0
  %v617 = vadd.f32 %v69, %v616
  %v618 = vpop.f32.mrb[0].mxu0
  %619 = vmatprep.mubr.f32.mxu0 0.0
  %620 = vmatmul.mubr.f32.gmra.mrb[0].mxu0 %v510
  %v621 = vpop.f32.mrb[0].mxu0
  %v622 = vadd.f32 %v74, %v621
  %v623 = vpop.f32.mrb[0].mxu0
  %624 = vmatprep.mubr.f32.mxu0 0.0
  %625 = vmatmul.mubr.f32.gmra.mrb[0].mxu0 %v511
  %v626 = vpop.f32.mrb[0].mxu0
  %v627 = vadd.f32 %v79, %v626
  %v628 = vpop.f32.mrb[0].mxu0
  %629 = vmatprep.mubr.f32.mxu0 0.0
  %630 = vmatmul.mubr.f32.gmra.mrb[0].mxu0 %v512
  %v631 = vpop.f32.mrb[0].mxu0
  %v632 = vadd.f32 %v84, %v631
  %v633 = vpop.f32.mrb[0].mxu0
  %634 = vdwg.mxu0
  %v635 = vmax.f32 %v597, 0.0
  %v636 = vmax.f32 %v602, 0.0
  %v637 = vmax.f32 %v607, 0.0
  %v638 = vmax.f32 %v612, 0.0
  %v639 = vmax.f32 %v617, 0.0
  %v640 = vmax.f32 %v622, 0.0
  %v641 = vmax.f32 %v627, 0.0
  %v642 = vmax.f32 %v632, 0.0
  %s643 = scalar_lea.vmem %s3, 192
  %644 = vst.msk [vmem:[%s643] sm:$0xff] %vm199, %v635
  %645 = vst.msk [vmem:[%s643 + $0x8] sm:$0xff] %vm199, %v636
  %646 = vst.msk [vmem:[%s643 + $0x10] sm:$0xff] %vm199, %v637
  %647 = vst.msk [vmem:[%s643 + $0x18] sm:$0xff] %vm199, %v638
  %648 = vst.msk [vmem:[%s643 + $0x20] sm:$0xff] %vm199, %v639
  %649 = vst.msk [vmem:[%s643 + $0x28] sm:$0xff] %vm199, %v640
  %650 = vst.msk [vmem:[%s643 + $0x30] sm:$0xff] %vm199, %v641
  %651 = vst.msk [vmem:[%s643 + $0x38] sm:$0xff] %vm199, %v642
  // Predicated region
  $region14: #{vae_forward.11} parent=0 // pred_check
    _
  $region15: #{vae_forward.11} parent=0 // pred_check_branch
    %653 = sbr.rel (0) target = $region17
  $region16: #{vae_forward.11} parent=0 // pred_region
    _
  $region17: #{vae_forward.11} parent=0 // pred_fallthru
    _
  // Predicated region
  $region18: #{vae_forward.11} parent=0 // pred_check
    _
  $region19: #{vae_forward.11} parent=0 // pred_check_branch
    %655 = sbr.rel (0) target = $region21
  $region20: #{vae_forward.11} parent=0 // pred_region
    _
  $region21: #{vae_forward.11} parent=0 // pred_fallthru
    _

// kernel: vae_forward.12
$region0: #{vae_forward.12}
  #allocation0 [shape = 'u32[]', space=smem, size = 0x4, offset = 0x4, fixed_abs, tag = 'smem constant byte address 0x4 - core index']
  #allocation1 [shape = 'u32[144,128]{1,0:T(1,128)}', space=vmem, size = 0x12000, scoped, tag = 'internal scratch']
  %s0 = inlined_call_operand.vmem [shape: f32[4,256,72], index: 0, kind: input, shape index: {}]
  %s1 = inlined_call_operand.vmem [shape: f32[4,32,256], index: 1, kind: input, shape index: {}]
  %s2 = inlined_call_operand.vmem [shape: f32[32,1], index: 2, kind: input, shape index: {}]
  %s3 = inlined_call_operand.vmem [shape: f32[4,32,72], index: 3, kind: output, shape index: {}]
  %s4 = sld [smem:[#allocation0]]
  $region22: #{vae_forward.12} parent=0
    _
  %s6 = ssub.s32 1, %s4
  %s7 = scalar_select 0, %s6, %s4
  // Predicated region
  $region2: #{vae_forward.12} parent=0 // pred_check
    _
  $region3: #{vae_forward.12} parent=0 // pred_check_branch
    %9 = sbr.rel (0) target = $region5
  $region4: #{vae_forward.12} parent=0 // pred_region
    _
  $region5: #{vae_forward.12} parent=0 // pred_fallthru
    _
  // Predicated region
  $region6: #{vae_forward.12} parent=0 // pred_check
    _
  $region7: #{vae_forward.12} parent=0 // pred_check_branch
    %11 = sbr.rel (0) target = $region9
  $region8: #{vae_forward.12} parent=0 // pred_region
    _
  $region9: #{vae_forward.12} parent=0 // pred_fallthru
    _
  // Predicated region
  $region10: #{vae_forward.12} parent=0 // pred_check
    _
  $region11: #{vae_forward.12} parent=0 // pred_check_branch
    %13 = sbr.rel (0) target = $region13
  $region12: #{vae_forward.12} parent=0 // pred_region
    _
  $region13: #{vae_forward.12} parent=0 // pred_fallthru
    _
  %v14 = vld [vmem:[%s2] sm:$0xff]
  %v15 = vld [vmem:[%s2 + $0x8] sm:$0xff]
  %v16 = vld [vmem:[%s2 + $0x10] sm:$0xff]
  %v17 = vld [vmem:[%s2 + $0x18] sm:$0xff]
  %v18 = vld [vmem:[%s1] sm:$0xff]
  %v19 = vld [vmem:[%s1 + $0x8] sm:$0xff]
  %v20 = vld [vmem:[%s1 + $0x10] sm:$0xff]
  %v21 = vld [vmem:[%s1 + $0x18] sm:$0xff]
  %v22 = vld [vmem:[%s1 + $0x20] sm:$0xff]
  %v23 = vld [vmem:[%s1 + $0x28] sm:$0xff]
  %v24 = vld [vmem:[%s1 + $0x30] sm:$0xff]
  %v25 = vld [vmem:[%s1 + $0x38] sm:$0xff]
  %v26 = vld [vmem:[%s0] sm:$0xff]
  %v27 = vld [vmem:[%s0 + $0x8] sm:$0xff]
  %v28 = vld [vmem:[%s0 + $0x10] sm:$0xff]
  %v29 = vld [vmem:[%s0 + $0x18] sm:$0xff]
  %v30 = vld [vmem:[%s0 + $0x20] sm:$0xff]
  %v31 = vld [vmem:[%s0 + $0x28] sm:$0xff]
  %v32 = vld [vmem:[%s0 + $0x30] sm:$0xff]
  %v33 = vld [vmem:[%s0 + $0x38] sm:$0xff]
  %v34 = vld [vmem:[%s0 + $0x40] sm:$0xff]
  %v35 = vld [vmem:[%s0 + $0x48] sm:$0xff]
  %v36 = vld [vmem:[%s0 + $0x50] sm:$0xff]
  %v37 = vld [vmem:[%s0 + $0x58] sm:$0xff]
  %v38 = vld [vmem:[%s0 + $0x60] sm:$0xff]
  %v39 = vld [vmem:[%s0 + $0x68] sm:$0xff]
  %v40 = vld [vmem:[%s0 + $0x70] sm:$0xff]
  %v41 = vld [vmem:[%s0 + $0x78] sm:$0xff]
  %v42 = vld [vmem:[%s0 + $0x80] sm:$0xff]
  %v43 = vld [vmem:[%s0 + $0x88] sm:$0xff]
  %v44 = vld [vmem:[%s0 + $0x90] sm:$0xff]
  %v45 = vld [vmem:[%s0 + $0x98] sm:$0xff]
  %v46 = vld [vmem:[%s0 + $0xa0] sm:$0xff]
  %v47 = vld [vmem:[%s0 + $0xa8] sm:$0xff]
  %v48 = vld [vmem:[%s0 + $0xb0] sm:$0xff]
  %v49 = vld [vmem:[%s0 + $0xb8] sm:$0xff]
  %v50 = vld [vmem:[%s0 + $0xc0] sm:$0xff]
  %v51 = vld [vmem:[%s0 + $0xc8] sm:$0xff]
  %v52 = vld [vmem:[%s0 + $0xd0] sm:$0xff]
  %v53 = vld [vmem:[%s0 + $0xd8] sm:$0xff]
  %v54 = vld [vmem:[%s0 + $0xe0] sm:$0xff]
  %v55 = vld [vmem:[%s0 + $0xe8] sm:$0xff]
  %v56 = vld [vmem:[%s0 + $0xf0] sm:$0xff]
  %v57 = vld [vmem:[%s0 + $0xf8] sm:$0xff]
  %59 = vset.pattern.permute.xlu0 0
  %60 = vperm.xlu0 %59, %v14
  %v61 = vpop.permute.xlu0 %60
  %64 = vset.pattern.permute.xlu0 0
  %65 = vperm.xlu0 %64, %v15
  %v66 = vpop.permute.xlu0 %65
  %69 = vset.pattern.permute.xlu0 0
  %70 = vperm.xlu0 %69, %v16
  %v71 = vpop.permute.xlu0 %70
  %74 = vset.pattern.permute.xlu0 0
  %75 = vperm.xlu0 %74, %v17
  %v76 = vpop.permute.xlu0 %75
  %78 = vmatprep.subr.mxu0 0.0
  %79 = vmatpush1.msra.mxu0 %v26
  %80 = vmatprep.subr.mxu0 0.0
  %81 = vmatpush1.msra.mxu0 %v27
  %82 = vmatprep.subr.mxu0 0.0
  %83 = vmatpush1.msra.mxu0 %v28
  %84 = vmatprep.subr.mxu0 0.0
  %85 = vmatpush1.msra.mxu0 %v29
  %86 = vmatprep.subr.mxu0 0.0
  %87 = vmatpush1.msra.mxu0 %v30
  %88 = vmatprep.subr.mxu0 0.0
  %89 = vmatpush1.msra.mxu0 %v31
  %90 = vmatprep.subr.mxu0 0.0
  %91 = vmatpush1.msra.mxu0 %v32
  %92 = vmatprep.subr.mxu0 0.0
  %93 = vmatpush1.msra.mxu0 %v33
  %94 = vmatprep.subr.mxu0 0.0
  %95 = vmatpush1.msra.mxu0 %v34
  %96 = vmatprep.subr.mxu0 0.0
  %97 = vmatpush1.msra.mxu0 %v35
  %98 = vmatprep.subr.mxu0 0.0
  %99 = vmatpush1.msra.mxu0 %v36
  %100 = vmatprep.subr.mxu0 0.0
  %101 = vmatpush1.msra.mxu0 %v37
  %102 = vmatprep.subr.mxu0 0.0
  %103 = vmatpush1.msra.mxu0 %v38
  %104 = vmatprep.subr.mxu0 0.0
  %105 = vmatpush1.msra.mxu0 %v39
  %106 = vmatprep.subr.mxu0 0.0
  %107 = vmatpush1.msra.mxu0 %v40
  %108 = vmatprep.subr.mxu0 0.0
  %109 = vmatpush1.msra.mxu0 %v41
  %110 = vmatprep.subr.mxu0 0.0
  %111 = vmatpush1.msra.mxu0 %v42
  %112 = vmatprep.subr.mxu0 0.0
  %113 = vmatpush1.msra.mxu0 %v43
  %114 = vmatprep.subr.mxu0 0.0
  %115 = vmatpush1.msra.mxu0 %v44
  %116 = vmatprep.subr.mxu0 0.0
  %117 = vmatpush1.msra.mxu0 %v45
  %118 = vmatprep.subr.mxu0 0.0
  %119 = vmatpush1.msra.mxu0 %v46
  %120 = vmatprep.subr.mxu0 0.0
  %121 = vmatpush1.msra.mxu0 %v47
  %122 = vmatprep.subr.mxu0 0.0
  %123 = vmatpush1.msra.mxu0 %v48
  %124 = vmatprep.subr.mxu0 0.0
  %125 = vmatpush1.msra.mxu0 %v49
  %126 = vmatprep.subr.mxu0 0.0
  %127 = vmatpush1.msra.mxu0 %v50
  %128 = vmatprep.subr.mxu0 0.0
  %129 = vmatpush1.msra.mxu0 %v51
  %130 = vmatprep.subr.mxu0 0.0
  %131 = vmatpush1.msra.mxu0 %v52
  %132 = vmatprep.subr.mxu0 0.0
  %133 = vmatpush1.msra.mxu0 %v53
  %134 = vmatprep.subr.mxu0 0.0
  %135 = vmatpush1.msra.mxu0 %v54
  %136 = vmatprep.subr.mxu0 0.0
  %137 = vmatpush1.msra.mxu0 %v55
  %138 = vmatprep.subr.mxu0 0.0
  %139 = vmatpush1.msra.mxu0 %v56
  %140 = vmatprep.subr.mxu0 0.0
  %141 = vmatpush1.msra.mxu0 %v57
  %142 = vmatprep.mubr.f32.mxu0 %v19
  %143 = vmatmul.mubr.f32.gmra.mrb[0].mxu0 %v18
  %v144 = vpop.f32.mrb[0].mxu0
  %v145 = vadd.f32 %v61, %v144
  %v146 = vpop.f32.mrb[0].mxu0
  %147 = vmatprep.mubr.f32.mxu0 %v21
  %148 = vmatmul.mubr.f32.gmra.mrb[0].mxu0 %v20
  %v149 = vpop.f32.mrb[0].mxu0
  %v150 = vadd.f32 %v66, %v149
  %v151 = vpop.f32.mrb[0].mxu0
  %152 = vmatprep.mubr.f32.mxu0 %v23
  %153 = vmatmul.mubr.f32.gmra.mrb[0].mxu0 %v22
  %v154 = vpop.f32.mrb[0].mxu0
  %v155 = vadd.f32 %v71, %v154
  %v156 = vpop.f32.mrb[0].mxu0
  %157 = vmatprep.mubr.f32.mxu0 %v25
  %158 = vmatmul.mubr.f32.gmra.mrb[0].mxu0 %v24
  %v159 = vpop.f32.mrb[0].mxu0
  %v160 = vadd.f32 %v76, %v159
  %v161 = vpop.f32.mrb[0].mxu0
  %162 = vdwg.mxu0
  %v163 = vmax.f32 %v145, 0.0
  %v164 = vmax.f32 %v150, 0.0
  %v165 = vmax.f32 %v155, 0.0
  %v166 = vmax.f32 %v160, 0.0
  %vm167 = vcmask 588800
  %168 = vst.msk [vmem:[%s3] sm:$0xff] %vm167, %v163
  %169 = vst.msk [vmem:[%s3 + $0x8] sm:$0xff] %vm167, %v164
  %170 = vst.msk [vmem:[%s3 + $0x10] sm:$0xff] %vm167, %v165
  %171 = vst.msk [vmem:[%s3 + $0x18] sm:$0xff] %vm167, %v166
  %s172 = scalar_lea.vmem %s1, 64
  %v173 = vld [vmem:[%s172] sm:$0xff]
  %v174 = vld [vmem:[%s172 + $0x8] sm:$0xff]
  %v175 = vld [vmem:[%s172 + $0x10] sm:$0xff]
  %v176 = vld [vmem:[%s172 + $0x18] sm:$0xff]
  %v177 = vld [vmem:[%s172 + $0x20] sm:$0xff]
  %v178 = vld [vmem:[%s172 + $0x28] sm:$0xff]
  %v179 = vld [vmem:[%s172 + $0x30] sm:$0xff]
  %v180 = vld [vmem:[%s172 + $0x38] sm:$0xff]
  %s181 = scalar_lea.vmem %s0, 256
  %v182 = vld [vmem:[%s181] sm:$0xff]
  %v183 = vld [vmem:[%s181 + $0x8] sm:$0xff]
  %v184 = vld [vmem:[%s181 + $0x10] sm:$0xff]
  %v185 = vld [vmem:[%s181 + $0x18] sm:$0xff]
  %v186 = vld [vmem:[%s181 + $0x20] sm:$0xff]
  %v187 = vld [vmem:[%s181 + $0x28] sm:$0xff]
  %v188 = vld [vmem:[%s181 + $0x30] sm:$0xff]
  %v189 = vld [vmem:[%s181 + $0x38] sm:$0xff]
  %v190 = vld [vmem:[%s181 + $0x40] sm:$0xff]
  %v191 = vld [vmem:[%s181 + $0x48] sm:$0xff]
  %v192 = vld [vmem:[%s181 + $0x50] sm:$0xff]
  %v193 = vld [vmem:[%s181 + $0x58] sm:$0xff]
  %v194 = vld [vmem:[%s181 + $0x60] sm:$0xff]
  %v195 = vld [vmem:[%s181 + $0x68] sm:$0xff]
  %v196 = vld [vmem:[%s181 + $0x70] sm:$0xff]
  %v197 = vld [vmem:[%s181 + $0x78] sm:$0xff]
  %v198 = vld [vmem:[%s181 + $0x80] sm:$0xff]
  %v199 = vld [vmem:[%s181 + $0x88] sm:$0xff]
  %v200 = vld [vmem:[%s181 + $0x90] sm:$0xff]
  %v201 = vld [vmem:[%s181 + $0x98] sm:$0xff]
  %v202 = vld [vmem:[%s181 + $0xa0] sm:$0xff]
  %v203 = vld [vmem:[%s181 + $0xa8] sm:$0xff]
  %v204 = vld [vmem:[%s181 + $0xb0] sm:$0xff]
  %v205 = vld [vmem:[%s181 + $0xb8] sm:$0xff]
  %v206 = vld [vmem:[%s181 + $0xc0] sm:$0xff]
  %v207 = vld [vmem:[%s181 + $0xc8] sm:$0xff]
  %v208 = vld [vmem:[%s181 + $0xd0] sm:$0xff]
  %v209 = vld [vmem:[%s181 + $0xd8] sm:$0xff]
  %v210 = vld [vmem:[%s181 + $0xe0] sm:$0xff]
  %v211 = vld [vmem:[%s181 + $0xe8] sm:$0xff]
  %v212 = vld [vmem:[%s181 + $0xf0] sm:$0xff]
  %v213 = vld [vmem:[%s181 + $0xf8] sm:$0xff]
  %214 = vmatprep.subr.mxu0 0.0
  %215 = vmatpush1.msra.mxu0 %v182
  %216 = vmatprep.subr.mxu0 0.0
  %217 = vmatpush1.msra.mxu0 %v183
  %218 = vmatprep.subr.mxu0 0.0
  %219 = vmatpush1.msra.mxu0 %v184
  %220 = vmatprep.subr.mxu0 0.0
  %221 = vmatpush1.msra.mxu0 %v185
  %222 = vmatprep.subr.mxu0 0.0
  %223 = vmatpush1.msra.mxu0 %v186
  %224 = vmatprep.subr.mxu0 0.0
  %225 = vmatpush1.msra.mxu0 %v187
  %226 = vmatprep.subr.mxu0 0.0
  %227 = vmatpush1.msra.mxu0 %v188
  %228 = vmatprep.subr.mxu0 0.0
  %229 = vmatpush1.msra.mxu0 %v189
  %230 = vmatprep.subr.mxu0 0.0
  %231 = vmatpush1.msra.mxu0 %v190
  %232 = vmatprep.subr.mxu0 0.0
  %233 = vmatpush1.msra.mxu0 %v191
  %234 = vmatprep.subr.mxu0 0.0
  %235 = vmatpush1.msra.mxu0 %v192
  %236 = vmatprep.subr.mxu0 0.0
  %237 = vmatpush1.msra.mxu0 %v193
  %238 = vmatprep.subr.mxu0 0.0
  %239 = vmatpush1.msra.mxu0 %v194
  %240 = vmatprep.subr.mxu0 0.0
  %241 = vmatpush1.msra.mxu0 %v195
  %242 = vmatprep.subr.mxu0 0.0
  %243 = vmatpush1.msra.mxu0 %v196
  %244 = vmatprep.subr.mxu0 0.0
  %245 = vmatpush1.msra.mxu0 %v197
  %246 = vmatprep.subr.mxu0 0.0
  %247 = vmatpush1.msra.mxu0 %v198
  %248 = vmatprep.subr.mxu0 0.0
  %249 = vmatpush1.msra.mxu0 %v199
  %250 = vmatprep.subr.mxu0 0.0
  %251 = vmatpush1.msra.mxu0 %v200
  %252 = vmatprep.subr.mxu0 0.0
  %253 = vmatpush1.msra.mxu0 %v201
  %254 = vmatprep.subr.mxu0 0.0
  %255 = vmatpush1.msra.mxu0 %v202
  %256 = vmatprep.subr.mxu0 0.0
  %257 = vmatpush1.msra.mxu0 %v203
  %258 = vmatprep.subr.mxu0 0.0
  %259 = vmatpush1.msra.mxu0 %v204
  %260 = vmatprep.subr.mxu0 0.0
  %261 = vmatpush1.msra.mxu0 %v205
  %262 = vmatprep.subr.mxu0 0.0
  %263 = vmatpush1.msra.mxu0 %v206
  %264 = vmatprep.subr.mxu0 0.0
  %265 = vmatpush1.msra.mxu0 %v207
  %266 = vmatprep.subr.mxu0 0.0
  %267 = vmatpush1.msra.mxu0 %v208
  %268 = vmatprep.subr.mxu0 0.0
  %269 = vmatpush1.msra.mxu0 %v209
  %270 = vmatprep.subr.mxu0 0.0
  %271 = vmatpush1.msra.mxu0 %v210
  %272 = vmatprep.subr.mxu0 0.0
  %273 = vmatpush1.msra.mxu0 %v211
  %274 = vmatprep.subr.mxu0 0.0
  %275 = vmatpush1.msra.mxu0 %v212
  %276 = vmatprep.subr.mxu0 0.0
  %277 = vmatpush1.msra.mxu0 %v213
  %278 = vmatprep.mubr.f32.mxu0 %v174
  %279 = vmatmul.mubr.f32.gmra.mrb[0].mxu0 %v173
  %v280 = vpop.f32.mrb[0].mxu0
  %v281 = vadd.f32 %v61, %v280
  %v282 = vpop.f32.mrb[0].mxu0
  %283 = vmatprep.mubr.f32.mxu0 %v176
  %284 = vmatmul.mubr.f32.gmra.mrb[0].mxu0 %v175
  %v285 = vpop.f32.mrb[0].mxu0
  %v286 = vadd.f32 %v66, %v285
  %v287 = vpop.f32.mrb[0].mxu0
  %288 = vmatprep.mubr.f32.mxu0 %v178
  %289 = vmatmul.mubr.f32.gmra.mrb[0].mxu0 %v177
  %v290 = vpop.f32.mrb[0].mxu0
  %v291 = vadd.f32 %v71, %v290
  %v292 = vpop.f32.mrb[0].mxu0
  %293 = vmatprep.mubr.f32.mxu0 %v180
  %294 = vmatmul.mubr.f32.gmra.mrb[0].mxu0 %v179
  %v295 = vpop.f32.mrb[0].mxu0
  %v296 = vadd.f32 %v76, %v295
  %v297 = vpop.f32.mrb[0].mxu0
  %298 = vdwg.mxu0
  %v299 = vmax.f32 %v281, 0.0
  %v300 = vmax.f32 %v286, 0.0
  %v301 = vmax.f32 %v291, 0.0
  %v302 = vmax.f32 %v296, 0.0
  %s303 = scalar_lea.vmem %s3, 32
  %304 = vst.msk [vmem:[%s303] sm:$0xff] %vm167, %v299
  %305 = vst.msk [vmem:[%s303 + $0x8] sm:$0xff] %vm167, %v300
  %306 = vst.msk [vmem:[%s303 + $0x10] sm:$0xff] %vm167, %v301
  %307 = vst.msk [vmem:[%s303 + $0x18] sm:$0xff] %vm167, %v302
  %s308 = scalar_lea.vmem %s1, 128
  %v309 = vld [vmem:[%s308] sm:$0xff]
  %v310 = vld [vmem:[%s308 + $0x8] sm:$0xff]
  %v311 = vld [vmem:[%s308 + $0x10] sm:$0xff]
  %v312 = vld [vmem:[%s308 + $0x18] sm:$0xff]
  %v313 = vld [vmem:[%s308 + $0x20] sm:$0xff]
  %v314 = vld [vmem:[%s308 + $0x28] sm:$0xff]
  %v315 = vld [vmem:[%s308 + $0x30] sm:$0xff]
  %v316 = vld [vmem:[%s308 + $0x38] sm:$0xff]
  %s317 = scalar_lea.vmem %s0, 512
  %v318 = vld [vmem:[%s317] sm:$0xff]
  %v319 = vld [vmem:[%s317 + $0x8] sm:$0xff]
  %v320 = vld [vmem:[%s317 + $0x10] sm:$0xff]
  %v321 = vld [vmem:[%s317 + $0x18] sm:$0xff]
  %v322 = vld [vmem:[%s317 + $0x20] sm:$0xff]
  %v323 = vld [vmem:[%s317 + $0x28] sm:$0xff]
  %v324 = vld [vmem:[%s317 + $0x30] sm:$0xff]
  %v325 = vld [vmem:[%s317 + $0x38] sm:$0xff]
  %v326 = vld [vmem:[%s317 + $0x40] sm:$0xff]
  %v327 = vld [vmem:[%s317 + $0x48] sm:$0xff]
  %v328 = vld [vmem:[%s317 + $0x50] sm:$0xff]
  %v329 = vld [vmem:[%s317 + $0x58] sm:$0xff]
  %v330 = vld [vmem:[%s317 + $0x60] sm:$0xff]
  %v331 = vld [vmem:[%s317 + $0x68] sm:$0xff]
  %v332 = vld [vmem:[%s317 + $0x70] sm:$0xff]
  %v333 = vld [vmem:[%s317 + $0x78] sm:$0xff]
  %v334 = vld [vmem:[%s317 + $0x80] sm:$0xff]
  %v335 = vld [vmem:[%s317 + $0x88] sm:$0xff]
  %v336 = vld [vmem:[%s317 + $0x90] sm:$0xff]
  %v337 = vld [vmem:[%s317 + $0x98] sm:$0xff]
  %v338 = vld [vmem:[%s317 + $0xa0] sm:$0xff]
  %v339 = vld [vmem:[%s317 + $0xa8] sm:$0xff]
  %v340 = vld [vmem:[%s317 + $0xb0] sm:$0xff]
  %v341 = vld [vmem:[%s317 + $0xb8] sm:$0xff]
  %v342 = vld [vmem:[%s317 + $0xc0] sm:$0xff]
  %v343 = vld [vmem:[%s317 + $0xc8] sm:$0xff]
  %v344 = vld [vmem:[%s317 + $0xd0] sm:$0xff]
  %v345 = vld [vmem:[%s317 + $0xd8] sm:$0xff]
  %v346 = vld [vmem:[%s317 + $0xe0] sm:$0xff]
  %v347 = vld [vmem:[%s317 + $0xe8] sm:$0xff]
  %v348 = vld [vmem:[%s317 + $0xf0] sm:$0xff]
  %v349 = vld [vmem:[%s317 + $0xf8] sm:$0xff]
  %350 = vmatprep.subr.mxu0 0.0
  %351 = vmatpush1.msra.mxu0 %v318
  %352 = vmatprep.subr.mxu0 0.0
  %353 = vmatpush1.msra.mxu0 %v319
  %354 = vmatprep.subr.mxu0 0.0
  %355 = vmatpush1.msra.mxu0 %v320
  %356 = vmatprep.subr.mxu0 0.0
  %357 = vmatpush1.msra.mxu0 %v321
  %358 = vmatprep.subr.mxu0 0.0
  %359 = vmatpush1.msra.mxu0 %v322
  %360 = vmatprep.subr.mxu0 0.0
  %361 = vmatpush1.msra.mxu0 %v323
  %362 = vmatprep.subr.mxu0 0.0
  %363 = vmatpush1.msra.mxu0 %v324
  %364 = vmatprep.subr.mxu0 0.0
  %365 = vmatpush1.msra.mxu0 %v325
  %366 = vmatprep.subr.mxu0 0.0
  %367 = vmatpush1.msra.mxu0 %v326
  %368 = vmatprep.subr.mxu0 0.0
  %369 = vmatpush1.msra.mxu0 %v327
  %370 = vmatprep.subr.mxu0 0.0
  %371 = vmatpush1.msra.mxu0 %v328
  %372 = vmatprep.subr.mxu0 0.0
  %373 = vmatpush1.msra.mxu0 %v329
  %374 = vmatprep.subr.mxu0 0.0
  %375 = vmatpush1.msra.mxu0 %v330
  %376 = vmatprep.subr.mxu0 0.0
  %377 = vmatpush1.msra.mxu0 %v331
  %378 = vmatprep.subr.mxu0 0.0
  %379 = vmatpush1.msra.mxu0 %v332
  %380 = vmatprep.subr.mxu0 0.0
  %381 = vmatpush1.msra.mxu0 %v333
  %382 = vmatprep.subr.mxu0 0.0
  %383 = vmatpush1.msra.mxu0 %v334
  %384 = vmatprep.subr.mxu0 0.0
  %385 = vmatpush1.msra.mxu0 %v335
  %386 = vmatprep.subr.mxu0 0.0
  %387 = vmatpush1.msra.mxu0 %v336
  %388 = vmatprep.subr.mxu0 0.0
  %389 = vmatpush1.msra.mxu0 %v337
  %390 = vmatprep.subr.mxu0 0.0
  %391 = vmatpush1.msra.mxu0 %v338
  %392 = vmatprep.subr.mxu0 0.0
  %393 = vmatpush1.msra.mxu0 %v339
  %394 = vmatprep.subr.mxu0 0.0
  %395 = vmatpush1.msra.mxu0 %v340
  %396 = vmatprep.subr.mxu0 0.0
  %397 = vmatpush1.msra.mxu0 %v341
  %398 = vmatprep.subr.mxu0 0.0
  %399 = vmatpush1.msra.mxu0 %v342
  %400 = vmatprep.subr.mxu0 0.0
  %401 = vmatpush1.msra.mxu0 %v343
  %402 = vmatprep.subr.mxu0 0.0
  %403 = vmatpush1.msra.mxu0 %v344
  %404 = vmatprep.subr.mxu0 0.0
  %405 = vmatpush1.msra.mxu0 %v345
  %406 = vmatprep.subr.mxu0 0.0
  %407 = vmatpush1.msra.mxu0 %v346
  %408 = vmatprep.subr.mxu0 0.0
  %409 = vmatpush1.msra.mxu0 %v347
  %410 = vmatprep.subr.mxu0 0.0
  %411 = vmatpush1.msra.mxu0 %v348
  %412 = vmatprep.subr.mxu0 0.0
  %413 = vmatpush1.msra.mxu0 %v349
  %414 = vmatprep.mubr.f32.mxu0 %v310
  %415 = vmatmul.mubr.f32.gmra.mrb[0].mxu0 %v309
  %v416 = vpop.f32.mrb[0].mxu0
  %v417 = vadd.f32 %v61, %v416
  %v418 = vpop.f32.mrb[0].mxu0
  %419 = vmatprep.mubr.f32.mxu0 %v312
  %420 = vmatmul.mubr.f32.gmra.mrb[0].mxu0 %v311
  %v421 = vpop.f32.mrb[0].mxu0
  %v422 = vadd.f32 %v66, %v421
  %v423 = vpop.f32.mrb[0].mxu0
  %424 = vmatprep.mubr.f32.mxu0 %v314
  %425 = vmatmul.mubr.f32.gmra.mrb[0].mxu0 %v313
  %v426 = vpop.f32.mrb[0].mxu0
  %v427 = vadd.f32 %v71, %v426
  %v428 = vpop.f32.mrb[0].mxu0
  %429 = vmatprep.mubr.f32.mxu0 %v316
  %430 = vmatmul.mubr.f32.gmra.mrb[0].mxu0 %v315
  %v431 = vpop.f32.mrb[0].mxu0
  %v432 = vadd.f32 %v76, %v431
  %v433 = vpop.f32.mrb[0].mxu0
  %434 = vdwg.mxu0
  %v435 = vmax.f32 %v417, 0.0
  %v436 = vmax.f32 %v422, 0.0
  %v437 = vmax.f32 %v427, 0.0
  %v438 = vmax.f32 %v432, 0.0
  %s439 = scalar_lea.vmem %s3, 64
  %440 = vst.msk [vmem:[%s439] sm:$0xff] %vm167, %v435
  %441 = vst.msk [vmem:[%s439 + $0x8] sm:$0xff] %vm167, %v436
  %442 = vst.msk [vmem:[%s439 + $0x10] sm:$0xff] %vm167, %v437
  %443 = vst.msk [vmem:[%s439 + $0x18] sm:$0xff] %vm167, %v438
  %s444 = scalar_lea.vmem %s1, 192
  %v445 = vld [vmem:[%s444] sm:$0xff]
  %v446 = vld [vmem:[%s444 + $0x8] sm:$0xff]
  %v447 = vld [vmem:[%s444 + $0x10] sm:$0xff]
  %v448 = vld [vmem:[%s444 + $0x18] sm:$0xff]
  %v449 = vld [vmem:[%s444 + $0x20] sm:$0xff]
  %v450 = vld [vmem:[%s444 + $0x28] sm:$0xff]
  %v451 = vld [vmem:[%s444 + $0x30] sm:$0xff]
  %v452 = vld [vmem:[%s444 + $0x38] sm:$0xff]
  %s453 = scalar_lea.vmem %s0, 768
  %v454 = vld [vmem:[%s453] sm:$0xff]
  %v455 = vld [vmem:[%s453 + $0x8] sm:$0xff]
  %v456 = vld [vmem:[%s453 + $0x10] sm:$0xff]
  %v457 = vld [vmem:[%s453 + $0x18] sm:$0xff]
  %v458 = vld [vmem:[%s453 + $0x20] sm:$0xff]
  %v459 = vld [vmem:[%s453 + $0x28] sm:$0xff]
  %v460 = vld [vmem:[%s453 + $0x30] sm:$0xff]
  %v461 = vld [vmem:[%s453 + $0x38] sm:$0xff]
  %v462 = vld [vmem:[%s453 + $0x40] sm:$0xff]
  %v463 = vld [vmem:[%s453 + $0x48] sm:$0xff]
  %v464 = vld [vmem:[%s453 + $0x50] sm:$0xff]
  %v465 = vld [vmem:[%s453 + $0x58] sm:$0xff]
  %v466 = vld [vmem:[%s453 + $0x60] sm:$0xff]
  %v467 = vld [vmem:[%s453 + $0x68] sm:$0xff]
  %v468 = vld [vmem:[%s453 + $0x70] sm:$0xff]
  %v469 = vld [vmem:[%s453 + $0x78] sm:$0xff]
  %v470 = vld [vmem:[%s453 + $0x80] sm:$0xff]
  %v471 = vld [vmem:[%s453 + $0x88] sm:$0xff]
  %v472 = vld [vmem:[%s453 + $0x90] sm:$0xff]
  %v473 = vld [vmem:[%s453 + $0x98] sm:$0xff]
  %v474 = vld [vmem:[%s453 + $0xa0] sm:$0xff]
  %v475 = vld [vmem:[%s453 + $0xa8] sm:$0xff]
  %v476 = vld [vmem:[%s453 + $0xb0] sm:$0xff]
  %v477 = vld [vmem:[%s453 + $0xb8] sm:$0xff]
  %v478 = vld [vmem:[%s453 + $0xc0] sm:$0xff]
  %v479 = vld [vmem:[%s453 + $0xc8] sm:$0xff]
  %v480 = vld [vmem:[%s453 + $0xd0] sm:$0xff]
  %v481 = vld [vmem:[%s453 + $0xd8] sm:$0xff]
  %v482 = vld [vmem:[%s453 + $0xe0] sm:$0xff]
  %v483 = vld [vmem:[%s453 + $0xe8] sm:$0xff]
  %v484 = vld [vmem:[%s453 + $0xf0] sm:$0xff]
  %v485 = vld [vmem:[%s453 + $0xf8] sm:$0xff]
  %486 = vmatprep.subr.mxu0 0.0
  %487 = vmatpush1.msra.mxu0 %v454
  %488 = vmatprep.subr.mxu0 0.0
  %489 = vmatpush1.msra.mxu0 %v455
  %490 = vmatprep.subr.mxu0 0.0
  %491 = vmatpush1.msra.mxu0 %v456
  %492 = vmatprep.subr.mxu0 0.0
  %493 = vmatpush1.msra.mxu0 %v457
  %494 = vmatprep.subr.mxu0 0.0
  %495 = vmatpush1.msra.mxu0 %v458
  %496 = vmatprep.subr.mxu0 0.0
  %497 = vmatpush1.msra.mxu0 %v459
  %498 = vmatprep.subr.mxu0 0.0
  %499 = vmatpush1.msra.mxu0 %v460
  %500 = vmatprep.subr.mxu0 0.0
  %501 = vmatpush1.msra.mxu0 %v461
  %502 = vmatprep.subr.mxu0 0.0
  %503 = vmatpush1.msra.mxu0 %v462
  %504 = vmatprep.subr.mxu0 0.0
  %505 = vmatpush1.msra.mxu0 %v463
  %506 = vmatprep.subr.mxu0 0.0
  %507 = vmatpush1.msra.mxu0 %v464
  %508 = vmatprep.subr.mxu0 0.0
  %509 = vmatpush1.msra.mxu0 %v465
  %510 = vmatprep.subr.mxu0 0.0
  %511 = vmatpush1.msra.mxu0 %v466
  %512 = vmatprep.subr.mxu0 0.0
  %513 = vmatpush1.msra.mxu0 %v467
  %514 = vmatprep.subr.mxu0 0.0
  %515 = vmatpush1.msra.mxu0 %v468
  %516 = vmatprep.subr.mxu0 0.0
  %517 = vmatpush1.msra.mxu0 %v469
  %518 = vmatprep.subr.mxu0 0.0
  %519 = vmatpush1.msra.mxu0 %v470
  %520 = vmatprep.subr.mxu0 0.0
  %521 = vmatpush1.msra.mxu0 %v471
  %522 = vmatprep.subr.mxu0 0.0
  %523 = vmatpush1.msra.mxu0 %v472
  %524 = vmatprep.subr.mxu0 0.0
  %525 = vmatpush1.msra.mxu0 %v473
  %526 = vmatprep.subr.mxu0 0.0
  %527 = vmatpush1.msra.mxu0 %v474
  %528 = vmatprep.subr.mxu0 0.0
  %529 = vmatpush1.msra.mxu0 %v475
  %530 = vmatprep.subr.mxu0 0.0
  %531 = vmatpush1.msra.mxu0 %v476
  %532 = vmatprep.subr.mxu0 0.0
  %533 = vmatpush1.msra.mxu0 %v477
  %534 = vmatprep.subr.mxu0 0.0
  %535 = vmatpush1.msra.mxu0 %v478
  %536 = vmatprep.subr.mxu0 0.0
  %537 = vmatpush1.msra.mxu0 %v479
  %538 = vmatprep.subr.mxu0 0.0
  %539 = vmatpush1.msra.mxu0 %v480
  %540 = vmatprep.subr.mxu0 0.0
  %541 = vmatpush1.msra.mxu0 %v481
  %542 = vmatprep.subr.mxu0 0.0
  %543 = vmatpush1.msra.mxu0 %v482
  %544 = vmatprep.subr.mxu0 0.0
  %545 = vmatpush1.msra.mxu0 %v483
  %546 = vmatprep.subr.mxu0 0.0
  %547 = vmatpush1.msra.mxu0 %v484
  %548 = vmatprep.subr.mxu0 0.0
  %549 = vmatpush1.msra.mxu0 %v485
  %550 = vmatprep.mubr.f32.mxu0 %v446
  %551 = vmatmul.mubr.f32.gmra.mrb[0].mxu0 %v445
  %v552 = vpop.f32.mrb[0].mxu0
  %v553 = vadd.f32 %v61, %v552
  %v554 = vpop.f32.mrb[0].mxu0
  %555 = vmatprep.mubr.f32.mxu0 %v448
  %556 = vmatmul.mubr.f32.gmra.mrb[0].mxu0 %v447
  %v557 = vpop.f32.mrb[0].mxu0
  %v558 = vadd.f32 %v66, %v557
  %v559 = vpop.f32.mrb[0].mxu0
  %560 = vmatprep.mubr.f32.mxu0 %v450
  %561 = vmatmul.mubr.f32.gmra.mrb[0].mxu0 %v449
  %v562 = vpop.f32.mrb[0].mxu0
  %v563 = vadd.f32 %v71, %v562
  %v564 = vpop.f32.mrb[0].mxu0
  %565 = vmatprep.mubr.f32.mxu0 %v452
  %566 = vmatmul.mubr.f32.gmra.mrb[0].mxu0 %v451
  %v567 = vpop.f32.mrb[0].mxu0
  %v568 = vadd.f32 %v76, %v567
  %v569 = vpop.f32.mrb[0].mxu0
  %570 = vdwg.mxu0
  %v571 = vmax.f32 %v553, 0.0
  %v572 = vmax.f32 %v558, 0.0
  %v573 = vmax.f32 %v563, 0.0
  %v574 = vmax.f32 %v568, 0.0
  %s575 = scalar_lea.vmem %s3, 96
  %576 = vst.msk [vmem:[%s575] sm:$0xff] %vm167, %v571
  %577 = vst.msk [vmem:[%s575 + $0x8] sm:$0xff] %vm167, %v572
  %578 = vst.msk [vmem:[%s575 + $0x10] sm:$0xff] %vm167, %v573
  %579 = vst.msk [vmem:[%s575 + $0x18] sm:$0xff] %vm167, %v574
  // Predicated region
  $region14: #{vae_forward.12} parent=0 // pred_check
    _
  $region15: #{vae_forward.12} parent=0 // pred_check_branch
    %581 = sbr.rel (0) target = $region17
  $region16: #{vae_forward.12} parent=0 // pred_region
    _
  $region17: #{vae_forward.12} parent=0 // pred_fallthru
    _
  // Predicated region
  $region18: #{vae_forward.12} parent=0 // pred_check
    _
  $region19: #{vae_forward.12} parent=0 // pred_check_branch
    %583 = sbr.rel (0) target = $region21
  $region20: #{vae_forward.12} parent=0 // pred_region
    _
  $region21: #{vae_forward.12} parent=0 // pred_fallthru
    _

// kernel: vae_forward.13
$region0: #{vae_forward.13}
  #allocation0 [shape = 'u32[]', space=smem, size = 0x4, offset = 0x4, fixed_abs, tag = 'smem constant byte address 0x4 - core index']
  #allocation1 [shape = 'u32[144,128]{1,0:T(1,128)}', space=vmem, size = 0x12000, scoped, tag = 'internal scratch']
  #allocation2 [shape = 'f32[1,1]{1,0:T(1,128)S(1)}', space=vmem, size = 0x200, scoped, tag = 'scoped memory for vae_forward.13']
  %s0 = inlined_call_operand.vmem [shape: f32[4,288,392], index: 0, kind: input, shape index: {}]
  %s1 = inlined_call_operand.vmem [shape: f32[4,1,288], index: 1, kind: input, shape index: {}]
  %s2 = inlined_call_operand.<no memory space> [shape: f32[1,1], index: 2, kind: input, shape index: {}]
  %s3 = inlined_call_operand.vmem [shape: f32[4,1,392], index: 3, kind: output, shape index: {}]
  %s4 = sld [smem:[#allocation0]]
  $region22: #{vae_forward.13} parent=0
    _
  %s6 = ssub.s32 1, %s4
  %s7 = scalar_select 0, %s6, %s4
  %v8 = vstv %s2
  %9 = vst [vmem:[#allocation2] sm:$0x1] %v8
  // Predicated region
  $region2: #{vae_forward.13} parent=0 // pred_check
    _
  $region3: #{vae_forward.13} parent=0 // pred_check_branch
    %11 = sbr.rel (0) target = $region5
  $region4: #{vae_forward.13} parent=0 // pred_region
    _
  $region5: #{vae_forward.13} parent=0 // pred_fallthru
    _
  // Predicated region
  $region6: #{vae_forward.13} parent=0 // pred_check
    _
  $region7: #{vae_forward.13} parent=0 // pred_check_branch
    %13 = sbr.rel (0) target = $region9
  $region8: #{vae_forward.13} parent=0 // pred_region
    _
  $region9: #{vae_forward.13} parent=0 // pred_fallthru
    _
  // Predicated region
  $region10: #{vae_forward.13} parent=0 // pred_check
    _
  $region11: #{vae_forward.13} parent=0 // pred_check_branch
    %15 = sbr.rel (0) target = $region13
  $region12: #{vae_forward.13} parent=0 // pred_region
    _
  $region13: #{vae_forward.13} parent=0 // pred_fallthru
    _
  %v16 = vld [vmem:[#allocation2] sm:$0x1]
  %v17 = vld [vmem:[%s1] sm:$0x7]
  %v18 = vld [vmem:[%s0] sm:$0xff]
  %v19 = vld [vmem:[%s0 + $0x8] sm:$0xff]
  %v20 = vld [vmem:[%s0 + $0x10] sm:$0xff]
  %v21 = vld [vmem:[%s0 + $0x18] sm:$0xff]
  %v22 = vld [vmem:[%s0 + $0x20] sm:$0xff]
  %v23 = vld [vmem:[%s0 + $0x28] sm:$0xff]
  %v24 = vld [vmem:[%s0 + $0x30] sm:$0xff]
  %v25 = vld [vmem:[%s0 + $0x38] sm:$0xff]
  %v26 = vld [vmem:[%s0 + $0x40] sm:$0xff]
  %v27 = vld [vmem:[%s0 + $0x48] sm:$0xff]
  %v28 = vld [vmem:[%s0 + $0x50] sm:$0xff]
  %v29 = vld [vmem:[%s0 + $0x58] sm:$0xff]
  %v30 = vld [vmem:[%s0 + $0x60] sm:$0xff]
  %v31 = vld [vmem:[%s0 + $0x68] sm:$0xff]
  %v32 = vld [vmem:[%s0 + $0x70] sm:$0xff]
  %v33 = vld [vmem:[%s0 + $0x78] sm:$0xff]
  %v34 = vld [vmem:[%s0 + $0x80] sm:$0xff]
  %v35 = vld [vmem:[%s0 + $0x88] sm:$0xff]
  %v36 = vld [vmem:[%s0 + $0x90] sm:$0xff]
  %v37 = vld [vmem:[%s0 + $0x98] sm:$0xff]
  %v38 = vld [vmem:[%s0 + $0xa0] sm:$0xff]
  %v39 = vld [vmem:[%s0 + $0xa8] sm:$0xff]
  %v40 = vld [vmem:[%s0 + $0xb0] sm:$0xff]
  %v41 = vld [vmem:[%s0 + $0xb8] sm:$0xff]
  %v42 = vld [vmem:[%s0 + $0xc0] sm:$0xff]
  %v43 = vld [vmem:[%s0 + $0xc8] sm:$0xff]
  %v44 = vld [vmem:[%s0 + $0xd0] sm:$0xff]
  %v45 = vld [vmem:[%s0 + $0xd8] sm:$0xff]
  %v46 = vld [vmem:[%s0 + $0xe0] sm:$0xff]
  %v47 = vld [vmem:[%s0 + $0xe8] sm:$0xff]
  %v48 = vld [vmem:[%s0 + $0xf0] sm:$0xff]
  %v49 = vld [vmem:[%s0 + $0xf8] sm:$0xff]
  %v50 = vld [vmem:[%s0 + $0x100] sm:$0xff]
  %v51 = vld [vmem:[%s0 + $0x108] sm:$0xff]
  %v52 = vld [vmem:[%s0 + $0x110] sm:$0xff]
  %v53 = vld [vmem:[%s0 + $0x118] sm:$0xff]
  %v54 = vld [vmem:[%s0 + $0x120] sm:$0xff]
  %v55 = vld [vmem:[%s0 + $0x128] sm:$0xff]
  %v56 = vld [vmem:[%s0 + $0x130] sm:$0xff]
  %v57 = vld [vmem:[%s0 + $0x138] sm:$0xff]
  %v58 = vld [vmem:[%s0 + $0x140] sm:$0xff]
  %v59 = vld [vmem:[%s0 + $0x148] sm:$0xff]
  %v60 = vld [vmem:[%s0 + $0x150] sm:$0xff]
  %v61 = vld [vmem:[%s0 + $0x158] sm:$0xff]
  %v62 = vld [vmem:[%s0 + $0x160] sm:$0xff]
  %v63 = vld [vmem:[%s0 + $0x168] sm:$0xff]
  %v64 = vld [vmem:[%s0 + $0x170] sm:$0xff]
  %v65 = vld [vmem:[%s0 + $0x178] sm:$0xff]
  %v66 = vld [vmem:[%s0 + $0x180] sm:$0xff]
  %v67 = vld [vmem:[%s0 + $0x188] sm:$0xff]
  %v68 = vld [vmem:[%s0 + $0x190] sm:$0xff]
  %v69 = vld [vmem:[%s0 + $0x198] sm:$0xff]
  %v70 = vld [vmem:[%s0 + $0x1a0] sm:$0xff]
  %v71 = vld [vmem:[%s0 + $0x1a8] sm:$0xff]
  %v72 = vld [vmem:[%s0 + $0x1b0] sm:$0xff]
  %v73 = vld [vmem:[%s0 + $0x1b8] sm:$0xff]
  %v74 = vld [vmem:[%s0 + $0x1c0] sm:$0xff]
  %v75 = vld [vmem:[%s0 + $0x1c8] sm:$0xff]
  %v76 = vld [vmem:[%s0 + $0x1d0] sm:$0xff]
  %v77 = vld [vmem:[%s0 + $0x1d8] sm:$0xff]
  %v78 = vld [vmem:[%s0 + $0x1e0] sm:$0xff]
  %v79 = vld [vmem:[%s0 + $0x1e8] sm:$0xff]
  %v80 = vld [vmem:[%s0 + $0x1f0] sm:$0xff]
  %v81 = vld [vmem:[%s0 + $0x1f8] sm:$0xff]
  %v82 = vld [vmem:[%s0 + $0x200] sm:$0xff]
  %v83 = vld [vmem:[%s0 + $0x208] sm:$0xff]
  %v84 = vld [vmem:[%s0 + $0x210] sm:$0xff]
  %v85 = vld [vmem:[%s0 + $0x218] sm:$0xff]
  %v86 = vld [vmem:[%s0 + $0x220] sm:$0xff]
  %v87 = vld [vmem:[%s0 + $0x228] sm:$0xff]
  %v88 = vld [vmem:[%s0 + $0x230] sm:$0xff]
  %v89 = vld [vmem:[%s0 + $0x238] sm:$0xff]
  %v90 = vld [vmem:[%s0 + $0x240] sm:$0xff]
  %v91 = vld [vmem:[%s0 + $0x248] sm:$0xff]
  %v92 = vld [vmem:[%s0 + $0x250] sm:$0xff]
  %v93 = vld [vmem:[%s0 + $0x258] sm:$0xff]
  %v94 = vld [vmem:[%s0 + $0x260] sm:$0xff]
  %v95 = vld [vmem:[%s0 + $0x268] sm:$0xff]
  %v96 = vld [vmem:[%s0 + $0x270] sm:$0xff]
  %v97 = vld [vmem:[%s0 + $0x278] sm:$0xff]
  %v98 = vld [vmem:[%s0 + $0x280] sm:$0xff]
  %v99 = vld [vmem:[%s0 + $0x288] sm:$0xff]
  %v100 = vld [vmem:[%s0 + $0x290] sm:$0xff]
  %v101 = vld [vmem:[%s0 + $0x298] sm:$0xff]
  %v102 = vld [vmem:[%s0 + $0x2a0] sm:$0xff]
  %v103 = vld [vmem:[%s0 + $0x2a8] sm:$0xff]
  %v104 = vld [vmem:[%s0 + $0x2b0] sm:$0xff]
  %v105 = vld [vmem:[%s0 + $0x2b8] sm:$0xff]
  %v106 = vld [vmem:[%s0 + $0x2c0] sm:$0xff]
  %v107 = vld [vmem:[%s0 + $0x2c8] sm:$0xff]
  %v108 = vld [vmem:[%s0 + $0x2d0] sm:$0xff]
  %v109 = vld [vmem:[%s0 + $0x2d8] sm:$0xff]
  %v110 = vld [vmem:[%s0 + $0x2e0] sm:$0xff]
  %v111 = vld [vmem:[%s0 + $0x2e8] sm:$0xff]
  %v112 = vld [vmem:[%s0 + $0x2f0] sm:$0xff]
  %v113 = vld [vmem:[%s0 + $0x2f8] sm:$0xff]
  %v114 = vld [vmem:[%s0 + $0x300] sm:$0xff]
  %v115 = vld [vmem:[%s0 + $0x308] sm:$0xff]
  %v116 = vld [vmem:[%s0 + $0x310] sm:$0xff]
  %v117 = vld [vmem:[%s0 + $0x318] sm:$0xff]
  %v118 = vld [vmem:[%s0 + $0x320] sm:$0xff]
  %v119 = vld [vmem:[%s0 + $0x328] sm:$0xff]
  %v120 = vld [vmem:[%s0 + $0x330] sm:$0xff]
  %v121 = vld [vmem:[%s0 + $0x338] sm:$0xff]
  %v122 = vld [vmem:[%s0 + $0x340] sm:$0xff]
  %v123 = vld [vmem:[%s0 + $0x348] sm:$0xff]
  %v124 = vld [vmem:[%s0 + $0x350] sm:$0xff]
  %v125 = vld [vmem:[%s0 + $0x358] sm:$0xff]
  %v126 = vld [vmem:[%s0 + $0x360] sm:$0xff]
  %v127 = vld [vmem:[%s0 + $0x368] sm:$0xff]
  %v128 = vld [vmem:[%s0 + $0x370] sm:$0xff]
  %v129 = vld [vmem:[%s0 + $0x378] sm:$0xff]
  %v130 = vld [vmem:[%s0 + $0x380] sm:$0xff]
  %v131 = vld [vmem:[%s0 + $0x388] sm:$0xff]
  %v132 = vld [vmem:[%s0 + $0x390] sm:$0xff]
  %v133 = vld [vmem:[%s0 + $0x398] sm:$0xff]
  %v134 = vld [vmem:[%s0 + $0x3a0] sm:$0xff]
  %v135 = vld [vmem:[%s0 + $0x3a8] sm:$0xff]
  %v136 = vld [vmem:[%s0 + $0x3b0] sm:$0xff]
  %v137 = vld [vmem:[%s0 + $0x3b8] sm:$0xff]
  %v138 = vld [vmem:[%s0 + $0x3c0] sm:$0xff]
  %v139 = vld [vmem:[%s0 + $0x3c8] sm:$0xff]
  %v140 = vld [vmem:[%s0 + $0x3d0] sm:$0xff]
  %v141 = vld [vmem:[%s0 + $0x3d8] sm:$0xff]
  %v142 = vld [vmem:[%s0 + $0x3e0] sm:$0xff]
  %v143 = vld [vmem:[%s0 + $0x3e8] sm:$0xff]
  %v144 = vld [vmem:[%s0 + $0x3f0] sm:$0xff]
  %v145 = vld [vmem:[%s0 + $0x3f8] sm:$0xff]
  %v146 = vld [vmem:[%s0 + $0x400] sm:$0xff]
  %v147 = vld [vmem:[%s0 + $0x408] sm:$0xff]
  %v148 = vld [vmem:[%s0 + $0x410] sm:$0xff]
  %v149 = vld [vmem:[%s0 + $0x418] sm:$0xff]
  %v150 = vld [vmem:[%s0 + $0x420] sm:$0xff]
  %v151 = vld [vmem:[%s0 + $0x428] sm:$0xff]
  %v152 = vld [vmem:[%s0 + $0x430] sm:$0xff]
  %v153 = vld [vmem:[%s0 + $0x438] sm:$0xff]
  %v154 = vld [vmem:[%s0 + $0x440] sm:$0xff]
  %v155 = vld [vmem:[%s0 + $0x448] sm:$0xff]
  %v156 = vld [vmem:[%s0 + $0x450] sm:$0xff]
  %v157 = vld [vmem:[%s0 + $0x458] sm:$0xff]
  %v158 = vld [vmem:[%s0 + $0x460] sm:$0xff]
  %v159 = vld [vmem:[%s0 + $0x468] sm:$0xff]
  %v160 = vld [vmem:[%s0 + $0x470] sm:$0xff]
  %v161 = vld [vmem:[%s0 + $0x478] sm:$0xff]
  %163 = vset.pattern.permute.xlu0 0
  %164 = vperm.xlu0 %163, %v16
  %v165 = vpop.permute.xlu0 %164
  %v167 = vlaneseq
  %v168 = vshrl.u32 %v167, 7
  %v169 = vsub.s32 0, %v168
  %v170 = vrot.slane %v165, %v169
  %v172 = vlaneseq
  %v173 = vshrl.u32 %v172, 7
  %v174 = vsub.s32 0, %v173
  %v175 = vrot.slane %v17, %v174
  %v176 = vlaneseq
  %v177 = vshrl.u32 %v176, 7
  %v178 = vsub.s32 1, %v177
  %v179 = vrot.slane %v17, %v178
  %v180 = vlaneseq
  %v181 = vshrl.u32 %v180, 7
  %v182 = vsub.s32 2, %v181
  %v183 = vrot.slane %v17, %v182
  %vm186 = vcmask 261120
  %v187 = vsel %vm186, %v183, 0
  %189 = vmatprep.subr.mxu0 %v19
  %190 = vmatpush1.msra.mxu0 %v18
  %191 = vmatprep.subr.mxu0 %v23
  %192 = vmatpush1.msra.mxu0 %v22
  %193 = vmatprep.subr.mxu0 %v27
  %194 = vmatpush1.msra.mxu0 %v26
  %195 = vmatprep.subr.mxu0 %v31
  %196 = vmatpush1.msra.mxu0 %v30
  %197 = vmatprep.subr.mxu0 %v35
  %198 = vmatpush1.msra.mxu0 %v34
  %199 = vmatprep.subr.mxu0 %v39
  %200 = vmatpush1.msra.mxu0 %v38
  %201 = vmatprep.subr.mxu0 %v43
  %202 = vmatpush1.msra.mxu0 %v42
  %203 = vmatprep.subr.mxu0 %v47
  %204 = vmatpush1.msra.mxu0 %v46
  %205 = vmatprep.subr.mxu0 %v51
  %206 = vmatpush1.msra.mxu0 %v50
  %207 = vmatprep.subr.mxu0 %v55
  %208 = vmatpush1.msra.mxu0 %v54
  %209 = vmatprep.subr.mxu0 %v59
  %210 = vmatpush1.msra.mxu0 %v58
  %211 = vmatprep.subr.mxu0 %v63
  %212 = vmatpush1.msra.mxu0 %v62
  %213 = vmatprep.subr.mxu0 %v67
  %214 = vmatpush1.msra.mxu0 %v66
  %215 = vmatprep.subr.mxu0 %v71
  %216 = vmatpush1.msra.mxu0 %v70
  %217 = vmatprep.subr.mxu0 %v75
  %218 = vmatpush1.msra.mxu0 %v74
  %219 = vmatprep.subr.mxu0 %v79
  %220 = vmatpush1.msra.mxu0 %v78
  %221 = vmatprep.subr.mxu0 %v83
  %222 = vmatpush1.msra.mxu0 %v82
  %223 = vmatprep.subr.mxu0 %v87
  %224 = vmatpush1.msra.mxu0 %v86
  %225 = vmatprep.subr.mxu0 %v91
  %226 = vmatpush1.msra.mxu0 %v90
  %227 = vmatprep.subr.mxu0 %v95
  %228 = vmatpush1.msra.mxu0 %v94
  %229 = vmatprep.subr.mxu0 %v99
  %230 = vmatpush1.msra.mxu0 %v98
  %231 = vmatprep.subr.mxu0 %v103
  %232 = vmatpush1.msra.mxu0 %v102
  %233 = vmatprep.subr.mxu0 %v107
  %234 = vmatpush1.msra.mxu0 %v106
  %235 = vmatprep.subr.mxu0 %v111
  %236 = vmatpush1.msra.mxu0 %v110
  %237 = vmatprep.subr.mxu0 %v115
  %238 = vmatpush1.msra.mxu0 %v114
  %239 = vmatprep.subr.mxu0 %v119
  %240 = vmatpush1.msra.mxu0 %v118
  %241 = vmatprep.subr.mxu0 %v123
  %242 = vmatpush1.msra.mxu0 %v122
  %243 = vmatprep.subr.mxu0 %v127
  %244 = vmatpush1.msra.mxu0 %v126
  %245 = vmatprep.subr.mxu0 %v131
  %246 = vmatpush1.msra.mxu0 %v130
  %247 = vmatprep.subr.mxu0 %v135
  %248 = vmatpush1.msra.mxu0 %v134
  %249 = vmatprep.subr.mxu0 %v139
  %250 = vmatpush1.msra.mxu0 %v138
  %251 = vmatprep.subr.mxu0 %v143
  %252 = vmatpush1.msra.mxu0 %v142
  %253 = vmatprep.mubr.f32.mxu0 %v179
  %254 = vmatmul.mubr.f32.gmra.mrb[0].mxu0 %v175
  %v255 = vpop.f32.mrb[0].mxu0
  %v256 = vadd.f32 %v170, %v255
  %v257 = vpop.f32.mrb[0].mxu0
  %v258 = vadd.f32 %v170, %v257
  %259 = vdwg.mxu0
  %260 = vmatprep.subr.mxu0 %v147
  %261 = vmatpush1.msra.mxu0 %v146
  %262 = vmatprep.subr.mxu0 %v151
  %263 = vmatpush1.msra.mxu0 %v150
  %264 = vmatprep.subr.mxu0 %v155
  %265 = vmatpush1.msra.mxu0 %v154
  %266 = vmatprep.subr.mxu0 %v159
  %267 = vmatpush1.msra.mxu0 %v158
  %268 = vmatprep.subr.mxu0 0.0
  %269 = vmatpush1.msra.mxu0 0.0
  %270 = vmatprep.subr.mxu0 0.0
  %271 = vmatpush1.msra.mxu0 0.0
  %272 = vmatprep.subr.mxu0 0.0
  %273 = vmatpush1.msra.mxu0 0.0
  %274 = vmatprep.subr.mxu0 0.0
  %275 = vmatpush1.msra.mxu0 0.0
  %276 = vmatprep.subr.mxu0 0.0
  %277 = vmatpush1.msra.mxu0 0.0
  %278 = vmatprep.subr.mxu0 0.0
  %279 = vmatpush1.msra.mxu0 0.0
  %280 = vmatprep.subr.mxu0 0.0
  %281 = vmatpush1.msra.mxu0 0.0
  %282 = vmatprep.subr.mxu0 0.0
  %283 = vmatpush1.msra.mxu0 0.0
  %284 = vmatprep.subr.mxu0 0.0
  %285 = vmatpush1.msra.mxu0 0.0
  %286 = vmatprep.subr.mxu0 0.0
  %287 = vmatpush1.msra.mxu0 0.0
  %288 = vmatprep.subr.mxu0 0.0
  %289 = vmatpush1.msra.mxu0 0.0
  %290 = vmatprep.subr.mxu0 0.0
  %291 = vmatpush1.msra.mxu0 0.0
  %292 = vmatprep.subr.mxu0 0.0
  %293 = vmatpush1.msra.mxu0 0.0
  %294 = vmatprep.subr.mxu0 0.0
  %295 = vmatpush1.msra.mxu0 0.0
  %296 = vmatprep.subr.mxu0 0.0
  %297 = vmatpush1.msra.mxu0 0.0
  %298 = vmatprep.subr.mxu0 0.0
  %299 = vmatpush1.msra.mxu0 0.0
  %300 = vmatprep.subr.mxu0 0.0
  %301 = vmatpush1.msra.mxu0 0.0
  %302 = vmatprep.subr.mxu0 0.0
  %303 = vmatpush1.msra.mxu0 0.0
  %304 = vmatprep.subr.mxu0 0.0
  %305 = vmatpush1.msra.mxu0 0.0
  %306 = vmatprep.subr.mxu0 0.0
  %307 = vmatpush1.msra.mxu0 0.0
  %308 = vmatprep.subr.mxu0 0.0
  %309 = vmatpush1.msra.mxu0 0.0
  %310 = vmatprep.subr.mxu0 0.0
  %311 = vmatpush1.msra.mxu0 0.0
  %312 = vmatprep.subr.mxu0 0.0
  %313 = vmatpush1.msra.mxu0 0.0
  %314 = vmatprep.subr.mxu0 0.0
  %315 = vmatpush1.msra.mxu0 0.0
  %316 = vmatprep.subr.mxu0 0.0
  %317 = vmatpush1.msra.mxu0 0.0
  %318 = vmatprep.subr.mxu0 0.0
  %319 = vmatpush1.msra.mxu0 0.0
  %320 = vmatprep.subr.mxu0 0.0
  %321 = vmatpush1.msra.mxu0 0.0
  %322 = vmatprep.subr.mxu0 0.0
  %323 = vmatpush1.msra.mxu0 0.0
  %324 = vmatprep.mubr.f32.mxu0 0.0
  %325 = vmatmul.mubr.f32.gmra.mrb[0].mxu0 %v187
  %v326 = vpop.f32.mrb[0].mxu0
  %v327 = vadd.f32 %v256, %v326
  %v328 = vpop.f32.mrb[0].mxu0
  %v329 = vadd.f32 %v258, %v328
  %330 = vdwg.mxu0
  %331 = vmatprep.subr.mxu0 %v21
  %332 = vmatpush1.msra.mxu0 %v20
  %333 = vmatprep.subr.mxu0 %v25
  %334 = vmatpush1.msra.mxu0 %v24
  %335 = vmatprep.subr.mxu0 %v29
  %336 = vmatpush1.msra.mxu0 %v28
  %337 = vmatprep.subr.mxu0 %v33
  %338 = vmatpush1.msra.mxu0 %v32
  %339 = vmatprep.subr.mxu0 %v37
  %340 = vmatpush1.msra.mxu0 %v36
  %341 = vmatprep.subr.mxu0 %v41
  %342 = vmatpush1.msra.mxu0 %v40
  %343 = vmatprep.subr.mxu0 %v45
  %344 = vmatpush1.msra.mxu0 %v44
  %345 = vmatprep.subr.mxu0 %v49
  %346 = vmatpush1.msra.mxu0 %v48
  %347 = vmatprep.subr.mxu0 %v53
  %348 = vmatpush1.msra.mxu0 %v52
  %349 = vmatprep.subr.mxu0 %v57
  %350 = vmatpush1.msra.mxu0 %v56
  %351 = vmatprep.subr.mxu0 %v61
  %352 = vmatpush1.msra.mxu0 %v60
  %353 = vmatprep.subr.mxu0 %v65
  %354 = vmatpush1.msra.mxu0 %v64
  %355 = vmatprep.subr.mxu0 %v69
  %356 = vmatpush1.msra.mxu0 %v68
  %357 = vmatprep.subr.mxu0 %v73
  %358 = vmatpush1.msra.mxu0 %v72
  %359 = vmatprep.subr.mxu0 %v77
  %360 = vmatpush1.msra.mxu0 %v76
  %361 = vmatprep.subr.mxu0 %v81
  %362 = vmatpush1.msra.mxu0 %v80
  %363 = vmatprep.subr.mxu0 %v85
  %364 = vmatpush1.msra.mxu0 %v84
  %365 = vmatprep.subr.mxu0 %v89
  %366 = vmatpush1.msra.mxu0 %v88
  %367 = vmatprep.subr.mxu0 %v93
  %368 = vmatpush1.msra.mxu0 %v92
  %369 = vmatprep.subr.mxu0 %v97
  %370 = vmatpush1.msra.mxu0 %v96
  %371 = vmatprep.subr.mxu0 %v101
  %372 = vmatpush1.msra.mxu0 %v100
  %373 = vmatprep.subr.mxu0 %v105
  %374 = vmatpush1.msra.mxu0 %v104
  %375 = vmatprep.subr.mxu0 %v109
  %376 = vmatpush1.msra.mxu0 %v108
  %377 = vmatprep.subr.mxu0 %v113
  %378 = vmatpush1.msra.mxu0 %v112
  %379 = vmatprep.subr.mxu0 %v117
  %380 = vmatpush1.msra.mxu0 %v116
  %381 = vmatprep.subr.mxu0 %v121
  %382 = vmatpush1.msra.mxu0 %v120
  %383 = vmatprep.subr.mxu0 %v125
  %384 = vmatpush1.msra.mxu0 %v124
  %385 = vmatprep.subr.mxu0 %v129
  %386 = vmatpush1.msra.mxu0 %v128
  %387 = vmatprep.subr.mxu0 %v133
  %388 = vmatpush1.msra.mxu0 %v132
  %389 = vmatprep.subr.mxu0 %v137
  %390 = vmatpush1.msra.mxu0 %v136
  %391 = vmatprep.subr.mxu0 %v141
  %392 = vmatpush1.msra.mxu0 %v140
  %393 = vmatprep.subr.mxu0 %v145
  %394 = vmatpush1.msra.mxu0 %v144
  %395 = vmatprep.mubr.f32.mxu0 %v179
  %396 = vmatmul.mubr.f32.gmra.mrb[0].mxu0 %v175
  %v397 = vpop.f32.mrb[0].mxu0
  %v398 = vadd.f32 %v170, %v397
  %v399 = vpop.f32.mrb[0].mxu0
  %v400 = vadd.f32 %v170, %v399
  %401 = vdwg.mxu0
  %402 = vmatprep.subr.mxu0 %v149
  %403 = vmatpush1.msra.mxu0 %v148
  %404 = vmatprep.subr.mxu0 %v153
  %405 = vmatpush1.msra.mxu0 %v152
  %406 = vmatprep.subr.mxu0 %v157
  %407 = vmatpush1.msra.mxu0 %v156
  %408 = vmatprep.subr.mxu0 %v161
  %409 = vmatpush1.msra.mxu0 %v160
  %410 = vmatprep.subr.mxu0 0.0
  %411 = vmatpush1.msra.mxu0 0.0
  %412 = vmatprep.subr.mxu0 0.0
  %413 = vmatpush1.msra.mxu0 0.0
  %414 = vmatprep.subr.mxu0 0.0
  %415 = vmatpush1.msra.mxu0 0.0
  %416 = vmatprep.subr.mxu0 0.0
  %417 = vmatpush1.msra.mxu0 0.0
  %418 = vmatprep.subr.mxu0 0.0
  %419 = vmatpush1.msra.mxu0 0.0
  %420 = vmatprep.subr.mxu0 0.0
  %421 = vmatpush1.msra.mxu0 0.0
  %422 = vmatprep.subr.mxu0 0.0
  %423 = vmatpush1.msra.mxu0 0.0
  %424 = vmatprep.subr.mxu0 0.0
  %425 = vmatpush1.msra.mxu0 0.0
  %426 = vmatprep.subr.mxu0 0.0
  %427 = vmatpush1.msra.mxu0 0.0
  %428 = vmatprep.subr.mxu0 0.0
  %429 = vmatpush1.msra.mxu0 0.0
  %430 = vmatprep.subr.mxu0 0.0
  %431 = vmatpush1.msra.mxu0 0.0
  %432 = vmatprep.subr.mxu0 0.0
  %433 = vmatpush1.msra.mxu0 0.0
  %434 = vmatprep.subr.mxu0 0.0
  %435 = vmatpush1.msra.mxu0 0.0
  %436 = vmatprep.subr.mxu0 0.0
  %437 = vmatpush1.msra.mxu0 0.0
  %438 = vmatprep.subr.mxu0 0.0
  %439 = vmatpush1.msra.mxu0 0.0
  %440 = vmatprep.subr.mxu0 0.0
  %441 = vmatpush1.msra.mxu0 0.0
  %442 = vmatprep.subr.mxu0 0.0
  %443 = vmatpush1.msra.mxu0 0.0
  %444 = vmatprep.subr.mxu0 0.0
  %445 = vmatpush1.msra.mxu0 0.0
  %446 = vmatprep.subr.mxu0 0.0
  %447 = vmatpush1.msra.mxu0 0.0
  %448 = vmatprep.subr.mxu0 0.0
  %449 = vmatpush1.msra.mxu0 0.0
  %450 = vmatprep.subr.mxu0 0.0
  %451 = vmatpush1.msra.mxu0 0.0
  %452 = vmatprep.subr.mxu0 0.0
  %453 = vmatpush1.msra.mxu0 0.0
  %454 = vmatprep.subr.mxu0 0.0
  %455 = vmatpush1.msra.mxu0 0.0
  %456 = vmatprep.subr.mxu0 0.0
  %457 = vmatpush1.msra.mxu0 0.0
  %458 = vmatprep.subr.mxu0 0.0
  %459 = vmatpush1.msra.mxu0 0.0
  %460 = vmatprep.subr.mxu0 0.0
  %461 = vmatpush1.msra.mxu0 0.0
  %462 = vmatprep.subr.mxu0 0.0
  %463 = vmatpush1.msra.mxu0 0.0
  %464 = vmatprep.subr.mxu0 0.0
  %465 = vmatpush1.msra.mxu0 0.0
  %466 = vmatprep.mubr.f32.mxu0 0.0
  %467 = vmatmul.mubr.f32.gmra.mrb[0].mxu0 %v187
  %v468 = vpop.f32.mrb[0].mxu0
  %v469 = vadd.f32 %v398, %v468
  %v470 = vpop.f32.mrb[0].mxu0
  %v471 = vadd.f32 %v400, %v470
  %472 = vdwg.mxu0
  %v473 = vand.u32 2147483647, %v327
  %v474 = vand.u32 2147483647, %v329
  %v475 = vand.u32 2147483647, %v469
  %v476 = vand.u32 2147483647, %v471
  %v477 = vsub.f32 0.0, %v473
  %v478 = vsub.f32 0.0, %v474
  %v479 = vsub.f32 0.0, %v475
  %v480 = vsub.f32 0.0, %v476
  %v481 = vmul.f32 %v477, 1.442695
  %v482 = vpow.pop %v481
  %v483 = vmul.f32 %v478, 1.442695
  %v484 = vpow.pop %v483
  %v485 = vmul.f32 %v479, 1.442695
  %v486 = vpow.pop %v485
  %v487 = vmul.f32 %v480, 1.442695
  %v488 = vpow.pop %v487
  %v489 = vadd.f32 %v482, 1.0
  %v490 = vadd.f32 %v484, 1.0
  %v491 = vadd.f32 %v486, 1.0
  %v492 = vadd.f32 %v488, 1.0
  %v493 = vrcp.pop %v489
  %v494 = vrcp.pop %v490
  %v495 = vrcp.pop %v491
  %v496 = vrcp.pop %v492
  %vm497 = vcmp.ge.f32.partialorder %v327, 0.0
  %vm498 = vcmp.ge.f32.partialorder %v329, 0.0
  %vm499 = vcmp.ge.f32.partialorder %v469, 0.0
  %vm500 = vcmp.ge.f32.partialorder %v471, 0.0
  %v501 = vmul.f32 %v482, %v493
  %v502 = vmul.f32 %v484, %v494
  %v503 = vmul.f32 %v486, %v495
  %v504 = vmul.f32 %v488, %v496
  %v505 = vsel %vm497, %v493, %v501
  %v506 = vsel %vm498, %v494, %v502
  %v507 = vsel %vm499, %v495, %v503
  %v508 = vsel %vm500, %v496, %v504
  %v513 = vcombine.low %v505, %v506
  %v514 = vcombine.low %v507, %v508
  %v516 = vunpack.c.l.s4 1966171168
  %v517 = vunpack.c.0.s8 %v516
  %v518 = vlaneseq
  %v519 = vshrl.u32 %v518, 7
  %v520 = vsub.s32 %v517, %v519
  %v521 = vrot.slane %v513, %v520
  %v523 = vunpack.c.l.s4 1966171168
  %v524 = vunpack.c.0.s8 %v523
  %v525 = vlaneseq
  %v526 = vshrl.u32 %v525, 7
  %v527 = vsub.s32 %v524, %v526
  %v528 = vrot.slane %v514, %v527
  %v529 = vcombine.low %v521, %v528
  %v531 = vunpack.c.l.s4 1966171168
  %v532 = vunpack.c.0.s8 %v531
  %v533 = vlaneseq
  %v534 = vshrl.u32 %v533, 7
  %v535 = vsub.s32 %v532, %v534
  %v536 = vrot.slane %v529, %v535
  %v538 = vlaneseq
  %vm539 = vcmp.ge.s32.totalorder %v538, 0
  %vm540 = vcmp.lt.s32.totalorder %v538, 392
  %vm541 = vmand %vm539, %vm540
  %542 = vst.msk [vmem:[%s3] sm:$0xf] %vm541, %v536
  %s543 = scalar_lea.vmem %s1, 3
  %v544 = vld [vmem:[%s543] sm:$0x7]
  %s545 = scalar_lea.vmem %s0, 1152
  %v546 = vld [vmem:[%s545] sm:$0xff]
  %v547 = vld [vmem:[%s545 + $0x8] sm:$0xff]
  %v548 = vld [vmem:[%s545 + $0x10] sm:$0xff]
  %v549 = vld [vmem:[%s545 + $0x18] sm:$0xff]
  %v550 = vld [vmem:[%s545 + $0x20] sm:$0xff]
  %v551 = vld [vmem:[%s545 + $0x28] sm:$0xff]
  %v552 = vld [vmem:[%s545 + $0x30] sm:$0xff]
  %v553 = vld [vmem:[%s545 + $0x38] sm:$0xff]
  %v554 = vld [vmem:[%s545 + $0x40] sm:$0xff]
  %v555 = vld [vmem:[%s545 + $0x48] sm:$0xff]
  %v556 = vld [vmem:[%s545 + $0x50] sm:$0xff]
  %v557 = vld [vmem:[%s545 + $0x58] sm:$0xff]
  %v558 = vld [vmem:[%s545 + $0x60] sm:$0xff]
  %v559 = vld [vmem:[%s545 + $0x68] sm:$0xff]
  %v560 = vld [vmem:[%s545 + $0x70] sm:$0xff]
  %v561 = vld [vmem:[%s545 + $0x78] sm:$0xff]
  %v562 = vld [vmem:[%s545 + $0x80] sm:$0xff]
  %v563 = vld [vmem:[%s545 + $0x88] sm:$0xff]
  %v564 = vld [vmem:[%s545 + $0x90] sm:$0xff]
  %v565 = vld [vmem:[%s545 + $0x98] sm:$0xff]
  %v566 = vld [vmem:[%s545 + $0xa0] sm:$0xff]
  %v567 = vld [vmem:[%s545 + $0xa8] sm:$0xff]
  %v568 = vld [vmem:[%s545 + $0xb0] sm:$0xff]
  %v569 = vld [vmem:[%s545 + $0xb8] sm:$0xff]
  %v570 = vld [vmem:[%s545 + $0xc0] sm:$0xff]
  %v571 = vld [vmem:[%s545 + $0xc8] sm:$0xff]
  %v572 = vld [vmem:[%s545 + $0xd0] sm:$0xff]
  %v573 = vld [vmem:[%s545 + $0xd8] sm:$0xff]
  %v574 = vld [vmem:[%s545 + $0xe0] sm:$0xff]
  %v575 = vld [vmem:[%s545 + $0xe8] sm:$0xff]
  %v576 = vld [vmem:[%s545 + $0xf0] sm:$0xff]
  %v577 = vld [vmem:[%s545 + $0xf8] sm:$0xff]
  %v578 = vld [vmem:[%s545 + $0x100] sm:$0xff]
  %v579 = vld [vmem:[%s545 + $0x108] sm:$0xff]
  %v580 = vld [vmem:[%s545 + $0x110] sm:$0xff]
  %v581 = vld [vmem:[%s545 + $0x118] sm:$0xff]
  %v582 = vld [vmem:[%s545 + $0x120] sm:$0xff]
  %v583 = vld [vmem:[%s545 + $0x128] sm:$0xff]
  %v584 = vld [vmem:[%s545 + $0x130] sm:$0xff]
  %v585 = vld [vmem:[%s545 + $0x138] sm:$0xff]
  %v586 = vld [vmem:[%s545 + $0x140] sm:$0xff]
  %v587 = vld [vmem:[%s545 + $0x148] sm:$0xff]
  %v588 = vld [vmem:[%s545 + $0x150] sm:$0xff]
  %v589 = vld [vmem:[%s545 + $0x158] sm:$0xff]
  %v590 = vld [vmem:[%s545 + $0x160] sm:$0xff]
  %v591 = vld [vmem:[%s545 + $0x168] sm:$0xff]
  %v592 = vld [vmem:[%s545 + $0x170] sm:$0xff]
  %v593 = vld [vmem:[%s545 + $0x178] sm:$0xff]
  %v594 = vld [vmem:[%s545 + $0x180] sm:$0xff]
  %v595 = vld [vmem:[%s545 + $0x188] sm:$0xff]
  %v596 = vld [vmem:[%s545 + $0x190] sm:$0xff]
  %v597 = vld [vmem:[%s545 + $0x198] sm:$0xff]
  %v598 = vld [vmem:[%s545 + $0x1a0] sm:$0xff]
  %v599 = vld [vmem:[%s545 + $0x1a8] sm:$0xff]
  %v600 = vld [vmem:[%s545 + $0x1b0] sm:$0xff]
  %v601 = vld [vmem:[%s545 + $0x1b8] sm:$0xff]
  %v602 = vld [vmem:[%s545 + $0x1c0] sm:$0xff]
  %v603 = vld [vmem:[%s545 + $0x1c8] sm:$0xff]
  %v604 = vld [vmem:[%s545 + $0x1d0] sm:$0xff]
  %v605 = vld [vmem:[%s545 + $0x1d8] sm:$0xff]
  %v606 = vld [vmem:[%s545 + $0x1e0] sm:$0xff]
  %v607 = vld [vmem:[%s545 + $0x1e8] sm:$0xff]
  %v608 = vld [vmem:[%s545 + $0x1f0] sm:$0xff]
  %v609 = vld [vmem:[%s545 + $0x1f8] sm:$0xff]
  %v610 = vld [vmem:[%s545 + $0x200] sm:$0xff]
  %v611 = vld [vmem:[%s545 + $0x208] sm:$0xff]
  %v612 = vld [vmem:[%s545 + $0x210] sm:$0xff]
  %v613 = vld [vmem:[%s545 + $0x218] sm:$0xff]
  %v614 = vld [vmem:[%s545 + $0x220] sm:$0xff]
  %v615 = vld [vmem:[%s545 + $0x228] sm:$0xff]
  %v616 = vld [vmem:[%s545 + $0x230] sm:$0xff]
  %v617 = vld [vmem:[%s545 + $0x238] sm:$0xff]
  %v618 = vld [vmem:[%s545 + $0x240] sm:$0xff]
  %v619 = vld [vmem:[%s545 + $0x248] sm:$0xff]
  %v620 = vld [vmem:[%s545 + $0x250] sm:$0xff]
  %v621 = vld [vmem:[%s545 + $0x258] sm:$0xff]
  %v622 = vld [vmem:[%s545 + $0x260] sm:$0xff]
  %v623 = vld [vmem:[%s545 + $0x268] sm:$0xff]
  %v624 = vld [vmem:[%s545 + $0x270] sm:$0xff]
  %v625 = vld [vmem:[%s545 + $0x278] sm:$0xff]
  %v626 = vld [vmem:[%s545 + $0x280] sm:$0xff]
  %v627 = vld [vmem:[%s545 + $0x288] sm:$0xff]
  %v628 = vld [vmem:[%s545 + $0x290] sm:$0xff]
  %v629 = vld [vmem:[%s545 + $0x298] sm:$0xff]
  %v630 = vld [vmem:[%s545 + $0x2a0] sm:$0xff]
  %v631 = vld [vmem:[%s545 + $0x2a8] sm:$0xff]
  %v632 = vld [vmem:[%s545 + $0x2b0] sm:$0xff]
  %v633 = vld [vmem:[%s545 + $0x2b8] sm:$0xff]
  %v634 = vld [vmem:[%s545 + $0x2c0] sm:$0xff]
  %v635 = vld [vmem:[%s545 + $0x2c8] sm:$0xff]
  %v636 = vld [vmem:[%s545 + $0x2d0] sm:$0xff]
  %v637 = vld [vmem:[%s545 + $0x2d8] sm:$0xff]
  %v638 = vld [vmem:[%s545 + $0x2e0] sm:$0xff]
  %v639 = vld [vmem:[%s545 + $0x2e8] sm:$0xff]
  %v640 = vld [vmem:[%s545 + $0x2f0] sm:$0xff]
  %v641 = vld [vmem:[%s545 + $0x2f8] sm:$0xff]
  %v642 = vld [vmem:[%s545 + $0x300] sm:$0xff]
  %v643 = vld [vmem:[%s545 + $0x308] sm:$0xff]
  %v644 = vld [vmem:[%s545 + $0x310] sm:$0xff]
  %v645 = vld [vmem:[%s545 + $0x318] sm:$0xff]
  %v646 = vld [vmem:[%s545 + $0x320] sm:$0xff]
  %v647 = vld [vmem:[%s545 + $0x328] sm:$0xff]
  %v648 = vld [vmem:[%s545 + $0x330] sm:$0xff]
  %v649 = vld [vmem:[%s545 + $0x338] sm:$0xff]
  %v650 = vld [vmem:[%s545 + $0x340] sm:$0xff]
  %v651 = vld [vmem:[%s545 + $0x348] sm:$0xff]
  %v652 = vld [vmem:[%s545 + $0x350] sm:$0xff]
  %v653 = vld [vmem:[%s545 + $0x358] sm:$0xff]
  %v654 = vld [vmem:[%s545 + $0x360] sm:$0xff]
  %v655 = vld [vmem:[%s545 + $0x368] sm:$0xff]
  %v656 = vld [vmem:[%s545 + $0x370] sm:$0xff]
  %v657 = vld [vmem:[%s545 + $0x378] sm:$0xff]
  %v658 = vld [vmem:[%s545 + $0x380] sm:$0xff]
  %v659 = vld [vmem:[%s545 + $0x388] sm:$0xff]
  %v660 = vld [vmem:[%s545 + $0x390] sm:$0xff]
  %v661 = vld [vmem:[%s545 + $0x398] sm:$0xff]
  %v662 = vld [vmem:[%s545 + $0x3a0] sm:$0xff]
  %v663 = vld [vmem:[%s545 + $0x3a8] sm:$0xff]
  %v664 = vld [vmem:[%s545 + $0x3b0] sm:$0xff]
  %v665 = vld [vmem:[%s545 + $0x3b8] sm:$0xff]
  %v666 = vld [vmem:[%s545 + $0x3c0] sm:$0xff]
  %v667 = vld [vmem:[%s545 + $0x3c8] sm:$0xff]
  %v668 = vld [vmem:[%s545 + $0x3d0] sm:$0xff]
  %v669 = vld [vmem:[%s545 + $0x3d8] sm:$0xff]
  %v670 = vld [vmem:[%s545 + $0x3e0] sm:$0xff]
  %v671 = vld [vmem:[%s545 + $0x3e8] sm:$0xff]
  %v672 = vld [vmem:[%s545 + $0x3f0] sm:$0xff]
  %v673 = vld [vmem:[%s545 + $0x3f8] sm:$0xff]
  %v674 = vld [vmem:[%s545 + $0x400] sm:$0xff]
  %v675 = vld [vmem:[%s545 + $0x408] sm:$0xff]
  %v676 = vld [vmem:[%s545 + $0x410] sm:$0xff]
  %v677 = vld [vmem:[%s545 + $0x418] sm:$0xff]
  %v678 = vld [vmem:[%s545 + $0x420] sm:$0xff]
  %v679 = vld [vmem:[%s545 + $0x428] sm:$0xff]
  %v680 = vld [vmem:[%s545 + $0x430] sm:$0xff]
  %v681 = vld [vmem:[%s545 + $0x438] sm:$0xff]
  %v682 = vld [vmem:[%s545 + $0x440] sm:$0xff]
  %v683 = vld [vmem:[%s545 + $0x448] sm:$0xff]
  %v684 = vld [vmem:[%s545 + $0x450] sm:$0xff]
  %v685 = vld [vmem:[%s545 + $0x458] sm:$0xff]
  %v686 = vld [vmem:[%s545 + $0x460] sm:$0xff]
  %v687 = vld [vmem:[%s545 + $0x468] sm:$0xff]
  %v688 = vld [vmem:[%s545 + $0x470] sm:$0xff]
  %v689 = vld [vmem:[%s545 + $0x478] sm:$0xff]
  %v691 = vlaneseq
  %v692 = vshrl.u32 %v691, 7
  %v693 = vsub.s32 0, %v692
  %v694 = vrot.slane %v544, %v693
  %v695 = vlaneseq
  %v696 = vshrl.u32 %v695, 7
  %v697 = vsub.s32 1, %v696
  %v698 = vrot.slane %v544, %v697
  %v699 = vlaneseq
  %v700 = vshrl.u32 %v699, 7
  %v701 = vsub.s32 2, %v700
  %v702 = vrot.slane %v544, %v701
  %v705 = vsel %vm186, %v702, 0
  %707 = vmatprep.subr.mxu0 %v547
  %708 = vmatpush1.msra.mxu0 %v546
  %709 = vmatprep.subr.mxu0 %v551
  %710 = vmatpush1.msra.mxu0 %v550
  %711 = vmatprep.subr.mxu0 %v555
  %712 = vmatpush1.msra.mxu0 %v554
  %713 = vmatprep.subr.mxu0 %v559
  %714 = vmatpush1.msra.mxu0 %v558
  %715 = vmatprep.subr.mxu0 %v563
  %716 = vmatpush1.msra.mxu0 %v562
  %717 = vmatprep.subr.mxu0 %v567
  %718 = vmatpush1.msra.mxu0 %v566
  %719 = vmatprep.subr.mxu0 %v571
  %720 = vmatpush1.msra.mxu0 %v570
  %721 = vmatprep.subr.mxu0 %v575
  %722 = vmatpush1.msra.mxu0 %v574
  %723 = vmatprep.subr.mxu0 %v579
  %724 = vmatpush1.msra.mxu0 %v578
  %725 = vmatprep.subr.mxu0 %v583
  %726 = vmatpush1.msra.mxu0 %v582
  %727 = vmatprep.subr.mxu0 %v587
  %728 = vmatpush1.msra.mxu0 %v586
  %729 = vmatprep.subr.mxu0 %v591
  %730 = vmatpush1.msra.mxu0 %v590
  %731 = vmatprep.subr.mxu0 %v595
  %732 = vmatpush1.msra.mxu0 %v594
  %733 = vmatprep.subr.mxu0 %v599
  %734 = vmatpush1.msra.mxu0 %v598
  %735 = vmatprep.subr.mxu0 %v603
  %736 = vmatpush1.msra.mxu0 %v602
  %737 = vmatprep.subr.mxu0 %v607
  %738 = vmatpush1.msra.mxu0 %v606
  %739 = vmatprep.subr.mxu0 %v611
  %740 = vmatpush1.msra.mxu0 %v610
  %741 = vmatprep.subr.mxu0 %v615
  %742 = vmatpush1.msra.mxu0 %v614
  %743 = vmatprep.subr.mxu0 %v619
  %744 = vmatpush1.msra.mxu0 %v618
  %745 = vmatprep.subr.mxu0 %v623
  %746 = vmatpush1.msra.mxu0 %v622
  %747 = vmatprep.subr.mxu0 %v627
  %748 = vmatpush1.msra.mxu0 %v626
  %749 = vmatprep.subr.mxu0 %v631
  %750 = vmatpush1.msra.mxu0 %v630
  %751 = vmatprep.subr.mxu0 %v635
  %752 = vmatpush1.msra.mxu0 %v634
  %753 = vmatprep.subr.mxu0 %v639
  %754 = vmatpush1.msra.mxu0 %v638
  %755 = vmatprep.subr.mxu0 %v643
  %756 = vmatpush1.msra.mxu0 %v642
  %757 = vmatprep.subr.mxu0 %v647
  %758 = vmatpush1.msra.mxu0 %v646
  %759 = vmatprep.subr.mxu0 %v651
  %760 = vmatpush1.msra.mxu0 %v650
  %761 = vmatprep.subr.mxu0 %v655
  %762 = vmatpush1.msra.mxu0 %v654
  %763 = vmatprep.subr.mxu0 %v659
  %764 = vmatpush1.msra.mxu0 %v658
  %765 = vmatprep.subr.mxu0 %v663
  %766 = vmatpush1.msra.mxu0 %v662
  %767 = vmatprep.subr.mxu0 %v667
  %768 = vmatpush1.msra.mxu0 %v666
  %769 = vmatprep.subr.mxu0 %v671
  %770 = vmatpush1.msra.mxu0 %v670
  %771 = vmatprep.mubr.f32.mxu0 %v698
  %772 = vmatmul.mubr.f32.gmra.mrb[0].mxu0 %v694
  %v773 = vpop.f32.mrb[0].mxu0
  %v774 = vadd.f32 %v170, %v773
  %v775 = vpop.f32.mrb[0].mxu0
  %v776 = vadd.f32 %v170, %v775
  %777 = vdwg.mxu0
  %778 = vmatprep.subr.mxu0 %v675
  %779 = vmatpush1.msra.mxu0 %v674
  %780 = vmatprep.subr.mxu0 %v679
  %781 = vmatpush1.msra.mxu0 %v678
  %782 = vmatprep.subr.mxu0 %v683
  %783 = vmatpush1.msra.mxu0 %v682
  %784 = vmatprep.subr.mxu0 %v687
  %785 = vmatpush1.msra.mxu0 %v686
  %786 = vmatprep.subr.mxu0 0.0
  %787 = vmatpush1.msra.mxu0 0.0
  %788 = vmatprep.subr.mxu0 0.0
  %789 = vmatpush1.msra.mxu0 0.0
  %790 = vmatprep.subr.mxu0 0.0
  %791 = vmatpush1.msra.mxu0 0.0
  %792 = vmatprep.subr.mxu0 0.0
  %793 = vmatpush1.msra.mxu0 0.0
  %794 = vmatprep.subr.mxu0 0.0
  %795 = vmatpush1.msra.mxu0 0.0
  %796 = vmatprep.subr.mxu0 0.0
  %797 = vmatpush1.msra.mxu0 0.0
  %798 = vmatprep.subr.mxu0 0.0
  %799 = vmatpush1.msra.mxu0 0.0
  %800 = vmatprep.subr.mxu0 0.0
  %801 = vmatpush1.msra.mxu0 0.0
  %802 = vmatprep.subr.mxu0 0.0
  %803 = vmatpush1.msra.mxu0 0.0
  %804 = vmatprep.subr.mxu0 0.0
  %805 = vmatpush1.msra.mxu0 0.0
  %806 = vmatprep.subr.mxu0 0.0
  %807 = vmatpush1.msra.mxu0 0.0
  %808 = vmatprep.subr.mxu0 0.0
  %809 = vmatpush1.msra.mxu0 0.0
  %810 = vmatprep.subr.mxu0 0.0
  %811 = vmatpush1.msra.mxu0 0.0
  %812 = vmatprep.subr.mxu0 0.0
  %813 = vmatpush1.msra.mxu0 0.0
  %814 = vmatprep.subr.mxu0 0.0
  %815 = vmatpush1.msra.mxu0 0.0
  %816 = vmatprep.subr.mxu0 0.0
  %817 = vmatpush1.msra.mxu0 0.0
  %818 = vmatprep.subr.mxu0 0.0
  %819 = vmatpush1.msra.mxu0 0.0
  %820 = vmatprep.subr.mxu0 0.0
  %821 = vmatpush1.msra.mxu0 0.0
  %822 = vmatprep.subr.mxu0 0.0
  %823 = vmatpush1.msra.mxu0 0.0
  %824 = vmatprep.subr.mxu0 0.0
  %825 = vmatpush1.msra.mxu0 0.0
  %826 = vmatprep.subr.mxu0 0.0
  %827 = vmatpush1.msra.mxu0 0.0
  %828 = vmatprep.subr.mxu0 0.0
  %829 = vmatpush1.msra.mxu0 0.0
  %830 = vmatprep.subr.mxu0 0.0
  %831 = vmatpush1.msra.mxu0 0.0
  %832 = vmatprep.subr.mxu0 0.0
  %833 = vmatpush1.msra.mxu0 0.0
  %834 = vmatprep.subr.mxu0 0.0
  %835 = vmatpush1.msra.mxu0 0.0
  %836 = vmatprep.subr.mxu0 0.0
  %837 = vmatpush1.msra.mxu0 0.0
  %838 = vmatprep.subr.mxu0 0.0
  %839 = vmatpush1.msra.mxu0 0.0
  %840 = vmatprep.subr.mxu0 0.0
  %841 = vmatpush1.msra.mxu0 0.0
  %842 = vmatprep.mubr.f32.mxu0 0.0
  %843 = vmatmul.mubr.f32.gmra.mrb[0].mxu0 %v705
  %v844 = vpop.f32.mrb[0].mxu0
  %v845 = vadd.f32 %v774, %v844
  %v846 = vpop.f32.mrb[0].mxu0
  %v847 = vadd.f32 %v776, %v846
  %848 = vdwg.mxu0
  %849 = vmatprep.subr.mxu0 %v549
  %850 = vmatpush1.msra.mxu0 %v548
  %851 = vmatprep.subr.mxu0 %v553
  %852 = vmatpush1.msra.mxu0 %v552
  %853 = vmatprep.subr.mxu0 %v557
  %854 = vmatpush1.msra.mxu0 %v556
  %855 = vmatprep.subr.mxu0 %v561
  %856 = vmatpush1.msra.mxu0 %v560
  %857 = vmatprep.subr.mxu0 %v565
  %858 = vmatpush1.msra.mxu0 %v564
  %859 = vmatprep.subr.mxu0 %v569
  %860 = vmatpush1.msra.mxu0 %v568
  %861 = vmatprep.subr.mxu0 %v573
  %862 = vmatpush1.msra.mxu0 %v572
  %863 = vmatprep.subr.mxu0 %v577
  %864 = vmatpush1.msra.mxu0 %v576
  %865 = vmatprep.subr.mxu0 %v581
  %866 = vmatpush1.msra.mxu0 %v580
  %867 = vmatprep.subr.mxu0 %v585
  %868 = vmatpush1.msra.mxu0 %v584
  %869 = vmatprep.subr.mxu0 %v589
  %870 = vmatpush1.msra.mxu0 %v588
  %871 = vmatprep.subr.mxu0 %v593
  %872 = vmatpush1.msra.mxu0 %v592
  %873 = vmatprep.subr.mxu0 %v597
  %874 = vmatpush1.msra.mxu0 %v596
  %875 = vmatprep.subr.mxu0 %v601
  %876 = vmatpush1.msra.mxu0 %v600
  %877 = vmatprep.subr.mxu0 %v605
  %878 = vmatpush1.msra.mxu0 %v604
  %879 = vmatprep.subr.mxu0 %v609
  %880 = vmatpush1.msra.mxu0 %v608
  %881 = vmatprep.subr.mxu0 %v613
  %882 = vmatpush1.msra.mxu0 %v612
  %883 = vmatprep.subr.mxu0 %v617
  %884 = vmatpush1.msra.mxu0 %v616
  %885 = vmatprep.subr.mxu0 %v621
  %886 = vmatpush1.msra.mxu0 %v620
  %887 = vmatprep.subr.mxu0 %v625
  %888 = vmatpush1.msra.mxu0 %v624
  %889 = vmatprep.subr.mxu0 %v629
  %890 = vmatpush1.msra.mxu0 %v628
  %891 = vmatprep.subr.mxu0 %v633
  %892 = vmatpush1.msra.mxu0 %v632
  %893 = vmatprep.subr.mxu0 %v637
  %894 = vmatpush1.msra.mxu0 %v636
  %895 = vmatprep.subr.mxu0 %v641
  %896 = vmatpush1.msra.mxu0 %v640
  %897 = vmatprep.subr.mxu0 %v645
  %898 = vmatpush1.msra.mxu0 %v644
  %899 = vmatprep.subr.mxu0 %v649
  %900 = vmatpush1.msra.mxu0 %v648
  %901 = vmatprep.subr.mxu0 %v653
  %902 = vmatpush1.msra.mxu0 %v652
  %903 = vmatprep.subr.mxu0 %v657
  %904 = vmatpush1.msra.mxu0 %v656
  %905 = vmatprep.subr.mxu0 %v661
  %906 = vmatpush1.msra.mxu0 %v660
  %907 = vmatprep.subr.mxu0 %v665
  %908 = vmatpush1.msra.mxu0 %v664
  %909 = vmatprep.subr.mxu0 %v669
  %910 = vmatpush1.msra.mxu0 %v668
  %911 = vmatprep.subr.mxu0 %v673
  %912 = vmatpush1.msra.mxu0 %v672
  %913 = vmatprep.mubr.f32.mxu0 %v698
  %914 = vmatmul.mubr.f32.gmra.mrb[0].mxu0 %v694
  %v915 = vpop.f32.mrb[0].mxu0
  %v916 = vadd.f32 %v170, %v915
  %v917 = vpop.f32.mrb[0].mxu0
  %v918 = vadd.f32 %v170, %v917
  %919 = vdwg.mxu0
  %920 = vmatprep.subr.mxu0 %v677
  %921 = vmatpush1.msra.mxu0 %v676
  %922 = vmatprep.subr.mxu0 %v681
  %923 = vmatpush1.msra.mxu0 %v680
  %924 = vmatprep.subr.mxu0 %v685
  %925 = vmatpush1.msra.mxu0 %v684
  %926 = vmatprep.subr.mxu0 %v689
  %927 = vmatpush1.msra.mxu0 %v688
  %928 = vmatprep.subr.mxu0 0.0
  %929 = vmatpush1.msra.mxu0 0.0
  %930 = vmatprep.subr.mxu0 0.0
  %931 = vmatpush1.msra.mxu0 0.0
  %932 = vmatprep.subr.mxu0 0.0
  %933 = vmatpush1.msra.mxu0 0.0
  %934 = vmatprep.subr.mxu0 0.0
  %935 = vmatpush1.msra.mxu0 0.0
  %936 = vmatprep.subr.mxu0 0.0
  %937 = vmatpush1.msra.mxu0 0.0
  %938 = vmatprep.subr.mxu0 0.0
  %939 = vmatpush1.msra.mxu0 0.0
  %940 = vmatprep.subr.mxu0 0.0
  %941 = vmatpush1.msra.mxu0 0.0
  %942 = vmatprep.subr.mxu0 0.0
  %943 = vmatpush1.msra.mxu0 0.0
  %944 = vmatprep.subr.mxu0 0.0
  %945 = vmatpush1.msra.mxu0 0.0
  %946 = vmatprep.subr.mxu0 0.0
  %947 = vmatpush1.msra.mxu0 0.0
  %948 = vmatprep.subr.mxu0 0.0
  %949 = vmatpush1.msra.mxu0 0.0
  %950 = vmatprep.subr.mxu0 0.0
  %951 = vmatpush1.msra.mxu0 0.0
  %952 = vmatprep.subr.mxu0 0.0
  %953 = vmatpush1.msra.mxu0 0.0
  %954 = vmatprep.subr.mxu0 0.0
  %955 = vmatpush1.msra.mxu0 0.0
  %956 = vmatprep.subr.mxu0 0.0
  %957 = vmatpush1.msra.mxu0 0.0
  %958 = vmatprep.subr.mxu0 0.0
  %959 = vmatpush1.msra.mxu0 0.0
  %960 = vmatprep.subr.mxu0 0.0
  %961 = vmatpush1.msra.mxu0 0.0
  %962 = vmatprep.subr.mxu0 0.0
  %963 = vmatpush1.msra.mxu0 0.0
  %964 = vmatprep.subr.mxu0 0.0
  %965 = vmatpush1.msra.mxu0 0.0
  %966 = vmatprep.subr.mxu0 0.0
  %967 = vmatpush1.msra.mxu0 0.0
  %968 = vmatprep.subr.mxu0 0.0
  %969 = vmatpush1.msra.mxu0 0.0
  %970 = vmatprep.subr.mxu0 0.0
  %971 = vmatpush1.msra.mxu0 0.0
  %972 = vmatprep.subr.mxu0 0.0
  %973 = vmatpush1.msra.mxu0 0.0
  %974 = vmatprep.subr.mxu0 0.0
  %975 = vmatpush1.msra.mxu0 0.0
  %976 = vmatprep.subr.mxu0 0.0
  %977 = vmatpush1.msra.mxu0 0.0
  %978 = vmatprep.subr.mxu0 0.0
  %979 = vmatpush1.msra.mxu0 0.0
  %980 = vmatprep.subr.mxu0 0.0
  %981 = vmatpush1.msra.mxu0 0.0
  %982 = vmatprep.subr.mxu0 0.0
  %983 = vmatpush1.msra.mxu0 0.0
  %984 = vmatprep.mubr.f32.mxu0 0.0
  %985 = vmatmul.mubr.f32.gmra.mrb[0].mxu0 %v705
  %v986 = vpop.f32.mrb[0].mxu0
  %v987 = vadd.f32 %v916, %v986
  %v988 = vpop.f32.mrb[0].mxu0
  %v989 = vadd.f32 %v918, %v988
  %990 = vdwg.mxu0
  %v991 = vand.u32 2147483647, %v845
  %v992 = vand.u32 2147483647, %v847
  %v993 = vand.u32 2147483647, %v987
  %v994 = vand.u32 2147483647, %v989
  %v995 = vsub.f32 0.0, %v991
  %v996 = vsub.f32 0.0, %v992
  %v997 = vsub.f32 0.0, %v993
  %v998 = vsub.f32 0.0, %v994
  %v999 = vmul.f32 %v995, 1.442695
  %v1000 = vpow.pop %v999
  %v1001 = vmul.f32 %v996, 1.442695
  %v1002 = vpow.pop %v1001
  %v1003 = vmul.f32 %v997, 1.442695
  %v1004 = vpow.pop %v1003
  %v1005 = vmul.f32 %v998, 1.442695
  %v1006 = vpow.pop %v1005
  %v1007 = vadd.f32 %v1000, 1.0
  %v1008 = vadd.f32 %v1002, 1.0
  %v1009 = vadd.f32 %v1004, 1.0
  %v1010 = vadd.f32 %v1006, 1.0
  %v1011 = vrcp.pop %v1007
  %v1012 = vrcp.pop %v1008
  %v1013 = vrcp.pop %v1009
  %v1014 = vrcp.pop %v1010
  %vm1015 = vcmp.ge.f32.partialorder %v845, 0.0
  %vm1016 = vcmp.ge.f32.partialorder %v847, 0.0
  %vm1017 = vcmp.ge.f32.partialorder %v987, 0.0
  %vm1018 = vcmp.ge.f32.partialorder %v989, 0.0
  %v1019 = vmul.f32 %v1000, %v1011
  %v1020 = vmul.f32 %v1002, %v1012
  %v1021 = vmul.f32 %v1004, %v1013
  %v1022 = vmul.f32 %v1006, %v1014
  %v1023 = vsel %vm1015, %v1011, %v1019
  %v1024 = vsel %vm1016, %v1012, %v1020
  %v1025 = vsel %vm1017, %v1013, %v1021
  %v1026 = vsel %vm1018, %v1014, %v1022
  %v1031 = vcombine.low %v1023, %v1024
  %v1032 = vcombine.low %v1025, %v1026
  %v1034 = vunpack.c.l.s4 1966171168
  %v1035 = vunpack.c.0.s8 %v1034
  %v1036 = vlaneseq
  %v1037 = vshrl.u32 %v1036, 7
  %v1038 = vsub.s32 %v1035, %v1037
  %v1039 = vrot.slane %v1031, %v1038
  %v1041 = vunpack.c.l.s4 1966171168
  %v1042 = vunpack.c.0.s8 %v1041
  %v1043 = vlaneseq
  %v1044 = vshrl.u32 %v1043, 7
  %v1045 = vsub.s32 %v1042, %v1044
  %v1046 = vrot.slane %v1032, %v1045
  %v1047 = vcombine.low %v1039, %v1046
  %v1049 = vunpack.c.l.s4 1966171168
  %v1050 = vunpack.c.0.s8 %v1049
  %v1051 = vlaneseq
  %v1052 = vshrl.u32 %v1051, 7
  %v1053 = vsub.s32 %v1050, %v1052
  %v1054 = vrot.slane %v1047, %v1053
  %s1056 = scalar_lea.vmem %s3, 4
  %1057 = vst.msk [vmem:[%s1056] sm:$0xf] %vm541, %v1054
  %s1058 = scalar_lea.vmem %s1, 6
  %v1059 = vld [vmem:[%s1058] sm:$0x7]
  %s1060 = scalar_lea.vmem %s0, 2304
  %v1061 = vld [vmem:[%s1060] sm:$0xff]
  %v1062 = vld [vmem:[%s1060 + $0x8] sm:$0xff]
  %v1063 = vld [vmem:[%s1060 + $0x10] sm:$0xff]
  %v1064 = vld [vmem:[%s1060 + $0x18] sm:$0xff]
  %v1065 = vld [vmem:[%s1060 + $0x20] sm:$0xff]
  %v1066 = vld [vmem:[%s1060 + $0x28] sm:$0xff]
  %v1067 = vld [vmem:[%s1060 + $0x30] sm:$0xff]
  %v1068 = vld [vmem:[%s1060 + $0x38] sm:$0xff]
  %v1069 = vld [vmem:[%s1060 + $0x40] sm:$0xff]
  %v1070 = vld [vmem:[%s1060 + $0x48] sm:$0xff]
  %v1071 = vld [vmem:[%s1060 + $0x50] sm:$0xff]
  %v1072 = vld [vmem:[%s1060 + $0x58] sm:$0xff]
  %v1073 = vld [vmem:[%s1060 + $0x60] sm:$0xff]
  %v1074 = vld [vmem:[%s1060 + $0x68] sm:$0xff]
  %v1075 = vld [vmem:[%s1060 + $0x70] sm:$0xff]
  %v1076 = vld [vmem:[%s1060 + $0x78] sm:$0xff]
  %v1077 = vld [vmem:[%s1060 + $0x80] sm:$0xff]
  %v1078 = vld [vmem:[%s1060 + $0x88] sm:$0xff]
  %v1079 = vld [vmem:[%s1060 + $0x90] sm:$0xff]
  %v1080 = vld [vmem:[%s1060 + $0x98] sm:$0xff]
  %v1081 = vld [vmem:[%s1060 + $0xa0] sm:$0xff]
  %v1082 = vld [vmem:[%s1060 + $0xa8] sm:$0xff]
  %v1083 = vld [vmem:[%s1060 + $0xb0] sm:$0xff]
  %v1084 = vld [vmem:[%s1060 + $0xb8] sm:$0xff]
  %v1085 = vld [vmem:[%s1060 + $0xc0] sm:$0xff]
  %v1086 = vld [vmem:[%s1060 + $0xc8] sm:$0xff]
  %v1087 = vld [vmem:[%s1060 + $0xd0] sm:$0xff]
  %v1088 = vld [vmem:[%s1060 + $0xd8] sm:$0xff]
  %v1089 = vld [vmem:[%s1060 + $0xe0] sm:$0xff]
  %v1090 = vld [vmem:[%s1060 + $0xe8] sm:$0xff]
  %v1091 = vld [vmem:[%s1060 + $0xf0] sm:$0xff]
  %v1092 = vld [vmem:[%s1060 + $0xf8] sm:$0xff]
  %v1093 = vld [vmem:[%s1060 + $0x100] sm:$0xff]
  %v1094 = vld [vmem:[%s1060 + $0x108] sm:$0xff]
  %v1095 = vld [vmem:[%s1060 + $0x110] sm:$0xff]
  %v1096 = vld [vmem:[%s1060 + $0x118] sm:$0xff]
  %v1097 = vld [vmem:[%s1060 + $0x120] sm:$0xff]
  %v1098 = vld [vmem:[%s1060 + $0x128] sm:$0xff]
  %v1099 = vld [vmem:[%s1060 + $0x130] sm:$0xff]
  %v1100 = vld [vmem:[%s1060 + $0x138] sm:$0xff]
  %v1101 = vld [vmem:[%s1060 + $0x140] sm:$0xff]
  %v1102 = vld [vmem:[%s1060 + $0x148] sm:$0xff]
  %v1103 = vld [vmem:[%s1060 + $0x150] sm:$0xff]
  %v1104 = vld [vmem:[%s1060 + $0x158] sm:$0xff]
  %v1105 = vld [vmem:[%s1060 + $0x160] sm:$0xff]
  %v1106 = vld [vmem:[%s1060 + $0x168] sm:$0xff]
  %v1107 = vld [vmem:[%s1060 + $0x170] sm:$0xff]
  %v1108 = vld [vmem:[%s1060 + $0x178] sm:$0xff]
  %v1109 = vld [vmem:[%s1060 + $0x180] sm:$0xff]
  %v1110 = vld [vmem:[%s1060 + $0x188] sm:$0xff]
  %v1111 = vld [vmem:[%s1060 + $0x190] sm:$0xff]
  %v1112 = vld [vmem:[%s1060 + $0x198] sm:$0xff]
  %v1113 = vld [vmem:[%s1060 + $0x1a0] sm:$0xff]
  %v1114 = vld [vmem:[%s1060 + $0x1a8] sm:$0xff]
  %v1115 = vld [vmem:[%s1060 + $0x1b0] sm:$0xff]
  %v1116 = vld [vmem:[%s1060 + $0x1b8] sm:$0xff]
  %v1117 = vld [vmem:[%s1060 + $0x1c0] sm:$0xff]
  %v1118 = vld [vmem:[%s1060 + $0x1c8] sm:$0xff]
  %v1119 = vld [vmem:[%s1060 + $0x1d0] sm:$0xff]
  %v1120 = vld [vmem:[%s1060 + $0x1d8] sm:$0xff]
  %v1121 = vld [vmem:[%s1060 + $0x1e0] sm:$0xff]
  %v1122 = vld [vmem:[%s1060 + $0x1e8] sm:$0xff]
  %v1123 = vld [vmem:[%s1060 + $0x1f0] sm:$0xff]
  %v1124 = vld [vmem:[%s1060 + $0x1f8] sm:$0xff]
  %v1125 = vld [vmem:[%s1060 + $0x200] sm:$0xff]
  %v1126 = vld [vmem:[%s1060 + $0x208] sm:$0xff]
  %v1127 = vld [vmem:[%s1060 + $0x210] sm:$0xff]
  %v1128 = vld [vmem:[%s1060 + $0x218] sm:$0xff]
  %v1129 = vld [vmem:[%s1060 + $0x220] sm:$0xff]
  %v1130 = vld [vmem:[%s1060 + $0x228] sm:$0xff]
  %v1131 = vld [vmem:[%s1060 + $0x230] sm:$0xff]
  %v1132 = vld [vmem:[%s1060 + $0x238] sm:$0xff]
  %v1133 = vld [vmem:[%s1060 + $0x240] sm:$0xff]
  %v1134 = vld [vmem:[%s1060 + $0x248] sm:$0xff]
  %v1135 = vld [vmem:[%s1060 + $0x250] sm:$0xff]
  %v1136 = vld [vmem:[%s1060 + $0x258] sm:$0xff]
  %v1137 = vld [vmem:[%s1060 + $0x260] sm:$0xff]
  %v1138 = vld [vmem:[%s1060 + $0x268] sm:$0xff]
  %v1139 = vld [vmem:[%s1060 + $0x270] sm:$0xff]
  %v1140 = vld [vmem:[%s1060 + $0x278] sm:$0xff]
  %v1141 = vld [vmem:[%s1060 + $0x280] sm:$0xff]
  %v1142 = vld [vmem:[%s1060 + $0x288] sm:$0xff]
  %v1143 = vld [vmem:[%s1060 + $0x290] sm:$0xff]
  %v1144 = vld [vmem:[%s1060 + $0x298] sm:$0xff]
  %v1145 = vld [vmem:[%s1060 + $0x2a0] sm:$0xff]
  %v1146 = vld [vmem:[%s1060 + $0x2a8] sm:$0xff]
  %v1147 = vld [vmem:[%s1060 + $0x2b0] sm:$0xff]
  %v1148 = vld [vmem:[%s1060 + $0x2b8] sm:$0xff]
  %v1149 = vld [vmem:[%s1060 + $0x2c0] sm:$0xff]
  %v1150 = vld [vmem:[%s1060 + $0x2c8] sm:$0xff]
  %v1151 = vld [vmem:[%s1060 + $0x2d0] sm:$0xff]
  %v1152 = vld [vmem:[%s1060 + $0x2d8] sm:$0xff]
  %v1153 = vld [vmem:[%s1060 + $0x2e0] sm:$0xff]
  %v1154 = vld [vmem:[%s1060 + $0x2e8] sm:$0xff]
  %v1155 = vld [vmem:[%s1060 + $0x2f0] sm:$0xff]
  %v1156 = vld [vmem:[%s1060 + $0x2f8] sm:$0xff]
  %v1157 = vld [vmem:[%s1060 + $0x300] sm:$0xff]
  %v1158 = vld [vmem:[%s1060 + $0x308] sm:$0xff]
  %v1159 = vld [vmem:[%s1060 + $0x310] sm:$0xff]
  %v1160 = vld [vmem:[%s1060 + $0x318] sm:$0xff]
  %v1161 = vld [vmem:[%s1060 + $0x320] sm:$0xff]
  %v1162 = vld [vmem:[%s1060 + $0x328] sm:$0xff]
  %v1163 = vld [vmem:[%s1060 + $0x330] sm:$0xff]
  %v1164 = vld [vmem:[%s1060 + $0x338] sm:$0xff]
  %v1165 = vld [vmem:[%s1060 + $0x340] sm:$0xff]
  %v1166 = vld [vmem:[%s1060 + $0x348] sm:$0xff]
  %v1167 = vld [vmem:[%s1060 + $0x350] sm:$0xff]
  %v1168 = vld [vmem:[%s1060 + $0x358] sm:$0xff]
  %v1169 = vld [vmem:[%s1060 + $0x360] sm:$0xff]
  %v1170 = vld [vmem:[%s1060 + $0x368] sm:$0xff]
  %v1171 = vld [vmem:[%s1060 + $0x370] sm:$0xff]
  %v1172 = vld [vmem:[%s1060 + $0x378] sm:$0xff]
  %v1173 = vld [vmem:[%s1060 + $0x380] sm:$0xff]
  %v1174 = vld [vmem:[%s1060 + $0x388] sm:$0xff]
  %v1175 = vld [vmem:[%s1060 + $0x390] sm:$0xff]
  %v1176 = vld [vmem:[%s1060 + $0x398] sm:$0xff]
  %v1177 = vld [vmem:[%s1060 + $0x3a0] sm:$0xff]
  %v1178 = vld [vmem:[%s1060 + $0x3a8] sm:$0xff]
  %v1179 = vld [vmem:[%s1060 + $0x3b0] sm:$0xff]
  %v1180 = vld [vmem:[%s1060 + $0x3b8] sm:$0xff]
  %v1181 = vld [vmem:[%s1060 + $0x3c0] sm:$0xff]
  %v1182 = vld [vmem:[%s1060 + $0x3c8] sm:$0xff]
  %v1183 = vld [vmem:[%s1060 + $0x3d0] sm:$0xff]
  %v1184 = vld [vmem:[%s1060 + $0x3d8] sm:$0xff]
  %v1185 = vld [vmem:[%s1060 + $0x3e0] sm:$0xff]
  %v1186 = vld [vmem:[%s1060 + $0x3e8] sm:$0xff]
  %v1187 = vld [vmem:[%s1060 + $0x3f0] sm:$0xff]
  %v1188 = vld [vmem:[%s1060 + $0x3f8] sm:$0xff]
  %v1189 = vld [vmem:[%s1060 + $0x400] sm:$0xff]
  %v1190 = vld [vmem:[%s1060 + $0x408] sm:$0xff]
  %v1191 = vld [vmem:[%s1060 + $0x410] sm:$0xff]
  %v1192 = vld [vmem:[%s1060 + $0x418] sm:$0xff]
  %v1193 = vld [vmem:[%s1060 + $0x420] sm:$0xff]
  %v1194 = vld [vmem:[%s1060 + $0x428] sm:$0xff]
  %v1195 = vld [vmem:[%s1060 + $0x430] sm:$0xff]
  %v1196 = vld [vmem:[%s1060 + $0x438] sm:$0xff]
  %v1197 = vld [vmem:[%s1060 + $0x440] sm:$0xff]
  %v1198 = vld [vmem:[%s1060 + $0x448] sm:$0xff]
  %v1199 = vld [vmem:[%s1060 + $0x450] sm:$0xff]
  %v1200 = vld [vmem:[%s1060 + $0x458] sm:$0xff]
  %v1201 = vld [vmem:[%s1060 + $0x460] sm:$0xff]
  %v1202 = vld [vmem:[%s1060 + $0x468] sm:$0xff]
  %v1203 = vld [vmem:[%s1060 + $0x470] sm:$0xff]
  %v1204 = vld [vmem:[%s1060 + $0x478] sm:$0xff]
  %v1206 = vlaneseq
  %v1207 = vshrl.u32 %v1206, 7
  %v1208 = vsub.s32 0, %v1207
  %v1209 = vrot.slane %v1059, %v1208
  %v1210 = vlaneseq
  %v1211 = vshrl.u32 %v1210, 7
  %v1212 = vsub.s32 1, %v1211
  %v1213 = vrot.slane %v1059, %v1212
  %v1214 = vlaneseq
  %v1215 = vshrl.u32 %v1214, 7
  %v1216 = vsub.s32 2, %v1215
  %v1217 = vrot.slane %v1059, %v1216
  %v1220 = vsel %vm186, %v1217, 0
  %1222 = vmatprep.subr.mxu0 %v1062
  %1223 = vmatpush1.msra.mxu0 %v1061
  %1224 = vmatprep.subr.mxu0 %v1066
  %1225 = vmatpush1.msra.mxu0 %v1065
  %1226 = vmatprep.subr.mxu0 %v1070
  %1227 = vmatpush1.msra.mxu0 %v1069
  %1228 = vmatprep.subr.mxu0 %v1074
  %1229 = vmatpush1.msra.mxu0 %v1073
  %1230 = vmatprep.subr.mxu0 %v1078
  %1231 = vmatpush1.msra.mxu0 %v1077
  %1232 = vmatprep.subr.mxu0 %v1082
  %1233 = vmatpush1.msra.mxu0 %v1081
  %1234 = vmatprep.subr.mxu0 %v1086
  %1235 = vmatpush1.msra.mxu0 %v1085
  %1236 = vmatprep.subr.mxu0 %v1090
  %1237 = vmatpush1.msra.mxu0 %v1089
  %1238 = vmatprep.subr.mxu0 %v1094
  %1239 = vmatpush1.msra.mxu0 %v1093
  %1240 = vmatprep.subr.mxu0 %v1098
  %1241 = vmatpush1.msra.mxu0 %v1097
  %1242 = vmatprep.subr.mxu0 %v1102
  %1243 = vmatpush1.msra.mxu0 %v1101
  %1244 = vmatprep.subr.mxu0 %v1106
  %1245 = vmatpush1.msra.mxu0 %v1105
  %1246 = vmatprep.subr.mxu0 %v1110
  %1247 = vmatpush1.msra.mxu0 %v1109
  %1248 = vmatprep.subr.mxu0 %v1114
  %1249 = vmatpush1.msra.mxu0 %v1113
  %1250 = vmatprep.subr.mxu0 %v1118
  %1251 = vmatpush1.msra.mxu0 %v1117
  %1252 = vmatprep.subr.mxu0 %v1122
  %1253 = vmatpush1.msra.mxu0 %v1121
  %1254 = vmatprep.subr.mxu0 %v1126
  %1255 = vmatpush1.msra.mxu0 %v1125
  %1256 = vmatprep.subr.mxu0 %v1130
  %1257 = vmatpush1.msra.mxu0 %v1129
  %1258 = vmatprep.subr.mxu0 %v1134
  %1259 = vmatpush1.msra.mxu0 %v1133
  %1260 = vmatprep.subr.mxu0 %v1138
  %1261 = vmatpush1.msra.mxu0 %v1137
  %1262 = vmatprep.subr.mxu0 %v1142
  %1263 = vmatpush1.msra.mxu0 %v1141
  %1264 = vmatprep.subr.mxu0 %v1146
  %1265 = vmatpush1.msra.mxu0 %v1145
  %1266 = vmatprep.subr.mxu0 %v1150
  %1267 = vmatpush1.msra.mxu0 %v1149
  %1268 = vmatprep.subr.mxu0 %v1154
  %1269 = vmatpush1.msra.mxu0 %v1153
  %1270 = vmatprep.subr.mxu0 %v1158
  %1271 = vmatpush1.msra.mxu0 %v1157
  %1272 = vmatprep.subr.mxu0 %v1162
  %1273 = vmatpush1.msra.mxu0 %v1161
  %1274 = vmatprep.subr.mxu0 %v1166
  %1275 = vmatpush1.msra.mxu0 %v1165
  %1276 = vmatprep.subr.mxu0 %v1170
  %1277 = vmatpush1.msra.mxu0 %v1169
  %1278 = vmatprep.subr.mxu0 %v1174
  %1279 = vmatpush1.msra.mxu0 %v1173
  %1280 = vmatprep.subr.mxu0 %v1178
  %1281 = vmatpush1.msra.mxu0 %v1177
  %1282 = vmatprep.subr.mxu0 %v1182
  %1283 = vmatpush1.msra.mxu0 %v1181
  %1284 = vmatprep.subr.mxu0 %v1186
  %1285 = vmatpush1.msra.mxu0 %v1185
  %1286 = vmatprep.mubr.f32.mxu0 %v1213
  %1287 = vmatmul.mubr.f32.gmra.mrb[0].mxu0 %v1209
  %v1288 = vpop.f32.mrb[0].mxu0
  %v1289 = vadd.f32 %v170, %v1288
  %v1290 = vpop.f32.mrb[0].mxu0
  %v1291 = vadd.f32 %v170, %v1290
  %1292 = vdwg.mxu0
  %1293 = vmatprep.subr.mxu0 %v1190
  %1294 = vmatpush1.msra.mxu0 %v1189
  %1295 = vmatprep.subr.mxu0 %v1194
  %1296 = vmatpush1.msra.mxu0 %v1193
  %1297 = vmatprep.subr.mxu0 %v1198
  %1298 = vmatpush1.msra.mxu0 %v1197
  %1299 = vmatprep.subr.mxu0 %v1202
  %1300 = vmatpush1.msra.mxu0 %v1201
  %1301 = vmatprep.subr.mxu0 0.0
  %1302 = vmatpush1.msra.mxu0 0.0
  %1303 = vmatprep.subr.mxu0 0.0
  %1304 = vmatpush1.msra.mxu0 0.0
  %1305 = vmatprep.subr.mxu0 0.0
  %1306 = vmatpush1.msra.mxu0 0.0
  %1307 = vmatprep.subr.mxu0 0.0
  %1308 = vmatpush1.msra.mxu0 0.0
  %1309 = vmatprep.subr.mxu0 0.0
  %1310 = vmatpush1.msra.mxu0 0.0
  %1311 = vmatprep.subr.mxu0 0.0
  %1312 = vmatpush1.msra.mxu0 0.0
  %1313 = vmatprep.subr.mxu0 0.0
  %1314 = vmatpush1.msra.mxu0 0.0
  %1315 = vmatprep.subr.mxu0 0.0
  %1316 = vmatpush1.msra.mxu0 0.0
  %1317 = vmatprep.subr.mxu0 0.0
  %1318 = vmatpush1.msra.mxu0 0.0
  %1319 = vmatprep.subr.mxu0 0.0
  %1320 = vmatpush1.msra.mxu0 0.0
  %1321 = vmatprep.subr.mxu0 0.0
  %1322 = vmatpush1.msra.mxu0 0.0
  %1323 = vmatprep.subr.mxu0 0.0
  %1324 = vmatpush1.msra.mxu0 0.0
  %1325 = vmatprep.subr.mxu0 0.0
  %1326 = vmatpush1.msra.mxu0 0.0
  %1327 = vmatprep.subr.mxu0 0.0
  %1328 = vmatpush1.msra.mxu0 0.0
  %1329 = vmatprep.subr.mxu0 0.0
  %1330 = vmatpush1.msra.mxu0 0.0
  %1331 = vmatprep.subr.mxu0 0.0
  %1332 = vmatpush1.msra.mxu0 0.0
  %1333 = vmatprep.subr.mxu0 0.0
  %1334 = vmatpush1.msra.mxu0 0.0
  %1335 = vmatprep.subr.mxu0 0.0
  %1336 = vmatpush1.msra.mxu0 0.0
  %1337 = vmatprep.subr.mxu0 0.0
  %1338 = vmatpush1.msra.mxu0 0.0
  %1339 = vmatprep.subr.mxu0 0.0
  %1340 = vmatpush1.msra.mxu0 0.0
  %1341 = vmatprep.subr.mxu0 0.0
  %1342 = vmatpush1.msra.mxu0 0.0
  %1343 = vmatprep.subr.mxu0 0.0
  %1344 = vmatpush1.msra.mxu0 0.0
  %1345 = vmatprep.subr.mxu0 0.0
  %1346 = vmatpush1.msra.mxu0 0.0
  %1347 = vmatprep.subr.mxu0 0.0
  %1348 = vmatpush1.msra.mxu0 0.0
  %1349 = vmatprep.subr.mxu0 0.0
  %1350 = vmatpush1.msra.mxu0 0.0
  %1351 = vmatprep.subr.mxu0 0.0
  %1352 = vmatpush1.msra.mxu0 0.0
  %1353 = vmatprep.subr.mxu0 0.0
  %1354 = vmatpush1.msra.mxu0 0.0
  %1355 = vmatprep.subr.mxu0 0.0
  %1356 = vmatpush1.msra.mxu0 0.0
  %1357 = vmatprep.mubr.f32.mxu0 0.0
  %1358 = vmatmul.mubr.f32.gmra.mrb[0].mxu0 %v1220
  %v1359 = vpop.f32.mrb[0].mxu0
  %v1360 = vadd.f32 %v1289, %v1359
  %v1361 = vpop.f32.mrb[0].mxu0
  %v1362 = vadd.f32 %v1291, %v1361
  %1363 = vdwg.mxu0
  %1364 = vmatprep.subr.mxu0 %v1064
  %1365 = vmatpush1.msra.mxu0 %v1063
  %1366 = vmatprep.subr.mxu0 %v1068
  %1367 = vmatpush1.msra.mxu0 %v1067
  %1368 = vmatprep.subr.mxu0 %v1072
  %1369 = vmatpush1.msra.mxu0 %v1071
  %1370 = vmatprep.subr.mxu0 %v1076
  %1371 = vmatpush1.msra.mxu0 %v1075
  %1372 = vmatprep.subr.mxu0 %v1080
  %1373 = vmatpush1.msra.mxu0 %v1079
  %1374 = vmatprep.subr.mxu0 %v1084
  %1375 = vmatpush1.msra.mxu0 %v1083
  %1376 = vmatprep.subr.mxu0 %v1088
  %1377 = vmatpush1.msra.mxu0 %v1087
  %1378 = vmatprep.subr.mxu0 %v1092
  %1379 = vmatpush1.msra.mxu0 %v1091
  %1380 = vmatprep.subr.mxu0 %v1096
  %1381 = vmatpush1.msra.mxu0 %v1095
  %1382 = vmatprep.subr.mxu0 %v1100
  %1383 = vmatpush1.msra.mxu0 %v1099
  %1384 = vmatprep.subr.mxu0 %v1104
  %1385 = vmatpush1.msra.mxu0 %v1103
  %1386 = vmatprep.subr.mxu0 %v1108
  %1387 = vmatpush1.msra.mxu0 %v1107
  %1388 = vmatprep.subr.mxu0 %v1112
  %1389 = vmatpush1.msra.mxu0 %v1111
  %1390 = vmatprep.subr.mxu0 %v1116
  %1391 = vmatpush1.msra.mxu0 %v1115
  %1392 = vmatprep.subr.mxu0 %v1120
  %1393 = vmatpush1.msra.mxu0 %v1119
  %1394 = vmatprep.subr.mxu0 %v1124
  %1395 = vmatpush1.msra.mxu0 %v1123
  %1396 = vmatprep.subr.mxu0 %v1128
  %1397 = vmatpush1.msra.mxu0 %v1127
  %1398 = vmatprep.subr.mxu0 %v1132
  %1399 = vmatpush1.msra.mxu0 %v1131
  %1400 = vmatprep.subr.mxu0 %v1136
  %1401 = vmatpush1.msra.mxu0 %v1135
  %1402 = vmatprep.subr.mxu0 %v1140
  %1403 = vmatpush1.msra.mxu0 %v1139
  %1404 = vmatprep.subr.mxu0 %v1144
  %1405 = vmatpush1.msra.mxu0 %v1143
  %1406 = vmatprep.subr.mxu0 %v1148
  %1407 = vmatpush1.msra.mxu0 %v1147
  %1408 = vmatprep.subr.mxu0 %v1152
  %1409 = vmatpush1.msra.mxu0 %v1151
  %1410 = vmatprep.subr.mxu0 %v1156
  %1411 = vmatpush1.msra.mxu0 %v1155
  %1412 = vmatprep.subr.mxu0 %v1160
  %1413 = vmatpush1.msra.mxu0 %v1159
  %1414 = vmatprep.subr.mxu0 %v1164
  %1415 = vmatpush1.msra.mxu0 %v1163
  %1416 = vmatprep.subr.mxu0 %v1168
  %1417 = vmatpush1.msra.mxu0 %v1167
  %1418 = vmatprep.subr.mxu0 %v1172
  %1419 = vmatpush1.msra.mxu0 %v1171
  %1420 = vmatprep.subr.mxu0 %v1176
  %1421 = vmatpush1.msra.mxu0 %v1175
  %1422 = vmatprep.subr.mxu0 %v1180
  %1423 = vmatpush1.msra.mxu0 %v1179
  %1424 = vmatprep.subr.mxu0 %v1184
  %1425 = vmatpush1.msra.mxu0 %v1183
  %1426 = vmatprep.subr.mxu0 %v1188
  %1427 = vmatpush1.msra.mxu0 %v1187
  %1428 = vmatprep.mubr.f32.mxu0 %v1213
  %1429 = vmatmul.mubr.f32.gmra.mrb[0].mxu0 %v1209
  %v1430 = vpop.f32.mrb[0].mxu0
  %v1431 = vadd.f32 %v170, %v1430
  %v1432 = vpop.f32.mrb[0].mxu0
  %v1433 = vadd.f32 %v170, %v1432
  %1434 = vdwg.mxu0
  %1435 = vmatprep.subr.mxu0 %v1192
  %1436 = vmatpush1.msra.mxu0 %v1191
  %1437 = vmatprep.subr.mxu0 %v1196
  %1438 = vmatpush1.msra.mxu0 %v1195
  %1439 = vmatprep.subr.mxu0 %v1200
  %1440 = vmatpush1.msra.mxu0 %v1199
  %1441 = vmatprep.subr.mxu0 %v1204
  %1442 = vmatpush1.msra.mxu0 %v1203
  %1443 = vmatprep.subr.mxu0 0.0
  %1444 = vmatpush1.msra.mxu0 0.0
  %1445 = vmatprep.subr.mxu0 0.0
  %1446 = vmatpush1.msra.mxu0 0.0
  %1447 = vmatprep.subr.mxu0 0.0
  %1448 = vmatpush1.msra.mxu0 0.0
  %1449 = vmatprep.subr.mxu0 0.0
  %1450 = vmatpush1.msra.mxu0 0.0
  %1451 = vmatprep.subr.mxu0 0.0
  %1452 = vmatpush1.msra.mxu0 0.0
  %1453 = vmatprep.subr.mxu0 0.0
  %1454 = vmatpush1.msra.mxu0 0.0
  %1455 = vmatprep.subr.mxu0 0.0
  %1456 = vmatpush1.msra.mxu0 0.0
  %1457 = vmatprep.subr.mxu0 0.0
  %1458 = vmatpush1.msra.mxu0 0.0
  %1459 = vmatprep.subr.mxu0 0.0
  %1460 = vmatpush1.msra.mxu0 0.0
  %1461 = vmatprep.subr.mxu0 0.0
  %1462 = vmatpush1.msra.mxu0 0.0
  %1463 = vmatprep.subr.mxu0 0.0
  %1464 = vmatpush1.msra.mxu0 0.0
  %1465 = vmatprep.subr.mxu0 0.0
  %1466 = vmatpush1.msra.mxu0 0.0
  %1467 = vmatprep.subr.mxu0 0.0
  %1468 = vmatpush1.msra.mxu0 0.0
  %1469 = vmatprep.subr.mxu0 0.0
  %1470 = vmatpush1.msra.mxu0 0.0
  %1471 = vmatprep.subr.mxu0 0.0
  %1472 = vmatpush1.msra.mxu0 0.0
  %1473 = vmatprep.subr.mxu0 0.0
  %1474 = vmatpush1.msra.mxu0 0.0
  %1475 = vmatprep.subr.mxu0 0.0
  %1476 = vmatpush1.msra.mxu0 0.0
  %1477 = vmatprep.subr.mxu0 0.0
  %1478 = vmatpush1.msra.mxu0 0.0
  %1479 = vmatprep.subr.mxu0 0.0
  %1480 = vmatpush1.msra.mxu0 0.0
  %1481 = vmatprep.subr.mxu0 0.0
  %1482 = vmatpush1.msra.mxu0 0.0
  %1483 = vmatprep.subr.mxu0 0.0
  %1484 = vmatpush1.msra.mxu0 0.0
  %1485 = vmatprep.subr.mxu0 0.0
  %1486 = vmatpush1.msra.mxu0 0.0
  %1487 = vmatprep.subr.mxu0 0.0
  %1488 = vmatpush1.msra.mxu0 0.0
  %1489 = vmatprep.subr.mxu0 0.0
  %1490 = vmatpush1.msra.mxu0 0.0
  %1491 = vmatprep.subr.mxu0 0.0
  %1492 = vmatpush1.msra.mxu0 0.0
  %1493 = vmatprep.subr.mxu0 0.0
  %1494 = vmatpush1.msra.mxu0 0.0
  %1495 = vmatprep.subr.mxu0 0.0
  %1496 = vmatpush1.msra.mxu0 0.0
  %1497 = vmatprep.subr.mxu0 0.0
  %1498 = vmatpush1.msra.mxu0 0.0
  %1499 = vmatprep.mubr.f32.mxu0 0.0
  %1500 = vmatmul.mubr.f32.gmra.mrb[0].mxu0 %v1220
  %v1501 = vpop.f32.mrb[0].mxu0
  %v1502 = vadd.f32 %v1431, %v1501
  %v1503 = vpop.f32.mrb[0].mxu0
  %v1504 = vadd.f32 %v1433, %v1503
  %1505 = vdwg.mxu0
  %v1506 = vand.u32 2147483647, %v1360
  %v1507 = vand.u32 2147483647, %v1362
  %v1508 = vand.u32 2147483647, %v1502
  %v1509 = vand.u32 2147483647, %v1504
  %v1510 = vsub.f32 0.0, %v1506
  %v1511 = vsub.f32 0.0, %v1507
  %v1512 = vsub.f32 0.0, %v1508
  %v1513 = vsub.f32 0.0, %v1509
  %v1514 = vmul.f32 %v1510, 1.442695
  %v1515 = vpow.pop %v1514
  %v1516 = vmul.f32 %v1511, 1.442695
  %v1517 = vpow.pop %v1516
  %v1518 = vmul.f32 %v1512, 1.442695
  %v1519 = vpow.pop %v1518
  %v1520 = vmul.f32 %v1513, 1.442695
  %v1521 = vpow.pop %v1520
  %v1522 = vadd.f32 %v1515, 1.0
  %v1523 = vadd.f32 %v1517, 1.0
  %v1524 = vadd.f32 %v1519, 1.0
  %v1525 = vadd.f32 %v1521, 1.0
  %v1526 = vrcp.pop %v1522
  %v1527 = vrcp.pop %v1523
  %v1528 = vrcp.pop %v1524
  %v1529 = vrcp.pop %v1525
  %vm1530 = vcmp.ge.f32.partialorder %v1360, 0.0
  %vm1531 = vcmp.ge.f32.partialorder %v1362, 0.0
  %vm1532 = vcmp.ge.f32.partialorder %v1502, 0.0
  %vm1533 = vcmp.ge.f32.partialorder %v1504, 0.0
  %v1534 = vmul.f32 %v1515, %v1526
  %v1535 = vmul.f32 %v1517, %v1527
  %v1536 = vmul.f32 %v1519, %v1528
  %v1537 = vmul.f32 %v1521, %v1529
  %v1538 = vsel %vm1530, %v1526, %v1534
  %v1539 = vsel %vm1531, %v1527, %v1535
  %v1540 = vsel %vm1532, %v1528, %v1536
  %v1541 = vsel %vm1533, %v1529, %v1537
  %v1546 = vcombine.low %v1538, %v1539
  %v1547 = vcombine.low %v1540, %v1541
  %v1549 = vunpack.c.l.s4 1966171168
  %v1550 = vunpack.c.0.s8 %v1549
  %v1551 = vlaneseq
  %v1552 = vshrl.u32 %v1551, 7
  %v1553 = vsub.s32 %v1550, %v1552
  %v1554 = vrot.slane %v1546, %v1553
  %v1556 = vunpack.c.l.s4 1966171168
  %v1557 = vunpack.c.0.s8 %v1556
  %v1558 = vlaneseq
  %v1559 = vshrl.u32 %v1558, 7
  %v1560 = vsub.s32 %v1557, %v1559
  %v1561 = vrot.slane %v1547, %v1560
  %v1562 = vcombine.low %v1554, %v1561
  %v1564 = vunpack.c.l.s4 1966171168
  %v1565 = vunpack.c.0.s8 %v1564
  %v1566 = vlaneseq
  %v1567 = vshrl.u32 %v1566, 7
  %v1568 = vsub.s32 %v1565, %v1567
  %v1569 = vrot.slane %v1562, %v1568
  %s1571 = scalar_lea.vmem %s3, 8
  %1572 = vst.msk [vmem:[%s1571] sm:$0xf] %vm541, %v1569
  %s1573 = scalar_lea.vmem %s1, 9
  %v1574 = vld [vmem:[%s1573] sm:$0x7]
  %s1575 = scalar_lea.vmem %s0, 3456
  %v1576 = vld [vmem:[%s1575] sm:$0xff]
  %v1577 = vld [vmem:[%s1575 + $0x8] sm:$0xff]
  %v1578 = vld [vmem:[%s1575 + $0x10] sm:$0xff]
  %v1579 = vld [vmem:[%s1575 + $0x18] sm:$0xff]
  %v1580 = vld [vmem:[%s1575 + $0x20] sm:$0xff]
  %v1581 = vld [vmem:[%s1575 + $0x28] sm:$0xff]
  %v1582 = vld [vmem:[%s1575 + $0x30] sm:$0xff]
  %v1583 = vld [vmem:[%s1575 + $0x38] sm:$0xff]
  %v1584 = vld [vmem:[%s1575 + $0x40] sm:$0xff]
  %v1585 = vld [vmem:[%s1575 + $0x48] sm:$0xff]
  %v1586 = vld [vmem:[%s1575 + $0x50] sm:$0xff]
  %v1587 = vld [vmem:[%s1575 + $0x58] sm:$0xff]
  %v1588 = vld [vmem:[%s1575 + $0x60] sm:$0xff]
  %v1589 = vld [vmem:[%s1575 + $0x68] sm:$0xff]
  %v1590 = vld [vmem:[%s1575 + $0x70] sm:$0xff]
  %v1591 = vld [vmem:[%s1575 + $0x78] sm:$0xff]
  %v1592 = vld [vmem:[%s1575 + $0x80] sm:$0xff]
  %v1593 = vld [vmem:[%s1575 + $0x88] sm:$0xff]
  %v1594 = vld [vmem:[%s1575 + $0x90] sm:$0xff]
  %v1595 = vld [vmem:[%s1575 + $0x98] sm:$0xff]
  %v1596 = vld [vmem:[%s1575 + $0xa0] sm:$0xff]
  %v1597 = vld [vmem:[%s1575 + $0xa8] sm:$0xff]
  %v1598 = vld [vmem:[%s1575 + $0xb0] sm:$0xff]
  %v1599 = vld [vmem:[%s1575 + $0xb8] sm:$0xff]
  %v1600 = vld [vmem:[%s1575 + $0xc0] sm:$0xff]
  %v1601 = vld [vmem:[%s1575 + $0xc8] sm:$0xff]
  %v1602 = vld [vmem:[%s1575 + $0xd0] sm:$0xff]
  %v1603 = vld [vmem:[%s1575 + $0xd8] sm:$0xff]
  %v1604 = vld [vmem:[%s1575 + $0xe0] sm:$0xff]
  %v1605 = vld [vmem:[%s1575 + $0xe8] sm:$0xff]
  %v1606 = vld [vmem:[%s1575 + $0xf0] sm:$0xff]
  %v1607 = vld [vmem:[%s1575 + $0xf8] sm:$0xff]
  %v1608 = vld [vmem:[%s1575 + $0x100] sm:$0xff]
  %v1609 = vld [vmem:[%s1575 + $0x108] sm:$0xff]
  %v1610 = vld [vmem:[%s1575 + $0x110] sm:$0xff]
  %v1611 = vld [vmem:[%s1575 + $0x118] sm:$0xff]
  %v1612 = vld [vmem:[%s1575 + $0x120] sm:$0xff]
  %v1613 = vld [vmem:[%s1575 + $0x128] sm:$0xff]
  %v1614 = vld [vmem:[%s1575 + $0x130] sm:$0xff]
  %v1615 = vld [vmem:[%s1575 + $0x138] sm:$0xff]
  %v1616 = vld [vmem:[%s1575 + $0x140] sm:$0xff]
  %v1617 = vld [vmem:[%s1575 + $0x148] sm:$0xff]
  %v1618 = vld [vmem:[%s1575 + $0x150] sm:$0xff]
  %v1619 = vld [vmem:[%s1575 + $0x158] sm:$0xff]
  %v1620 = vld [vmem:[%s1575 + $0x160] sm:$0xff]
  %v1621 = vld [vmem:[%s1575 + $0x168] sm:$0xff]
  %v1622 = vld [vmem:[%s1575 + $0x170] sm:$0xff]
  %v1623 = vld [vmem:[%s1575 + $0x178] sm:$0xff]
  %v1624 = vld [vmem:[%s1575 + $0x180] sm:$0xff]
  %v1625 = vld [vmem:[%s1575 + $0x188] sm:$0xff]
  %v1626 = vld [vmem:[%s1575 + $0x190] sm:$0xff]
  %v1627 = vld [vmem:[%s1575 + $0x198] sm:$0xff]
  %v1628 = vld [vmem:[%s1575 + $0x1a0] sm:$0xff]
  %v1629 = vld [vmem:[%s1575 + $0x1a8] sm:$0xff]
  %v1630 = vld [vmem:[%s1575 + $0x1b0] sm:$0xff]
  %v1631 = vld [vmem:[%s1575 + $0x1b8] sm:$0xff]
  %v1632 = vld [vmem:[%s1575 + $0x1c0] sm:$0xff]
  %v1633 = vld [vmem:[%s1575 + $0x1c8] sm:$0xff]
  %v1634 = vld [vmem:[%s1575 + $0x1d0] sm:$0xff]
  %v1635 = vld [vmem:[%s1575 + $0x1d8] sm:$0xff]
  %v1636 = vld [vmem:[%s1575 + $0x1e0] sm:$0xff]
  %v1637 = vld [vmem:[%s1575 + $0x1e8] sm:$0xff]
  %v1638 = vld [vmem:[%s1575 + $0x1f0] sm:$0xff]
  %v1639 = vld [vmem:[%s1575 + $0x1f8] sm:$0xff]
  %v1640 = vld [vmem:[%s1575 + $0x200] sm:$0xff]
  %v1641 = vld [vmem:[%s1575 + $0x208] sm:$0xff]
  %v1642 = vld [vmem:[%s1575 + $0x210] sm:$0xff]
  %v1643 = vld [vmem:[%s1575 + $0x218] sm:$0xff]
  %v1644 = vld [vmem:[%s1575 + $0x220] sm:$0xff]
  %v1645 = vld [vmem:[%s1575 + $0x228] sm:$0xff]
  %v1646 = vld [vmem:[%s1575 + $0x230] sm:$0xff]
  %v1647 = vld [vmem:[%s1575 + $0x238] sm:$0xff]
  %v1648 = vld [vmem:[%s1575 + $0x240] sm:$0xff]
  %v1649 = vld [vmem:[%s1575 + $0x248] sm:$0xff]
  %v1650 = vld [vmem:[%s1575 + $0x250] sm:$0xff]
  %v1651 = vld [vmem:[%s1575 + $0x258] sm:$0xff]
  %v1652 = vld [vmem:[%s1575 + $0x260] sm:$0xff]
  %v1653 = vld [vmem:[%s1575 + $0x268] sm:$0xff]
  %v1654 = vld [vmem:[%s1575 + $0x270] sm:$0xff]
  %v1655 = vld [vmem:[%s1575 + $0x278] sm:$0xff]
  %v1656 = vld [vmem:[%s1575 + $0x280] sm:$0xff]
  %v1657 = vld [vmem:[%s1575 + $0x288] sm:$0xff]
  %v1658 = vld [vmem:[%s1575 + $0x290] sm:$0xff]
  %v1659 = vld [vmem:[%s1575 + $0x298] sm:$0xff]
  %v1660 = vld [vmem:[%s1575 + $0x2a0] sm:$0xff]
  %v1661 = vld [vmem:[%s1575 + $0x2a8] sm:$0xff]
  %v1662 = vld [vmem:[%s1575 + $0x2b0] sm:$0xff]
  %v1663 = vld [vmem:[%s1575 + $0x2b8] sm:$0xff]
  %v1664 = vld [vmem:[%s1575 + $0x2c0] sm:$0xff]
  %v1665 = vld [vmem:[%s1575 + $0x2c8] sm:$0xff]
  %v1666 = vld [vmem:[%s1575 + $0x2d0] sm:$0xff]
  %v1667 = vld [vmem:[%s1575 + $0x2d8] sm:$0xff]
  %v1668 = vld [vmem:[%s1575 + $0x2e0] sm:$0xff]
  %v1669 = vld [vmem:[%s1575 + $0x2e8] sm:$0xff]
  %v1670 = vld [vmem:[%s1575 + $0x2f0] sm:$0xff]
  %v1671 = vld [vmem:[%s1575 + $0x2f8] sm:$0xff]
  %v1672 = vld [vmem:[%s1575 + $0x300] sm:$0xff]
  %v1673 = vld [vmem:[%s1575 + $0x308] sm:$0xff]
  %v1674 = vld [vmem:[%s1575 + $0x310] sm:$0xff]
  %v1675 = vld [vmem:[%s1575 + $0x318] sm:$0xff]
  %v1676 = vld [vmem:[%s1575 + $0x320] sm:$0xff]
  %v1677 = vld [vmem:[%s1575 + $0x328] sm:$0xff]
  %v1678 = vld [vmem:[%s1575 + $0x330] sm:$0xff]
  %v1679 = vld [vmem:[%s1575 + $0x338] sm:$0xff]
  %v1680 = vld [vmem:[%s1575 + $0x340] sm:$0xff]
  %v1681 = vld [vmem:[%s1575 + $0x348] sm:$0xff]
  %v1682 = vld [vmem:[%s1575 + $0x350] sm:$0xff]
  %v1683 = vld [vmem:[%s1575 + $0x358] sm:$0xff]
  %v1684 = vld [vmem:[%s1575 + $0x360] sm:$0xff]
  %v1685 = vld [vmem:[%s1575 + $0x368] sm:$0xff]
  %v1686 = vld [vmem:[%s1575 + $0x370] sm:$0xff]
  %v1687 = vld [vmem:[%s1575 + $0x378] sm:$0xff]
  %v1688 = vld [vmem:[%s1575 + $0x380] sm:$0xff]
  %v1689 = vld [vmem:[%s1575 + $0x388] sm:$0xff]
  %v1690 = vld [vmem:[%s1575 + $0x390] sm:$0xff]
  %v1691 = vld [vmem:[%s1575 + $0x398] sm:$0xff]
  %v1692 = vld [vmem:[%s1575 + $0x3a0] sm:$0xff]
  %v1693 = vld [vmem:[%s1575 + $0x3a8] sm:$0xff]
  %v1694 = vld [vmem:[%s1575 + $0x3b0] sm:$0xff]
  %v1695 = vld [vmem:[%s1575 + $0x3b8] sm:$0xff]
  %v1696 = vld [vmem:[%s1575 + $0x3c0] sm:$0xff]
  %v1697 = vld [vmem:[%s1575 + $0x3c8] sm:$0xff]
  %v1698 = vld [vmem:[%s1575 + $0x3d0] sm:$0xff]
  %v1699 = vld [vmem:[%s1575 + $0x3d8] sm:$0xff]
  %v1700 = vld [vmem:[%s1575 + $0x3e0] sm:$0xff]
  %v1701 = vld [vmem:[%s1575 + $0x3e8] sm:$0xff]
  %v1702 = vld [vmem:[%s1575 + $0x3f0] sm:$0xff]
  %v1703 = vld [vmem:[%s1575 + $0x3f8] sm:$0xff]
  %v1704 = vld [vmem:[%s1575 + $0x400] sm:$0xff]
  %v1705 = vld [vmem:[%s1575 + $0x408] sm:$0xff]
  %v1706 = vld [vmem:[%s1575 + $0x410] sm:$0xff]
  %v1707 = vld [vmem:[%s1575 + $0x418] sm:$0xff]
  %v1708 = vld [vmem:[%s1575 + $0x420] sm:$0xff]
  %v1709 = vld [vmem:[%s1575 + $0x428] sm:$0xff]
  %v1710 = vld [vmem:[%s1575 + $0x430] sm:$0xff]
  %v1711 = vld [vmem:[%s1575 + $0x438] sm:$0xff]
  %v1712 = vld [vmem:[%s1575 + $0x440] sm:$0xff]
  %v1713 = vld [vmem:[%s1575 + $0x448] sm:$0xff]
  %v1714 = vld [vmem:[%s1575 + $0x450] sm:$0xff]
  %v1715 = vld [vmem:[%s1575 + $0x458] sm:$0xff]
  %v1716 = vld [vmem:[%s1575 + $0x460] sm:$0xff]
  %v1717 = vld [vmem:[%s1575 + $0x468] sm:$0xff]
  %v1718 = vld [vmem:[%s1575 + $0x470] sm:$0xff]
  %v1719 = vld [vmem:[%s1575 + $0x478] sm:$0xff]
  %v1721 = vlaneseq
  %v1722 = vshrl.u32 %v1721, 7
  %v1723 = vsub.s32 0, %v1722
  %v1724 = vrot.slane %v1574, %v1723
  %v1725 = vlaneseq
  %v1726 = vshrl.u32 %v1725, 7
  %v1727 = vsub.s32 1, %v1726
  %v1728 = vrot.slane %v1574, %v1727
  %v1729 = vlaneseq
  %v1730 = vshrl.u32 %v1729, 7
  %v1731 = vsub.s32 2, %v1730
  %v1732 = vrot.slane %v1574, %v1731
  %v1735 = vsel %vm186, %v1732, 0
  %1737 = vmatprep.subr.mxu0 %v1577
  %1738 = vmatpush1.msra.mxu0 %v1576
  %1739 = vmatprep.subr.mxu0 %v1581
  %1740 = vmatpush1.msra.mxu0 %v1580
  %1741 = vmatprep.subr.mxu0 %v1585
  %1742 = vmatpush1.msra.mxu0 %v1584
  %1743 = vmatprep.subr.mxu0 %v1589
  %1744 = vmatpush1.msra.mxu0 %v1588
  %1745 = vmatprep.subr.mxu0 %v1593
  %1746 = vmatpush1.msra.mxu0 %v1592
  %1747 = vmatprep.subr.mxu0 %v1597
  %1748 = vmatpush1.msra.mxu0 %v1596
  %1749 = vmatprep.subr.mxu0 %v1601
  %1750 = vmatpush1.msra.mxu0 %v1600
  %1751 = vmatprep.subr.mxu0 %v1605
  %1752 = vmatpush1.msra.mxu0 %v1604
  %1753 = vmatprep.subr.mxu0 %v1609
  %1754 = vmatpush1.msra.mxu0 %v1608
  %1755 = vmatprep.subr.mxu0 %v1613
  %1756 = vmatpush1.msra.mxu0 %v1612
  %1757 = vmatprep.subr.mxu0 %v1617
  %1758 = vmatpush1.msra.mxu0 %v1616
  %1759 = vmatprep.subr.mxu0 %v1621
  %1760 = vmatpush1.msra.mxu0 %v1620
  %1761 = vmatprep.subr.mxu0 %v1625
  %1762 = vmatpush1.msra.mxu0 %v1624
  %1763 = vmatprep.subr.mxu0 %v1629
  %1764 = vmatpush1.msra.mxu0 %v1628
  %1765 = vmatprep.subr.mxu0 %v1633
  %1766 = vmatpush1.msra.mxu0 %v1632
  %1767 = vmatprep.subr.mxu0 %v1637
  %1768 = vmatpush1.msra.mxu0 %v1636
  %1769 = vmatprep.subr.mxu0 %v1641
  %1770 = vmatpush1.msra.mxu0 %v1640
  %1771 = vmatprep.subr.mxu0 %v1645
  %1772 = vmatpush1.msra.mxu0 %v1644
  %1773 = vmatprep.subr.mxu0 %v1649
  %1774 = vmatpush1.msra.mxu0 %v1648
  %1775 = vmatprep.subr.mxu0 %v1653
  %1776 = vmatpush1.msra.mxu0 %v1652
  %1777 = vmatprep.subr.mxu0 %v1657
  %1778 = vmatpush1.msra.mxu0 %v1656
  %1779 = vmatprep.subr.mxu0 %v1661
  %1780 = vmatpush1.msra.mxu0 %v1660
  %1781 = vmatprep.subr.mxu0 %v1665
  %1782 = vmatpush1.msra.mxu0 %v1664
  %1783 = vmatprep.subr.mxu0 %v1669
  %1784 = vmatpush1.msra.mxu0 %v1668
  %1785 = vmatprep.subr.mxu0 %v1673
  %1786 = vmatpush1.msra.mxu0 %v1672
  %1787 = vmatprep.subr.mxu0 %v1677
  %1788 = vmatpush1.msra.mxu0 %v1676
  %1789 = vmatprep.subr.mxu0 %v1681
  %1790 = vmatpush1.msra.mxu0 %v1680
  %1791 = vmatprep.subr.mxu0 %v1685
  %1792 = vmatpush1.msra.mxu0 %v1684
  %1793 = vmatprep.subr.mxu0 %v1689
  %1794 = vmatpush1.msra.mxu0 %v1688
  %1795 = vmatprep.subr.mxu0 %v1693
  %1796 = vmatpush1.msra.mxu0 %v1692
  %1797 = vmatprep.subr.mxu0 %v1697
  %1798 = vmatpush1.msra.mxu0 %v1696
  %1799 = vmatprep.subr.mxu0 %v1701
  %1800 = vmatpush1.msra.mxu0 %v1700
  %1801 = vmatprep.mubr.f32.mxu0 %v1728
  %1802 = vmatmul.mubr.f32.gmra.mrb[0].mxu0 %v1724
  %v1803 = vpop.f32.mrb[0].mxu0
  %v1804 = vadd.f32 %v170, %v1803
  %v1805 = vpop.f32.mrb[0].mxu0
  %v1806 = vadd.f32 %v170, %v1805
  %1807 = vdwg.mxu0
  %1808 = vmatprep.subr.mxu0 %v1705
  %1809 = vmatpush1.msra.mxu0 %v1704
  %1810 = vmatprep.subr.mxu0 %v1709
  %1811 = vmatpush1.msra.mxu0 %v1708
  %1812 = vmatprep.subr.mxu0 %v1713
  %1813 = vmatpush1.msra.mxu0 %v1712
  %1814 = vmatprep.subr.mxu0 %v1717
  %1815 = vmatpush1.msra.mxu0 %v1716
  %1816 = vmatprep.subr.mxu0 0.0
  %1817 = vmatpush1.msra.mxu0 0.0
  %1818 = vmatprep.subr.mxu0 0.0
  %1819 = vmatpush1.msra.mxu0 0.0
  %1820 = vmatprep.subr.mxu0 0.0
  %1821 = vmatpush1.msra.mxu0 0.0
  %1822 = vmatprep.subr.mxu0 0.0
  %1823 = vmatpush1.msra.mxu0 0.0
  %1824 = vmatprep.subr.mxu0 0.0
  %1825 = vmatpush1.msra.mxu0 0.0
  %1826 = vmatprep.subr.mxu0 0.0
  %1827 = vmatpush1.msra.mxu0 0.0
  %1828 = vmatprep.subr.mxu0 0.0
  %1829 = vmatpush1.msra.mxu0 0.0
  %1830 = vmatprep.subr.mxu0 0.0
  %1831 = vmatpush1.msra.mxu0 0.0
  %1832 = vmatprep.subr.mxu0 0.0
  %1833 = vmatpush1.msra.mxu0 0.0
  %1834 = vmatprep.subr.mxu0 0.0
  %1835 = vmatpush1.msra.mxu0 0.0
  %1836 = vmatprep.subr.mxu0 0.0
  %1837 = vmatpush1.msra.mxu0 0.0
  %1838 = vmatprep.subr.mxu0 0.0
  %1839 = vmatpush1.msra.mxu0 0.0
  %1840 = vmatprep.subr.mxu0 0.0
  %1841 = vmatpush1.msra.mxu0 0.0
  %1842 = vmatprep.subr.mxu0 0.0
  %1843 = vmatpush1.msra.mxu0 0.0
  %1844 = vmatprep.subr.mxu0 0.0
  %1845 = vmatpush1.msra.mxu0 0.0
  %1846 = vmatprep.subr.mxu0 0.0
  %1847 = vmatpush1.msra.mxu0 0.0
  %1848 = vmatprep.subr.mxu0 0.0
  %1849 = vmatpush1.msra.mxu0 0.0
  %1850 = vmatprep.subr.mxu0 0.0
  %1851 = vmatpush1.msra.mxu0 0.0
  %1852 = vmatprep.subr.mxu0 0.0
  %1853 = vmatpush1.msra.mxu0 0.0
  %1854 = vmatprep.subr.mxu0 0.0
  %1855 = vmatpush1.msra.mxu0 0.0
  %1856 = vmatprep.subr.mxu0 0.0
  %1857 = vmatpush1.msra.mxu0 0.0
  %1858 = vmatprep.subr.mxu0 0.0
  %1859 = vmatpush1.msra.mxu0 0.0
  %1860 = vmatprep.subr.mxu0 0.0
  %1861 = vmatpush1.msra.mxu0 0.0
  %1862 = vmatprep.subr.mxu0 0.0
  %1863 = vmatpush1.msra.mxu0 0.0
  %1864 = vmatprep.subr.mxu0 0.0
  %1865 = vmatpush1.msra.mxu0 0.0
  %1866 = vmatprep.subr.mxu0 0.0
  %1867 = vmatpush1.msra.mxu0 0.0
  %1868 = vmatprep.subr.mxu0 0.0
  %1869 = vmatpush1.msra.mxu0 0.0
  %1870 = vmatprep.subr.mxu0 0.0
  %1871 = vmatpush1.msra.mxu0 0.0
  %1872 = vmatprep.mubr.f32.mxu0 0.0
  %1873 = vmatmul.mubr.f32.gmra.mrb[0].mxu0 %v1735
  %v1874 = vpop.f32.mrb[0].mxu0
  %v1875 = vadd.f32 %v1804, %v1874
  %v1876 = vpop.f32.mrb[0].mxu0
  %v1877 = vadd.f32 %v1806, %v1876
  %1878 = vdwg.mxu0
  %1879 = vmatprep.subr.mxu0 %v1579
  %1880 = vmatpush1.msra.mxu0 %v1578
  %1881 = vmatprep.subr.mxu0 %v1583
  %1882 = vmatpush1.msra.mxu0 %v1582
  %1883 = vmatprep.subr.mxu0 %v1587
  %1884 = vmatpush1.msra.mxu0 %v1586
  %1885 = vmatprep.subr.mxu0 %v1591
  %1886 = vmatpush1.msra.mxu0 %v1590
  %1887 = vmatprep.subr.mxu0 %v1595
  %1888 = vmatpush1.msra.mxu0 %v1594
  %1889 = vmatprep.subr.mxu0 %v1599
  %1890 = vmatpush1.msra.mxu0 %v1598
  %1891 = vmatprep.subr.mxu0 %v1603
  %1892 = vmatpush1.msra.mxu0 %v1602
  %1893 = vmatprep.subr.mxu0 %v1607
  %1894 = vmatpush1.msra.mxu0 %v1606
  %1895 = vmatprep.subr.mxu0 %v1611
  %1896 = vmatpush1.msra.mxu0 %v1610
  %1897 = vmatprep.subr.mxu0 %v1615
  %1898 = vmatpush1.msra.mxu0 %v1614
  %1899 = vmatprep.subr.mxu0 %v1619
  %1900 = vmatpush1.msra.mxu0 %v1618
  %1901 = vmatprep.subr.mxu0 %v1623
  %1902 = vmatpush1.msra.mxu0 %v1622
  %1903 = vmatprep.subr.mxu0 %v1627
  %1904 = vmatpush1.msra.mxu0 %v1626
  %1905 = vmatprep.subr.mxu0 %v1631
  %1906 = vmatpush1.msra.mxu0 %v1630
  %1907 = vmatprep.subr.mxu0 %v1635
  %1908 = vmatpush1.msra.mxu0 %v1634
  %1909 = vmatprep.subr.mxu0 %v1639
  %1910 = vmatpush1.msra.mxu0 %v1638
  %1911 = vmatprep.subr.mxu0 %v1643
  %1912 = vmatpush1.msra.mxu0 %v1642
  %1913 = vmatprep.subr.mxu0 %v1647
  %1914 = vmatpush1.msra.mxu0 %v1646
  %1915 = vmatprep.subr.mxu0 %v1651
  %1916 = vmatpush1.msra.mxu0 %v1650
  %1917 = vmatprep.subr.mxu0 %v1655
  %1918 = vmatpush1.msra.mxu0 %v1654
  %1919 = vmatprep.subr.mxu0 %v1659
  %1920 = vmatpush1.msra.mxu0 %v1658
  %1921 = vmatprep.subr.mxu0 %v1663
  %1922 = vmatpush1.msra.mxu0 %v1662
  %1923 = vmatprep.subr.mxu0 %v1667
  %1924 = vmatpush1.msra.mxu0 %v1666
  %1925 = vmatprep.subr.mxu0 %v1671
  %1926 = vmatpush1.msra.mxu0 %v1670
  %1927 = vmatprep.subr.mxu0 %v1675
  %1928 = vmatpush1.msra.mxu0 %v1674
  %1929 = vmatprep.subr.mxu0 %v1679
  %1930 = vmatpush1.msra.mxu0 %v1678
  %1931 = vmatprep.subr.mxu0 %v1683
  %1932 = vmatpush1.msra.mxu0 %v1682
  %1933 = vmatprep.subr.mxu0 %v1687
  %1934 = vmatpush1.msra.mxu0 %v1686
  %1935 = vmatprep.subr.mxu0 %v1691
  %1936 = vmatpush1.msra.mxu0 %v1690
  %1937 = vmatprep.subr.mxu0 %v1695
  %1938 = vmatpush1.msra.mxu0 %v1694
  %1939 = vmatprep.subr.mxu0 %v1699
  %1940 = vmatpush1.msra.mxu0 %v1698
  %1941 = vmatprep.subr.mxu0 %v1703
  %1942 = vmatpush1.msra.mxu0 %v1702
  %1943 = vmatprep.mubr.f32.mxu0 %v1728
  %1944 = vmatmul.mubr.f32.gmra.mrb[0].mxu0 %v1724
  %v1945 = vpop.f32.mrb[0].mxu0
  %v1946 = vadd.f32 %v170, %v1945
  %v1947 = vpop.f32.mrb[0].mxu0
  %v1948 = vadd.f32 %v170, %v1947
  %1949 = vdwg.mxu0
  %1950 = vmatprep.subr.mxu0 %v1707
  %1951 = vmatpush1.msra.mxu0 %v1706
  %1952 = vmatprep.subr.mxu0 %v1711
  %1953 = vmatpush1.msra.mxu0 %v1710
  %1954 = vmatprep.subr.mxu0 %v1715
  %1955 = vmatpush1.msra.mxu0 %v1714
  %1956 = vmatprep.subr.mxu0 %v1719
  %1957 = vmatpush1.msra.mxu0 %v1718
  %1958 = vmatprep.subr.mxu0 0.0
  %1959 = vmatpush1.msra.mxu0 0.0
  %1960 = vmatprep.subr.mxu0 0.0
  %1961 = vmatpush1.msra.mxu0 0.0
  %1962 = vmatprep.subr.mxu0 0.0
  %1963 = vmatpush1.msra.mxu0 0.0
  %1964 = vmatprep.subr.mxu0 0.0
  %1965 = vmatpush1.msra.mxu0 0.0
  %1966 = vmatprep.subr.mxu0 0.0
  %1967 = vmatpush1.msra.mxu0 0.0
  %1968 = vmatprep.subr.mxu0 0.0
  %1969 = vmatpush1.msra.mxu0 0.0
  %1970 = vmatprep.subr.mxu0 0.0
  %1971 = vmatpush1.msra.mxu0 0.0
  %1972 = vmatprep.subr.mxu0 0.0
  %1973 = vmatpush1.msra.mxu0 0.0
  %1974 = vmatprep.subr.mxu0 0.0
  %1975 = vmatpush1.msra.mxu0 0.0
  %1976 = vmatprep.subr.mxu0 0.0
  %1977 = vmatpush1.msra.mxu0 0.0
  %1978 = vmatprep.subr.mxu0 0.0
  %1979 = vmatpush1.msra.mxu0 0.0
  %1980 = vmatprep.subr.mxu0 0.0
  %1981 = vmatpush1.msra.mxu0 0.0
  %1982 = vmatprep.subr.mxu0 0.0
  %1983 = vmatpush1.msra.mxu0 0.0
  %1984 = vmatprep.subr.mxu0 0.0
  %1985 = vmatpush1.msra.mxu0 0.0
  %1986 = vmatprep.subr.mxu0 0.0
  %1987 = vmatpush1.msra.mxu0 0.0
  %1988 = vmatprep.subr.mxu0 0.0
  %1989 = vmatpush1.msra.mxu0 0.0
  %1990 = vmatprep.subr.mxu0 0.0
  %1991 = vmatpush1.msra.mxu0 0.0
  %1992 = vmatprep.subr.mxu0 0.0
  %1993 = vmatpush1.msra.mxu0 0.0
  %1994 = vmatprep.subr.mxu0 0.0
  %1995 = vmatpush1.msra.mxu0 0.0
  %1996 = vmatprep.subr.mxu0 0.0
  %1997 = vmatpush1.msra.mxu0 0.0
  %1998 = vmatprep.subr.mxu0 0.0
  %1999 = vmatpush1.msra.mxu0 0.0
  %2000 = vmatprep.subr.mxu0 0.0
  %2001 = vmatpush1.msra.mxu0 0.0
  %2002 = vmatprep.subr.mxu0 0.0
  %2003 = vmatpush1.msra.mxu0 0.0
  %2004 = vmatprep.subr.mxu0 0.0
  %2005 = vmatpush1.msra.mxu0 0.0
  %2006 = vmatprep.subr.mxu0 0.0
  %2007 = vmatpush1.msra.mxu0 0.0
  %2008 = vmatprep.subr.mxu0 0.0
  %2009 = vmatpush1.msra.mxu0 0.0
  %2010 = vmatprep.subr.mxu0 0.0
  %2011 = vmatpush1.msra.mxu0 0.0
  %2012 = vmatprep.subr.mxu0 0.0
  %2013 = vmatpush1.msra.mxu0 0.0
  %2014 = vmatprep.mubr.f32.mxu0 0.0
  %2015 = vmatmul.mubr.f32.gmra.mrb[0].mxu0 %v1735
  %v2016 = vpop.f32.mrb[0].mxu0
  %v2017 = vadd.f32 %v1946, %v2016
  %v2018 = vpop.f32.mrb[0].mxu0
  %v2019 = vadd.f32 %v1948, %v2018
  %2020 = vdwg.mxu0
  %v2021 = vand.u32 2147483647, %v1875
  %v2022 = vand.u32 2147483647, %v1877
  %v2023 = vand.u32 2147483647, %v2017
  %v2024 = vand.u32 2147483647, %v2019
  %v2025 = vsub.f32 0.0, %v2021
  %v2026 = vsub.f32 0.0, %v2022
  %v2027 = vsub.f32 0.0, %v2023
  %v2028 = vsub.f32 0.0, %v2024
  %v2029 = vmul.f32 %v2025, 1.442695
  %v2030 = vpow.pop %v2029
  %v2031 = vmul.f32 %v2026, 1.442695
  %v2032 = vpow.pop %v2031
  %v2033 = vmul.f32 %v2027, 1.442695
  %v2034 = vpow.pop %v2033
  %v2035 = vmul.f32 %v2028, 1.442695
  %v2036 = vpow.pop %v2035
  %v2037 = vadd.f32 %v2030, 1.0
  %v2038 = vadd.f32 %v2032, 1.0
  %v2039 = vadd.f32 %v2034, 1.0
  %v2040 = vadd.f32 %v2036, 1.0
  %v2041 = vrcp.pop %v2037
  %v2042 = vrcp.pop %v2038
  %v2043 = vrcp.pop %v2039
  %v2044 = vrcp.pop %v2040
  %vm2045 = vcmp.ge.f32.partialorder %v1875, 0.0
  %vm2046 = vcmp.ge.f32.partialorder %v1877, 0.0
  %vm2047 = vcmp.ge.f32.partialorder %v2017, 0.0
  %vm2048 = vcmp.ge.f32.partialorder %v2019, 0.0
  %v2049 = vmul.f32 %v2030, %v2041
  %v2050 = vmul.f32 %v2032, %v2042
  %v2051 = vmul.f32 %v2034, %v2043
  %v2052 = vmul.f32 %v2036, %v2044
  %v2053 = vsel %vm2045, %v2041, %v2049
  %v2054 = vsel %vm2046, %v2042, %v2050
  %v2055 = vsel %vm2047, %v2043, %v2051
  %v2056 = vsel %vm2048, %v2044, %v2052
  %v2061 = vcombine.low %v2053, %v2054
  %v2062 = vcombine.low %v2055, %v2056
  %v2064 = vunpack.c.l.s4 1966171168
  %v2065 = vunpack.c.0.s8 %v2064
  %v2066 = vlaneseq
  %v2067 = vshrl.u32 %v2066, 7
  %v2068 = vsub.s32 %v2065, %v2067
  %v2069 = vrot.slane %v2061, %v2068
  %v2071 = vunpack.c.l.s4 1966171168
  %v2072 = vunpack.c.0.s8 %v2071
  %v2073 = vlaneseq
  %v2074 = vshrl.u32 %v2073, 7
  %v2075 = vsub.s32 %v2072, %v2074
  %v2076 = vrot.slane %v2062, %v2075
  %v2077 = vcombine.low %v2069, %v2076
  %v2079 = vunpack.c.l.s4 1966171168
  %v2080 = vunpack.c.0.s8 %v2079
  %v2081 = vlaneseq
  %v2082 = vshrl.u32 %v2081, 7
  %v2083 = vsub.s32 %v2080, %v2082
  %v2084 = vrot.slane %v2077, %v2083
  %s2086 = scalar_lea.vmem %s3, 12
  %2087 = vst.msk [vmem:[%s2086] sm:$0xf] %vm541, %v2084
  // Predicated region
  $region14: #{vae_forward.13} parent=0 // pred_check
    _
  $region15: #{vae_forward.13} parent=0 // pred_check_branch
    %2089 = sbr.rel (0) target = $region17
  $region16: #{vae_forward.13} parent=0 // pred_region
    _
  $region17: #{vae_forward.13} parent=0 // pred_fallthru
    _
  // Predicated region
  $region18: #{vae_forward.13} parent=0 // pred_check
    _
  $region19: #{vae_forward.13} parent=0 // pred_check_branch
    %2091 = sbr.rel (0) target = $region21
  $region20: #{vae_forward.13} parent=0 // pred_region
    _
  $region21: #{vae_forward.13} parent=0 // pred_fallthru
    _

</llo_original>
